<compile_context>
chip_gen: v7x
topology: tpu7x:2x2x1
jax: 0.10.0
libtpu: 0.0.40
codegen_flags: <defaults>
</compile_context>

<pallas_src>
import functools

import jax
import jax.numpy as jnp
from jax.experimental import pallas as pl
from jax.experimental.pallas import tpu as pltpu

_LANE = 128


def _csp_res_unit_kernel(x_ref, w1_ref, b1_ref, w2_ref, b2_ref, o_ref,
                         y1cat_ref, acc_ref, cur_ref, *, n_reps, add_residual):
    """One batch element per grid step.

    x_ref   : (1, H, W, Cinp)        input image, channel-padded, compute dtype
    w1_ref  : (Cinp, Cinp)           1x1 conv weights (BN scale folded), (K, N)
    b1_ref  : (1, Cinp)              fused BN bias for the 1x1 ConvBlock (f32)
    w2_ref  : (3, 3*Cinp, Coutp)     3x3 conv weights, kw folded into K
    b2_ref  : (1, Coutp)             fused BN bias for the 3x3 ConvBlock (f32)
    o_ref   : (1, H, W, Coutp)
    y1cat_ref: (H+2, W, 3*Cinp)      kw-shift concat scratch (compute dtype)
    acc_ref : (H*W, Coutp) f32       3x3 conv accumulator
    cur_ref : (H*W, Cinp)            activation carry between repetitions
    """
    _, H, W, Cinp = x_ref.shape
    Coutp = o_ref.shape[3]
    HW = H * W
    cdtype = x_ref.dtype

    def silu(v):
        # exp goes to the EUP; TODO(synk): pl.reciprocal(..., approx=True)
        # would also move the reciprocal to the EUP at ~1e-3 accuracy cost.
        return v * (1.0 / (1.0 + jnp.exp(-v)))

    # Halo rows (0 and H+1) provide the zero spatial padding of the 3x3 conv;
    # interior rows are fully overwritten every repetition.
    y1cat_ref[...] = jnp.zeros_like(y1cat_ref)

    z = None
    for r in range(n_reps):                       # shared weights: same refs
        inp = x_ref[0].reshape(HW, Cinp) if r == 0 else cur_ref[...]

        # ---- ConvBlock 1: 1x1 conv (one lane-dense matmul) + bias + SiLU ----
        y1 = jnp.dot(inp, w1_ref[...], preferred_element_type=jnp.float32)
        y1 = silu(y1 + b1_ref[...])
        y1 = y1.astype(cdtype).reshape(H, W, Cinp)

        # ---- scatter into kw-shift-concat layout (H+2, W, 3*Cinp) -----------
        # Channel block j holds y1 shifted by kw=j with zero W-padding, so the
        # 3x3 conv below is 3 contiguous matmuls with K = 3*Cinp.  All stores
        # are full-W and 128-lane aligned.
        zero_col = jnp.zeros((H, 1, Cinp), cdtype)
        y1_left = jnp.concatenate([zero_col, y1[:, :W - 1, :]], axis=1)
        y1_right = jnp.concatenate([y1[:, 1:, :], zero_col], axis=1)
        y1cat_ref[1:H + 1, :, 0:Cinp] = y1_left
        y1cat_ref[1:H + 1, :, Cinp:2 * Cinp] = y1
        y1cat_ref[1:H + 1, :, 2 * Cinp:3 * Cinp] = y1_right

        # ---- ConvBlock 2: 3x3 conv as 3 wide MXU matmuls + bias + SiLU ------
        acc_ref[...] = jnp.zeros_like(acc_ref)
        for kh in range(3):
            acc_ref[...] += jnp.dot(
                y1cat_ref[kh:kh + H].reshape(HW, 3 * Cinp), w2_ref[kh],
                preferred_element_type=jnp.float32)
        z = silu(acc_ref[...] + b2_ref[...])

        if r < n_reps - 1:                        # carry to next repetition
            cur_ref[...] = z.astype(cdtype)

    if add_residual:                              # shortcut (cin == cout)
        z = z + x_ref[0].reshape(HW, Cinp).astype(jnp.float32)

    o_ref[...] = z.reshape(1, H, W, Coutp).astype(o_ref.dtype)


def csp_res_unit_forward(x_nchw, w1, g1, b1, m1, v1, w2, g2, b2, m2, v2, *,
                         n, eps=1e-5, compute_dtype=jnp.float32):
    """CSPResUnit forward.  NCHW in / NCHW out (PyTorch convention).

    w1: (cin, cin, 1, 1) OIHW,  w2: (cout, cin, 3, 3) OIHW,
    g*/b*/m*/v*: BatchNorm2d gamma/beta/running_mean/running_var.
    """
    N, cin, H, W = x_nchw.shape
    cout = w2.shape[0]
    assert w1.shape == (cin, cin, 1, 1)
    assert w2.shape[1] == cin
    assert n >= 1
    assert n == 1 or cin == cout, "n > 1 requires cin == cout (shared res block)"
    shortcut = (cin == cout)

    Cinp = ((cin + _LANE - 1) // _LANE) * _LANE
    Coutp = ((cout + _LANE - 1) // _LANE) * _LANE

    # --- fuse BatchNorm (inference): y = conv(x, w*scale) + bias ------------
    s1 = g1 / jnp.sqrt(v1 + eps)
    s2 = g2 / jnp.sqrt(v2 + eps)
    bb1 = b1 - m1 * s1
    bb2 = b2 - m2 * s2

    # 1x1 weights -> (K=in, N=out), BN scale folded, channel-padded.
    w1m = jnp.transpose(w1[:, :, 0, 0] * s1[:, None], (1, 0))      # (in, out)
    w1m = jnp.pad(w1m, ((0, Cinp - cin), (0, Cinp - cin))).astype(compute_dtype)
    b1v = jnp.pad(bb1, (0, Cinp - cin)).reshape(1, Cinp).astype(jnp.float32)

    # 3x3 weights -> (kh, kw*Cinp + cin, cout), BN scale folded, padded.
    w2s = w2 * s2[:, None, None, None]                             # OIHW
    w2t = jnp.transpose(w2s, (2, 3, 1, 0))                         # (kh,kw,in,out)
    w2t = jnp.pad(w2t, ((0, 0), (0, 0), (0, Cinp - cin), (0, Coutp - cout)))
    w2cat = w2t.reshape(3, 3 * Cinp, Coutp).astype(compute_dtype)
    b2v = jnp.pad(bb2, (0, Coutp - cout)).reshape(1, Coutp).astype(jnp.float32)

    # activations: NCHW -> NHWC, zero-pad channels to a lane-dense width.
    x_nhwc = jnp.transpose(x_nchw, (0, 2, 3, 1))
    x_p = jnp.pad(x_nhwc, ((0, 0), (0, 0), (0, 0), (0, Cinp - cin)))
    x_p = x_p.astype(compute_dtype)

    kernel = functools.partial(_csp_res_unit_kernel,
                               n_reps=n, add_residual=shortcut)

    out_nhwc = pl.pallas_call(
        kernel,
        out_shape=jax.ShapeDtypeStruct((N, H, W, Coutp), jnp.float32),
        grid_spec=pltpu.PrefetchScalarGridSpec(
            num_scalar_prefetch=0,
            grid=(N,),
            in_specs=[
                pl.BlockSpec((1, H, W, Cinp), lambda b: (b, 0, 0, 0)),
                pl.BlockSpec((Cinp, Cinp), lambda b: (0, 0)),
                pl.BlockSpec((1, Cinp), lambda b: (0, 0)),
                pl.BlockSpec((3, 3 * Cinp, Coutp), lambda b: (0, 0, 0)),
                pl.BlockSpec((1, Coutp), lambda b: (0, 0)),
            ],
            out_specs=pl.BlockSpec((1, H, W, Coutp), lambda b: (b, 0, 0, 0)),
            scratch_shapes=[
                pltpu.VMEM((H + 2, W, 3 * Cinp), compute_dtype),   # kw-concat
                pltpu.VMEM((H * W, Coutp), jnp.float32),           # 3x3 acc
                pltpu.VMEM((H * W, Cinp), compute_dtype),          # rep carry
            ],
        ),
        compiler_params=pltpu.CompilerParams(
            dimension_semantics=("parallel",)),
    )(x_p, w1m, b1v, w2cat, b2v)

    out = out_nhwc[..., :cout]                               # drop lane padding
    return jnp.transpose(out, (0, 3, 1, 2)).astype(x_nchw.dtype)


def _reference(x, w1, g1, b1, m1, v1, w2, g2, b2, m2, v2, *, n, eps=1e-5):
    """Pure-JAX reference (matches the PyTorch module in inference mode)."""
    def convblock(h, w, g, b, m, v, pad):
        y = jax.lax.conv_general_dilated(
            h, w, window_strides=(1, 1), padding=((pad, pad), (pad, pad)),
            dimension_numbers=("NCHW", "OIHW", "NCHW"))
        s = (g / jnp.sqrt(v + eps)).reshape(1, -1, 1, 1)
        bb = (b - m * g / jnp.sqrt(v + eps)).reshape(1, -1, 1, 1)
        y = y * s + bb
        return y * jax.nn.sigmoid(y)

    h = x
    for _ in range(n):                                       # shared weights
        h = convblock(h, w1, g1, b1, m1, v1, 0)
        h = convblock(h, w2, g2, b2, m2, v2, 1)
    return x + h if x.shape[1] == w2.shape[0] else h


def _make_params(key, cin, cout):
    ks = jax.random.split(key, 10)
    w1 = jax.random.normal(ks[0], (cin, cin, 1, 1), jnp.float32) / jnp.sqrt(cin)
    w2 = jax.random.normal(ks[1], (cout, cin, 3, 3), jnp.float32) / jnp.sqrt(9.0 * cin)
    g1 = 1.0 + 0.1 * jax.random.normal(ks[2], (cin,), jnp.float32)
    b1 = 0.1 * jax.random.normal(ks[3], (cin,), jnp.float32)
    m1 = 0.05 * jax.random.normal(ks[4], (cin,), jnp.float32)
    v1 = 1.0 + 0.1 * jax.random.uniform(ks[5], (cin,), jnp.float32)
    g2 = 1.0 + 0.1 * jax.random.normal(ks[6], (cout,), jnp.float32)
    b2 = 0.1 * jax.random.normal(ks[7], (cout,), jnp.float32)
    m2 = 0.05 * jax.random.normal(ks[8], (cout,), jnp.float32)
    v2 = 1.0 + 0.1 * jax.random.uniform(ks[9], (cout,), jnp.float32)
    return (w1, g1, b1, m1, v1, w2, g2, b2, m2, v2)


if __name__ == "__main__":
    key = jax.random.PRNGKey(0)
    kx, kp1, kp2 = jax.random.split(key, 3)

    # ---- Config 1: cin == cout (shortcut active), n = 2 shared-weight reps --
    N, cin, cout, H, W, n = 2, 4, 4, 16, 16, 2
    x = jax.random.normal(kx, (N, cin, H, W), dtype=jnp.float32)
    params = _make_params(kp1, cin, cout)

    ref = _reference(x, *params, n=n)

    out = csp_res_unit_forward(x, *params, n=n, compute_dtype=jnp.float32)
    out = jax.block_until_ready(out)
    assert out.shape == (N, cout, H, W), out.shape
    err = float(jnp.max(jnp.abs(out - ref)))
    assert jnp.allclose(out, ref, atol=1e-3, rtol=1e-3), err

    # bf16 MXU-input fast path (v6e/v7x), f32 accumulation -> looser tolerance.
    out_bf16 = csp_res_unit_forward(x, *params, n=n, compute_dtype=jnp.bfloat16)
    out_bf16 = jax.block_until_ready(out_bf16)
    err_bf16 = float(jnp.max(jnp.abs(out_bf16 - ref)))
    assert jnp.allclose(out_bf16, ref, atol=1e-1, rtol=1e-1), err_bf16

    # ---- Config 2: cin != cout (no shortcut), single repetition -------------
    cin2, cout2, n2 = 4, 8, 1
    params2 = _make_params(kp2, cin2, cout2)
    ref2 = _reference(x, *params2, n=n2)
    out2 = csp_res_unit_forward(x, *params2, n=n2, compute_dtype=jnp.float32)
    out2 = jax.block_until_ready(out2)
    assert out2.shape == (N, cout2, H, W), out2.shape
    err2 = float(jnp.max(jnp.abs(out2 - ref2)))
    assert jnp.allclose(out2, ref2, atol=1e-3, rtol=1e-3), err2

    print("KERNEL_OK")
</pallas_src>

<mosaic_0001>
module attributes {stable_mosaic.version = 11 : i64} {
  func.func @_csp_res_unit_kernel(%arg0: i32, %arg1: memref<1x16x16x128xf32, #tpu.memory_space<vmem>>, %arg2: memref<128x128xf32, #tpu.memory_space<vmem>>, %arg3: memref<1x128xf32, #tpu.memory_space<vmem>>, %arg4: memref<3x384x128xf32, #tpu.memory_space<vmem>>, %arg5: memref<1x128xf32, #tpu.memory_space<vmem>>, %arg6: memref<1x16x16x128xf32, #tpu.memory_space<vmem>>, %arg7: memref<18x16x384xf32, #tpu.memory_space<vmem>>, %arg8: memref<256x128xf32, #tpu.memory_space<vmem>>, %arg9: memref<256x128xf32, #tpu.memory_space<vmem>>) attributes {dimension_semantics = [#tpu.dimension_semantics<parallel>], iteration_bounds = array<i64: 2>, scalar_prefetch = 0 : i64, scratch_operands = 3 : i64, tpu.core_type = #tpu.core_type<tc>, window_params = [{transform_indices = @transform_0, window_bounds = array<i64: 1, 16, 16, 128>}, {pipeline_mode = #tpu.pipeline_mode<synchronous>, transform_indices = @transform_1, window_bounds = array<i64: 128, 128>}, {pipeline_mode = #tpu.pipeline_mode<synchronous>, transform_indices = @transform_2, window_bounds = array<i64: 1, 128>}, {pipeline_mode = #tpu.pipeline_mode<synchronous>, transform_indices = @transform_3, window_bounds = array<i64: 3, 384, 128>}, {pipeline_mode = #tpu.pipeline_mode<synchronous>, transform_indices = @transform_4, window_bounds = array<i64: 1, 128>}, {transform_indices = @transform_5, window_bounds = array<i64: 1, 16, 16, 128>}]} {
    %cst = arith.constant 0.000000e+00 : f32
    %0 = vector.broadcast %cst : f32 to vector<18x16x384xf32>
    %c0 = arith.constant 0 : index
    %c0_0 = arith.constant 0 : index
    %c0_1 = arith.constant 0 : index
    %1 = vector.load %arg7[%c0, %c0_0, %c0_1] : memref<18x16x384xf32, #tpu.memory_space<vmem>>, vector<18x16x384xf32>
    tpu.vector_store %arg7[%c0, %c0_0, %c0_1], %0 {strides = array<i32>} : memref<18x16x384xf32, #tpu.memory_space<vmem>>, vector<18x16x384xf32>,
    %c0_2 = arith.constant 0 : index
    %c0_3 = arith.constant 0 : index
    %c0_4 = arith.constant 0 : index
    %c0_5 = arith.constant 0 : index
    %2 = vector.load %arg1[%c0_2, %c0_3, %c0_4, %c0_5] : memref<1x16x16x128xf32, #tpu.memory_space<vmem>>, vector<1x16x16x128xf32>
    %3 = vector.shape_cast %2 : vector<1x16x16x128xf32> to vector<16x16x128xf32>
    %4 = vector.shape_cast %3 : vector<16x16x128xf32> to vector<256x128xf32>
    %c0_6 = arith.constant 0 : index
    %c0_7 = arith.constant 0 : index
    %5 = vector.load %arg2[%c0_6, %c0_7] : memref<128x128xf32, #tpu.memory_space<vmem>>, vector<128x128xf32>
    %cst_8 = arith.constant dense<0.000000e+00> : vector<256x128xf32>
    %6 = tpu.matmul %4, %5, %cst_8 {dimension_numbers = #tpu.dot_dimension_numbers<[1], [0], [0], [1], [0, 0, 1, 1], [], []>} : vector<256x128xf32>, vector<128x128xf32>, vector<256x128xf32> -> vector<256x128xf32>
    %c0_9 = arith.constant 0 : index
    %c0_10 = arith.constant 0 : index
    %7 = vector.load %arg3[%c0_9, %c0_10] : memref<1x128xf32, #tpu.memory_space<vmem>>, vector<1x128xf32>
    %8 = vector.broadcast %7 : vector<1x128xf32> to vector<256x128xf32>
    %9 = arith.addf %6, %8 : vector<256x128xf32>
    %cst_11 = arith.constant 0.000000e+00 : f32
    %10 = vector.broadcast %cst_11 : f32 to vector<256x128xf32>
    %11 = arith.subf %10, %9 : vector<256x128xf32>
    %12 = math.exp %11 : vector<256x128xf32>
    %cst_12 = arith.constant 1.000000e+00 : f32
    %13 = vector.broadcast %cst_12 : f32 to vector<256x128xf32>
    %14 = arith.addf %13, %12 : vector<256x128xf32>
    %cst_13 = arith.constant 1.000000e+00 : f32
    %15 = vector.broadcast %cst_13 : f32 to vector<256x128xf32>
    %16 = arith.divf %15, %14 : vector<256x128xf32>
    %17 = arith.mulf %9, %16 : vector<256x128xf32>
    %18 = vector.shape_cast %17 : vector<256x128xf32> to vector<16x16x128xf32>
    %cst_14 = arith.constant 0.000000e+00 : f32
    %19 = vector.broadcast %cst_14 : f32 to vector<16x1x128xf32>
    %20 = vector.extract_strided_slice %18 {offsets = [0, 0, 0], sizes = [16, 15, 128], strides = [1, 1, 1]} : vector<16x16x128xf32> to vector<16x15x128xf32>
    %21 = tpu.concatenate %19, %20 in 1 : vector<16x1x128xf32>, vector<16x15x128xf32> -> vector<16x16x128xf32>
    %22 = vector.extract_strided_slice %18 {offsets = [0, 1, 0], sizes = [16, 15, 128], strides = [1, 1, 1]} : vector<16x16x128xf32> to vector<16x15x128xf32>
    %23 = tpu.concatenate %22, %19 in 1 : vector<16x15x128xf32>, vector<16x1x128xf32> -> vector<16x16x128xf32>
    %c1 = arith.constant 1 : index
    %c0_15 = arith.constant 0 : index
    %c0_16 = arith.constant 0 : index
    %24 = vector.load %arg7[%c1, %c0_15, %c0_16] : memref<18x16x384xf32, #tpu.memory_space<vmem>>, vector<16x16x128xf32>
    tpu.vector_store %arg7[%c1, %c0_15, %c0_16], %21 {strides = array<i32>} : memref<18x16x384xf32, #tpu.memory_space<vmem>>, vector<16x16x128xf32>,
    %c1_17 = arith.constant 1 : index
    %c0_18 = arith.constant 0 : index
    %c128 = arith.constant 128 : index
    %25 = vector.load %arg7[%c1_17, %c0_18, %c128] : memref<18x16x384xf32, #tpu.memory_space<vmem>>, vector<16x16x128xf32>
    tpu.vector_store %arg7[%c1_17, %c0_18, %c128], %18 {strides = array<i32>} : memref<18x16x384xf32, #tpu.memory_space<vmem>>, vector<16x16x128xf32>,
    %c1_19 = arith.constant 1 : index
    %c0_20 = arith.constant 0 : index
    %c256 = arith.constant 256 : index
    %26 = vector.load %arg7[%c1_19, %c0_20, %c256] : memref<18x16x384xf32, #tpu.memory_space<vmem>>, vector<16x16x128xf32>
    tpu.vector_store %arg7[%c1_19, %c0_20, %c256], %23 {strides = array<i32>} : memref<18x16x384xf32, #tpu.memory_space<vmem>>, vector<16x16x128xf32>,
    %cst_21 = arith.constant 0.000000e+00 : f32
    %27 = vector.broadcast %cst_21 : f32 to vector<256x128xf32>
    %c0_22 = arith.constant 0 : index
    %c0_23 = arith.constant 0 : index
    %28 = vector.load %arg8[%c0_22, %c0_23] : memref<256x128xf32, #tpu.memory_space<vmem>>, vector<256x128xf32>
    tpu.vector_store %arg8[%c0_22, %c0_23], %27 {strides = array<i32>} : memref<256x128xf32, #tpu.memory_space<vmem>>, vector<256x128xf32>,
    %c0_24 = arith.constant 0 : index
    %c0_25 = arith.constant 0 : index
    %29 = vector.load %arg8[%c0_24, %c0_25] : memref<256x128xf32, #tpu.memory_space<vmem>>, vector<256x128xf32>
    %c0_26 = arith.constant 0 : index
    %c0_27 = arith.constant 0 : index
    %c0_28 = arith.constant 0 : index
    %30 = vector.load %arg7[%c0_26, %c0_27, %c0_28] : memref<18x16x384xf32, #tpu.memory_space<vmem>>, vector<16x16x384xf32>
    %31 = vector.shape_cast %30 : vector<16x16x384xf32> to vector<256x384xf32>
    %c0_29 = arith.constant 0 : index
    %c0_30 = arith.constant 0 : index
    %c0_31 = arith.constant 0 : index
    %32 = vector.load %arg4[%c0_29, %c0_30, %c0_31] : memref<3x384x128xf32, #tpu.memory_space<vmem>>, vector<1x384x128xf32>
    %33 = vector.shape_cast %32 : vector<1x384x128xf32> to vector<384x128xf32>
    %cst_32 = arith.constant dense<0.000000e+00> : vector<256x128xf32>
    %34 = tpu.matmul %31, %33, %cst_32 {dimension_numbers = #tpu.dot_dimension_numbers<[1], [0], [0], [1], [0, 0, 1, 1], [], []>} : vector<256x384xf32>, vector<384x128xf32>, vector<256x128xf32> -> vector<256x128xf32>
    %35 = arith.addf %29, %34 : vector<256x128xf32>
    %c0_33 = arith.constant 0 : index
    %c0_34 = arith.constant 0 : index
    %36 = vector.load %arg8[%c0_33, %c0_34] : memref<256x128xf32, #tpu.memory_space<vmem>>, vector<256x128xf32>
    tpu.vector_store %arg8[%c0_33, %c0_34], %35 {strides = array<i32>} : memref<256x128xf32, #tpu.memory_space<vmem>>, vector<256x128xf32>,
    %c0_35 = arith.constant 0 : index
    %c0_36 = arith.constant 0 : index
    %37 = vector.load %arg8[%c0_35, %c0_36] : memref<256x128xf32, #tpu.memory_space<vmem>>, vector<256x128xf32>
    %c1_37 = arith.constant 1 : index
    %c0_38 = arith.constant 0 : index
    %c0_39 = arith.constant 0 : index
    %38 = vector.load %arg7[%c1_37, %c0_38, %c0_39] : memref<18x16x384xf32, #tpu.memory_space<vmem>>, vector<16x16x384xf32>
    %39 = vector.shape_cast %38 : vector<16x16x384xf32> to vector<256x384xf32>
    %c1_40 = arith.constant 1 : index
    %c0_41 = arith.constant 0 : index
    %c0_42 = arith.constant 0 : index
    %40 = vector.load %arg4[%c1_40, %c0_41, %c0_42] : memref<3x384x128xf32, #tpu.memory_space<vmem>>, vector<1x384x128xf32>
    %41 = vector.shape_cast %40 : vector<1x384x128xf32> to vector<384x128xf32>
    %cst_43 = arith.constant dense<0.000000e+00> : vector<256x128xf32>
    %42 = tpu.matmul %39, %41, %cst_43 {dimension_numbers = #tpu.dot_dimension_numbers<[1], [0], [0], [1], [0, 0, 1, 1], [], []>} : vector<256x384xf32>, vector<384x128xf32>, vector<256x128xf32> -> vector<256x128xf32>
    %43 = arith.addf %37, %42 : vector<256x128xf32>
    %c0_44 = arith.constant 0 : index
    %c0_45 = arith.constant 0 : index
    %44 = vector.load %arg8[%c0_44, %c0_45] : memref<256x128xf32, #tpu.memory_space<vmem>>, vector<256x128xf32>
    tpu.vector_store %arg8[%c0_44, %c0_45], %43 {strides = array<i32>} : memref<256x128xf32, #tpu.memory_space<vmem>>, vector<256x128xf32>,
    %c0_46 = arith.constant 0 : index
    %c0_47 = arith.constant 0 : index
    %45 = vector.load %arg8[%c0_46, %c0_47] : memref<256x128xf32, #tpu.memory_space<vmem>>, vector<256x128xf32>
    %c2 = arith.constant 2 : index
    %c0_48 = arith.constant 0 : index
    %c0_49 = arith.constant 0 : index
    %46 = vector.load %arg7[%c2, %c0_48, %c0_49] : memref<18x16x384xf32, #tpu.memory_space<vmem>>, vector<16x16x384xf32>
    %47 = vector.shape_cast %46 : vector<16x16x384xf32> to vector<256x384xf32>
    %c2_50 = arith.constant 2 : index
    %c0_51 = arith.constant 0 : index
    %c0_52 = arith.constant 0 : index
    %48 = vector.load %arg4[%c2_50, %c0_51, %c0_52] : memref<3x384x128xf32, #tpu.memory_space<vmem>>, vector<1x384x128xf32>
    %49 = vector.shape_cast %48 : vector<1x384x128xf32> to vector<384x128xf32>
    %cst_53 = arith.constant dense<0.000000e+00> : vector<256x128xf32>
    %50 = tpu.matmul %47, %49, %cst_53 {dimension_numbers = #tpu.dot_dimension_numbers<[1], [0], [0], [1], [0, 0, 1, 1], [], []>} : vector<256x384xf32>, vector<384x128xf32>, vector<256x128xf32> -> vector<256x128xf32>
    %51 = arith.addf %45, %50 : vector<256x128xf32>
    %c0_54 = arith.constant 0 : index
    %c0_55 = arith.constant 0 : index
    %52 = vector.load %arg8[%c0_54, %c0_55] : memref<256x128xf32, #tpu.memory_space<vmem>>, vector<256x128xf32>
    tpu.vector_store %arg8[%c0_54, %c0_55], %51 {strides = array<i32>} : memref<256x128xf32, #tpu.memory_space<vmem>>, vector<256x128xf32>,
    %c0_56 = arith.constant 0 : index
    %c0_57 = arith.constant 0 : index
    %53 = vector.load %arg8[%c0_56, %c0_57] : memref<256x128xf32, #tpu.memory_space<vmem>>, vector<256x128xf32>
    %c0_58 = arith.constant 0 : index
    %c0_59 = arith.constant 0 : index
    %54 = vector.load %arg5[%c0_58, %c0_59] : memref<1x128xf32, #tpu.memory_space<vmem>>, vector<1x128xf32>
    %55 = vector.broadcast %54 : vector<1x128xf32> to vector<256x128xf32>
    %56 = arith.addf %53, %55 : vector<256x128xf32>
    %cst_60 = arith.constant 0.000000e+00 : f32
    %57 = vector.broadcast %cst_60 : f32 to vector<256x128xf32>
    %58 = arith.subf %57, %56 : vector<256x128xf32>
    %59 = math.exp %58 : vector<256x128xf32>
    %cst_61 = arith.constant 1.000000e+00 : f32
    %60 = vector.broadcast %cst_61 : f32 to vector<256x128xf32>
    %61 = arith.addf %60, %59 : vector<256x128xf32>
    %cst_62 = arith.constant 1.000000e+00 : f32
    %62 = vector.broadcast %cst_62 : f32 to vector<256x128xf32>
    %63 = arith.divf %62, %61 : vector<256x128xf32>
    %64 = arith.mulf %56, %63 : vector<256x128xf32>
    %c0_63 = arith.constant 0 : index
    %c0_64 = arith.constant 0 : index
    %65 = vector.load %arg9[%c0_63, %c0_64] : memref<256x128xf32, #tpu.memory_space<vmem>>, vector<256x128xf32>
    tpu.vector_store %arg9[%c0_63, %c0_64], %64 {strides = array<i32>} : memref<256x128xf32, #tpu.memory_space<vmem>>, vector<256x128xf32>,
    %c0_65 = arith.constant 0 : index
    %c0_66 = arith.constant 0 : index
    %66 = vector.load %arg9[%c0_65, %c0_66] : memref<256x128xf32, #tpu.memory_space<vmem>>, vector<256x128xf32>
    %c0_67 = arith.constant 0 : index
    %c0_68 = arith.constant 0 : index
    %67 = vector.load %arg2[%c0_67, %c0_68] : memref<128x128xf32, #tpu.memory_space<vmem>>, vector<128x128xf32>
    %cst_69 = arith.constant dense<0.000000e+00> : vector<256x128xf32>
    %68 = tpu.matmul %66, %67, %cst_69 {dimension_numbers = #tpu.dot_dimension_numbers<[1], [0], [0], [1], [0, 0, 1, 1], [], []>} : vector<256x128xf32>, vector<128x128xf32>, vector<256x128xf32> -> vector<256x128xf32>
    %c0_70 = arith.constant 0 : index
    %c0_71 = arith.constant 0 : index
    %69 = vector.load %arg3[%c0_70, %c0_71] : memref<1x128xf32, #tpu.memory_space<vmem>>, vector<1x128xf32>
    %70 = vector.broadcast %69 : vector<1x128xf32> to vector<256x128xf32>
    %71 = arith.addf %68, %70 : vector<256x128xf32>
    %cst_72 = arith.constant 0.000000e+00 : f32
    %72 = vector.broadcast %cst_72 : f32 to vector<256x128xf32>
    %73 = arith.subf %72, %71 : vector<256x128xf32>
    %74 = math.exp %73 : vector<256x128xf32>
    %cst_73 = arith.constant 1.000000e+00 : f32
    %75 = vector.broadcast %cst_73 : f32 to vector<256x128xf32>
    %76 = arith.addf %75, %74 : vector<256x128xf32>
    %cst_74 = arith.constant 1.000000e+00 : f32
    %77 = vector.broadcast %cst_74 : f32 to vector<256x128xf32>
    %78 = arith.divf %77, %76 : vector<256x128xf32>
    %79 = arith.mulf %71, %78 : vector<256x128xf32>
    %80 = vector.shape_cast %79 : vector<256x128xf32> to vector<16x16x128xf32>
    %cst_75 = arith.constant 0.000000e+00 : f32
    %81 = vector.broadcast %cst_75 : f32 to vector<16x1x128xf32>
    %82 = vector.extract_strided_slice %80 {offsets = [0, 0, 0], sizes = [16, 15, 128], strides = [1, 1, 1]} : vector<16x16x128xf32> to vector<16x15x128xf32>
    %83 = tpu.concatenate %81, %82 in 1 : vector<16x1x128xf32>, vector<16x15x128xf32> -> vector<16x16x128xf32>
    %84 = vector.extract_strided_slice %80 {offsets = [0, 1, 0], sizes = [16, 15, 128], strides = [1, 1, 1]} : vector<16x16x128xf32> to vector<16x15x128xf32>
    %85 = tpu.concatenate %84, %81 in 1 : vector<16x15x128xf32>, vector<16x1x128xf32> -> vector<16x16x128xf32>
    %c1_76 = arith.constant 1 : index
    %c0_77 = arith.constant 0 : index
    %c0_78 = arith.constant 0 : index
    %86 = vector.load %arg7[%c1_76, %c0_77, %c0_78] : memref<18x16x384xf32, #tpu.memory_space<vmem>>, vector<16x16x128xf32>
    tpu.vector_store %arg7[%c1_76, %c0_77, %c0_78], %83 {strides = array<i32>} : memref<18x16x384xf32, #tpu.memory_space<vmem>>, vector<16x16x128xf32>,
    %c1_79 = arith.constant 1 : index
    %c0_80 = arith.constant 0 : index
    %c128_81 = arith.constant 128 : index
    %87 = vector.load %arg7[%c1_79, %c0_80, %c128_81] : memref<18x16x384xf32, #tpu.memory_space<vmem>>, vector<16x16x128xf32>
    tpu.vector_store %arg7[%c1_79, %c0_80, %c128_81], %80 {strides = array<i32>} : memref<18x16x384xf32, #tpu.memory_space<vmem>>, vector<16x16x128xf32>,
    %c1_82 = arith.constant 1 : index
    %c0_83 = arith.constant 0 : index
    %c256_84 = arith.constant 256 : index
    %88 = vector.load %arg7[%c1_82, %c0_83, %c256_84] : memref<18x16x384xf32, #tpu.memory_space<vmem>>, vector<16x16x128xf32>
    tpu.vector_store %arg7[%c1_82, %c0_83, %c256_84], %85 {strides = array<i32>} : memref<18x16x384xf32, #tpu.memory_space<vmem>>, vector<16x16x128xf32>,
    %cst_85 = arith.constant 0.000000e+00 : f32
    %89 = vector.broadcast %cst_85 : f32 to vector<256x128xf32>
    %c0_86 = arith.constant 0 : index
    %c0_87 = arith.constant 0 : index
    %90 = vector.load %arg8[%c0_86, %c0_87] : memref<256x128xf32, #tpu.memory_space<vmem>>, vector<256x128xf32>
    tpu.vector_store %arg8[%c0_86, %c0_87], %89 {strides = array<i32>} : memref<256x128xf32, #tpu.memory_space<vmem>>, vector<256x128xf32>,
    %c0_88 = arith.constant 0 : index
    %c0_89 = arith.constant 0 : index
    %91 = vector.load %arg8[%c0_88, %c0_89] : memref<256x128xf32, #tpu.memory_space<vmem>>, vector<256x128xf32>
    %c0_90 = arith.constant 0 : index
    %c0_91 = arith.constant 0 : index
    %c0_92 = arith.constant 0 : index
    %92 = vector.load %arg7[%c0_90, %c0_91, %c0_92] : memref<18x16x384xf32, #tpu.memory_space<vmem>>, vector<16x16x384xf32>
    %93 = vector.shape_cast %92 : vector<16x16x384xf32> to vector<256x384xf32>
    %c0_93 = arith.constant 0 : index
    %c0_94 = arith.constant 0 : index
    %c0_95 = arith.constant 0 : index
    %94 = vector.load %arg4[%c0_93, %c0_94, %c0_95] : memref<3x384x128xf32, #tpu.memory_space<vmem>>, vector<1x384x128xf32>
    %95 = vector.shape_cast %94 : vector<1x384x128xf32> to vector<384x128xf32>
    %cst_96 = arith.constant dense<0.000000e+00> : vector<256x128xf32>
    %96 = tpu.matmul %93, %95, %cst_96 {dimension_numbers = #tpu.dot_dimension_numbers<[1], [0], [0], [1], [0, 0, 1, 1], [], []>} : vector<256x384xf32>, vector<384x128xf32>, vector<256x128xf32> -> vector<256x128xf32>
    %97 = arith.addf %91, %96 : vector<256x128xf32>
    %c0_97 = arith.constant 0 : index
    %c0_98 = arith.constant 0 : index
    %98 = vector.load %arg8[%c0_97, %c0_98] : memref<256x128xf32, #tpu.memory_space<vmem>>, vector<256x128xf32>
    tpu.vector_store %arg8[%c0_97, %c0_98], %97 {strides = array<i32>} : memref<256x128xf32, #tpu.memory_space<vmem>>, vector<256x128xf32>,
    %c0_99 = arith.constant 0 : index
    %c0_100 = arith.constant 0 : index
    %99 = vector.load %arg8[%c0_99, %c0_100] : memref<256x128xf32, #tpu.memory_space<vmem>>, vector<256x128xf32>
    %c1_101 = arith.constant 1 : index
    %c0_102 = arith.constant 0 : index
    %c0_103 = arith.constant 0 : index
    %100 = vector.load %arg7[%c1_101, %c0_102, %c0_103] : memref<18x16x384xf32, #tpu.memory_space<vmem>>, vector<16x16x384xf32>
    %101 = vector.shape_cast %100 : vector<16x16x384xf32> to vector<256x384xf32>
    %c1_104 = arith.constant 1 : index
    %c0_105 = arith.constant 0 : index
    %c0_106 = arith.constant 0 : index
    %102 = vector.load %arg4[%c1_104, %c0_105, %c0_106] : memref<3x384x128xf32, #tpu.memory_space<vmem>>, vector<1x384x128xf32>
    %103 = vector.shape_cast %102 : vector<1x384x128xf32> to vector<384x128xf32>
    %cst_107 = arith.constant dense<0.000000e+00> : vector<256x128xf32>
    %104 = tpu.matmul %101, %103, %cst_107 {dimension_numbers = #tpu.dot_dimension_numbers<[1], [0], [0], [1], [0, 0, 1, 1], [], []>} : vector<256x384xf32>, vector<384x128xf32>, vector<256x128xf32> -> vector<256x128xf32>
    %105 = arith.addf %99, %104 : vector<256x128xf32>
    %c0_108 = arith.constant 0 : index
    %c0_109 = arith.constant 0 : index
    %106 = vector.load %arg8[%c0_108, %c0_109] : memref<256x128xf32, #tpu.memory_space<vmem>>, vector<256x128xf32>
    tpu.vector_store %arg8[%c0_108, %c0_109], %105 {strides = array<i32>} : memref<256x128xf32, #tpu.memory_space<vmem>>, vector<256x128xf32>,
    %c0_110 = arith.constant 0 : index
    %c0_111 = arith.constant 0 : index
    %107 = vector.load %arg8[%c0_110, %c0_111] : memref<256x128xf32, #tpu.memory_space<vmem>>, vector<256x128xf32>
    %c2_112 = arith.constant 2 : index
    %c0_113 = arith.constant 0 : index
    %c0_114 = arith.constant 0 : index
    %108 = vector.load %arg7[%c2_112, %c0_113, %c0_114] : memref<18x16x384xf32, #tpu.memory_space<vmem>>, vector<16x16x384xf32>
    %109 = vector.shape_cast %108 : vector<16x16x384xf32> to vector<256x384xf32>
    %c2_115 = arith.constant 2 : index
    %c0_116 = arith.constant 0 : index
    %c0_117 = arith.constant 0 : index
    %110 = vector.load %arg4[%c2_115, %c0_116, %c0_117] : memref<3x384x128xf32, #tpu.memory_space<vmem>>, vector<1x384x128xf32>
    %111 = vector.shape_cast %110 : vector<1x384x128xf32> to vector<384x128xf32>
    %cst_118 = arith.constant dense<0.000000e+00> : vector<256x128xf32>
    %112 = tpu.matmul %109, %111, %cst_118 {dimension_numbers = #tpu.dot_dimension_numbers<[1], [0], [0], [1], [0, 0, 1, 1], [], []>} : vector<256x384xf32>, vector<384x128xf32>, vector<256x128xf32> -> vector<256x128xf32>
    %113 = arith.addf %107, %112 : vector<256x128xf32>
    %c0_119 = arith.constant 0 : index
    %c0_120 = arith.constant 0 : index
    %114 = vector.load %arg8[%c0_119, %c0_120] : memref<256x128xf32, #tpu.memory_space<vmem>>, vector<256x128xf32>
    tpu.vector_store %arg8[%c0_119, %c0_120], %113 {strides = array<i32>} : memref<256x128xf32, #tpu.memory_space<vmem>>, vector<256x128xf32>,
    %c0_121 = arith.constant 0 : index
    %c0_122 = arith.constant 0 : index
    %115 = vector.load %arg8[%c0_121, %c0_122] : memref<256x128xf32, #tpu.memory_space<vmem>>, vector<256x128xf32>
    %c0_123 = arith.constant 0 : index
    %c0_124 = arith.constant 0 : index
    %116 = vector.load %arg5[%c0_123, %c0_124] : memref<1x128xf32, #tpu.memory_space<vmem>>, vector<1x128xf32>
    %117 = vector.broadcast %116 : vector<1x128xf32> to vector<256x128xf32>
    %118 = arith.addf %115, %117 : vector<256x128xf32>
    %cst_125 = arith.constant 0.000000e+00 : f32
    %119 = vector.broadcast %cst_125 : f32 to vector<256x128xf32>
    %120 = arith.subf %119, %118 : vector<256x128xf32>
    %121 = math.exp %120 : vector<256x128xf32>
    %cst_126 = arith.constant 1.000000e+00 : f32
    %122 = vector.broadcast %cst_126 : f32 to vector<256x128xf32>
    %123 = arith.addf %122, %121 : vector<256x128xf32>
    %cst_127 = arith.constant 1.000000e+00 : f32
    %124 = vector.broadcast %cst_127 : f32 to vector<256x128xf32>
    %125 = arith.divf %124, %123 : vector<256x128xf32>
    %126 = arith.mulf %118, %125 : vector<256x128xf32>
    %c0_128 = arith.constant 0 : index
    %c0_129 = arith.constant 0 : index
    %c0_130 = arith.constant 0 : index
    %c0_131 = arith.constant 0 : index
    %127 = vector.load %arg1[%c0_128, %c0_129, %c0_130, %c0_131] : memref<1x16x16x128xf32, #tpu.memory_space<vmem>>, vector<1x16x16x128xf32>
    %128 = vector.shape_cast %127 : vector<1x16x16x128xf32> to vector<16x16x128xf32>
    %129 = vector.shape_cast %128 : vector<16x16x128xf32> to vector<256x128xf32>
    %130 = arith.addf %126, %129 : vector<256x128xf32>
    %131 = vector.shape_cast %130 : vector<256x128xf32> to vector<1x16x16x128xf32>
    %c0_132 = arith.constant 0 : index
    %c0_133 = arith.constant 0 : index
    %c0_134 = arith.constant 0 : index
    %c0_135 = arith.constant 0 : index
    %132 = vector.load %arg6[%c0_132, %c0_133, %c0_134, %c0_135] : memref<1x16x16x128xf32, #tpu.memory_space<vmem>>, vector<1x16x16x128xf32>
    tpu.vector_store %arg6[%c0_132, %c0_133, %c0_134, %c0_135], %131 {strides = array<i32>} : memref<1x16x16x128xf32, #tpu.memory_space<vmem>>, vector<1x16x16x128xf32>,
    return
  }
  func.func @transform_0(%arg0: i32) -> (i32, i32, i32, i32) {
    %c0_i32 = arith.constant 0 : i32
    %c0_i32_0 = arith.constant 0 : i32
    %c0_i32_1 = arith.constant 0 : i32
    %c0_i32_2 = arith.constant 0 : i32
    return %arg0, %c0_i32, %c0_i32_0, %c0_i32_1 : i32, i32, i32, i32
  }
  func.func @transform_1(%arg0: i32) -> (i32, i32) {
    %c0_i32 = arith.constant 0 : i32
    %c0_i32_0 = arith.constant 0 : i32
    %c0_i32_1 = arith.constant 0 : i32
    return %c0_i32, %c0_i32_0 : i32, i32
  }
  func.func @transform_2(%arg0: i32) -> (i32, i32) {
    %c0_i32 = arith.constant 0 : i32
    %c0_i32_0 = arith.constant 0 : i32
    %c0_i32_1 = arith.constant 0 : i32
    return %c0_i32, %c0_i32_0 : i32, i32
  }
  func.func @transform_3(%arg0: i32) -> (i32, i32, i32) {
    %c0_i32 = arith.constant 0 : i32
    %c0_i32_0 = arith.constant 0 : i32
    %c0_i32_1 = arith.constant 0 : i32
    %c0_i32_2 = arith.constant 0 : i32
    return %c0_i32, %c0_i32_0, %c0_i32_1 : i32, i32, i32
  }
  func.func @transform_4(%arg0: i32) -> (i32, i32) {
    %c0_i32 = arith.constant 0 : i32
    %c0_i32_0 = arith.constant 0 : i32
    %c0_i32_1 = arith.constant 0 : i32
    return %c0_i32, %c0_i32_0 : i32, i32
  }
  func.func @transform_5(%arg0: i32) -> (i32, i32, i32, i32) {
    %c0_i32 = arith.constant 0 : i32
    %c0_i32_0 = arith.constant 0 : i32
    %c0_i32_1 = arith.constant 0 : i32
    %c0_i32_2 = arith.constant 0 : i32
    return %arg0, %c0_i32, %c0_i32_0, %c0_i32_1 : i32, i32, i32, i32
  }
}

</mosaic_0001>

<llo_original>
// kernel: tpu_custom_call.1
$region0: #{tpu_custom_call.1}
  #allocation0 [shape = 'u32[]', space=smem, size = 0x4, offset = 0x4, fixed_abs, tag = 'smem constant byte address 0x4 - core index']
  #allocation1 [shape = 'u32[144,128]{1,0:T(1,128)}', space=vmem, size = 0x12000, scoped, tag = 'internal scratch']
  #allocation2 [shape = 'f32[18,16,384]{2,1,0:T(8,128)}', space=vmem, size = 0x6c000, scoped, tag = 'scratch operand']
  #allocation3 [shape = 'f32[256,128]{1,0:T(8,128)}', space=vmem, size = 0x20000, scoped, tag = 'scratch operand']
  #allocation4 [shape = 'f32[256,128]{1,0:T(8,128)}', space=vmem, size = 0x20000, scoped, tag = 'scratch operand']
  %s0 = inlined_call_operand.hbm [shape: f32[2,16,16,128], index: 0, kind: input, shape index: {}]
  %s1 = inlined_call_operand.hbm [shape: f32[128,128], index: 1, kind: input, shape index: {}]
  %s2 = inlined_call_operand.vmem [shape: f32[1,128], index: 2, kind: input, shape index: {}]
  %s3 = inlined_call_operand.hbm [shape: f32[3,384,128], index: 3, kind: input, shape index: {}]
  %s4 = inlined_call_operand.vmem [shape: f32[1,128], index: 4, kind: input, shape index: {}]
  %s5 = inlined_call_operand.hbm [shape: f32[2,16,16,128], index: 5, kind: output, shape index: {}]
  %s6 = sld [smem:[#allocation0]]
  $region65: #{tpu_custom_call.1} parent=0
    _
  %s8 = ssub.s32 1, %s6
  %s9 = scalar_select 0, %s8, %s6
  $region1: #{tpu_custom_call.1} parent=0
    #allocation5 [shape = 'u8[262144]{0}', space=vmem, size = 0x40000, scoped, tag = 'input window, operand 0']
    #allocation6 [shape = 's32[2]{0}', space=sflag, size = 0x8, scoped, tag = 'scoped memory for tpu_custom_call.1']
    #allocation7 [shape = 's32[2]{0}', space=sflag, size = 0x8, scoped, tag = 'scoped memory for tpu_custom_call.1']
    #allocation8 [shape = 'u8[65536]{0}', space=vmem, size = 0x10000, scoped, tag = 'input window, operand 1, single buffered']
    #allocation9 [shape = 's32[1]{0}', space=sflag, size = 0x4, scoped, tag = 'scoped memory for tpu_custom_call.1']
    #allocation10 [shape = 'u8[589824]{0}', space=vmem, size = 0x90000, scoped, tag = 'input window, operand 3, single buffered']
    #allocation11 [shape = 'u8[262144]{0}', space=vmem, size = 0x40000, scoped, tag = 'output window, operand 0']
    %10 = vsyncpa [#allocation6], 0
    %s11 = scalar_lea.sflag [#allocation6], 1
    %12 = vsyncpa %s11, 0
    %13 = vsyncpa [#allocation9], 0
    %14 = vsyncpa [#allocation7], 0
    %s15 = scalar_lea.sflag [#allocation7], 1
    %16 = vsyncpa %s15, 0
    loop: start=0, step=1, limit=4
    $region2: #{tpu_custom_call.1} parent=1 // loop_pre_header
      _
    $region3: #{tpu_custom_call.1} parent=1 // loop_header
      %s18 = sphi 0, %s22
      %p19 = scmp.ge.s32.totalorder %s18, 4
      %s28 = sphi 0, %s30
      %s31 = sphi 0, %s28
      %s32 = sphi 0, %s31
      %s48 = sphi 0, %s32
      %s52 = sphi 0, %s52
      %s54 = sphi 0, %s52
      %s55 = sphi 0, %s54
      %s69 = sphi 0, %s55
      %s73 = sphi 0, %s73
      %s75 = sphi 0, %s73
      %s76 = sphi 0, %s75
      %s90 = sphi 0, %s76
      %s94 = sphi 0, %s94
      %s96 = sphi 0, %s94
      %s97 = sphi 0, %s96
      %s111 = sphi 0, %s97
      %s115 = sphi 0, %s115
      %s117 = sphi 0, %s115
      %s118 = sphi 0, %s117
      %s132 = sphi 0, %s118
      %s138 = sphi 0, %s140
      %s141 = sphi 0, %s138
      %s142 = sphi 0, %s141
      %s158 = sphi 0, %s142
    $region4: #{tpu_custom_call.1} parent=1 // loop_header_branch
      %21 = sbr.rel (%p19) target = $region8
    $region5: #{tpu_custom_call.1} parent=1 // loop_body
      %s23 = ssub.s32 %s18, 1
      %s24 = ssub.s32 %s18, 2
      %s25 = sadd.s32 %s18, 1
      %s26 = ssub.s32 %s18, %s25
      %p27 = scmp.eq.s32.totalorder %s26, 0
      %s29 = sadd.s32 %s28, 1
      %s30 = scalar_select %p27, %s28, %s29
      %p33 = pneg %p27
      %p34 = scmp.eq.s32.totalorder %s18, 1
      %p35 = por %p33, %p34
      %p36 = scmp.ne.s32.totalorder %s28, %s31
      %p37 = scmp.eq.s32.totalorder %s18, 0
      %p38 = por %p36, %p37
      %p39 = scmp.ne.s32.totalorder %s28, %s31
      %p40 = scmp.eq.s32.totalorder %s23, 1
      %p41 = por %p39, %p40
      %p42 = scmp.ne.s32.totalorder %s31, %s32
      %p43 = scmp.eq.s32.totalorder %s23, 0
      %p44 = por %p42, %p43
      %p45 = scmp.ne.s32.totalorder %s31, %s32
      %p46 = scmp.eq.s32.totalorder %s24, 1
      %p47 = por %p45, %p46
      %p49 = scmp.ne.s32.totalorder %s32, %s48
      %p50 = scmp.eq.s32.totalorder %s24, 0
      %p51 = por %p49, %p50
      %s53 = sadd.s32 %s52, 1
      %p56 = scmp.eq.s32.totalorder %s18, 1
      %p57 = scmp.ne.s32.totalorder %s52, %s54
      %p58 = scmp.eq.s32.totalorder %s18, 0
      %p59 = por %p57, %p58
      %p60 = scmp.ne.s32.totalorder %s52, %s54
      %p61 = scmp.eq.s32.totalorder %s23, 1
      %p62 = por %p60, %p61
      %p63 = scmp.ne.s32.totalorder %s54, %s55
      %p64 = scmp.eq.s32.totalorder %s23, 0
      %p65 = por %p63, %p64
      %p66 = scmp.ne.s32.totalorder %s54, %s55
      %p67 = scmp.eq.s32.totalorder %s24, 1
      %p68 = por %p66, %p67
      %p70 = scmp.ne.s32.totalorder %s55, %s69
      %p71 = scmp.eq.s32.totalorder %s24, 0
      %p72 = por %p70, %p71
      %s74 = sadd.s32 %s73, 1
      %p77 = scmp.eq.s32.totalorder %s18, 1
      %p78 = scmp.ne.s32.totalorder %s73, %s75
      %p79 = scmp.eq.s32.totalorder %s18, 0
      %p80 = por %p78, %p79
      %p81 = scmp.ne.s32.totalorder %s73, %s75
      %p82 = scmp.eq.s32.totalorder %s23, 1
      %p83 = por %p81, %p82
      %p84 = scmp.ne.s32.totalorder %s75, %s76
      %p85 = scmp.eq.s32.totalorder %s23, 0
      %p86 = por %p84, %p85
      %p87 = scmp.ne.s32.totalorder %s75, %s76
      %p88 = scmp.eq.s32.totalorder %s24, 1
      %p89 = por %p87, %p88
      %p91 = scmp.ne.s32.totalorder %s76, %s90
      %p92 = scmp.eq.s32.totalorder %s24, 0
      %p93 = por %p91, %p92
      %s95 = sadd.s32 %s94, 1
      %p98 = scmp.eq.s32.totalorder %s18, 1
      %p99 = scmp.ne.s32.totalorder %s94, %s96
      %p100 = scmp.eq.s32.totalorder %s18, 0
      %p101 = por %p99, %p100
      %p102 = scmp.ne.s32.totalorder %s94, %s96
      %p103 = scmp.eq.s32.totalorder %s23, 1
      %p104 = por %p102, %p103
      %p105 = scmp.ne.s32.totalorder %s96, %s97
      %p106 = scmp.eq.s32.totalorder %s23, 0
      %p107 = por %p105, %p106
      %p108 = scmp.ne.s32.totalorder %s96, %s97
      %p109 = scmp.eq.s32.totalorder %s24, 1
      %p110 = por %p108, %p109
      %p112 = scmp.ne.s32.totalorder %s97, %s111
      %p113 = scmp.eq.s32.totalorder %s24, 0
      %p114 = por %p112, %p113
      %s116 = sadd.s32 %s115, 1
      %p119 = scmp.eq.s32.totalorder %s18, 1
      %p120 = scmp.ne.s32.totalorder %s115, %s117
      %p121 = scmp.eq.s32.totalorder %s18, 0
      %p122 = por %p120, %p121
      %p123 = scmp.ne.s32.totalorder %s115, %s117
      %p124 = scmp.eq.s32.totalorder %s23, 1
      %p125 = por %p123, %p124
      %p126 = scmp.ne.s32.totalorder %s117, %s118
      %p127 = scmp.eq.s32.totalorder %s23, 0
      %p128 = por %p126, %p127
      %p129 = scmp.ne.s32.totalorder %s117, %s118
      %p130 = scmp.eq.s32.totalorder %s24, 1
      %p131 = por %p129, %p130
      %p133 = scmp.ne.s32.totalorder %s118, %s132
      %p134 = scmp.eq.s32.totalorder %s24, 0
      %p135 = por %p133, %p134
      %s136 = ssub.s32 %s18, %s25
      %p137 = scmp.eq.s32.totalorder %s136, 0
      %s139 = sadd.s32 %s138, 1
      %s140 = scalar_select %p137, %s138, %s139
      %p143 = pneg %p137
      %p144 = scmp.eq.s32.totalorder %s18, 1
      %p145 = por %p143, %p144
      %p146 = scmp.ne.s32.totalorder %s138, %s141
      %p147 = scmp.eq.s32.totalorder %s18, 0
      %p148 = por %p146, %p147
      %p149 = scmp.ne.s32.totalorder %s138, %s141
      %p150 = scmp.eq.s32.totalorder %s23, 1
      %p151 = por %p149, %p150
      %p152 = scmp.ne.s32.totalorder %s141, %s142
      %p153 = scmp.eq.s32.totalorder %s23, 0
      %p154 = por %p152, %p153
      %p155 = scmp.ne.s32.totalorder %s141, %s142
      %p156 = scmp.eq.s32.totalorder %s24, 1
      %p157 = por %p155, %p156
      %p159 = scmp.ne.s32.totalorder %s142, %s158
      %p160 = scmp.eq.s32.totalorder %s24, 0
      %p161 = por %p159, %p160
      %p162 = scmp.le.s32.totalorder 1, %s18
      %p163 = scmp.lt.s32.totalorder %s18, 3
      %p164 = pnand %p162, %p163
      %p165 = pneg %p164
      // Predicated region
      $region9: #{tpu_custom_call.1} parent=5 // pred_check
        _
      $region10: #{tpu_custom_call.1} parent=5 // pred_check_branch
        %167 = sbr.rel (%p164) target = $region12
      $region11: #{tpu_custom_call.1} parent=5 // pred_region
        %s168 = ssub.s32 %s18, 1
        // Predicated region
        $region13: #{tpu_custom_call.1} parent=11 // pred_check
          %p169 = pneg %p65
        $region14: #{tpu_custom_call.1} parent=11 // pred_check_branch
          %171 = sbr.rel (%p169) target = $region16
        $region15: #{tpu_custom_call.1} parent=11 // pred_region
          %s173 = ssub.s32 2048, 2048
          %174 = vsyncadd [#allocation9], %s173
          %s175 = sshll.u32 [#allocation8], 4
          %s176 = int_to_ptr.vmem [resolvable:$true] %s175
          %181 = dma.hbm_to_vmem [thread:$0]  %s1, 2048, %s176, [#allocation9], 128, 128, 8
        $region16: #{tpu_custom_call.1} parent=11 // pred_fallthru
          _
        // Predicated region
        $region17: #{tpu_custom_call.1} parent=11 // pred_check
          %p182 = pneg %p86
        $region18: #{tpu_custom_call.1} parent=11 // pred_check_branch
          %184 = sbr.rel (%p182) target = $region20
        $region19: #{tpu_custom_call.1} parent=11 // pred_region
          _
        $region20: #{tpu_custom_call.1} parent=11 // pred_fallthru
          _
        // Predicated region
        $region21: #{tpu_custom_call.1} parent=11 // pred_check
          %p185 = pneg %p107
        $region22: #{tpu_custom_call.1} parent=11 // pred_check_branch
          %187 = sbr.rel (%p185) target = $region24
        $region23: #{tpu_custom_call.1} parent=11 // pred_region
          %s189 = ssub.s32 18432, 18432
          %190 = vsyncadd [#allocation9], %s189
          %s191 = sshll.u32 [#allocation10], 4
          %s192 = int_to_ptr.vmem [resolvable:$true] %s191
          %197 = dma.hbm_to_vmem [thread:$0]  %s3, 18432, %s192, [#allocation9], 128, 128, 8
        $region24: #{tpu_custom_call.1} parent=11 // pred_fallthru
          _
        // Predicated region
        $region25: #{tpu_custom_call.1} parent=11 // pred_check
          %p198 = pneg %p128
        $region26: #{tpu_custom_call.1} parent=11 // pred_check_branch
          %200 = sbr.rel (%p198) target = $region28
        $region27: #{tpu_custom_call.1} parent=11 // pred_region
          _
        $region28: #{tpu_custom_call.1} parent=11 // pred_fallthru
          _
      $region12: #{tpu_custom_call.1} parent=5 // pred_fallthru
        _
      %p201 = scmp.lt.s32.totalorder %s18, 2
      // Predicated region
      $region29: #{tpu_custom_call.1} parent=5 // pred_check
        %p202 = pneg %p201
      $region30: #{tpu_custom_call.1} parent=5 // pred_check_branch
        %204 = sbr.rel (%p202) target = $region32
      $region31: #{tpu_custom_call.1} parent=5 // pred_region
        // Predicated region
        $region33: #{tpu_custom_call.1} parent=31 // pred_check
          %p205 = pneg %p38
        $region34: #{tpu_custom_call.1} parent=31 // pred_check_branch
          %207 = sbr.rel (%p205) target = $region36
        $region35: #{tpu_custom_call.1} parent=31 // pred_region
          %s208 = sand.u32 %s28, 1
          %s209 = scalar_lea.sflag [#allocation6], %s208
          %s210 = sand.u32 %s28, 1
          %s211 = smul.addr %s210, 256
          %s212 = scalar_lea.vmem [#allocation5], %s211
          %s214 = ssub.s32 4096, 4096
          %215 = vsyncadd %s209, %s214
          %s216 = smul.addr %s18, 32
          %s217 = smul.addr %s216, 128
          %s218 = scalar_lea.hbm %s0, %s217
          %s219 = sshll.u32 %s212, 4
          %s220 = int_to_ptr.vmem [resolvable:$true] %s219
          %225 = dma.hbm_to_vmem [thread:$0]  %s218, 4096, %s220, %s209, 128, 128, 8
        $region36: #{tpu_custom_call.1} parent=31 // pred_fallthru
          _
      $region32: #{tpu_custom_call.1} parent=5 // pred_fallthru
        _
      %p226 = scmp.le.s32.totalorder 1, %s18
      %p227 = scmp.lt.s32.totalorder %s18, 3
      %p228 = pnand %p226, %p227
      %p229 = pneg %p228
      // Predicated region
      $region37: #{tpu_custom_call.1} parent=5 // pred_check
        _
      $region38: #{tpu_custom_call.1} parent=5 // pred_check_branch
        %231 = sbr.rel (%p228) target = $region40
      $region39: #{tpu_custom_call.1} parent=5 // pred_region
        %s232 = ssub.s32 %s18, 1
        %s233 = sand.u32 %s31, 1
        %s234 = scalar_lea.sflag [#allocation6], %s233
        %s235 = sand.u32 %s31, 1
        %s236 = smul.addr %s235, 256
        %s237 = scalar_lea.vmem [#allocation5], %s236
        // Predicated region
        $region41: #{tpu_custom_call.1} parent=39 // pred_check
          %p238 = pneg %p44
        $region42: #{tpu_custom_call.1} parent=39 // pred_check_branch
          %240 = sbr.rel (%p238) target = $region44
        $region43: #{tpu_custom_call.1} parent=39 // pred_region
          %241 = dma.done %s234, 4096
        $region44: #{tpu_custom_call.1} parent=39 // pred_fallthru
          _
        // Predicated region
        $region45: #{tpu_custom_call.1} parent=39 // pred_check
          %p242 = pneg %p65
        $region46: #{tpu_custom_call.1} parent=39 // pred_check_branch
          %244 = sbr.rel (%p242) target = $region48
        $region47: #{tpu_custom_call.1} parent=39 // pred_region
          %245 = dma.done [#allocation9], 2048
        $region48: #{tpu_custom_call.1} parent=39 // pred_fallthru
          _
        // Predicated region
        $region49: #{tpu_custom_call.1} parent=39 // pred_check
          %p246 = pneg %p107
        $region50: #{tpu_custom_call.1} parent=39 // pred_check_branch
          %248 = sbr.rel (%p246) target = $region52
        $region51: #{tpu_custom_call.1} parent=39 // pred_region
          %249 = dma.done [#allocation9], 18432
        $region52: #{tpu_custom_call.1} parent=39 // pred_fallthru
          _
        %s250 = sand.u32 %s31, 1
        %s251 = scalar_lea.sflag [#allocation6], %s250
        %s252 = sand.u32 %s31, 1
        %s253 = smul.addr %s252, 256
        %s254 = scalar_lea.vmem [#allocation5], %s253
        %p255 = pneg %p44
        %p256 = pneg %p41
        %p257 = pneg %p65
        %p258 = pneg %p62
        %p259 = pneg %p86
        %p260 = pneg %p83
        %p261 = pneg %p107
        %p262 = pneg %p104
        %p263 = pneg %p128
        %p264 = pneg %p125
        %p265 = pneg %p154
        %p266 = pneg %p151
        %s267 = sand.u32 %s141, 1
        %s268 = scalar_lea.sflag [#allocation7], %s267
        %s269 = sand.u32 %s141, 1
        %s270 = smul.addr %s269, 256
        %s271 = scalar_lea.vmem [#allocation11], %s270
        %272 = vst [vmem:[#allocation2] sm:$0xff] 0.0
        %273 = vst [vmem:[#allocation2 + $0x8] sm:$0xff] 0.0
        %274 = vst [vmem:[#allocation2 + $0x10] sm:$0xff] 0.0
        %275 = vst [vmem:[#allocation2 + $0x18] sm:$0xff] 0.0
        %276 = vst [vmem:[#allocation2 + $0x20] sm:$0xff] 0.0
        %277 = vst [vmem:[#allocation2 + $0x28] sm:$0xff] 0.0
        %278 = vst [vmem:[#allocation2 + $0x30] sm:$0xff] 0.0
        %279 = vst [vmem:[#allocation2 + $0x38] sm:$0xff] 0.0
        %280 = vst [vmem:[#allocation2 + $0x40] sm:$0xff] 0.0
        %281 = vst [vmem:[#allocation2 + $0x48] sm:$0xff] 0.0
        %282 = vst [vmem:[#allocation2 + $0x50] sm:$0xff] 0.0
        %283 = vst [vmem:[#allocation2 + $0x58] sm:$0xff] 0.0
        %284 = vst [vmem:[#allocation2 + $0x60] sm:$0xff] 0.0
        %285 = vst [vmem:[#allocation2 + $0x68] sm:$0xff] 0.0
        %286 = vst [vmem:[#allocation2 + $0x70] sm:$0xff] 0.0
        %287 = vst [vmem:[#allocation2 + $0x78] sm:$0xff] 0.0
        %288 = vst [vmem:[#allocation2 + $0x80] sm:$0xff] 0.0
        %289 = vst [vmem:[#allocation2 + $0x88] sm:$0xff] 0.0
        %290 = vst [vmem:[#allocation2 + $0x90] sm:$0xff] 0.0
        %291 = vst [vmem:[#allocation2 + $0x98] sm:$0xff] 0.0
        %292 = vst [vmem:[#allocation2 + $0xa0] sm:$0xff] 0.0
        %293 = vst [vmem:[#allocation2 + $0xa8] sm:$0xff] 0.0
        %294 = vst [vmem:[#allocation2 + $0xb0] sm:$0xff] 0.0
        %295 = vst [vmem:[#allocation2 + $0xb8] sm:$0xff] 0.0
        %296 = vst [vmem:[#allocation2 + $0xc0] sm:$0xff] 0.0
        %297 = vst [vmem:[#allocation2 + $0xc8] sm:$0xff] 0.0
        %298 = vst [vmem:[#allocation2 + $0xd0] sm:$0xff] 0.0
        %299 = vst [vmem:[#allocation2 + $0xd8] sm:$0xff] 0.0
        %300 = vst [vmem:[#allocation2 + $0xe0] sm:$0xff] 0.0
        %301 = vst [vmem:[#allocation2 + $0xe8] sm:$0xff] 0.0
        %302 = vst [vmem:[#allocation2 + $0xf0] sm:$0xff] 0.0
        %303 = vst [vmem:[#allocation2 + $0xf8] sm:$0xff] 0.0
        %304 = vst [vmem:[#allocation2 + $0x100] sm:$0xff] 0.0
        %305 = vst [vmem:[#allocation2 + $0x108] sm:$0xff] 0.0
        %306 = vst [vmem:[#allocation2 + $0x110] sm:$0xff] 0.0
        %307 = vst [vmem:[#allocation2 + $0x118] sm:$0xff] 0.0
        %308 = vst [vmem:[#allocation2 + $0x120] sm:$0xff] 0.0
        %309 = vst [vmem:[#allocation2 + $0x128] sm:$0xff] 0.0
        %310 = vst [vmem:[#allocation2 + $0x130] sm:$0xff] 0.0
        %311 = vst [vmem:[#allocation2 + $0x138] sm:$0xff] 0.0
        %312 = vst [vmem:[#allocation2 + $0x140] sm:$0xff] 0.0
        %313 = vst [vmem:[#allocation2 + $0x148] sm:$0xff] 0.0
        %314 = vst [vmem:[#allocation2 + $0x150] sm:$0xff] 0.0
        %315 = vst [vmem:[#allocation2 + $0x158] sm:$0xff] 0.0
        %316 = vst [vmem:[#allocation2 + $0x160] sm:$0xff] 0.0
        %317 = vst [vmem:[#allocation2 + $0x168] sm:$0xff] 0.0
        %318 = vst [vmem:[#allocation2 + $0x170] sm:$0xff] 0.0
        %319 = vst [vmem:[#allocation2 + $0x178] sm:$0xff] 0.0
        %320 = vst [vmem:[#allocation2 + $0x180] sm:$0xff] 0.0
        %321 = vst [vmem:[#allocation2 + $0x188] sm:$0xff] 0.0
        %322 = vst [vmem:[#allocation2 + $0x190] sm:$0xff] 0.0
        %323 = vst [vmem:[#allocation2 + $0x198] sm:$0xff] 0.0
        %324 = vst [vmem:[#allocation2 + $0x1a0] sm:$0xff] 0.0
        %325 = vst [vmem:[#allocation2 + $0x1a8] sm:$0xff] 0.0
        %326 = vst [vmem:[#allocation2 + $0x1b0] sm:$0xff] 0.0
        %327 = vst [vmem:[#allocation2 + $0x1b8] sm:$0xff] 0.0
        %328 = vst [vmem:[#allocation2 + $0x1c0] sm:$0xff] 0.0
        %329 = vst [vmem:[#allocation2 + $0x1c8] sm:$0xff] 0.0
        %330 = vst [vmem:[#allocation2 + $0x1d0] sm:$0xff] 0.0
        %331 = vst [vmem:[#allocation2 + $0x1d8] sm:$0xff] 0.0
        %332 = vst [vmem:[#allocation2 + $0x1e0] sm:$0xff] 0.0
        %333 = vst [vmem:[#allocation2 + $0x1e8] sm:$0xff] 0.0
        %334 = vst [vmem:[#allocation2 + $0x1f0] sm:$0xff] 0.0
        %335 = vst [vmem:[#allocation2 + $0x1f8] sm:$0xff] 0.0
        %336 = vst [vmem:[#allocation2 + $0x200] sm:$0xff] 0.0
        %337 = vst [vmem:[#allocation2 + $0x208] sm:$0xff] 0.0
        %338 = vst [vmem:[#allocation2 + $0x210] sm:$0xff] 0.0
        %339 = vst [vmem:[#allocation2 + $0x218] sm:$0xff] 0.0
        %340 = vst [vmem:[#allocation2 + $0x220] sm:$0xff] 0.0
        %341 = vst [vmem:[#allocation2 + $0x228] sm:$0xff] 0.0
        %342 = vst [vmem:[#allocation2 + $0x230] sm:$0xff] 0.0
        %343 = vst [vmem:[#allocation2 + $0x238] sm:$0xff] 0.0
        %344 = vst [vmem:[#allocation2 + $0x240] sm:$0xff] 0.0
        %345 = vst [vmem:[#allocation2 + $0x248] sm:$0xff] 0.0
        %346 = vst [vmem:[#allocation2 + $0x250] sm:$0xff] 0.0
        %347 = vst [vmem:[#allocation2 + $0x258] sm:$0xff] 0.0
        %348 = vst [vmem:[#allocation2 + $0x260] sm:$0xff] 0.0
        %349 = vst [vmem:[#allocation2 + $0x268] sm:$0xff] 0.0
        %350 = vst [vmem:[#allocation2 + $0x270] sm:$0xff] 0.0
        %351 = vst [vmem:[#allocation2 + $0x278] sm:$0xff] 0.0
        %352 = vst [vmem:[#allocation2 + $0x280] sm:$0xff] 0.0
        %353 = vst [vmem:[#allocation2 + $0x288] sm:$0xff] 0.0
        %354 = vst [vmem:[#allocation2 + $0x290] sm:$0xff] 0.0
        %355 = vst [vmem:[#allocation2 + $0x298] sm:$0xff] 0.0
        %356 = vst [vmem:[#allocation2 + $0x2a0] sm:$0xff] 0.0
        %357 = vst [vmem:[#allocation2 + $0x2a8] sm:$0xff] 0.0
        %358 = vst [vmem:[#allocation2 + $0x2b0] sm:$0xff] 0.0
        %359 = vst [vmem:[#allocation2 + $0x2b8] sm:$0xff] 0.0
        %360 = vst [vmem:[#allocation2 + $0x2c0] sm:$0xff] 0.0
        %361 = vst [vmem:[#allocation2 + $0x2c8] sm:$0xff] 0.0
        %362 = vst [vmem:[#allocation2 + $0x2d0] sm:$0xff] 0.0
        %363 = vst [vmem:[#allocation2 + $0x2d8] sm:$0xff] 0.0
        %364 = vst [vmem:[#allocation2 + $0x2e0] sm:$0xff] 0.0
        %365 = vst [vmem:[#allocation2 + $0x2e8] sm:$0xff] 0.0
        %366 = vst [vmem:[#allocation2 + $0x2f0] sm:$0xff] 0.0
        %367 = vst [vmem:[#allocation2 + $0x2f8] sm:$0xff] 0.0
        %368 = vst [vmem:[#allocation2 + $0x300] sm:$0xff] 0.0
        %369 = vst [vmem:[#allocation2 + $0x308] sm:$0xff] 0.0
        %370 = vst [vmem:[#allocation2 + $0x310] sm:$0xff] 0.0
        %371 = vst [vmem:[#allocation2 + $0x318] sm:$0xff] 0.0
        %372 = vst [vmem:[#allocation2 + $0x320] sm:$0xff] 0.0
        %373 = vst [vmem:[#allocation2 + $0x328] sm:$0xff] 0.0
        %374 = vst [vmem:[#allocation2 + $0x330] sm:$0xff] 0.0
        %375 = vst [vmem:[#allocation2 + $0x338] sm:$0xff] 0.0
        %376 = vst [vmem:[#allocation2 + $0x340] sm:$0xff] 0.0
        %377 = vst [vmem:[#allocation2 + $0x348] sm:$0xff] 0.0
        %378 = vst [vmem:[#allocation2 + $0x350] sm:$0xff] 0.0
        %379 = vst [vmem:[#allocation2 + $0x358] sm:$0xff] 0.0
        %v380 = vld [vmem:[%s237] sm:$0xff]
        %v381 = vld [vmem:[%s237 + $0x8] sm:$0xff]
        %v382 = vld [vmem:[%s237 + $0x10] sm:$0xff]
        %v383 = vld [vmem:[%s237 + $0x18] sm:$0xff]
        %v384 = vld [vmem:[%s237 + $0x20] sm:$0xff]
        %v385 = vld [vmem:[%s237 + $0x28] sm:$0xff]
        %v386 = vld [vmem:[%s237 + $0x30] sm:$0xff]
        %v387 = vld [vmem:[%s237 + $0x38] sm:$0xff]
        %v388 = vld [vmem:[%s237 + $0x40] sm:$0xff]
        %v389 = vld [vmem:[%s237 + $0x48] sm:$0xff]
        %v390 = vld [vmem:[%s237 + $0x50] sm:$0xff]
        %v391 = vld [vmem:[%s237 + $0x58] sm:$0xff]
        %v392 = vld [vmem:[%s237 + $0x60] sm:$0xff]
        %v393 = vld [vmem:[%s237 + $0x68] sm:$0xff]
        %v394 = vld [vmem:[%s237 + $0x70] sm:$0xff]
        %v395 = vld [vmem:[%s237 + $0x78] sm:$0xff]
        %v396 = vld [vmem:[%s237 + $0x80] sm:$0xff]
        %v397 = vld [vmem:[%s237 + $0x88] sm:$0xff]
        %v398 = vld [vmem:[%s237 + $0x90] sm:$0xff]
        %v399 = vld [vmem:[%s237 + $0x98] sm:$0xff]
        %v400 = vld [vmem:[%s237 + $0xa0] sm:$0xff]
        %v401 = vld [vmem:[%s237 + $0xa8] sm:$0xff]
        %v402 = vld [vmem:[%s237 + $0xb0] sm:$0xff]
        %v403 = vld [vmem:[%s237 + $0xb8] sm:$0xff]
        %v404 = vld [vmem:[%s237 + $0xc0] sm:$0xff]
        %v405 = vld [vmem:[%s237 + $0xc8] sm:$0xff]
        %v406 = vld [vmem:[%s237 + $0xd0] sm:$0xff]
        %v407 = vld [vmem:[%s237 + $0xd8] sm:$0xff]
        %v408 = vld [vmem:[%s237 + $0xe0] sm:$0xff]
        %v409 = vld [vmem:[%s237 + $0xe8] sm:$0xff]
        %v410 = vld [vmem:[%s237 + $0xf0] sm:$0xff]
        %v411 = vld [vmem:[%s237 + $0xf8] sm:$0xff]
        %v412 = vld [vmem:[#allocation8] sm:$0xff]
        %v413 = vld [vmem:[#allocation8 + $0x8] sm:$0xff]
        %v414 = vld [vmem:[#allocation8 + $0x10] sm:$0xff]
        %v415 = vld [vmem:[#allocation8 + $0x18] sm:$0xff]
        %v416 = vld [vmem:[#allocation8 + $0x20] sm:$0xff]
        %v417 = vld [vmem:[#allocation8 + $0x28] sm:$0xff]
        %v418 = vld [vmem:[#allocation8 + $0x30] sm:$0xff]
        %v419 = vld [vmem:[#allocation8 + $0x38] sm:$0xff]
        %v420 = vld [vmem:[#allocation8 + $0x40] sm:$0xff]
        %v421 = vld [vmem:[#allocation8 + $0x48] sm:$0xff]
        %v422 = vld [vmem:[#allocation8 + $0x50] sm:$0xff]
        %v423 = vld [vmem:[#allocation8 + $0x58] sm:$0xff]
        %v424 = vld [vmem:[#allocation8 + $0x60] sm:$0xff]
        %v425 = vld [vmem:[#allocation8 + $0x68] sm:$0xff]
        %v426 = vld [vmem:[#allocation8 + $0x70] sm:$0xff]
        %v427 = vld [vmem:[#allocation8 + $0x78] sm:$0xff]
        %v428 = vld [vmem:[%s2] sm:$0x1]
        %v430 = vlaneseq
        %v431 = vshrl.u32 %v430, 7
        %v432 = vsub.s32 0, %v431
        %v433 = vrot.slane %v428, %v432
        %435 = vmatprep.subr.mxu0 0.0
        %436 = vmatpush1.msra.mxu0 %v412
        %437 = vmatprep.subr.mxu0 0.0
        %438 = vmatpush1.msra.mxu0 %v413
        %439 = vmatprep.subr.mxu0 0.0
        %440 = vmatpush1.msra.mxu0 %v414
        %441 = vmatprep.subr.mxu0 0.0
        %442 = vmatpush1.msra.mxu0 %v415
        %443 = vmatprep.subr.mxu0 0.0
        %444 = vmatpush1.msra.mxu0 %v416
        %445 = vmatprep.subr.mxu0 0.0
        %446 = vmatpush1.msra.mxu0 %v417
        %447 = vmatprep.subr.mxu0 0.0
        %448 = vmatpush1.msra.mxu0 %v418
        %449 = vmatprep.subr.mxu0 0.0
        %450 = vmatpush1.msra.mxu0 %v419
        %451 = vmatprep.subr.mxu0 0.0
        %452 = vmatpush1.msra.mxu0 %v420
        %453 = vmatprep.subr.mxu0 0.0
        %454 = vmatpush1.msra.mxu0 %v421
        %455 = vmatprep.subr.mxu0 0.0
        %456 = vmatpush1.msra.mxu0 %v422
        %457 = vmatprep.subr.mxu0 0.0
        %458 = vmatpush1.msra.mxu0 %v423
        %459 = vmatprep.subr.mxu0 0.0
        %460 = vmatpush1.msra.mxu0 %v424
        %461 = vmatprep.subr.mxu0 0.0
        %462 = vmatpush1.msra.mxu0 %v425
        %463 = vmatprep.subr.mxu0 0.0
        %464 = vmatpush1.msra.mxu0 %v426
        %465 = vmatprep.subr.mxu0 0.0
        %466 = vmatpush1.msra.mxu0 %v427
        %467 = vmatprep.subr.mxu0 0.0
        %468 = vmatpush1.msra.mxu0 0.0
        %469 = vmatprep.subr.mxu0 0.0
        %470 = vmatpush1.msra.mxu0 0.0
        %471 = vmatprep.subr.mxu0 0.0
        %472 = vmatpush1.msra.mxu0 0.0
        %473 = vmatprep.subr.mxu0 0.0
        %474 = vmatpush1.msra.mxu0 0.0
        %475 = vmatprep.subr.mxu0 0.0
        %476 = vmatpush1.msra.mxu0 0.0
        %477 = vmatprep.subr.mxu0 0.0
        %478 = vmatpush1.msra.mxu0 0.0
        %479 = vmatprep.subr.mxu0 0.0
        %480 = vmatpush1.msra.mxu0 0.0
        %481 = vmatprep.subr.mxu0 0.0
        %482 = vmatpush1.msra.mxu0 0.0
        %483 = vmatprep.subr.mxu0 0.0
        %484 = vmatpush1.msra.mxu0 0.0
        %485 = vmatprep.subr.mxu0 0.0
        %486 = vmatpush1.msra.mxu0 0.0
        %487 = vmatprep.subr.mxu0 0.0
        %488 = vmatpush1.msra.mxu0 0.0
        %489 = vmatprep.subr.mxu0 0.0
        %490 = vmatpush1.msra.mxu0 0.0
        %491 = vmatprep.subr.mxu0 0.0
        %492 = vmatpush1.msra.mxu0 0.0
        %493 = vmatprep.subr.mxu0 0.0
        %494 = vmatpush1.msra.mxu0 0.0
        %495 = vmatprep.subr.mxu0 0.0
        %496 = vmatpush1.msra.mxu0 0.0
        %497 = vmatprep.subr.mxu0 0.0
        %498 = vmatpush1.msra.mxu0 0.0
        %499 = vmatprep.mubr.f32.mxu0 0.0
        %500 = vmatmul.mubr.f32.gmra.mrb[0].mxu0 %v380
        %v501 = vpop.f32.mrb[0].mxu0
        %v502 = vadd.f32 %v433, %v501
        %v503 = vpop.f32.mrb[0].mxu0
        %504 = vmatprep.mubr.f32.mxu0 0.0
        %505 = vmatmul.mubr.f32.gmra.mrb[0].mxu0 %v381
        %v506 = vpop.f32.mrb[0].mxu0
        %v507 = vadd.f32 %v433, %v506
        %v508 = vpop.f32.mrb[0].mxu0
        %509 = vmatprep.mubr.f32.mxu0 0.0
        %510 = vmatmul.mubr.f32.gmra.mrb[0].mxu0 %v382
        %v511 = vpop.f32.mrb[0].mxu0
        %v512 = vadd.f32 %v433, %v511
        %v513 = vpop.f32.mrb[0].mxu0
        %514 = vmatprep.mubr.f32.mxu0 0.0
        %515 = vmatmul.mubr.f32.gmra.mrb[0].mxu0 %v383
        %v516 = vpop.f32.mrb[0].mxu0
        %v517 = vadd.f32 %v433, %v516
        %v518 = vpop.f32.mrb[0].mxu0
        %519 = vmatprep.mubr.f32.mxu0 0.0
        %520 = vmatmul.mubr.f32.gmra.mrb[0].mxu0 %v384
        %v521 = vpop.f32.mrb[0].mxu0
        %v522 = vadd.f32 %v433, %v521
        %v523 = vpop.f32.mrb[0].mxu0
        %524 = vmatprep.mubr.f32.mxu0 0.0
        %525 = vmatmul.mubr.f32.gmra.mrb[0].mxu0 %v385
        %v526 = vpop.f32.mrb[0].mxu0
        %v527 = vadd.f32 %v433, %v526
        %v528 = vpop.f32.mrb[0].mxu0
        %529 = vmatprep.mubr.f32.mxu0 0.0
        %530 = vmatmul.mubr.f32.gmra.mrb[0].mxu0 %v386
        %v531 = vpop.f32.mrb[0].mxu0
        %v532 = vadd.f32 %v433, %v531
        %v533 = vpop.f32.mrb[0].mxu0
        %534 = vmatprep.mubr.f32.mxu0 0.0
        %535 = vmatmul.mubr.f32.gmra.mrb[0].mxu0 %v387
        %v536 = vpop.f32.mrb[0].mxu0
        %v537 = vadd.f32 %v433, %v536
        %v538 = vpop.f32.mrb[0].mxu0
        %539 = vmatprep.mubr.f32.mxu0 0.0
        %540 = vmatmul.mubr.f32.gmra.mrb[0].mxu0 %v388
        %v541 = vpop.f32.mrb[0].mxu0
        %v542 = vadd.f32 %v433, %v541
        %v543 = vpop.f32.mrb[0].mxu0
        %544 = vmatprep.mubr.f32.mxu0 0.0
        %545 = vmatmul.mubr.f32.gmra.mrb[0].mxu0 %v389
        %v546 = vpop.f32.mrb[0].mxu0
        %v547 = vadd.f32 %v433, %v546
        %v548 = vpop.f32.mrb[0].mxu0
        %549 = vmatprep.mubr.f32.mxu0 0.0
        %550 = vmatmul.mubr.f32.gmra.mrb[0].mxu0 %v390
        %v551 = vpop.f32.mrb[0].mxu0
        %v552 = vadd.f32 %v433, %v551
        %v553 = vpop.f32.mrb[0].mxu0
        %554 = vmatprep.mubr.f32.mxu0 0.0
        %555 = vmatmul.mubr.f32.gmra.mrb[0].mxu0 %v391
        %v556 = vpop.f32.mrb[0].mxu0
        %v557 = vadd.f32 %v433, %v556
        %v558 = vpop.f32.mrb[0].mxu0
        %559 = vmatprep.mubr.f32.mxu0 0.0
        %560 = vmatmul.mubr.f32.gmra.mrb[0].mxu0 %v392
        %v561 = vpop.f32.mrb[0].mxu0
        %v562 = vadd.f32 %v433, %v561
        %v563 = vpop.f32.mrb[0].mxu0
        %564 = vmatprep.mubr.f32.mxu0 0.0
        %565 = vmatmul.mubr.f32.gmra.mrb[0].mxu0 %v393
        %v566 = vpop.f32.mrb[0].mxu0
        %v567 = vadd.f32 %v433, %v566
        %v568 = vpop.f32.mrb[0].mxu0
        %569 = vmatprep.mubr.f32.mxu0 0.0
        %570 = vmatmul.mubr.f32.gmra.mrb[0].mxu0 %v394
        %v571 = vpop.f32.mrb[0].mxu0
        %v572 = vadd.f32 %v433, %v571
        %v573 = vpop.f32.mrb[0].mxu0
        %574 = vmatprep.mubr.f32.mxu0 0.0
        %575 = vmatmul.mubr.f32.gmra.mrb[0].mxu0 %v395
        %v576 = vpop.f32.mrb[0].mxu0
        %v577 = vadd.f32 %v433, %v576
        %v578 = vpop.f32.mrb[0].mxu0
        %579 = vmatprep.mubr.f32.mxu0 0.0
        %580 = vmatmul.mubr.f32.gmra.mrb[0].mxu0 %v396
        %v581 = vpop.f32.mrb[0].mxu0
        %v582 = vadd.f32 %v433, %v581
        %v583 = vpop.f32.mrb[0].mxu0
        %584 = vmatprep.mubr.f32.mxu0 0.0
        %585 = vmatmul.mubr.f32.gmra.mrb[0].mxu0 %v397
        %v586 = vpop.f32.mrb[0].mxu0
        %v587 = vadd.f32 %v433, %v586
        %v588 = vpop.f32.mrb[0].mxu0
        %589 = vmatprep.mubr.f32.mxu0 0.0
        %590 = vmatmul.mubr.f32.gmra.mrb[0].mxu0 %v398
        %v591 = vpop.f32.mrb[0].mxu0
        %v592 = vadd.f32 %v433, %v591
        %v593 = vpop.f32.mrb[0].mxu0
        %594 = vmatprep.mubr.f32.mxu0 0.0
        %595 = vmatmul.mubr.f32.gmra.mrb[0].mxu0 %v399
        %v596 = vpop.f32.mrb[0].mxu0
        %v597 = vadd.f32 %v433, %v596
        %v598 = vpop.f32.mrb[0].mxu0
        %599 = vmatprep.mubr.f32.mxu0 0.0
        %600 = vmatmul.mubr.f32.gmra.mrb[0].mxu0 %v400
        %v601 = vpop.f32.mrb[0].mxu0
        %v602 = vadd.f32 %v433, %v601
        %v603 = vpop.f32.mrb[0].mxu0
        %604 = vmatprep.mubr.f32.mxu0 0.0
        %605 = vmatmul.mubr.f32.gmra.mrb[0].mxu0 %v401
        %v606 = vpop.f32.mrb[0].mxu0
        %v607 = vadd.f32 %v433, %v606
        %v608 = vpop.f32.mrb[0].mxu0
        %609 = vmatprep.mubr.f32.mxu0 0.0
        %610 = vmatmul.mubr.f32.gmra.mrb[0].mxu0 %v402
        %v611 = vpop.f32.mrb[0].mxu0
        %v612 = vadd.f32 %v433, %v611
        %v613 = vpop.f32.mrb[0].mxu0
        %614 = vmatprep.mubr.f32.mxu0 0.0
        %615 = vmatmul.mubr.f32.gmra.mrb[0].mxu0 %v403
        %v616 = vpop.f32.mrb[0].mxu0
        %v617 = vadd.f32 %v433, %v616
        %v618 = vpop.f32.mrb[0].mxu0
        %619 = vmatprep.mubr.f32.mxu0 0.0
        %620 = vmatmul.mubr.f32.gmra.mrb[0].mxu0 %v404
        %v621 = vpop.f32.mrb[0].mxu0
        %v622 = vadd.f32 %v433, %v621
        %v623 = vpop.f32.mrb[0].mxu0
        %624 = vmatprep.mubr.f32.mxu0 0.0
        %625 = vmatmul.mubr.f32.gmra.mrb[0].mxu0 %v405
        %v626 = vpop.f32.mrb[0].mxu0
        %v627 = vadd.f32 %v433, %v626
        %v628 = vpop.f32.mrb[0].mxu0
        %629 = vmatprep.mubr.f32.mxu0 0.0
        %630 = vmatmul.mubr.f32.gmra.mrb[0].mxu0 %v406
        %v631 = vpop.f32.mrb[0].mxu0
        %v632 = vadd.f32 %v433, %v631
        %v633 = vpop.f32.mrb[0].mxu0
        %634 = vmatprep.mubr.f32.mxu0 0.0
        %635 = vmatmul.mubr.f32.gmra.mrb[0].mxu0 %v407
        %v636 = vpop.f32.mrb[0].mxu0
        %v637 = vadd.f32 %v433, %v636
        %v638 = vpop.f32.mrb[0].mxu0
        %639 = vmatprep.mubr.f32.mxu0 0.0
        %640 = vmatmul.mubr.f32.gmra.mrb[0].mxu0 %v408
        %v641 = vpop.f32.mrb[0].mxu0
        %v642 = vadd.f32 %v433, %v641
        %v643 = vpop.f32.mrb[0].mxu0
        %644 = vmatprep.mubr.f32.mxu0 0.0
        %645 = vmatmul.mubr.f32.gmra.mrb[0].mxu0 %v409
        %v646 = vpop.f32.mrb[0].mxu0
        %v647 = vadd.f32 %v433, %v646
        %v648 = vpop.f32.mrb[0].mxu0
        %649 = vmatprep.mubr.f32.mxu0 0.0
        %650 = vmatmul.mubr.f32.gmra.mrb[0].mxu0 %v410
        %v651 = vpop.f32.mrb[0].mxu0
        %v652 = vadd.f32 %v433, %v651
        %v653 = vpop.f32.mrb[0].mxu0
        %654 = vmatprep.mubr.f32.mxu0 0.0
        %655 = vmatmul.mubr.f32.gmra.mrb[0].mxu0 %v411
        %v656 = vpop.f32.mrb[0].mxu0
        %v657 = vadd.f32 %v433, %v656
        %v658 = vpop.f32.mrb[0].mxu0
        %659 = vdwg.mxu0
        %v660 = vsub.f32 0.0, %v502
        %v661 = vsub.f32 0.0, %v507
        %v662 = vsub.f32 0.0, %v512
        %v663 = vsub.f32 0.0, %v517
        %v664 = vsub.f32 0.0, %v522
        %v665 = vsub.f32 0.0, %v527
        %v666 = vsub.f32 0.0, %v532
        %v667 = vsub.f32 0.0, %v537
        %v668 = vsub.f32 0.0, %v542
        %v669 = vsub.f32 0.0, %v547
        %v670 = vsub.f32 0.0, %v552
        %v671 = vsub.f32 0.0, %v557
        %v672 = vsub.f32 0.0, %v562
        %v673 = vsub.f32 0.0, %v567
        %v674 = vsub.f32 0.0, %v572
        %v675 = vsub.f32 0.0, %v577
        %v676 = vsub.f32 0.0, %v582
        %v677 = vsub.f32 0.0, %v587
        %v678 = vsub.f32 0.0, %v592
        %v679 = vsub.f32 0.0, %v597
        %v680 = vsub.f32 0.0, %v602
        %v681 = vsub.f32 0.0, %v607
        %v682 = vsub.f32 0.0, %v612
        %v683 = vsub.f32 0.0, %v617
        %v684 = vsub.f32 0.0, %v622
        %v685 = vsub.f32 0.0, %v627
        %v686 = vsub.f32 0.0, %v632
        %v687 = vsub.f32 0.0, %v637
        %v688 = vsub.f32 0.0, %v642
        %v689 = vsub.f32 0.0, %v647
        %v690 = vsub.f32 0.0, %v652
        %v691 = vsub.f32 0.0, %v657
        %v692 = vmul.f32 %v660, 1.442695
        %v693 = vpow.pop %v692
        %v694 = vmul.f32 %v661, 1.442695
        %v695 = vpow.pop %v694
        %v696 = vmul.f32 %v662, 1.442695
        %v697 = vpow.pop %v696
        %v698 = vmul.f32 %v663, 1.442695
        %v699 = vpow.pop %v698
        %v700 = vmul.f32 %v664, 1.442695
        %v701 = vpow.pop %v700
        %v702 = vmul.f32 %v665, 1.442695
        %v703 = vpow.pop %v702
        %v704 = vmul.f32 %v666, 1.442695
        %v705 = vpow.pop %v704
        %v706 = vmul.f32 %v667, 1.442695
        %v707 = vpow.pop %v706
        %v708 = vmul.f32 %v668, 1.442695
        %v709 = vpow.pop %v708
        %v710 = vmul.f32 %v669, 1.442695
        %v711 = vpow.pop %v710
        %v712 = vmul.f32 %v670, 1.442695
        %v713 = vpow.pop %v712
        %v714 = vmul.f32 %v671, 1.442695
        %v715 = vpow.pop %v714
        %v716 = vmul.f32 %v672, 1.442695
        %v717 = vpow.pop %v716
        %v718 = vmul.f32 %v673, 1.442695
        %v719 = vpow.pop %v718
        %v720 = vmul.f32 %v674, 1.442695
        %v721 = vpow.pop %v720
        %v722 = vmul.f32 %v675, 1.442695
        %v723 = vpow.pop %v722
        %v724 = vmul.f32 %v676, 1.442695
        %v725 = vpow.pop %v724
        %v726 = vmul.f32 %v677, 1.442695
        %v727 = vpow.pop %v726
        %v728 = vmul.f32 %v678, 1.442695
        %v729 = vpow.pop %v728
        %v730 = vmul.f32 %v679, 1.442695
        %v731 = vpow.pop %v730
        %v732 = vmul.f32 %v680, 1.442695
        %v733 = vpow.pop %v732
        %v734 = vmul.f32 %v681, 1.442695
        %v735 = vpow.pop %v734
        %v736 = vmul.f32 %v682, 1.442695
        %v737 = vpow.pop %v736
        %v738 = vmul.f32 %v683, 1.442695
        %v739 = vpow.pop %v738
        %v740 = vmul.f32 %v684, 1.442695
        %v741 = vpow.pop %v740
        %v742 = vmul.f32 %v685, 1.442695
        %v743 = vpow.pop %v742
        %v744 = vmul.f32 %v686, 1.442695
        %v745 = vpow.pop %v744
        %v746 = vmul.f32 %v687, 1.442695
        %v747 = vpow.pop %v746
        %v748 = vmul.f32 %v688, 1.442695
        %v749 = vpow.pop %v748
        %v750 = vmul.f32 %v689, 1.442695
        %v751 = vpow.pop %v750
        %v752 = vmul.f32 %v690, 1.442695
        %v753 = vpow.pop %v752
        %v754 = vmul.f32 %v691, 1.442695
        %v755 = vpow.pop %v754
        %v756 = vadd.f32 %v693, 1.0
        %v757 = vadd.f32 %v695, 1.0
        %v758 = vadd.f32 %v697, 1.0
        %v759 = vadd.f32 %v699, 1.0
        %v760 = vadd.f32 %v701, 1.0
        %v761 = vadd.f32 %v703, 1.0
        %v762 = vadd.f32 %v705, 1.0
        %v763 = vadd.f32 %v707, 1.0
        %v764 = vadd.f32 %v709, 1.0
        %v765 = vadd.f32 %v711, 1.0
        %v766 = vadd.f32 %v713, 1.0
        %v767 = vadd.f32 %v715, 1.0
        %v768 = vadd.f32 %v717, 1.0
        %v769 = vadd.f32 %v719, 1.0
        %v770 = vadd.f32 %v721, 1.0
        %v771 = vadd.f32 %v723, 1.0
        %v772 = vadd.f32 %v725, 1.0
        %v773 = vadd.f32 %v727, 1.0
        %v774 = vadd.f32 %v729, 1.0
        %v775 = vadd.f32 %v731, 1.0
        %v776 = vadd.f32 %v733, 1.0
        %v777 = vadd.f32 %v735, 1.0
        %v778 = vadd.f32 %v737, 1.0
        %v779 = vadd.f32 %v739, 1.0
        %v780 = vadd.f32 %v741, 1.0
        %v781 = vadd.f32 %v743, 1.0
        %v782 = vadd.f32 %v745, 1.0
        %v783 = vadd.f32 %v747, 1.0
        %v784 = vadd.f32 %v749, 1.0
        %v785 = vadd.f32 %v751, 1.0
        %v786 = vadd.f32 %v753, 1.0
        %v787 = vadd.f32 %v755, 1.0
        %v788 = vrcp.pop %v756
        %v789 = vmul.f32 1.0, %v788
        %v790 = vrcp.pop %v757
        %v791 = vmul.f32 1.0, %v790
        %v792 = vrcp.pop %v758
        %v793 = vmul.f32 1.0, %v792
        %v794 = vrcp.pop %v759
        %v795 = vmul.f32 1.0, %v794
        %v796 = vrcp.pop %v760
        %v797 = vmul.f32 1.0, %v796
        %v798 = vrcp.pop %v761
        %v799 = vmul.f32 1.0, %v798
        %v800 = vrcp.pop %v762
        %v801 = vmul.f32 1.0, %v800
        %v802 = vrcp.pop %v763
        %v803 = vmul.f32 1.0, %v802
        %v804 = vrcp.pop %v764
        %v805 = vmul.f32 1.0, %v804
        %v806 = vrcp.pop %v765
        %v807 = vmul.f32 1.0, %v806
        %v808 = vrcp.pop %v766
        %v809 = vmul.f32 1.0, %v808
        %v810 = vrcp.pop %v767
        %v811 = vmul.f32 1.0, %v810
        %v812 = vrcp.pop %v768
        %v813 = vmul.f32 1.0, %v812
        %v814 = vrcp.pop %v769
        %v815 = vmul.f32 1.0, %v814
        %v816 = vrcp.pop %v770
        %v817 = vmul.f32 1.0, %v816
        %v818 = vrcp.pop %v771
        %v819 = vmul.f32 1.0, %v818
        %v820 = vrcp.pop %v772
        %v821 = vmul.f32 1.0, %v820
        %v822 = vrcp.pop %v773
        %v823 = vmul.f32 1.0, %v822
        %v824 = vrcp.pop %v774
        %v825 = vmul.f32 1.0, %v824
        %v826 = vrcp.pop %v775
        %v827 = vmul.f32 1.0, %v826
        %v828 = vrcp.pop %v776
        %v829 = vmul.f32 1.0, %v828
        %v830 = vrcp.pop %v777
        %v831 = vmul.f32 1.0, %v830
        %v832 = vrcp.pop %v778
        %v833 = vmul.f32 1.0, %v832
        %v834 = vrcp.pop %v779
        %v835 = vmul.f32 1.0, %v834
        %v836 = vrcp.pop %v780
        %v837 = vmul.f32 1.0, %v836
        %v838 = vrcp.pop %v781
        %v839 = vmul.f32 1.0, %v838
        %v840 = vrcp.pop %v782
        %v841 = vmul.f32 1.0, %v840
        %v842 = vrcp.pop %v783
        %v843 = vmul.f32 1.0, %v842
        %v844 = vrcp.pop %v784
        %v845 = vmul.f32 1.0, %v844
        %v846 = vrcp.pop %v785
        %v847 = vmul.f32 1.0, %v846
        %v848 = vrcp.pop %v786
        %v849 = vmul.f32 1.0, %v848
        %v850 = vrcp.pop %v787
        %v851 = vmul.f32 1.0, %v850
        %v852 = vmul.f32 %v502, %v789
        %v853 = vmul.f32 %v507, %v791
        %v854 = vmul.f32 %v512, %v793
        %v855 = vmul.f32 %v517, %v795
        %v856 = vmul.f32 %v522, %v797
        %v857 = vmul.f32 %v527, %v799
        %v858 = vmul.f32 %v532, %v801
        %v859 = vmul.f32 %v537, %v803
        %v860 = vmul.f32 %v542, %v805
        %v861 = vmul.f32 %v547, %v807
        %v862 = vmul.f32 %v552, %v809
        %v863 = vmul.f32 %v557, %v811
        %v864 = vmul.f32 %v562, %v813
        %v865 = vmul.f32 %v567, %v815
        %v866 = vmul.f32 %v572, %v817
        %v867 = vmul.f32 %v577, %v819
        %v868 = vmul.f32 %v582, %v821
        %v869 = vmul.f32 %v587, %v823
        %v870 = vmul.f32 %v592, %v825
        %v871 = vmul.f32 %v597, %v827
        %v872 = vmul.f32 %v602, %v829
        %v873 = vmul.f32 %v607, %v831
        %v874 = vmul.f32 %v612, %v833
        %v875 = vmul.f32 %v617, %v835
        %v876 = vmul.f32 %v622, %v837
        %v877 = vmul.f32 %v627, %v839
        %v878 = vmul.f32 %v632, %v841
        %v879 = vmul.f32 %v637, %v843
        %v880 = vmul.f32 %v642, %v845
        %v881 = vmul.f32 %v647, %v847
        %v882 = vmul.f32 %v652, %v849
        %v883 = vmul.f32 %v657, %v851
        %vm916 = vcmask 1040384
        %v917 = vrot.slane %v852, 7
        %v918 = vrot.slane %v853, 7
        %v919 = vsel %vm916, %v917, %v918
        %v920 = vrot.slane %v854, 7
        %v921 = vrot.slane %v855, 7
        %v922 = vsel %vm916, %v920, %v921
        %v923 = vrot.slane %v856, 7
        %v924 = vrot.slane %v857, 7
        %v925 = vsel %vm916, %v923, %v924
        %v926 = vrot.slane %v858, 7
        %v927 = vrot.slane %v859, 7
        %v928 = vsel %vm916, %v926, %v927
        %v929 = vrot.slane %v860, 7
        %v930 = vrot.slane %v861, 7
        %v931 = vsel %vm916, %v929, %v930
        %v932 = vrot.slane %v862, 7
        %v933 = vrot.slane %v863, 7
        %v934 = vsel %vm916, %v932, %v933
        %v935 = vrot.slane %v864, 7
        %v936 = vrot.slane %v865, 7
        %v937 = vsel %vm916, %v935, %v936
        %v938 = vrot.slane %v866, 7
        %v939 = vrot.slane %v867, 7
        %v940 = vsel %vm916, %v938, %v939
        %v941 = vrot.slane %v868, 7
        %v942 = vrot.slane %v869, 7
        %v943 = vsel %vm916, %v941, %v942
        %v944 = vrot.slane %v870, 7
        %v945 = vrot.slane %v871, 7
        %v946 = vsel %vm916, %v944, %v945
        %v947 = vrot.slane %v872, 7
        %v948 = vrot.slane %v873, 7
        %v949 = vsel %vm916, %v947, %v948
        %v950 = vrot.slane %v874, 7
        %v951 = vrot.slane %v875, 7
        %v952 = vsel %vm916, %v950, %v951
        %v953 = vrot.slane %v876, 7
        %v954 = vrot.slane %v877, 7
        %v955 = vsel %vm916, %v953, %v954
        %v956 = vrot.slane %v878, 7
        %v957 = vrot.slane %v879, 7
        %v958 = vsel %vm916, %v956, %v957
        %v959 = vrot.slane %v880, 7
        %v960 = vrot.slane %v881, 7
        %v961 = vsel %vm916, %v959, %v960
        %v962 = vrot.slane %v882, 7
        %v963 = vrot.slane %v883, 7
        %v964 = vsel %vm916, %v962, %v963
        %v997 = vsel %vm916, 0.0, %v917
        %v998 = vsel %vm916, 0.0, %v920
        %v999 = vsel %vm916, 0.0, %v923
        %v1000 = vsel %vm916, 0.0, %v926
        %v1001 = vsel %vm916, 0.0, %v929
        %v1002 = vsel %vm916, 0.0, %v932
        %v1003 = vsel %vm916, 0.0, %v935
        %v1004 = vsel %vm916, 0.0, %v938
        %v1005 = vsel %vm916, 0.0, %v941
        %v1006 = vsel %vm916, 0.0, %v944
        %v1007 = vsel %vm916, 0.0, %v947
        %v1008 = vsel %vm916, 0.0, %v950
        %v1009 = vsel %vm916, 0.0, %v953
        %v1010 = vsel %vm916, 0.0, %v956
        %v1011 = vsel %vm916, 0.0, %v959
        %v1012 = vsel %vm916, 0.0, %v962
        %vm1013 = vcmask 1046528
        %v1014 = vrot.slane %v852, 1
        %v1015 = vrot.slane %v853, 1
        %v1016 = vsel %vm1013, %v1014, %v1015
        %v1017 = vrot.slane %v854, 1
        %v1018 = vrot.slane %v855, 1
        %v1019 = vsel %vm1013, %v1017, %v1018
        %v1020 = vrot.slane %v856, 1
        %v1021 = vrot.slane %v857, 1
        %v1022 = vsel %vm1013, %v1020, %v1021
        %v1023 = vrot.slane %v858, 1
        %v1024 = vrot.slane %v859, 1
        %v1025 = vsel %vm1013, %v1023, %v1024
        %v1026 = vrot.slane %v860, 1
        %v1027 = vrot.slane %v861, 1
        %v1028 = vsel %vm1013, %v1026, %v1027
        %v1029 = vrot.slane %v862, 1
        %v1030 = vrot.slane %v863, 1
        %v1031 = vsel %vm1013, %v1029, %v1030
        %v1032 = vrot.slane %v864, 1
        %v1033 = vrot.slane %v865, 1
        %v1034 = vsel %vm1013, %v1032, %v1033
        %v1035 = vrot.slane %v866, 1
        %v1036 = vrot.slane %v867, 1
        %v1037 = vsel %vm1013, %v1035, %v1036
        %v1038 = vrot.slane %v868, 1
        %v1039 = vrot.slane %v869, 1
        %v1040 = vsel %vm1013, %v1038, %v1039
        %v1041 = vrot.slane %v870, 1
        %v1042 = vrot.slane %v871, 1
        %v1043 = vsel %vm1013, %v1041, %v1042
        %v1044 = vrot.slane %v872, 1
        %v1045 = vrot.slane %v873, 1
        %v1046 = vsel %vm1013, %v1044, %v1045
        %v1047 = vrot.slane %v874, 1
        %v1048 = vrot.slane %v875, 1
        %v1049 = vsel %vm1013, %v1047, %v1048
        %v1050 = vrot.slane %v876, 1
        %v1051 = vrot.slane %v877, 1
        %v1052 = vsel %vm1013, %v1050, %v1051
        %v1053 = vrot.slane %v878, 1
        %v1054 = vrot.slane %v879, 1
        %v1055 = vsel %vm1013, %v1053, %v1054
        %v1056 = vrot.slane %v880, 1
        %v1057 = vrot.slane %v881, 1
        %v1058 = vsel %vm1013, %v1056, %v1057
        %v1059 = vrot.slane %v882, 1
        %v1060 = vrot.slane %v883, 1
        %v1061 = vsel %vm1013, %v1059, %v1060
        %v1094 = vsel %vm1013, %v1015, 0.0
        %v1095 = vsel %vm1013, %v1018, 0.0
        %v1096 = vsel %vm1013, %v1021, 0.0
        %v1097 = vsel %vm1013, %v1024, 0.0
        %v1098 = vsel %vm1013, %v1027, 0.0
        %v1099 = vsel %vm1013, %v1030, 0.0
        %v1100 = vsel %vm1013, %v1033, 0.0
        %v1101 = vsel %vm1013, %v1036, 0.0
        %v1102 = vsel %vm1013, %v1039, 0.0
        %v1103 = vsel %vm1013, %v1042, 0.0
        %v1104 = vsel %vm1013, %v1045, 0.0
        %v1105 = vsel %vm1013, %v1048, 0.0
        %v1106 = vsel %vm1013, %v1051, 0.0
        %v1107 = vsel %vm1013, %v1054, 0.0
        %v1108 = vsel %vm1013, %v1057, 0.0
        %v1109 = vsel %vm1013, %v1060, 0.0
        %s1110 = scalar_lea.vmem [#allocation2], 48
        %1111 = vst [vmem:[%s1110] sm:$0xff] %v997
        %1112 = vst [vmem:[%s1110 + $0x18] sm:$0xff] %v919
        %1113 = vst [vmem:[%s1110 + $0x30] sm:$0xff] %v998
        %1114 = vst [vmem:[%s1110 + $0x48] sm:$0xff] %v922
        %1115 = vst [vmem:[%s1110 + $0x60] sm:$0xff] %v999
        %1116 = vst [vmem:[%s1110 + $0x78] sm:$0xff] %v925
        %1117 = vst [vmem:[%s1110 + $0x90] sm:$0xff] %v1000
        %1118 = vst [vmem:[%s1110 + $0xa8] sm:$0xff] %v928
        %1119 = vst [vmem:[%s1110 + $0xc0] sm:$0xff] %v1001
        %1120 = vst [vmem:[%s1110 + $0xd8] sm:$0xff] %v931
        %1121 = vst [vmem:[%s1110 + $0xf0] sm:$0xff] %v1002
        %1122 = vst [vmem:[%s1110 + $0x108] sm:$0xff] %v934
        %1123 = vst [vmem:[%s1110 + $0x120] sm:$0xff] %v1003
        %1124 = vst [vmem:[%s1110 + $0x138] sm:$0xff] %v937
        %1125 = vst [vmem:[%s1110 + $0x150] sm:$0xff] %v1004
        %1126 = vst [vmem:[%s1110 + $0x168] sm:$0xff] %v940
        %1127 = vst [vmem:[%s1110 + $0x180] sm:$0xff] %v1005
        %1128 = vst [vmem:[%s1110 + $0x198] sm:$0xff] %v943
        %1129 = vst [vmem:[%s1110 + $0x1b0] sm:$0xff] %v1006
        %1130 = vst [vmem:[%s1110 + $0x1c8] sm:$0xff] %v946
        %1131 = vst [vmem:[%s1110 + $0x1e0] sm:$0xff] %v1007
        %1132 = vst [vmem:[%s1110 + $0x1f8] sm:$0xff] %v949
        %1133 = vst [vmem:[%s1110 + $0x210] sm:$0xff] %v1008
        %1134 = vst [vmem:[%s1110 + $0x228] sm:$0xff] %v952
        %1135 = vst [vmem:[%s1110 + $0x240] sm:$0xff] %v1009
        %1136 = vst [vmem:[%s1110 + $0x258] sm:$0xff] %v955
        %1137 = vst [vmem:[%s1110 + $0x270] sm:$0xff] %v1010
        %1138 = vst [vmem:[%s1110 + $0x288] sm:$0xff] %v958
        %1139 = vst [vmem:[%s1110 + $0x2a0] sm:$0xff] %v1011
        %1140 = vst [vmem:[%s1110 + $0x2b8] sm:$0xff] %v961
        %1141 = vst [vmem:[%s1110 + $0x2d0] sm:$0xff] %v1012
        %1142 = vst [vmem:[%s1110 + $0x2e8] sm:$0xff] %v964
        %1143 = vst [vmem:[%s1110 + $0x8] sm:$0xff] %v852
        %1144 = vst [vmem:[%s1110 + $0x20] sm:$0xff] %v853
        %1145 = vst [vmem:[%s1110 + $0x38] sm:$0xff] %v854
        %1146 = vst [vmem:[%s1110 + $0x50] sm:$0xff] %v855
        %1147 = vst [vmem:[%s1110 + $0x68] sm:$0xff] %v856
        %1148 = vst [vmem:[%s1110 + $0x80] sm:$0xff] %v857
        %1149 = vst [vmem:[%s1110 + $0x98] sm:$0xff] %v858
        %1150 = vst [vmem:[%s1110 + $0xb0] sm:$0xff] %v859
        %1151 = vst [vmem:[%s1110 + $0xc8] sm:$0xff] %v860
        %1152 = vst [vmem:[%s1110 + $0xe0] sm:$0xff] %v861
        %1153 = vst [vmem:[%s1110 + $0xf8] sm:$0xff] %v862
        %1154 = vst [vmem:[%s1110 + $0x110] sm:$0xff] %v863
        %1155 = vst [vmem:[%s1110 + $0x128] sm:$0xff] %v864
        %1156 = vst [vmem:[%s1110 + $0x140] sm:$0xff] %v865
        %1157 = vst [vmem:[%s1110 + $0x158] sm:$0xff] %v866
        %1158 = vst [vmem:[%s1110 + $0x170] sm:$0xff] %v867
        %1159 = vst [vmem:[%s1110 + $0x188] sm:$0xff] %v868
        %1160 = vst [vmem:[%s1110 + $0x1a0] sm:$0xff] %v869
        %1161 = vst [vmem:[%s1110 + $0x1b8] sm:$0xff] %v870
        %1162 = vst [vmem:[%s1110 + $0x1d0] sm:$0xff] %v871
        %1163 = vst [vmem:[%s1110 + $0x1e8] sm:$0xff] %v872
        %1164 = vst [vmem:[%s1110 + $0x200] sm:$0xff] %v873
        %1165 = vst [vmem:[%s1110 + $0x218] sm:$0xff] %v874
        %1166 = vst [vmem:[%s1110 + $0x230] sm:$0xff] %v875
        %1167 = vst [vmem:[%s1110 + $0x248] sm:$0xff] %v876
        %1168 = vst [vmem:[%s1110 + $0x260] sm:$0xff] %v877
        %1169 = vst [vmem:[%s1110 + $0x278] sm:$0xff] %v878
        %1170 = vst [vmem:[%s1110 + $0x290] sm:$0xff] %v879
        %1171 = vst [vmem:[%s1110 + $0x2a8] sm:$0xff] %v880
        %1172 = vst [vmem:[%s1110 + $0x2c0] sm:$0xff] %v881
        %1173 = vst [vmem:[%s1110 + $0x2d8] sm:$0xff] %v882
        %1174 = vst [vmem:[%s1110 + $0x2f0] sm:$0xff] %v883
        %1175 = vst [vmem:[%s1110 + $0x10] sm:$0xff] %v1016
        %1176 = vst [vmem:[%s1110 + $0x28] sm:$0xff] %v1094
        %1177 = vst [vmem:[%s1110 + $0x40] sm:$0xff] %v1019
        %1178 = vst [vmem:[%s1110 + $0x58] sm:$0xff] %v1095
        %1179 = vst [vmem:[%s1110 + $0x70] sm:$0xff] %v1022
        %1180 = vst [vmem:[%s1110 + $0x88] sm:$0xff] %v1096
        %1181 = vst [vmem:[%s1110 + $0xa0] sm:$0xff] %v1025
        %1182 = vst [vmem:[%s1110 + $0xb8] sm:$0xff] %v1097
        %1183 = vst [vmem:[%s1110 + $0xd0] sm:$0xff] %v1028
        %1184 = vst [vmem:[%s1110 + $0xe8] sm:$0xff] %v1098
        %1185 = vst [vmem:[%s1110 + $0x100] sm:$0xff] %v1031
        %1186 = vst [vmem:[%s1110 + $0x118] sm:$0xff] %v1099
        %1187 = vst [vmem:[%s1110 + $0x130] sm:$0xff] %v1034
        %1188 = vst [vmem:[%s1110 + $0x148] sm:$0xff] %v1100
        %1189 = vst [vmem:[%s1110 + $0x160] sm:$0xff] %v1037
        %1190 = vst [vmem:[%s1110 + $0x178] sm:$0xff] %v1101
        %1191 = vst [vmem:[%s1110 + $0x190] sm:$0xff] %v1040
        %1192 = vst [vmem:[%s1110 + $0x1a8] sm:$0xff] %v1102
        %1193 = vst [vmem:[%s1110 + $0x1c0] sm:$0xff] %v1043
        %1194 = vst [vmem:[%s1110 + $0x1d8] sm:$0xff] %v1103
        %1195 = vst [vmem:[%s1110 + $0x1f0] sm:$0xff] %v1046
        %1196 = vst [vmem:[%s1110 + $0x208] sm:$0xff] %v1104
        %1197 = vst [vmem:[%s1110 + $0x220] sm:$0xff] %v1049
        %1198 = vst [vmem:[%s1110 + $0x238] sm:$0xff] %v1105
        %1199 = vst [vmem:[%s1110 + $0x250] sm:$0xff] %v1052
        %1200 = vst [vmem:[%s1110 + $0x268] sm:$0xff] %v1106
        %1201 = vst [vmem:[%s1110 + $0x280] sm:$0xff] %v1055
        %1202 = vst [vmem:[%s1110 + $0x298] sm:$0xff] %v1107
        %1203 = vst [vmem:[%s1110 + $0x2b0] sm:$0xff] %v1058
        %1204 = vst [vmem:[%s1110 + $0x2c8] sm:$0xff] %v1108
        %1205 = vst [vmem:[%s1110 + $0x2e0] sm:$0xff] %v1061
        %1206 = vst [vmem:[%s1110 + $0x2f8] sm:$0xff] %v1109
        %1207 = vst [vmem:[#allocation3] sm:$0xff] 0.0
        %1208 = vst [vmem:[#allocation3 + $0x8] sm:$0xff] 0.0
        %1209 = vst [vmem:[#allocation3 + $0x10] sm:$0xff] 0.0
        %1210 = vst [vmem:[#allocation3 + $0x18] sm:$0xff] 0.0
        %1211 = vst [vmem:[#allocation3 + $0x20] sm:$0xff] 0.0
        %1212 = vst [vmem:[#allocation3 + $0x28] sm:$0xff] 0.0
        %1213 = vst [vmem:[#allocation3 + $0x30] sm:$0xff] 0.0
        %1214 = vst [vmem:[#allocation3 + $0x38] sm:$0xff] 0.0
        %1215 = vst [vmem:[#allocation3 + $0x40] sm:$0xff] 0.0
        %1216 = vst [vmem:[#allocation3 + $0x48] sm:$0xff] 0.0
        %1217 = vst [vmem:[#allocation3 + $0x50] sm:$0xff] 0.0
        %1218 = vst [vmem:[#allocation3 + $0x58] sm:$0xff] 0.0
        %1219 = vst [vmem:[#allocation3 + $0x60] sm:$0xff] 0.0
        %1220 = vst [vmem:[#allocation3 + $0x68] sm:$0xff] 0.0
        %1221 = vst [vmem:[#allocation3 + $0x70] sm:$0xff] 0.0
        %1222 = vst [vmem:[#allocation3 + $0x78] sm:$0xff] 0.0
        %1223 = vst [vmem:[#allocation3 + $0x80] sm:$0xff] 0.0
        %1224 = vst [vmem:[#allocation3 + $0x88] sm:$0xff] 0.0
        %1225 = vst [vmem:[#allocation3 + $0x90] sm:$0xff] 0.0
        %1226 = vst [vmem:[#allocation3 + $0x98] sm:$0xff] 0.0
        %1227 = vst [vmem:[#allocation3 + $0xa0] sm:$0xff] 0.0
        %1228 = vst [vmem:[#allocation3 + $0xa8] sm:$0xff] 0.0
        %1229 = vst [vmem:[#allocation3 + $0xb0] sm:$0xff] 0.0
        %1230 = vst [vmem:[#allocation3 + $0xb8] sm:$0xff] 0.0
        %1231 = vst [vmem:[#allocation3 + $0xc0] sm:$0xff] 0.0
        %1232 = vst [vmem:[#allocation3 + $0xc8] sm:$0xff] 0.0
        %1233 = vst [vmem:[#allocation3 + $0xd0] sm:$0xff] 0.0
        %1234 = vst [vmem:[#allocation3 + $0xd8] sm:$0xff] 0.0
        %1235 = vst [vmem:[#allocation3 + $0xe0] sm:$0xff] 0.0
        %1236 = vst [vmem:[#allocation3 + $0xe8] sm:$0xff] 0.0
        %1237 = vst [vmem:[#allocation3 + $0xf0] sm:$0xff] 0.0
        %1238 = vst [vmem:[#allocation3 + $0xf8] sm:$0xff] 0.0
        %v1239 = vld [vmem:[#allocation3] sm:$0xff]
        %v1240 = vld [vmem:[#allocation3 + $0x8] sm:$0xff]
        %v1241 = vld [vmem:[#allocation3 + $0x10] sm:$0xff]
        %v1242 = vld [vmem:[#allocation3 + $0x18] sm:$0xff]
        %v1243 = vld [vmem:[#allocation3 + $0x20] sm:$0xff]
        %v1244 = vld [vmem:[#allocation3 + $0x28] sm:$0xff]
        %v1245 = vld [vmem:[#allocation3 + $0x30] sm:$0xff]
        %v1246 = vld [vmem:[#allocation3 + $0x38] sm:$0xff]
        %v1247 = vld [vmem:[#allocation3 + $0x40] sm:$0xff]
        %v1248 = vld [vmem:[#allocation3 + $0x48] sm:$0xff]
        %v1249 = vld [vmem:[#allocation3 + $0x50] sm:$0xff]
        %v1250 = vld [vmem:[#allocation3 + $0x58] sm:$0xff]
        %v1251 = vld [vmem:[#allocation3 + $0x60] sm:$0xff]
        %v1252 = vld [vmem:[#allocation3 + $0x68] sm:$0xff]
        %v1253 = vld [vmem:[#allocation3 + $0x70] sm:$0xff]
        %v1254 = vld [vmem:[#allocation3 + $0x78] sm:$0xff]
        %v1255 = vld [vmem:[#allocation3 + $0x80] sm:$0xff]
        %v1256 = vld [vmem:[#allocation3 + $0x88] sm:$0xff]
        %v1257 = vld [vmem:[#allocation3 + $0x90] sm:$0xff]
        %v1258 = vld [vmem:[#allocation3 + $0x98] sm:$0xff]
        %v1259 = vld [vmem:[#allocation3 + $0xa0] sm:$0xff]
        %v1260 = vld [vmem:[#allocation3 + $0xa8] sm:$0xff]
        %v1261 = vld [vmem:[#allocation3 + $0xb0] sm:$0xff]
        %v1262 = vld [vmem:[#allocation3 + $0xb8] sm:$0xff]
        %v1263 = vld [vmem:[#allocation3 + $0xc0] sm:$0xff]
        %v1264 = vld [vmem:[#allocation3 + $0xc8] sm:$0xff]
        %v1265 = vld [vmem:[#allocation3 + $0xd0] sm:$0xff]
        %v1266 = vld [vmem:[#allocation3 + $0xd8] sm:$0xff]
        %v1267 = vld [vmem:[#allocation3 + $0xe0] sm:$0xff]
        %v1268 = vld [vmem:[#allocation3 + $0xe8] sm:$0xff]
        %v1269 = vld [vmem:[#allocation3 + $0xf0] sm:$0xff]
        %v1270 = vld [vmem:[#allocation3 + $0xf8] sm:$0xff]
        %v1271 = vld [vmem:[#allocation2] sm:$0xff]
        %v1272 = vld [vmem:[#allocation2 + $0x8] sm:$0xff]
        %v1273 = vld [vmem:[#allocation2 + $0x10] sm:$0xff]
        %v1274 = vld [vmem:[#allocation2 + $0x18] sm:$0xff]
        %v1275 = vld [vmem:[#allocation2 + $0x20] sm:$0xff]
        %v1276 = vld [vmem:[#allocation2 + $0x28] sm:$0xff]
        %v1277 = vld [vmem:[#allocation2 + $0x30] sm:$0xff]
        %v1278 = vld [vmem:[#allocation2 + $0x38] sm:$0xff]
        %v1279 = vld [vmem:[#allocation2 + $0x40] sm:$0xff]
        %v1280 = vld [vmem:[#allocation2 + $0x48] sm:$0xff]
        %v1281 = vld [vmem:[#allocation2 + $0x50] sm:$0xff]
        %v1282 = vld [vmem:[#allocation2 + $0x58] sm:$0xff]
        %v1283 = vld [vmem:[#allocation2 + $0x60] sm:$0xff]
        %v1284 = vld [vmem:[#allocation2 + $0x68] sm:$0xff]
        %v1285 = vld [vmem:[#allocation2 + $0x70] sm:$0xff]
        %v1286 = vld [vmem:[#allocation2 + $0x78] sm:$0xff]
        %v1287 = vld [vmem:[#allocation2 + $0x80] sm:$0xff]
        %v1288 = vld [vmem:[#allocation2 + $0x88] sm:$0xff]
        %v1289 = vld [vmem:[#allocation2 + $0x90] sm:$0xff]
        %v1290 = vld [vmem:[#allocation2 + $0x98] sm:$0xff]
        %v1291 = vld [vmem:[#allocation2 + $0xa0] sm:$0xff]
        %v1292 = vld [vmem:[#allocation2 + $0xa8] sm:$0xff]
        %v1293 = vld [vmem:[#allocation2 + $0xb0] sm:$0xff]
        %v1294 = vld [vmem:[#allocation2 + $0xb8] sm:$0xff]
        %v1295 = vld [vmem:[#allocation2 + $0xc0] sm:$0xff]
        %v1296 = vld [vmem:[#allocation2 + $0xc8] sm:$0xff]
        %v1297 = vld [vmem:[#allocation2 + $0xd0] sm:$0xff]
        %v1298 = vld [vmem:[#allocation2 + $0xd8] sm:$0xff]
        %v1299 = vld [vmem:[#allocation2 + $0xe0] sm:$0xff]
        %v1300 = vld [vmem:[#allocation2 + $0xe8] sm:$0xff]
        %v1301 = vld [vmem:[#allocation2 + $0xf0] sm:$0xff]
        %v1302 = vld [vmem:[#allocation2 + $0xf8] sm:$0xff]
        %v1303 = vld [vmem:[#allocation2 + $0x100] sm:$0xff]
        %v1304 = vld [vmem:[#allocation2 + $0x108] sm:$0xff]
        %v1305 = vld [vmem:[#allocation2 + $0x110] sm:$0xff]
        %v1306 = vld [vmem:[#allocation2 + $0x118] sm:$0xff]
        %v1307 = vld [vmem:[#allocation2 + $0x120] sm:$0xff]
        %v1308 = vld [vmem:[#allocation2 + $0x128] sm:$0xff]
        %v1309 = vld [vmem:[#allocation2 + $0x130] sm:$0xff]
        %v1310 = vld [vmem:[#allocation2 + $0x138] sm:$0xff]
        %v1311 = vld [vmem:[#allocation2 + $0x140] sm:$0xff]
        %v1312 = vld [vmem:[#allocation2 + $0x148] sm:$0xff]
        %v1313 = vld [vmem:[#allocation2 + $0x150] sm:$0xff]
        %v1314 = vld [vmem:[#allocation2 + $0x158] sm:$0xff]
        %v1315 = vld [vmem:[#allocation2 + $0x160] sm:$0xff]
        %v1316 = vld [vmem:[#allocation2 + $0x168] sm:$0xff]
        %v1317 = vld [vmem:[#allocation2 + $0x170] sm:$0xff]
        %v1318 = vld [vmem:[#allocation2 + $0x178] sm:$0xff]
        %v1319 = vld [vmem:[#allocation2 + $0x180] sm:$0xff]
        %v1320 = vld [vmem:[#allocation2 + $0x188] sm:$0xff]
        %v1321 = vld [vmem:[#allocation2 + $0x190] sm:$0xff]
        %v1322 = vld [vmem:[#allocation2 + $0x198] sm:$0xff]
        %v1323 = vld [vmem:[#allocation2 + $0x1a0] sm:$0xff]
        %v1324 = vld [vmem:[#allocation2 + $0x1a8] sm:$0xff]
        %v1325 = vld [vmem:[#allocation2 + $0x1b0] sm:$0xff]
        %v1326 = vld [vmem:[#allocation2 + $0x1b8] sm:$0xff]
        %v1327 = vld [vmem:[#allocation2 + $0x1c0] sm:$0xff]
        %v1328 = vld [vmem:[#allocation2 + $0x1c8] sm:$0xff]
        %v1329 = vld [vmem:[#allocation2 + $0x1d0] sm:$0xff]
        %v1330 = vld [vmem:[#allocation2 + $0x1d8] sm:$0xff]
        %v1331 = vld [vmem:[#allocation2 + $0x1e0] sm:$0xff]
        %v1332 = vld [vmem:[#allocation2 + $0x1e8] sm:$0xff]
        %v1333 = vld [vmem:[#allocation2 + $0x1f0] sm:$0xff]
        %v1334 = vld [vmem:[#allocation2 + $0x1f8] sm:$0xff]
        %v1335 = vld [vmem:[#allocation2 + $0x200] sm:$0xff]
        %v1336 = vld [vmem:[#allocation2 + $0x208] sm:$0xff]
        %v1337 = vld [vmem:[#allocation2 + $0x210] sm:$0xff]
        %v1338 = vld [vmem:[#allocation2 + $0x218] sm:$0xff]
        %v1339 = vld [vmem:[#allocation2 + $0x220] sm:$0xff]
        %v1340 = vld [vmem:[#allocation2 + $0x228] sm:$0xff]
        %v1341 = vld [vmem:[#allocation2 + $0x230] sm:$0xff]
        %v1342 = vld [vmem:[#allocation2 + $0x238] sm:$0xff]
        %v1343 = vld [vmem:[#allocation2 + $0x240] sm:$0xff]
        %v1344 = vld [vmem:[#allocation2 + $0x248] sm:$0xff]
        %v1345 = vld [vmem:[#allocation2 + $0x250] sm:$0xff]
        %v1346 = vld [vmem:[#allocation2 + $0x258] sm:$0xff]
        %v1347 = vld [vmem:[#allocation2 + $0x260] sm:$0xff]
        %v1348 = vld [vmem:[#allocation2 + $0x268] sm:$0xff]
        %v1349 = vld [vmem:[#allocation2 + $0x270] sm:$0xff]
        %v1350 = vld [vmem:[#allocation2 + $0x278] sm:$0xff]
        %v1351 = vld [vmem:[#allocation2 + $0x280] sm:$0xff]
        %v1352 = vld [vmem:[#allocation2 + $0x288] sm:$0xff]
        %v1353 = vld [vmem:[#allocation2 + $0x290] sm:$0xff]
        %v1354 = vld [vmem:[#allocation2 + $0x298] sm:$0xff]
        %v1355 = vld [vmem:[#allocation2 + $0x2a0] sm:$0xff]
        %v1356 = vld [vmem:[#allocation2 + $0x2a8] sm:$0xff]
        %v1357 = vld [vmem:[#allocation2 + $0x2b0] sm:$0xff]
        %v1358 = vld [vmem:[#allocation2 + $0x2b8] sm:$0xff]
        %v1359 = vld [vmem:[#allocation2 + $0x2c0] sm:$0xff]
        %v1360 = vld [vmem:[#allocation2 + $0x2c8] sm:$0xff]
        %v1361 = vld [vmem:[#allocation2 + $0x2d0] sm:$0xff]
        %v1362 = vld [vmem:[#allocation2 + $0x2d8] sm:$0xff]
        %v1363 = vld [vmem:[#allocation2 + $0x2e0] sm:$0xff]
        %v1364 = vld [vmem:[#allocation2 + $0x2e8] sm:$0xff]
        %v1365 = vld [vmem:[#allocation2 + $0x2f0] sm:$0xff]
        %v1366 = vld [vmem:[#allocation2 + $0x2f8] sm:$0xff]
        %v1367 = vld [vmem:[#allocation10] sm:$0xff]
        %v1368 = vld [vmem:[#allocation10 + $0x8] sm:$0xff]
        %v1369 = vld [vmem:[#allocation10 + $0x10] sm:$0xff]
        %v1370 = vld [vmem:[#allocation10 + $0x18] sm:$0xff]
        %v1371 = vld [vmem:[#allocation10 + $0x20] sm:$0xff]
        %v1372 = vld [vmem:[#allocation10 + $0x28] sm:$0xff]
        %v1373 = vld [vmem:[#allocation10 + $0x30] sm:$0xff]
        %v1374 = vld [vmem:[#allocation10 + $0x38] sm:$0xff]
        %v1375 = vld [vmem:[#allocation10 + $0x40] sm:$0xff]
        %v1376 = vld [vmem:[#allocation10 + $0x48] sm:$0xff]
        %v1377 = vld [vmem:[#allocation10 + $0x50] sm:$0xff]
        %v1378 = vld [vmem:[#allocation10 + $0x58] sm:$0xff]
        %v1379 = vld [vmem:[#allocation10 + $0x60] sm:$0xff]
        %v1380 = vld [vmem:[#allocation10 + $0x68] sm:$0xff]
        %v1381 = vld [vmem:[#allocation10 + $0x70] sm:$0xff]
        %v1382 = vld [vmem:[#allocation10 + $0x78] sm:$0xff]
        %v1383 = vld [vmem:[#allocation10 + $0x80] sm:$0xff]
        %v1384 = vld [vmem:[#allocation10 + $0x88] sm:$0xff]
        %v1385 = vld [vmem:[#allocation10 + $0x90] sm:$0xff]
        %v1386 = vld [vmem:[#allocation10 + $0x98] sm:$0xff]
        %v1387 = vld [vmem:[#allocation10 + $0xa0] sm:$0xff]
        %v1388 = vld [vmem:[#allocation10 + $0xa8] sm:$0xff]
        %v1389 = vld [vmem:[#allocation10 + $0xb0] sm:$0xff]
        %v1390 = vld [vmem:[#allocation10 + $0xb8] sm:$0xff]
        %v1391 = vld [vmem:[#allocation10 + $0xc0] sm:$0xff]
        %v1392 = vld [vmem:[#allocation10 + $0xc8] sm:$0xff]
        %v1393 = vld [vmem:[#allocation10 + $0xd0] sm:$0xff]
        %v1394 = vld [vmem:[#allocation10 + $0xd8] sm:$0xff]
        %v1395 = vld [vmem:[#allocation10 + $0xe0] sm:$0xff]
        %v1396 = vld [vmem:[#allocation10 + $0xe8] sm:$0xff]
        %v1397 = vld [vmem:[#allocation10 + $0xf0] sm:$0xff]
        %v1398 = vld [vmem:[#allocation10 + $0xf8] sm:$0xff]
        %v1399 = vld [vmem:[#allocation10 + $0x100] sm:$0xff]
        %v1400 = vld [vmem:[#allocation10 + $0x108] sm:$0xff]
        %v1401 = vld [vmem:[#allocation10 + $0x110] sm:$0xff]
        %v1402 = vld [vmem:[#allocation10 + $0x118] sm:$0xff]
        %v1403 = vld [vmem:[#allocation10 + $0x120] sm:$0xff]
        %v1404 = vld [vmem:[#allocation10 + $0x128] sm:$0xff]
        %v1405 = vld [vmem:[#allocation10 + $0x130] sm:$0xff]
        %v1406 = vld [vmem:[#allocation10 + $0x138] sm:$0xff]
        %v1407 = vld [vmem:[#allocation10 + $0x140] sm:$0xff]
        %v1408 = vld [vmem:[#allocation10 + $0x148] sm:$0xff]
        %v1409 = vld [vmem:[#allocation10 + $0x150] sm:$0xff]
        %v1410 = vld [vmem:[#allocation10 + $0x158] sm:$0xff]
        %v1411 = vld [vmem:[#allocation10 + $0x160] sm:$0xff]
        %v1412 = vld [vmem:[#allocation10 + $0x168] sm:$0xff]
        %v1413 = vld [vmem:[#allocation10 + $0x170] sm:$0xff]
        %v1414 = vld [vmem:[#allocation10 + $0x178] sm:$0xff]
        %1415 = vmatprep.subr.mxu0 0.0
        %1416 = vmatpush1.msra.mxu0 %v1367
        %1417 = vmatprep.subr.mxu0 0.0
        %1418 = vmatpush1.msra.mxu0 %v1368
        %1419 = vmatprep.subr.mxu0 0.0
        %1420 = vmatpush1.msra.mxu0 %v1369
        %1421 = vmatprep.subr.mxu0 0.0
        %1422 = vmatpush1.msra.mxu0 %v1370
        %1423 = vmatprep.subr.mxu0 0.0
        %1424 = vmatpush1.msra.mxu0 %v1371
        %1425 = vmatprep.subr.mxu0 0.0
        %1426 = vmatpush1.msra.mxu0 %v1372
        %1427 = vmatprep.subr.mxu0 0.0
        %1428 = vmatpush1.msra.mxu0 %v1373
        %1429 = vmatprep.subr.mxu0 0.0
        %1430 = vmatpush1.msra.mxu0 %v1374
        %1431 = vmatprep.subr.mxu0 0.0
        %1432 = vmatpush1.msra.mxu0 %v1375
        %1433 = vmatprep.subr.mxu0 0.0
        %1434 = vmatpush1.msra.mxu0 %v1376
        %1435 = vmatprep.subr.mxu0 0.0
        %1436 = vmatpush1.msra.mxu0 %v1377
        %1437 = vmatprep.subr.mxu0 0.0
        %1438 = vmatpush1.msra.mxu0 %v1378
        %1439 = vmatprep.subr.mxu0 0.0
        %1440 = vmatpush1.msra.mxu0 %v1379
        %1441 = vmatprep.subr.mxu0 0.0
        %1442 = vmatpush1.msra.mxu0 %v1380
        %1443 = vmatprep.subr.mxu0 0.0
        %1444 = vmatpush1.msra.mxu0 %v1381
        %1445 = vmatprep.subr.mxu0 0.0
        %1446 = vmatpush1.msra.mxu0 %v1382
        %1447 = vmatprep.subr.mxu0 0.0
        %1448 = vmatpush1.msra.mxu0 %v1383
        %1449 = vmatprep.subr.mxu0 0.0
        %1450 = vmatpush1.msra.mxu0 %v1384
        %1451 = vmatprep.subr.mxu0 0.0
        %1452 = vmatpush1.msra.mxu0 %v1385
        %1453 = vmatprep.subr.mxu0 0.0
        %1454 = vmatpush1.msra.mxu0 %v1386
        %1455 = vmatprep.subr.mxu0 0.0
        %1456 = vmatpush1.msra.mxu0 %v1387
        %1457 = vmatprep.subr.mxu0 0.0
        %1458 = vmatpush1.msra.mxu0 %v1388
        %1459 = vmatprep.subr.mxu0 0.0
        %1460 = vmatpush1.msra.mxu0 %v1389
        %1461 = vmatprep.subr.mxu0 0.0
        %1462 = vmatpush1.msra.mxu0 %v1390
        %1463 = vmatprep.subr.mxu0 0.0
        %1464 = vmatpush1.msra.mxu0 %v1391
        %1465 = vmatprep.subr.mxu0 0.0
        %1466 = vmatpush1.msra.mxu0 %v1392
        %1467 = vmatprep.subr.mxu0 0.0
        %1468 = vmatpush1.msra.mxu0 %v1393
        %1469 = vmatprep.subr.mxu0 0.0
        %1470 = vmatpush1.msra.mxu0 %v1394
        %1471 = vmatprep.subr.mxu0 0.0
        %1472 = vmatpush1.msra.mxu0 %v1395
        %1473 = vmatprep.subr.mxu0 0.0
        %1474 = vmatpush1.msra.mxu0 %v1396
        %1475 = vmatprep.subr.mxu0 0.0
        %1476 = vmatpush1.msra.mxu0 %v1397
        %1477 = vmatprep.subr.mxu0 0.0
        %1478 = vmatpush1.msra.mxu0 %v1398
        %1479 = vmatprep.mubr.f32.mxu0 %v1272
        %1480 = vmatmul.mubr.f32.gmra.mrb[0].mxu0 %v1271
        %v1481 = vpop.f32.mrb[0].mxu0
        %v1482 = vadd.f32 0.0, %v1481
        %v1483 = vpop.f32.mrb[0].mxu0
        %1484 = vmatprep.mubr.f32.mxu0 %v1275
        %1485 = vmatmul.mubr.f32.gmra.mrb[0].mxu0 %v1274
        %v1486 = vpop.f32.mrb[0].mxu0
        %v1487 = vadd.f32 0.0, %v1486
        %v1488 = vpop.f32.mrb[0].mxu0
        %1489 = vmatprep.mubr.f32.mxu0 %v1278
        %1490 = vmatmul.mubr.f32.gmra.mrb[0].mxu0 %v1277
        %v1491 = vpop.f32.mrb[0].mxu0
        %v1492 = vadd.f32 0.0, %v1491
        %v1493 = vpop.f32.mrb[0].mxu0
        %1494 = vmatprep.mubr.f32.mxu0 %v1281
        %1495 = vmatmul.mubr.f32.gmra.mrb[0].mxu0 %v1280
        %v1496 = vpop.f32.mrb[0].mxu0
        %v1497 = vadd.f32 0.0, %v1496
        %v1498 = vpop.f32.mrb[0].mxu0
        %1499 = vmatprep.mubr.f32.mxu0 %v1284
        %1500 = vmatmul.mubr.f32.gmra.mrb[0].mxu0 %v1283
        %v1501 = vpop.f32.mrb[0].mxu0
        %v1502 = vadd.f32 0.0, %v1501
        %v1503 = vpop.f32.mrb[0].mxu0
        %1504 = vmatprep.mubr.f32.mxu0 %v1287
        %1505 = vmatmul.mubr.f32.gmra.mrb[0].mxu0 %v1286
        %v1506 = vpop.f32.mrb[0].mxu0
        %v1507 = vadd.f32 0.0, %v1506
        %v1508 = vpop.f32.mrb[0].mxu0
        %1509 = vmatprep.mubr.f32.mxu0 %v1290
        %1510 = vmatmul.mubr.f32.gmra.mrb[0].mxu0 %v1289
        %v1511 = vpop.f32.mrb[0].mxu0
        %v1512 = vadd.f32 0.0, %v1511
        %v1513 = vpop.f32.mrb[0].mxu0
        %1514 = vmatprep.mubr.f32.mxu0 %v1293
        %1515 = vmatmul.mubr.f32.gmra.mrb[0].mxu0 %v1292
        %v1516 = vpop.f32.mrb[0].mxu0
        %v1517 = vadd.f32 0.0, %v1516
        %v1518 = vpop.f32.mrb[0].mxu0
        %1519 = vmatprep.mubr.f32.mxu0 %v1296
        %1520 = vmatmul.mubr.f32.gmra.mrb[0].mxu0 %v1295
        %v1521 = vpop.f32.mrb[0].mxu0
        %v1522 = vadd.f32 0.0, %v1521
        %v1523 = vpop.f32.mrb[0].mxu0
        %1524 = vmatprep.mubr.f32.mxu0 %v1299
        %1525 = vmatmul.mubr.f32.gmra.mrb[0].mxu0 %v1298
        %v1526 = vpop.f32.mrb[0].mxu0
        %v1527 = vadd.f32 0.0, %v1526
        %v1528 = vpop.f32.mrb[0].mxu0
        %1529 = vmatprep.mubr.f32.mxu0 %v1302
        %1530 = vmatmul.mubr.f32.gmra.mrb[0].mxu0 %v1301
        %v1531 = vpop.f32.mrb[0].mxu0
        %v1532 = vadd.f32 0.0, %v1531
        %v1533 = vpop.f32.mrb[0].mxu0
        %1534 = vmatprep.mubr.f32.mxu0 %v1305
        %1535 = vmatmul.mubr.f32.gmra.mrb[0].mxu0 %v1304
        %v1536 = vpop.f32.mrb[0].mxu0
        %v1537 = vadd.f32 0.0, %v1536
        %v1538 = vpop.f32.mrb[0].mxu0
        %1539 = vmatprep.mubr.f32.mxu0 %v1308
        %1540 = vmatmul.mubr.f32.gmra.mrb[0].mxu0 %v1307
        %v1541 = vpop.f32.mrb[0].mxu0
        %v1542 = vadd.f32 0.0, %v1541
        %v1543 = vpop.f32.mrb[0].mxu0
        %1544 = vmatprep.mubr.f32.mxu0 %v1311
        %1545 = vmatmul.mubr.f32.gmra.mrb[0].mxu0 %v1310
        %v1546 = vpop.f32.mrb[0].mxu0
        %v1547 = vadd.f32 0.0, %v1546
        %v1548 = vpop.f32.mrb[0].mxu0
        %1549 = vmatprep.mubr.f32.mxu0 %v1314
        %1550 = vmatmul.mubr.f32.gmra.mrb[0].mxu0 %v1313
        %v1551 = vpop.f32.mrb[0].mxu0
        %v1552 = vadd.f32 0.0, %v1551
        %v1553 = vpop.f32.mrb[0].mxu0
        %1554 = vmatprep.mubr.f32.mxu0 %v1317
        %1555 = vmatmul.mubr.f32.gmra.mrb[0].mxu0 %v1316
        %v1556 = vpop.f32.mrb[0].mxu0
        %v1557 = vadd.f32 0.0, %v1556
        %v1558 = vpop.f32.mrb[0].mxu0
        %1559 = vmatprep.mubr.f32.mxu0 %v1320
        %1560 = vmatmul.mubr.f32.gmra.mrb[0].mxu0 %v1319
        %v1561 = vpop.f32.mrb[0].mxu0
        %v1562 = vadd.f32 0.0, %v1561
        %v1563 = vpop.f32.mrb[0].mxu0
        %1564 = vmatprep.mubr.f32.mxu0 %v1323
        %1565 = vmatmul.mubr.f32.gmra.mrb[0].mxu0 %v1322
        %v1566 = vpop.f32.mrb[0].mxu0
        %v1567 = vadd.f32 0.0, %v1566
        %v1568 = vpop.f32.mrb[0].mxu0
        %1569 = vmatprep.mubr.f32.mxu0 %v1326
        %1570 = vmatmul.mubr.f32.gmra.mrb[0].mxu0 %v1325
        %v1571 = vpop.f32.mrb[0].mxu0
        %v1572 = vadd.f32 0.0, %v1571
        %v1573 = vpop.f32.mrb[0].mxu0
        %1574 = vmatprep.mubr.f32.mxu0 %v1329
        %1575 = vmatmul.mubr.f32.gmra.mrb[0].mxu0 %v1328
        %v1576 = vpop.f32.mrb[0].mxu0
        %v1577 = vadd.f32 0.0, %v1576
        %v1578 = vpop.f32.mrb[0].mxu0
        %1579 = vmatprep.mubr.f32.mxu0 %v1332
        %1580 = vmatmul.mubr.f32.gmra.mrb[0].mxu0 %v1331
        %v1581 = vpop.f32.mrb[0].mxu0
        %v1582 = vadd.f32 0.0, %v1581
        %v1583 = vpop.f32.mrb[0].mxu0
        %1584 = vmatprep.mubr.f32.mxu0 %v1335
        %1585 = vmatmul.mubr.f32.gmra.mrb[0].mxu0 %v1334
        %v1586 = vpop.f32.mrb[0].mxu0
        %v1587 = vadd.f32 0.0, %v1586
        %v1588 = vpop.f32.mrb[0].mxu0
        %1589 = vmatprep.mubr.f32.mxu0 %v1338
        %1590 = vmatmul.mubr.f32.gmra.mrb[0].mxu0 %v1337
        %v1591 = vpop.f32.mrb[0].mxu0
        %v1592 = vadd.f32 0.0, %v1591
        %v1593 = vpop.f32.mrb[0].mxu0
        %1594 = vmatprep.mubr.f32.mxu0 %v1341
        %1595 = vmatmul.mubr.f32.gmra.mrb[0].mxu0 %v1340
        %v1596 = vpop.f32.mrb[0].mxu0
        %v1597 = vadd.f32 0.0, %v1596
        %v1598 = vpop.f32.mrb[0].mxu0
        %1599 = vmatprep.mubr.f32.mxu0 %v1344
        %1600 = vmatmul.mubr.f32.gmra.mrb[0].mxu0 %v1343
        %v1601 = vpop.f32.mrb[0].mxu0
        %v1602 = vadd.f32 0.0, %v1601
        %v1603 = vpop.f32.mrb[0].mxu0
        %1604 = vmatprep.mubr.f32.mxu0 %v1347
        %1605 = vmatmul.mubr.f32.gmra.mrb[0].mxu0 %v1346
        %v1606 = vpop.f32.mrb[0].mxu0
        %v1607 = vadd.f32 0.0, %v1606
        %v1608 = vpop.f32.mrb[0].mxu0
        %1609 = vmatprep.mubr.f32.mxu0 %v1350
        %1610 = vmatmul.mubr.f32.gmra.mrb[0].mxu0 %v1349
        %v1611 = vpop.f32.mrb[0].mxu0
        %v1612 = vadd.f32 0.0, %v1611
        %v1613 = vpop.f32.mrb[0].mxu0
        %1614 = vmatprep.mubr.f32.mxu0 %v1353
        %1615 = vmatmul.mubr.f32.gmra.mrb[0].mxu0 %v1352
        %v1616 = vpop.f32.mrb[0].mxu0
        %v1617 = vadd.f32 0.0, %v1616
        %v1618 = vpop.f32.mrb[0].mxu0
        %1619 = vmatprep.mubr.f32.mxu0 %v1356
        %1620 = vmatmul.mubr.f32.gmra.mrb[0].mxu0 %v1355
        %v1621 = vpop.f32.mrb[0].mxu0
        %v1622 = vadd.f32 0.0, %v1621
        %v1623 = vpop.f32.mrb[0].mxu0
        %1624 = vmatprep.mubr.f32.mxu0 %v1359
        %1625 = vmatmul.mubr.f32.gmra.mrb[0].mxu0 %v1358
        %v1626 = vpop.f32.mrb[0].mxu0
        %v1627 = vadd.f32 0.0, %v1626
        %v1628 = vpop.f32.mrb[0].mxu0
        %1629 = vmatprep.mubr.f32.mxu0 %v1362
        %1630 = vmatmul.mubr.f32.gmra.mrb[0].mxu0 %v1361
        %v1631 = vpop.f32.mrb[0].mxu0
        %v1632 = vadd.f32 0.0, %v1631
        %v1633 = vpop.f32.mrb[0].mxu0
        %1634 = vmatprep.mubr.f32.mxu0 %v1365
        %1635 = vmatmul.mubr.f32.gmra.mrb[0].mxu0 %v1364
        %v1636 = vpop.f32.mrb[0].mxu0
        %v1637 = vadd.f32 0.0, %v1636
        %v1638 = vpop.f32.mrb[0].mxu0
        %1639 = vdwg.mxu0
        %1640 = vmatprep.subr.mxu0 0.0
        %1641 = vmatpush1.msra.mxu0 %v1399
        %1642 = vmatprep.subr.mxu0 0.0
        %1643 = vmatpush1.msra.mxu0 %v1400
        %1644 = vmatprep.subr.mxu0 0.0
        %1645 = vmatpush1.msra.mxu0 %v1401
        %1646 = vmatprep.subr.mxu0 0.0
        %1647 = vmatpush1.msra.mxu0 %v1402
        %1648 = vmatprep.subr.mxu0 0.0
        %1649 = vmatpush1.msra.mxu0 %v1403
        %1650 = vmatprep.subr.mxu0 0.0
        %1651 = vmatpush1.msra.mxu0 %v1404
        %1652 = vmatprep.subr.mxu0 0.0
        %1653 = vmatpush1.msra.mxu0 %v1405
        %1654 = vmatprep.subr.mxu0 0.0
        %1655 = vmatpush1.msra.mxu0 %v1406
        %1656 = vmatprep.subr.mxu0 0.0
        %1657 = vmatpush1.msra.mxu0 %v1407
        %1658 = vmatprep.subr.mxu0 0.0
        %1659 = vmatpush1.msra.mxu0 %v1408
        %1660 = vmatprep.subr.mxu0 0.0
        %1661 = vmatpush1.msra.mxu0 %v1409
        %1662 = vmatprep.subr.mxu0 0.0
        %1663 = vmatpush1.msra.mxu0 %v1410
        %1664 = vmatprep.subr.mxu0 0.0
        %1665 = vmatpush1.msra.mxu0 %v1411
        %1666 = vmatprep.subr.mxu0 0.0
        %1667 = vmatpush1.msra.mxu0 %v1412
        %1668 = vmatprep.subr.mxu0 0.0
        %1669 = vmatpush1.msra.mxu0 %v1413
        %1670 = vmatprep.subr.mxu0 0.0
        %1671 = vmatpush1.msra.mxu0 %v1414
        %1672 = vmatprep.subr.mxu0 0.0
        %1673 = vmatpush1.msra.mxu0 0.0
        %1674 = vmatprep.subr.mxu0 0.0
        %1675 = vmatpush1.msra.mxu0 0.0
        %1676 = vmatprep.subr.mxu0 0.0
        %1677 = vmatpush1.msra.mxu0 0.0
        %1678 = vmatprep.subr.mxu0 0.0
        %1679 = vmatpush1.msra.mxu0 0.0
        %1680 = vmatprep.subr.mxu0 0.0
        %1681 = vmatpush1.msra.mxu0 0.0
        %1682 = vmatprep.subr.mxu0 0.0
        %1683 = vmatpush1.msra.mxu0 0.0
        %1684 = vmatprep.subr.mxu0 0.0
        %1685 = vmatpush1.msra.mxu0 0.0
        %1686 = vmatprep.subr.mxu0 0.0
        %1687 = vmatpush1.msra.mxu0 0.0
        %1688 = vmatprep.subr.mxu0 0.0
        %1689 = vmatpush1.msra.mxu0 0.0
        %1690 = vmatprep.subr.mxu0 0.0
        %1691 = vmatpush1.msra.mxu0 0.0
        %1692 = vmatprep.subr.mxu0 0.0
        %1693 = vmatpush1.msra.mxu0 0.0
        %1694 = vmatprep.subr.mxu0 0.0
        %1695 = vmatpush1.msra.mxu0 0.0
        %1696 = vmatprep.subr.mxu0 0.0
        %1697 = vmatpush1.msra.mxu0 0.0
        %1698 = vmatprep.subr.mxu0 0.0
        %1699 = vmatpush1.msra.mxu0 0.0
        %1700 = vmatprep.subr.mxu0 0.0
        %1701 = vmatpush1.msra.mxu0 0.0
        %1702 = vmatprep.subr.mxu0 0.0
        %1703 = vmatpush1.msra.mxu0 0.0
        %1704 = vmatprep.mubr.f32.mxu0 0.0
        %1705 = vmatmul.mubr.f32.gmra.mrb[0].mxu0 %v1273
        %v1706 = vpop.f32.mrb[0].mxu0
        %v1707 = vadd.f32 %v1482, %v1706
        %v1708 = vpop.f32.mrb[0].mxu0
        %1709 = vmatprep.mubr.f32.mxu0 0.0
        %1710 = vmatmul.mubr.f32.gmra.mrb[0].mxu0 %v1276
        %v1711 = vpop.f32.mrb[0].mxu0
        %v1712 = vadd.f32 %v1487, %v1711
        %v1713 = vpop.f32.mrb[0].mxu0
        %1714 = vmatprep.mubr.f32.mxu0 0.0
        %1715 = vmatmul.mubr.f32.gmra.mrb[0].mxu0 %v1279
        %v1716 = vpop.f32.mrb[0].mxu0
        %v1717 = vadd.f32 %v1492, %v1716
        %v1718 = vpop.f32.mrb[0].mxu0
        %1719 = vmatprep.mubr.f32.mxu0 0.0
        %1720 = vmatmul.mubr.f32.gmra.mrb[0].mxu0 %v1282
        %v1721 = vpop.f32.mrb[0].mxu0
        %v1722 = vadd.f32 %v1497, %v1721
        %v1723 = vpop.f32.mrb[0].mxu0
        %1724 = vmatprep.mubr.f32.mxu0 0.0
        %1725 = vmatmul.mubr.f32.gmra.mrb[0].mxu0 %v1285
        %v1726 = vpop.f32.mrb[0].mxu0
        %v1727 = vadd.f32 %v1502, %v1726
        %v1728 = vpop.f32.mrb[0].mxu0
        %1729 = vmatprep.mubr.f32.mxu0 0.0
        %1730 = vmatmul.mubr.f32.gmra.mrb[0].mxu0 %v1288
        %v1731 = vpop.f32.mrb[0].mxu0
        %v1732 = vadd.f32 %v1507, %v1731
        %v1733 = vpop.f32.mrb[0].mxu0
        %1734 = vmatprep.mubr.f32.mxu0 0.0
        %1735 = vmatmul.mubr.f32.gmra.mrb[0].mxu0 %v1291
        %v1736 = vpop.f32.mrb[0].mxu0
        %v1737 = vadd.f32 %v1512, %v1736
        %v1738 = vpop.f32.mrb[0].mxu0
        %1739 = vmatprep.mubr.f32.mxu0 0.0
        %1740 = vmatmul.mubr.f32.gmra.mrb[0].mxu0 %v1294
        %v1741 = vpop.f32.mrb[0].mxu0
        %v1742 = vadd.f32 %v1517, %v1741
        %v1743 = vpop.f32.mrb[0].mxu0
        %1744 = vmatprep.mubr.f32.mxu0 0.0
        %1745 = vmatmul.mubr.f32.gmra.mrb[0].mxu0 %v1297
        %v1746 = vpop.f32.mrb[0].mxu0
        %v1747 = vadd.f32 %v1522, %v1746
        %v1748 = vpop.f32.mrb[0].mxu0
        %1749 = vmatprep.mubr.f32.mxu0 0.0
        %1750 = vmatmul.mubr.f32.gmra.mrb[0].mxu0 %v1300
        %v1751 = vpop.f32.mrb[0].mxu0
        %v1752 = vadd.f32 %v1527, %v1751
        %v1753 = vpop.f32.mrb[0].mxu0
        %1754 = vmatprep.mubr.f32.mxu0 0.0
        %1755 = vmatmul.mubr.f32.gmra.mrb[0].mxu0 %v1303
        %v1756 = vpop.f32.mrb[0].mxu0
        %v1757 = vadd.f32 %v1532, %v1756
        %v1758 = vpop.f32.mrb[0].mxu0
        %1759 = vmatprep.mubr.f32.mxu0 0.0
        %1760 = vmatmul.mubr.f32.gmra.mrb[0].mxu0 %v1306
        %v1761 = vpop.f32.mrb[0].mxu0
        %v1762 = vadd.f32 %v1537, %v1761
        %v1763 = vpop.f32.mrb[0].mxu0
        %1764 = vmatprep.mubr.f32.mxu0 0.0
        %1765 = vmatmul.mubr.f32.gmra.mrb[0].mxu0 %v1309
        %v1766 = vpop.f32.mrb[0].mxu0
        %v1767 = vadd.f32 %v1542, %v1766
        %v1768 = vpop.f32.mrb[0].mxu0
        %1769 = vmatprep.mubr.f32.mxu0 0.0
        %1770 = vmatmul.mubr.f32.gmra.mrb[0].mxu0 %v1312
        %v1771 = vpop.f32.mrb[0].mxu0
        %v1772 = vadd.f32 %v1547, %v1771
        %v1773 = vpop.f32.mrb[0].mxu0
        %1774 = vmatprep.mubr.f32.mxu0 0.0
        %1775 = vmatmul.mubr.f32.gmra.mrb[0].mxu0 %v1315
        %v1776 = vpop.f32.mrb[0].mxu0
        %v1777 = vadd.f32 %v1552, %v1776
        %v1778 = vpop.f32.mrb[0].mxu0
        %1779 = vmatprep.mubr.f32.mxu0 0.0
        %1780 = vmatmul.mubr.f32.gmra.mrb[0].mxu0 %v1318
        %v1781 = vpop.f32.mrb[0].mxu0
        %v1782 = vadd.f32 %v1557, %v1781
        %v1783 = vpop.f32.mrb[0].mxu0
        %1784 = vmatprep.mubr.f32.mxu0 0.0
        %1785 = vmatmul.mubr.f32.gmra.mrb[0].mxu0 %v1321
        %v1786 = vpop.f32.mrb[0].mxu0
        %v1787 = vadd.f32 %v1562, %v1786
        %v1788 = vpop.f32.mrb[0].mxu0
        %1789 = vmatprep.mubr.f32.mxu0 0.0
        %1790 = vmatmul.mubr.f32.gmra.mrb[0].mxu0 %v1324
        %v1791 = vpop.f32.mrb[0].mxu0
        %v1792 = vadd.f32 %v1567, %v1791
        %v1793 = vpop.f32.mrb[0].mxu0
        %1794 = vmatprep.mubr.f32.mxu0 0.0
        %1795 = vmatmul.mubr.f32.gmra.mrb[0].mxu0 %v1327
        %v1796 = vpop.f32.mrb[0].mxu0
        %v1797 = vadd.f32 %v1572, %v1796
        %v1798 = vpop.f32.mrb[0].mxu0
        %1799 = vmatprep.mubr.f32.mxu0 0.0
        %1800 = vmatmul.mubr.f32.gmra.mrb[0].mxu0 %v1330
        %v1801 = vpop.f32.mrb[0].mxu0
        %v1802 = vadd.f32 %v1577, %v1801
        %v1803 = vpop.f32.mrb[0].mxu0
        %1804 = vmatprep.mubr.f32.mxu0 0.0
        %1805 = vmatmul.mubr.f32.gmra.mrb[0].mxu0 %v1333
        %v1806 = vpop.f32.mrb[0].mxu0
        %v1807 = vadd.f32 %v1582, %v1806
        %v1808 = vpop.f32.mrb[0].mxu0
        %1809 = vmatprep.mubr.f32.mxu0 0.0
        %1810 = vmatmul.mubr.f32.gmra.mrb[0].mxu0 %v1336
        %v1811 = vpop.f32.mrb[0].mxu0
        %v1812 = vadd.f32 %v1587, %v1811
        %v1813 = vpop.f32.mrb[0].mxu0
        %1814 = vmatprep.mubr.f32.mxu0 0.0
        %1815 = vmatmul.mubr.f32.gmra.mrb[0].mxu0 %v1339
        %v1816 = vpop.f32.mrb[0].mxu0
        %v1817 = vadd.f32 %v1592, %v1816
        %v1818 = vpop.f32.mrb[0].mxu0
        %1819 = vmatprep.mubr.f32.mxu0 0.0
        %1820 = vmatmul.mubr.f32.gmra.mrb[0].mxu0 %v1342
        %v1821 = vpop.f32.mrb[0].mxu0
        %v1822 = vadd.f32 %v1597, %v1821
        %v1823 = vpop.f32.mrb[0].mxu0
        %1824 = vmatprep.mubr.f32.mxu0 0.0
        %1825 = vmatmul.mubr.f32.gmra.mrb[0].mxu0 %v1345
        %v1826 = vpop.f32.mrb[0].mxu0
        %v1827 = vadd.f32 %v1602, %v1826
        %v1828 = vpop.f32.mrb[0].mxu0
        %1829 = vmatprep.mubr.f32.mxu0 0.0
        %1830 = vmatmul.mubr.f32.gmra.mrb[0].mxu0 %v1348
        %v1831 = vpop.f32.mrb[0].mxu0
        %v1832 = vadd.f32 %v1607, %v1831
        %v1833 = vpop.f32.mrb[0].mxu0
        %1834 = vmatprep.mubr.f32.mxu0 0.0
        %1835 = vmatmul.mubr.f32.gmra.mrb[0].mxu0 %v1351
        %v1836 = vpop.f32.mrb[0].mxu0
        %v1837 = vadd.f32 %v1612, %v1836
        %v1838 = vpop.f32.mrb[0].mxu0
        %1839 = vmatprep.mubr.f32.mxu0 0.0
        %1840 = vmatmul.mubr.f32.gmra.mrb[0].mxu0 %v1354
        %v1841 = vpop.f32.mrb[0].mxu0
        %v1842 = vadd.f32 %v1617, %v1841
        %v1843 = vpop.f32.mrb[0].mxu0
        %1844 = vmatprep.mubr.f32.mxu0 0.0
        %1845 = vmatmul.mubr.f32.gmra.mrb[0].mxu0 %v1357
        %v1846 = vpop.f32.mrb[0].mxu0
        %v1847 = vadd.f32 %v1622, %v1846
        %v1848 = vpop.f32.mrb[0].mxu0
        %1849 = vmatprep.mubr.f32.mxu0 0.0
        %1850 = vmatmul.mubr.f32.gmra.mrb[0].mxu0 %v1360
        %v1851 = vpop.f32.mrb[0].mxu0
        %v1852 = vadd.f32 %v1627, %v1851
        %v1853 = vpop.f32.mrb[0].mxu0
        %1854 = vmatprep.mubr.f32.mxu0 0.0
        %1855 = vmatmul.mubr.f32.gmra.mrb[0].mxu0 %v1363
        %v1856 = vpop.f32.mrb[0].mxu0
        %v1857 = vadd.f32 %v1632, %v1856
        %v1858 = vpop.f32.mrb[0].mxu0
        %1859 = vmatprep.mubr.f32.mxu0 0.0
        %1860 = vmatmul.mubr.f32.gmra.mrb[0].mxu0 %v1366
        %v1861 = vpop.f32.mrb[0].mxu0
        %v1862 = vadd.f32 %v1637, %v1861
        %v1863 = vpop.f32.mrb[0].mxu0
        %1864 = vdwg.mxu0
        %v1865 = vadd.f32 %v1239, %v1707
        %v1866 = vadd.f32 %v1240, %v1712
        %v1867 = vadd.f32 %v1241, %v1717
        %v1868 = vadd.f32 %v1242, %v1722
        %v1869 = vadd.f32 %v1243, %v1727
        %v1870 = vadd.f32 %v1244, %v1732
        %v1871 = vadd.f32 %v1245, %v1737
        %v1872 = vadd.f32 %v1246, %v1742
        %v1873 = vadd.f32 %v1247, %v1747
        %v1874 = vadd.f32 %v1248, %v1752
        %v1875 = vadd.f32 %v1249, %v1757
        %v1876 = vadd.f32 %v1250, %v1762
        %v1877 = vadd.f32 %v1251, %v1767
        %v1878 = vadd.f32 %v1252, %v1772
        %v1879 = vadd.f32 %v1253, %v1777
        %v1880 = vadd.f32 %v1254, %v1782
        %v1881 = vadd.f32 %v1255, %v1787
        %v1882 = vadd.f32 %v1256, %v1792
        %v1883 = vadd.f32 %v1257, %v1797
        %v1884 = vadd.f32 %v1258, %v1802
        %v1885 = vadd.f32 %v1259, %v1807
        %v1886 = vadd.f32 %v1260, %v1812
        %v1887 = vadd.f32 %v1261, %v1817
        %v1888 = vadd.f32 %v1262, %v1822
        %v1889 = vadd.f32 %v1263, %v1827
        %v1890 = vadd.f32 %v1264, %v1832
        %v1891 = vadd.f32 %v1265, %v1837
        %v1892 = vadd.f32 %v1266, %v1842
        %v1893 = vadd.f32 %v1267, %v1847
        %v1894 = vadd.f32 %v1268, %v1852
        %v1895 = vadd.f32 %v1269, %v1857
        %v1896 = vadd.f32 %v1270, %v1862
        %1897 = vst [vmem:[#allocation3] sm:$0xff] %v1865
        %1898 = vst [vmem:[#allocation3 + $0x8] sm:$0xff] %v1866
        %1899 = vst [vmem:[#allocation3 + $0x10] sm:$0xff] %v1867
        %1900 = vst [vmem:[#allocation3 + $0x18] sm:$0xff] %v1868
        %1901 = vst [vmem:[#allocation3 + $0x20] sm:$0xff] %v1869
        %1902 = vst [vmem:[#allocation3 + $0x28] sm:$0xff] %v1870
        %1903 = vst [vmem:[#allocation3 + $0x30] sm:$0xff] %v1871
        %1904 = vst [vmem:[#allocation3 + $0x38] sm:$0xff] %v1872
        %1905 = vst [vmem:[#allocation3 + $0x40] sm:$0xff] %v1873
        %1906 = vst [vmem:[#allocation3 + $0x48] sm:$0xff] %v1874
        %1907 = vst [vmem:[#allocation3 + $0x50] sm:$0xff] %v1875
        %1908 = vst [vmem:[#allocation3 + $0x58] sm:$0xff] %v1876
        %1909 = vst [vmem:[#allocation3 + $0x60] sm:$0xff] %v1877
        %1910 = vst [vmem:[#allocation3 + $0x68] sm:$0xff] %v1878
        %1911 = vst [vmem:[#allocation3 + $0x70] sm:$0xff] %v1879
        %1912 = vst [vmem:[#allocation3 + $0x78] sm:$0xff] %v1880
        %1913 = vst [vmem:[#allocation3 + $0x80] sm:$0xff] %v1881
        %1914 = vst [vmem:[#allocation3 + $0x88] sm:$0xff] %v1882
        %1915 = vst [vmem:[#allocation3 + $0x90] sm:$0xff] %v1883
        %1916 = vst [vmem:[#allocation3 + $0x98] sm:$0xff] %v1884
        %1917 = vst [vmem:[#allocation3 + $0xa0] sm:$0xff] %v1885
        %1918 = vst [vmem:[#allocation3 + $0xa8] sm:$0xff] %v1886
        %1919 = vst [vmem:[#allocation3 + $0xb0] sm:$0xff] %v1887
        %1920 = vst [vmem:[#allocation3 + $0xb8] sm:$0xff] %v1888
        %1921 = vst [vmem:[#allocation3 + $0xc0] sm:$0xff] %v1889
        %1922 = vst [vmem:[#allocation3 + $0xc8] sm:$0xff] %v1890
        %1923 = vst [vmem:[#allocation3 + $0xd0] sm:$0xff] %v1891
        %1924 = vst [vmem:[#allocation3 + $0xd8] sm:$0xff] %v1892
        %1925 = vst [vmem:[#allocation3 + $0xe0] sm:$0xff] %v1893
        %1926 = vst [vmem:[#allocation3 + $0xe8] sm:$0xff] %v1894
        %1927 = vst [vmem:[#allocation3 + $0xf0] sm:$0xff] %v1895
        %1928 = vst [vmem:[#allocation3 + $0xf8] sm:$0xff] %v1896
        %v1929 = vld [vmem:[#allocation3] sm:$0xff]
        %v1930 = vld [vmem:[#allocation3 + $0x8] sm:$0xff]
        %v1931 = vld [vmem:[#allocation3 + $0x10] sm:$0xff]
        %v1932 = vld [vmem:[#allocation3 + $0x18] sm:$0xff]
        %v1933 = vld [vmem:[#allocation3 + $0x20] sm:$0xff]
        %v1934 = vld [vmem:[#allocation3 + $0x28] sm:$0xff]
        %v1935 = vld [vmem:[#allocation3 + $0x30] sm:$0xff]
        %v1936 = vld [vmem:[#allocation3 + $0x38] sm:$0xff]
        %v1937 = vld [vmem:[#allocation3 + $0x40] sm:$0xff]
        %v1938 = vld [vmem:[#allocation3 + $0x48] sm:$0xff]
        %v1939 = vld [vmem:[#allocation3 + $0x50] sm:$0xff]
        %v1940 = vld [vmem:[#allocation3 + $0x58] sm:$0xff]
        %v1941 = vld [vmem:[#allocation3 + $0x60] sm:$0xff]
        %v1942 = vld [vmem:[#allocation3 + $0x68] sm:$0xff]
        %v1943 = vld [vmem:[#allocation3 + $0x70] sm:$0xff]
        %v1944 = vld [vmem:[#allocation3 + $0x78] sm:$0xff]
        %v1945 = vld [vmem:[#allocation3 + $0x80] sm:$0xff]
        %v1946 = vld [vmem:[#allocation3 + $0x88] sm:$0xff]
        %v1947 = vld [vmem:[#allocation3 + $0x90] sm:$0xff]
        %v1948 = vld [vmem:[#allocation3 + $0x98] sm:$0xff]
        %v1949 = vld [vmem:[#allocation3 + $0xa0] sm:$0xff]
        %v1950 = vld [vmem:[#allocation3 + $0xa8] sm:$0xff]
        %v1951 = vld [vmem:[#allocation3 + $0xb0] sm:$0xff]
        %v1952 = vld [vmem:[#allocation3 + $0xb8] sm:$0xff]
        %v1953 = vld [vmem:[#allocation3 + $0xc0] sm:$0xff]
        %v1954 = vld [vmem:[#allocation3 + $0xc8] sm:$0xff]
        %v1955 = vld [vmem:[#allocation3 + $0xd0] sm:$0xff]
        %v1956 = vld [vmem:[#allocation3 + $0xd8] sm:$0xff]
        %v1957 = vld [vmem:[#allocation3 + $0xe0] sm:$0xff]
        %v1958 = vld [vmem:[#allocation3 + $0xe8] sm:$0xff]
        %v1959 = vld [vmem:[#allocation3 + $0xf0] sm:$0xff]
        %v1960 = vld [vmem:[#allocation3 + $0xf8] sm:$0xff]
        %v1961 = vld [vmem:[%s1110] sm:$0xff]
        %v1962 = vld [vmem:[%s1110 + $0x8] sm:$0xff]
        %v1963 = vld [vmem:[%s1110 + $0x10] sm:$0xff]
        %v1964 = vld [vmem:[%s1110 + $0x18] sm:$0xff]
        %v1965 = vld [vmem:[%s1110 + $0x20] sm:$0xff]
        %v1966 = vld [vmem:[%s1110 + $0x28] sm:$0xff]
        %v1967 = vld [vmem:[%s1110 + $0x30] sm:$0xff]
        %v1968 = vld [vmem:[%s1110 + $0x38] sm:$0xff]
        %v1969 = vld [vmem:[%s1110 + $0x40] sm:$0xff]
        %v1970 = vld [vmem:[%s1110 + $0x48] sm:$0xff]
        %v1971 = vld [vmem:[%s1110 + $0x50] sm:$0xff]
        %v1972 = vld [vmem:[%s1110 + $0x58] sm:$0xff]
        %v1973 = vld [vmem:[%s1110 + $0x60] sm:$0xff]
        %v1974 = vld [vmem:[%s1110 + $0x68] sm:$0xff]
        %v1975 = vld [vmem:[%s1110 + $0x70] sm:$0xff]
        %v1976 = vld [vmem:[%s1110 + $0x78] sm:$0xff]
        %v1977 = vld [vmem:[%s1110 + $0x80] sm:$0xff]
        %v1978 = vld [vmem:[%s1110 + $0x88] sm:$0xff]
        %v1979 = vld [vmem:[%s1110 + $0x90] sm:$0xff]
        %v1980 = vld [vmem:[%s1110 + $0x98] sm:$0xff]
        %v1981 = vld [vmem:[%s1110 + $0xa0] sm:$0xff]
        %v1982 = vld [vmem:[%s1110 + $0xa8] sm:$0xff]
        %v1983 = vld [vmem:[%s1110 + $0xb0] sm:$0xff]
        %v1984 = vld [vmem:[%s1110 + $0xb8] sm:$0xff]
        %v1985 = vld [vmem:[%s1110 + $0xc0] sm:$0xff]
        %v1986 = vld [vmem:[%s1110 + $0xc8] sm:$0xff]
        %v1987 = vld [vmem:[%s1110 + $0xd0] sm:$0xff]
        %v1988 = vld [vmem:[%s1110 + $0xd8] sm:$0xff]
        %v1989 = vld [vmem:[%s1110 + $0xe0] sm:$0xff]
        %v1990 = vld [vmem:[%s1110 + $0xe8] sm:$0xff]
        %v1991 = vld [vmem:[%s1110 + $0xf0] sm:$0xff]
        %v1992 = vld [vmem:[%s1110 + $0xf8] sm:$0xff]
        %v1993 = vld [vmem:[%s1110 + $0x100] sm:$0xff]
        %v1994 = vld [vmem:[%s1110 + $0x108] sm:$0xff]
        %v1995 = vld [vmem:[%s1110 + $0x110] sm:$0xff]
        %v1996 = vld [vmem:[%s1110 + $0x118] sm:$0xff]
        %v1997 = vld [vmem:[%s1110 + $0x120] sm:$0xff]
        %v1998 = vld [vmem:[%s1110 + $0x128] sm:$0xff]
        %v1999 = vld [vmem:[%s1110 + $0x130] sm:$0xff]
        %v2000 = vld [vmem:[%s1110 + $0x138] sm:$0xff]
        %v2001 = vld [vmem:[%s1110 + $0x140] sm:$0xff]
        %v2002 = vld [vmem:[%s1110 + $0x148] sm:$0xff]
        %v2003 = vld [vmem:[%s1110 + $0x150] sm:$0xff]
        %v2004 = vld [vmem:[%s1110 + $0x158] sm:$0xff]
        %v2005 = vld [vmem:[%s1110 + $0x160] sm:$0xff]
        %v2006 = vld [vmem:[%s1110 + $0x168] sm:$0xff]
        %v2007 = vld [vmem:[%s1110 + $0x170] sm:$0xff]
        %v2008 = vld [vmem:[%s1110 + $0x178] sm:$0xff]
        %v2009 = vld [vmem:[%s1110 + $0x180] sm:$0xff]
        %v2010 = vld [vmem:[%s1110 + $0x188] sm:$0xff]
        %v2011 = vld [vmem:[%s1110 + $0x190] sm:$0xff]
        %v2012 = vld [vmem:[%s1110 + $0x198] sm:$0xff]
        %v2013 = vld [vmem:[%s1110 + $0x1a0] sm:$0xff]
        %v2014 = vld [vmem:[%s1110 + $0x1a8] sm:$0xff]
        %v2015 = vld [vmem:[%s1110 + $0x1b0] sm:$0xff]
        %v2016 = vld [vmem:[%s1110 + $0x1b8] sm:$0xff]
        %v2017 = vld [vmem:[%s1110 + $0x1c0] sm:$0xff]
        %v2018 = vld [vmem:[%s1110 + $0x1c8] sm:$0xff]
        %v2019 = vld [vmem:[%s1110 + $0x1d0] sm:$0xff]
        %v2020 = vld [vmem:[%s1110 + $0x1d8] sm:$0xff]
        %v2021 = vld [vmem:[%s1110 + $0x1e0] sm:$0xff]
        %v2022 = vld [vmem:[%s1110 + $0x1e8] sm:$0xff]
        %v2023 = vld [vmem:[%s1110 + $0x1f0] sm:$0xff]
        %v2024 = vld [vmem:[%s1110 + $0x1f8] sm:$0xff]
        %v2025 = vld [vmem:[%s1110 + $0x200] sm:$0xff]
        %v2026 = vld [vmem:[%s1110 + $0x208] sm:$0xff]
        %v2027 = vld [vmem:[%s1110 + $0x210] sm:$0xff]
        %v2028 = vld [vmem:[%s1110 + $0x218] sm:$0xff]
        %v2029 = vld [vmem:[%s1110 + $0x220] sm:$0xff]
        %v2030 = vld [vmem:[%s1110 + $0x228] sm:$0xff]
        %v2031 = vld [vmem:[%s1110 + $0x230] sm:$0xff]
        %v2032 = vld [vmem:[%s1110 + $0x238] sm:$0xff]
        %v2033 = vld [vmem:[%s1110 + $0x240] sm:$0xff]
        %v2034 = vld [vmem:[%s1110 + $0x248] sm:$0xff]
        %v2035 = vld [vmem:[%s1110 + $0x250] sm:$0xff]
        %v2036 = vld [vmem:[%s1110 + $0x258] sm:$0xff]
        %v2037 = vld [vmem:[%s1110 + $0x260] sm:$0xff]
        %v2038 = vld [vmem:[%s1110 + $0x268] sm:$0xff]
        %v2039 = vld [vmem:[%s1110 + $0x270] sm:$0xff]
        %v2040 = vld [vmem:[%s1110 + $0x278] sm:$0xff]
        %v2041 = vld [vmem:[%s1110 + $0x280] sm:$0xff]
        %v2042 = vld [vmem:[%s1110 + $0x288] sm:$0xff]
        %v2043 = vld [vmem:[%s1110 + $0x290] sm:$0xff]
        %v2044 = vld [vmem:[%s1110 + $0x298] sm:$0xff]
        %v2045 = vld [vmem:[%s1110 + $0x2a0] sm:$0xff]
        %v2046 = vld [vmem:[%s1110 + $0x2a8] sm:$0xff]
        %v2047 = vld [vmem:[%s1110 + $0x2b0] sm:$0xff]
        %v2048 = vld [vmem:[%s1110 + $0x2b8] sm:$0xff]
        %v2049 = vld [vmem:[%s1110 + $0x2c0] sm:$0xff]
        %v2050 = vld [vmem:[%s1110 + $0x2c8] sm:$0xff]
        %v2051 = vld [vmem:[%s1110 + $0x2d0] sm:$0xff]
        %v2052 = vld [vmem:[%s1110 + $0x2d8] sm:$0xff]
        %v2053 = vld [vmem:[%s1110 + $0x2e0] sm:$0xff]
        %v2054 = vld [vmem:[%s1110 + $0x2e8] sm:$0xff]
        %v2055 = vld [vmem:[%s1110 + $0x2f0] sm:$0xff]
        %v2056 = vld [vmem:[%s1110 + $0x2f8] sm:$0xff]
        %s2057 = scalar_lea.vmem [#allocation10], 384
        %v2058 = vld [vmem:[%s2057] sm:$0xff]
        %v2059 = vld [vmem:[%s2057 + $0x8] sm:$0xff]
        %v2060 = vld [vmem:[%s2057 + $0x10] sm:$0xff]
        %v2061 = vld [vmem:[%s2057 + $0x18] sm:$0xff]
        %v2062 = vld [vmem:[%s2057 + $0x20] sm:$0xff]
        %v2063 = vld [vmem:[%s2057 + $0x28] sm:$0xff]
        %v2064 = vld [vmem:[%s2057 + $0x30] sm:$0xff]
        %v2065 = vld [vmem:[%s2057 + $0x38] sm:$0xff]
        %v2066 = vld [vmem:[%s2057 + $0x40] sm:$0xff]
        %v2067 = vld [vmem:[%s2057 + $0x48] sm:$0xff]
        %v2068 = vld [vmem:[%s2057 + $0x50] sm:$0xff]
        %v2069 = vld [vmem:[%s2057 + $0x58] sm:$0xff]
        %v2070 = vld [vmem:[%s2057 + $0x60] sm:$0xff]
        %v2071 = vld [vmem:[%s2057 + $0x68] sm:$0xff]
        %v2072 = vld [vmem:[%s2057 + $0x70] sm:$0xff]
        %v2073 = vld [vmem:[%s2057 + $0x78] sm:$0xff]
        %v2074 = vld [vmem:[%s2057 + $0x80] sm:$0xff]
        %v2075 = vld [vmem:[%s2057 + $0x88] sm:$0xff]
        %v2076 = vld [vmem:[%s2057 + $0x90] sm:$0xff]
        %v2077 = vld [vmem:[%s2057 + $0x98] sm:$0xff]
        %v2078 = vld [vmem:[%s2057 + $0xa0] sm:$0xff]
        %v2079 = vld [vmem:[%s2057 + $0xa8] sm:$0xff]
        %v2080 = vld [vmem:[%s2057 + $0xb0] sm:$0xff]
        %v2081 = vld [vmem:[%s2057 + $0xb8] sm:$0xff]
        %v2082 = vld [vmem:[%s2057 + $0xc0] sm:$0xff]
        %v2083 = vld [vmem:[%s2057 + $0xc8] sm:$0xff]
        %v2084 = vld [vmem:[%s2057 + $0xd0] sm:$0xff]
        %v2085 = vld [vmem:[%s2057 + $0xd8] sm:$0xff]
        %v2086 = vld [vmem:[%s2057 + $0xe0] sm:$0xff]
        %v2087 = vld [vmem:[%s2057 + $0xe8] sm:$0xff]
        %v2088 = vld [vmem:[%s2057 + $0xf0] sm:$0xff]
        %v2089 = vld [vmem:[%s2057 + $0xf8] sm:$0xff]
        %v2090 = vld [vmem:[%s2057 + $0x100] sm:$0xff]
        %v2091 = vld [vmem:[%s2057 + $0x108] sm:$0xff]
        %v2092 = vld [vmem:[%s2057 + $0x110] sm:$0xff]
        %v2093 = vld [vmem:[%s2057 + $0x118] sm:$0xff]
        %v2094 = vld [vmem:[%s2057 + $0x120] sm:$0xff]
        %v2095 = vld [vmem:[%s2057 + $0x128] sm:$0xff]
        %v2096 = vld [vmem:[%s2057 + $0x130] sm:$0xff]
        %v2097 = vld [vmem:[%s2057 + $0x138] sm:$0xff]
        %v2098 = vld [vmem:[%s2057 + $0x140] sm:$0xff]
        %v2099 = vld [vmem:[%s2057 + $0x148] sm:$0xff]
        %v2100 = vld [vmem:[%s2057 + $0x150] sm:$0xff]
        %v2101 = vld [vmem:[%s2057 + $0x158] sm:$0xff]
        %v2102 = vld [vmem:[%s2057 + $0x160] sm:$0xff]
        %v2103 = vld [vmem:[%s2057 + $0x168] sm:$0xff]
        %v2104 = vld [vmem:[%s2057 + $0x170] sm:$0xff]
        %v2105 = vld [vmem:[%s2057 + $0x178] sm:$0xff]
        %2106 = vmatprep.subr.mxu0 0.0
        %2107 = vmatpush1.msra.mxu0 %v2058
        %2108 = vmatprep.subr.mxu0 0.0
        %2109 = vmatpush1.msra.mxu0 %v2059
        %2110 = vmatprep.subr.mxu0 0.0
        %2111 = vmatpush1.msra.mxu0 %v2060
        %2112 = vmatprep.subr.mxu0 0.0
        %2113 = vmatpush1.msra.mxu0 %v2061
        %2114 = vmatprep.subr.mxu0 0.0
        %2115 = vmatpush1.msra.mxu0 %v2062
        %2116 = vmatprep.subr.mxu0 0.0
        %2117 = vmatpush1.msra.mxu0 %v2063
        %2118 = vmatprep.subr.mxu0 0.0
        %2119 = vmatpush1.msra.mxu0 %v2064
        %2120 = vmatprep.subr.mxu0 0.0
        %2121 = vmatpush1.msra.mxu0 %v2065
        %2122 = vmatprep.subr.mxu0 0.0
        %2123 = vmatpush1.msra.mxu0 %v2066
        %2124 = vmatprep.subr.mxu0 0.0
        %2125 = vmatpush1.msra.mxu0 %v2067
        %2126 = vmatprep.subr.mxu0 0.0
        %2127 = vmatpush1.msra.mxu0 %v2068
        %2128 = vmatprep.subr.mxu0 0.0
        %2129 = vmatpush1.msra.mxu0 %v2069
        %2130 = vmatprep.subr.mxu0 0.0
        %2131 = vmatpush1.msra.mxu0 %v2070
        %2132 = vmatprep.subr.mxu0 0.0
        %2133 = vmatpush1.msra.mxu0 %v2071
        %2134 = vmatprep.subr.mxu0 0.0
        %2135 = vmatpush1.msra.mxu0 %v2072
        %2136 = vmatprep.subr.mxu0 0.0
        %2137 = vmatpush1.msra.mxu0 %v2073
        %2138 = vmatprep.subr.mxu0 0.0
        %2139 = vmatpush1.msra.mxu0 %v2074
        %2140 = vmatprep.subr.mxu0 0.0
        %2141 = vmatpush1.msra.mxu0 %v2075
        %2142 = vmatprep.subr.mxu0 0.0
        %2143 = vmatpush1.msra.mxu0 %v2076
        %2144 = vmatprep.subr.mxu0 0.0
        %2145 = vmatpush1.msra.mxu0 %v2077
        %2146 = vmatprep.subr.mxu0 0.0
        %2147 = vmatpush1.msra.mxu0 %v2078
        %2148 = vmatprep.subr.mxu0 0.0
        %2149 = vmatpush1.msra.mxu0 %v2079
        %2150 = vmatprep.subr.mxu0 0.0
        %2151 = vmatpush1.msra.mxu0 %v2080
        %2152 = vmatprep.subr.mxu0 0.0
        %2153 = vmatpush1.msra.mxu0 %v2081
        %2154 = vmatprep.subr.mxu0 0.0
        %2155 = vmatpush1.msra.mxu0 %v2082
        %2156 = vmatprep.subr.mxu0 0.0
        %2157 = vmatpush1.msra.mxu0 %v2083
        %2158 = vmatprep.subr.mxu0 0.0
        %2159 = vmatpush1.msra.mxu0 %v2084
        %2160 = vmatprep.subr.mxu0 0.0
        %2161 = vmatpush1.msra.mxu0 %v2085
        %2162 = vmatprep.subr.mxu0 0.0
        %2163 = vmatpush1.msra.mxu0 %v2086
        %2164 = vmatprep.subr.mxu0 0.0
        %2165 = vmatpush1.msra.mxu0 %v2087
        %2166 = vmatprep.subr.mxu0 0.0
        %2167 = vmatpush1.msra.mxu0 %v2088
        %2168 = vmatprep.subr.mxu0 0.0
        %2169 = vmatpush1.msra.mxu0 %v2089
        %2170 = vmatprep.mubr.f32.mxu0 %v1962
        %2171 = vmatmul.mubr.f32.gmra.mrb[0].mxu0 %v1961
        %v2172 = vpop.f32.mrb[0].mxu0
        %v2173 = vadd.f32 0.0, %v2172
        %v2174 = vpop.f32.mrb[0].mxu0
        %2175 = vmatprep.mubr.f32.mxu0 %v1965
        %2176 = vmatmul.mubr.f32.gmra.mrb[0].mxu0 %v1964
        %v2177 = vpop.f32.mrb[0].mxu0
        %v2178 = vadd.f32 0.0, %v2177
        %v2179 = vpop.f32.mrb[0].mxu0
        %2180 = vmatprep.mubr.f32.mxu0 %v1968
        %2181 = vmatmul.mubr.f32.gmra.mrb[0].mxu0 %v1967
        %v2182 = vpop.f32.mrb[0].mxu0
        %v2183 = vadd.f32 0.0, %v2182
        %v2184 = vpop.f32.mrb[0].mxu0
        %2185 = vmatprep.mubr.f32.mxu0 %v1971
        %2186 = vmatmul.mubr.f32.gmra.mrb[0].mxu0 %v1970
        %v2187 = vpop.f32.mrb[0].mxu0
        %v2188 = vadd.f32 0.0, %v2187
        %v2189 = vpop.f32.mrb[0].mxu0
        %2190 = vmatprep.mubr.f32.mxu0 %v1974
        %2191 = vmatmul.mubr.f32.gmra.mrb[0].mxu0 %v1973
        %v2192 = vpop.f32.mrb[0].mxu0
        %v2193 = vadd.f32 0.0, %v2192
        %v2194 = vpop.f32.mrb[0].mxu0
        %2195 = vmatprep.mubr.f32.mxu0 %v1977
        %2196 = vmatmul.mubr.f32.gmra.mrb[0].mxu0 %v1976
        %v2197 = vpop.f32.mrb[0].mxu0
        %v2198 = vadd.f32 0.0, %v2197
        %v2199 = vpop.f32.mrb[0].mxu0
        %2200 = vmatprep.mubr.f32.mxu0 %v1980
        %2201 = vmatmul.mubr.f32.gmra.mrb[0].mxu0 %v1979
        %v2202 = vpop.f32.mrb[0].mxu0
        %v2203 = vadd.f32 0.0, %v2202
        %v2204 = vpop.f32.mrb[0].mxu0
        %2205 = vmatprep.mubr.f32.mxu0 %v1983
        %2206 = vmatmul.mubr.f32.gmra.mrb[0].mxu0 %v1982
        %v2207 = vpop.f32.mrb[0].mxu0
        %v2208 = vadd.f32 0.0, %v2207
        %v2209 = vpop.f32.mrb[0].mxu0
        %2210 = vmatprep.mubr.f32.mxu0 %v1986
        %2211 = vmatmul.mubr.f32.gmra.mrb[0].mxu0 %v1985
        %v2212 = vpop.f32.mrb[0].mxu0
        %v2213 = vadd.f32 0.0, %v2212
        %v2214 = vpop.f32.mrb[0].mxu0
        %2215 = vmatprep.mubr.f32.mxu0 %v1989
        %2216 = vmatmul.mubr.f32.gmra.mrb[0].mxu0 %v1988
        %v2217 = vpop.f32.mrb[0].mxu0
        %v2218 = vadd.f32 0.0, %v2217
        %v2219 = vpop.f32.mrb[0].mxu0
        %2220 = vmatprep.mubr.f32.mxu0 %v1992
        %2221 = vmatmul.mubr.f32.gmra.mrb[0].mxu0 %v1991
        %v2222 = vpop.f32.mrb[0].mxu0
        %v2223 = vadd.f32 0.0, %v2222
        %v2224 = vpop.f32.mrb[0].mxu0
        %2225 = vmatprep.mubr.f32.mxu0 %v1995
        %2226 = vmatmul.mubr.f32.gmra.mrb[0].mxu0 %v1994
        %v2227 = vpop.f32.mrb[0].mxu0
        %v2228 = vadd.f32 0.0, %v2227
        %v2229 = vpop.f32.mrb[0].mxu0
        %2230 = vmatprep.mubr.f32.mxu0 %v1998
        %2231 = vmatmul.mubr.f32.gmra.mrb[0].mxu0 %v1997
        %v2232 = vpop.f32.mrb[0].mxu0
        %v2233 = vadd.f32 0.0, %v2232
        %v2234 = vpop.f32.mrb[0].mxu0
        %2235 = vmatprep.mubr.f32.mxu0 %v2001
        %2236 = vmatmul.mubr.f32.gmra.mrb[0].mxu0 %v2000
        %v2237 = vpop.f32.mrb[0].mxu0
        %v2238 = vadd.f32 0.0, %v2237
        %v2239 = vpop.f32.mrb[0].mxu0
        %2240 = vmatprep.mubr.f32.mxu0 %v2004
        %2241 = vmatmul.mubr.f32.gmra.mrb[0].mxu0 %v2003
        %v2242 = vpop.f32.mrb[0].mxu0
        %v2243 = vadd.f32 0.0, %v2242
        %v2244 = vpop.f32.mrb[0].mxu0
        %2245 = vmatprep.mubr.f32.mxu0 %v2007
        %2246 = vmatmul.mubr.f32.gmra.mrb[0].mxu0 %v2006
        %v2247 = vpop.f32.mrb[0].mxu0
        %v2248 = vadd.f32 0.0, %v2247
        %v2249 = vpop.f32.mrb[0].mxu0
        %2250 = vmatprep.mubr.f32.mxu0 %v2010
        %2251 = vmatmul.mubr.f32.gmra.mrb[0].mxu0 %v2009
        %v2252 = vpop.f32.mrb[0].mxu0
        %v2253 = vadd.f32 0.0, %v2252
        %v2254 = vpop.f32.mrb[0].mxu0
        %2255 = vmatprep.mubr.f32.mxu0 %v2013
        %2256 = vmatmul.mubr.f32.gmra.mrb[0].mxu0 %v2012
        %v2257 = vpop.f32.mrb[0].mxu0
        %v2258 = vadd.f32 0.0, %v2257
        %v2259 = vpop.f32.mrb[0].mxu0
        %2260 = vmatprep.mubr.f32.mxu0 %v2016
        %2261 = vmatmul.mubr.f32.gmra.mrb[0].mxu0 %v2015
        %v2262 = vpop.f32.mrb[0].mxu0
        %v2263 = vadd.f32 0.0, %v2262
        %v2264 = vpop.f32.mrb[0].mxu0
        %2265 = vmatprep.mubr.f32.mxu0 %v2019
        %2266 = vmatmul.mubr.f32.gmra.mrb[0].mxu0 %v2018
        %v2267 = vpop.f32.mrb[0].mxu0
        %v2268 = vadd.f32 0.0, %v2267
        %v2269 = vpop.f32.mrb[0].mxu0
        %2270 = vmatprep.mubr.f32.mxu0 %v2022
        %2271 = vmatmul.mubr.f32.gmra.mrb[0].mxu0 %v2021
        %v2272 = vpop.f32.mrb[0].mxu0
        %v2273 = vadd.f32 0.0, %v2272
        %v2274 = vpop.f32.mrb[0].mxu0
        %2275 = vmatprep.mubr.f32.mxu0 %v2025
        %2276 = vmatmul.mubr.f32.gmra.mrb[0].mxu0 %v2024
        %v2277 = vpop.f32.mrb[0].mxu0
        %v2278 = vadd.f32 0.0, %v2277
        %v2279 = vpop.f32.mrb[0].mxu0
        %2280 = vmatprep.mubr.f32.mxu0 %v2028
        %2281 = vmatmul.mubr.f32.gmra.mrb[0].mxu0 %v2027
        %v2282 = vpop.f32.mrb[0].mxu0
        %v2283 = vadd.f32 0.0, %v2282
        %v2284 = vpop.f32.mrb[0].mxu0
        %2285 = vmatprep.mubr.f32.mxu0 %v2031
        %2286 = vmatmul.mubr.f32.gmra.mrb[0].mxu0 %v2030
        %v2287 = vpop.f32.mrb[0].mxu0
        %v2288 = vadd.f32 0.0, %v2287
        %v2289 = vpop.f32.mrb[0].mxu0
        %2290 = vmatprep.mubr.f32.mxu0 %v2034
        %2291 = vmatmul.mubr.f32.gmra.mrb[0].mxu0 %v2033
        %v2292 = vpop.f32.mrb[0].mxu0
        %v2293 = vadd.f32 0.0, %v2292
        %v2294 = vpop.f32.mrb[0].mxu0
        %2295 = vmatprep.mubr.f32.mxu0 %v2037
        %2296 = vmatmul.mubr.f32.gmra.mrb[0].mxu0 %v2036
        %v2297 = vpop.f32.mrb[0].mxu0
        %v2298 = vadd.f32 0.0, %v2297
        %v2299 = vpop.f32.mrb[0].mxu0
        %2300 = vmatprep.mubr.f32.mxu0 %v2040
        %2301 = vmatmul.mubr.f32.gmra.mrb[0].mxu0 %v2039
        %v2302 = vpop.f32.mrb[0].mxu0
        %v2303 = vadd.f32 0.0, %v2302
        %v2304 = vpop.f32.mrb[0].mxu0
        %2305 = vmatprep.mubr.f32.mxu0 %v2043
        %2306 = vmatmul.mubr.f32.gmra.mrb[0].mxu0 %v2042
        %v2307 = vpop.f32.mrb[0].mxu0
        %v2308 = vadd.f32 0.0, %v2307
        %v2309 = vpop.f32.mrb[0].mxu0
        %2310 = vmatprep.mubr.f32.mxu0 %v2046
        %2311 = vmatmul.mubr.f32.gmra.mrb[0].mxu0 %v2045
        %v2312 = vpop.f32.mrb[0].mxu0
        %v2313 = vadd.f32 0.0, %v2312
        %v2314 = vpop.f32.mrb[0].mxu0
        %2315 = vmatprep.mubr.f32.mxu0 %v2049
        %2316 = vmatmul.mubr.f32.gmra.mrb[0].mxu0 %v2048
        %v2317 = vpop.f32.mrb[0].mxu0
        %v2318 = vadd.f32 0.0, %v2317
        %v2319 = vpop.f32.mrb[0].mxu0
        %2320 = vmatprep.mubr.f32.mxu0 %v2052
        %2321 = vmatmul.mubr.f32.gmra.mrb[0].mxu0 %v2051
        %v2322 = vpop.f32.mrb[0].mxu0
        %v2323 = vadd.f32 0.0, %v2322
        %v2324 = vpop.f32.mrb[0].mxu0
        %2325 = vmatprep.mubr.f32.mxu0 %v2055
        %2326 = vmatmul.mubr.f32.gmra.mrb[0].mxu0 %v2054
        %v2327 = vpop.f32.mrb[0].mxu0
        %v2328 = vadd.f32 0.0, %v2327
        %v2329 = vpop.f32.mrb[0].mxu0
        %2330 = vdwg.mxu0
        %2331 = vmatprep.subr.mxu0 0.0
        %2332 = vmatpush1.msra.mxu0 %v2090
        %2333 = vmatprep.subr.mxu0 0.0
        %2334 = vmatpush1.msra.mxu0 %v2091
        %2335 = vmatprep.subr.mxu0 0.0
        %2336 = vmatpush1.msra.mxu0 %v2092
        %2337 = vmatprep.subr.mxu0 0.0
        %2338 = vmatpush1.msra.mxu0 %v2093
        %2339 = vmatprep.subr.mxu0 0.0
        %2340 = vmatpush1.msra.mxu0 %v2094
        %2341 = vmatprep.subr.mxu0 0.0
        %2342 = vmatpush1.msra.mxu0 %v2095
        %2343 = vmatprep.subr.mxu0 0.0
        %2344 = vmatpush1.msra.mxu0 %v2096
        %2345 = vmatprep.subr.mxu0 0.0
        %2346 = vmatpush1.msra.mxu0 %v2097
        %2347 = vmatprep.subr.mxu0 0.0
        %2348 = vmatpush1.msra.mxu0 %v2098
        %2349 = vmatprep.subr.mxu0 0.0
        %2350 = vmatpush1.msra.mxu0 %v2099
        %2351 = vmatprep.subr.mxu0 0.0
        %2352 = vmatpush1.msra.mxu0 %v2100
        %2353 = vmatprep.subr.mxu0 0.0
        %2354 = vmatpush1.msra.mxu0 %v2101
        %2355 = vmatprep.subr.mxu0 0.0
        %2356 = vmatpush1.msra.mxu0 %v2102
        %2357 = vmatprep.subr.mxu0 0.0
        %2358 = vmatpush1.msra.mxu0 %v2103
        %2359 = vmatprep.subr.mxu0 0.0
        %2360 = vmatpush1.msra.mxu0 %v2104
        %2361 = vmatprep.subr.mxu0 0.0
        %2362 = vmatpush1.msra.mxu0 %v2105
        %2363 = vmatprep.subr.mxu0 0.0
        %2364 = vmatpush1.msra.mxu0 0.0
        %2365 = vmatprep.subr.mxu0 0.0
        %2366 = vmatpush1.msra.mxu0 0.0
        %2367 = vmatprep.subr.mxu0 0.0
        %2368 = vmatpush1.msra.mxu0 0.0
        %2369 = vmatprep.subr.mxu0 0.0
        %2370 = vmatpush1.msra.mxu0 0.0
        %2371 = vmatprep.subr.mxu0 0.0
        %2372 = vmatpush1.msra.mxu0 0.0
        %2373 = vmatprep.subr.mxu0 0.0
        %2374 = vmatpush1.msra.mxu0 0.0
        %2375 = vmatprep.subr.mxu0 0.0
        %2376 = vmatpush1.msra.mxu0 0.0
        %2377 = vmatprep.subr.mxu0 0.0
        %2378 = vmatpush1.msra.mxu0 0.0
        %2379 = vmatprep.subr.mxu0 0.0
        %2380 = vmatpush1.msra.mxu0 0.0
        %2381 = vmatprep.subr.mxu0 0.0
        %2382 = vmatpush1.msra.mxu0 0.0
        %2383 = vmatprep.subr.mxu0 0.0
        %2384 = vmatpush1.msra.mxu0 0.0
        %2385 = vmatprep.subr.mxu0 0.0
        %2386 = vmatpush1.msra.mxu0 0.0
        %2387 = vmatprep.subr.mxu0 0.0
        %2388 = vmatpush1.msra.mxu0 0.0
        %2389 = vmatprep.subr.mxu0 0.0
        %2390 = vmatpush1.msra.mxu0 0.0
        %2391 = vmatprep.subr.mxu0 0.0
        %2392 = vmatpush1.msra.mxu0 0.0
        %2393 = vmatprep.subr.mxu0 0.0
        %2394 = vmatpush1.msra.mxu0 0.0
        %2395 = vmatprep.mubr.f32.mxu0 0.0
        %2396 = vmatmul.mubr.f32.gmra.mrb[0].mxu0 %v1963
        %v2397 = vpop.f32.mrb[0].mxu0
        %v2398 = vadd.f32 %v2173, %v2397
        %v2399 = vpop.f32.mrb[0].mxu0
        %2400 = vmatprep.mubr.f32.mxu0 0.0
        %2401 = vmatmul.mubr.f32.gmra.mrb[0].mxu0 %v1966
        %v2402 = vpop.f32.mrb[0].mxu0
        %v2403 = vadd.f32 %v2178, %v2402
        %v2404 = vpop.f32.mrb[0].mxu0
        %2405 = vmatprep.mubr.f32.mxu0 0.0
        %2406 = vmatmul.mubr.f32.gmra.mrb[0].mxu0 %v1969
        %v2407 = vpop.f32.mrb[0].mxu0
        %v2408 = vadd.f32 %v2183, %v2407
        %v2409 = vpop.f32.mrb[0].mxu0
        %2410 = vmatprep.mubr.f32.mxu0 0.0
        %2411 = vmatmul.mubr.f32.gmra.mrb[0].mxu0 %v1972
        %v2412 = vpop.f32.mrb[0].mxu0
        %v2413 = vadd.f32 %v2188, %v2412
        %v2414 = vpop.f32.mrb[0].mxu0
        %2415 = vmatprep.mubr.f32.mxu0 0.0
        %2416 = vmatmul.mubr.f32.gmra.mrb[0].mxu0 %v1975
        %v2417 = vpop.f32.mrb[0].mxu0
        %v2418 = vadd.f32 %v2193, %v2417
        %v2419 = vpop.f32.mrb[0].mxu0
        %2420 = vmatprep.mubr.f32.mxu0 0.0
        %2421 = vmatmul.mubr.f32.gmra.mrb[0].mxu0 %v1978
        %v2422 = vpop.f32.mrb[0].mxu0
        %v2423 = vadd.f32 %v2198, %v2422
        %v2424 = vpop.f32.mrb[0].mxu0
        %2425 = vmatprep.mubr.f32.mxu0 0.0
        %2426 = vmatmul.mubr.f32.gmra.mrb[0].mxu0 %v1981
        %v2427 = vpop.f32.mrb[0].mxu0
        %v2428 = vadd.f32 %v2203, %v2427
        %v2429 = vpop.f32.mrb[0].mxu0
        %2430 = vmatprep.mubr.f32.mxu0 0.0
        %2431 = vmatmul.mubr.f32.gmra.mrb[0].mxu0 %v1984
        %v2432 = vpop.f32.mrb[0].mxu0
        %v2433 = vadd.f32 %v2208, %v2432
        %v2434 = vpop.f32.mrb[0].mxu0
        %2435 = vmatprep.mubr.f32.mxu0 0.0
        %2436 = vmatmul.mubr.f32.gmra.mrb[0].mxu0 %v1987
        %v2437 = vpop.f32.mrb[0].mxu0
        %v2438 = vadd.f32 %v2213, %v2437
        %v2439 = vpop.f32.mrb[0].mxu0
        %2440 = vmatprep.mubr.f32.mxu0 0.0
        %2441 = vmatmul.mubr.f32.gmra.mrb[0].mxu0 %v1990
        %v2442 = vpop.f32.mrb[0].mxu0
        %v2443 = vadd.f32 %v2218, %v2442
        %v2444 = vpop.f32.mrb[0].mxu0
        %2445 = vmatprep.mubr.f32.mxu0 0.0
        %2446 = vmatmul.mubr.f32.gmra.mrb[0].mxu0 %v1993
        %v2447 = vpop.f32.mrb[0].mxu0
        %v2448 = vadd.f32 %v2223, %v2447
        %v2449 = vpop.f32.mrb[0].mxu0
        %2450 = vmatprep.mubr.f32.mxu0 0.0
        %2451 = vmatmul.mubr.f32.gmra.mrb[0].mxu0 %v1996
        %v2452 = vpop.f32.mrb[0].mxu0
        %v2453 = vadd.f32 %v2228, %v2452
        %v2454 = vpop.f32.mrb[0].mxu0
        %2455 = vmatprep.mubr.f32.mxu0 0.0
        %2456 = vmatmul.mubr.f32.gmra.mrb[0].mxu0 %v1999
        %v2457 = vpop.f32.mrb[0].mxu0
        %v2458 = vadd.f32 %v2233, %v2457
        %v2459 = vpop.f32.mrb[0].mxu0
        %2460 = vmatprep.mubr.f32.mxu0 0.0
        %2461 = vmatmul.mubr.f32.gmra.mrb[0].mxu0 %v2002
        %v2462 = vpop.f32.mrb[0].mxu0
        %v2463 = vadd.f32 %v2238, %v2462
        %v2464 = vpop.f32.mrb[0].mxu0
        %2465 = vmatprep.mubr.f32.mxu0 0.0
        %2466 = vmatmul.mubr.f32.gmra.mrb[0].mxu0 %v2005
        %v2467 = vpop.f32.mrb[0].mxu0
        %v2468 = vadd.f32 %v2243, %v2467
        %v2469 = vpop.f32.mrb[0].mxu0
        %2470 = vmatprep.mubr.f32.mxu0 0.0
        %2471 = vmatmul.mubr.f32.gmra.mrb[0].mxu0 %v2008
        %v2472 = vpop.f32.mrb[0].mxu0
        %v2473 = vadd.f32 %v2248, %v2472
        %v2474 = vpop.f32.mrb[0].mxu0
        %2475 = vmatprep.mubr.f32.mxu0 0.0
        %2476 = vmatmul.mubr.f32.gmra.mrb[0].mxu0 %v2011
        %v2477 = vpop.f32.mrb[0].mxu0
        %v2478 = vadd.f32 %v2253, %v2477
        %v2479 = vpop.f32.mrb[0].mxu0
        %2480 = vmatprep.mubr.f32.mxu0 0.0
        %2481 = vmatmul.mubr.f32.gmra.mrb[0].mxu0 %v2014
        %v2482 = vpop.f32.mrb[0].mxu0
        %v2483 = vadd.f32 %v2258, %v2482
        %v2484 = vpop.f32.mrb[0].mxu0
        %2485 = vmatprep.mubr.f32.mxu0 0.0
        %2486 = vmatmul.mubr.f32.gmra.mrb[0].mxu0 %v2017
        %v2487 = vpop.f32.mrb[0].mxu0
        %v2488 = vadd.f32 %v2263, %v2487
        %v2489 = vpop.f32.mrb[0].mxu0
        %2490 = vmatprep.mubr.f32.mxu0 0.0
        %2491 = vmatmul.mubr.f32.gmra.mrb[0].mxu0 %v2020
        %v2492 = vpop.f32.mrb[0].mxu0
        %v2493 = vadd.f32 %v2268, %v2492
        %v2494 = vpop.f32.mrb[0].mxu0
        %2495 = vmatprep.mubr.f32.mxu0 0.0
        %2496 = vmatmul.mubr.f32.gmra.mrb[0].mxu0 %v2023
        %v2497 = vpop.f32.mrb[0].mxu0
        %v2498 = vadd.f32 %v2273, %v2497
        %v2499 = vpop.f32.mrb[0].mxu0
        %2500 = vmatprep.mubr.f32.mxu0 0.0
        %2501 = vmatmul.mubr.f32.gmra.mrb[0].mxu0 %v2026
        %v2502 = vpop.f32.mrb[0].mxu0
        %v2503 = vadd.f32 %v2278, %v2502
        %v2504 = vpop.f32.mrb[0].mxu0
        %2505 = vmatprep.mubr.f32.mxu0 0.0
        %2506 = vmatmul.mubr.f32.gmra.mrb[0].mxu0 %v2029
        %v2507 = vpop.f32.mrb[0].mxu0
        %v2508 = vadd.f32 %v2283, %v2507
        %v2509 = vpop.f32.mrb[0].mxu0
        %2510 = vmatprep.mubr.f32.mxu0 0.0
        %2511 = vmatmul.mubr.f32.gmra.mrb[0].mxu0 %v2032
        %v2512 = vpop.f32.mrb[0].mxu0
        %v2513 = vadd.f32 %v2288, %v2512
        %v2514 = vpop.f32.mrb[0].mxu0
        %2515 = vmatprep.mubr.f32.mxu0 0.0
        %2516 = vmatmul.mubr.f32.gmra.mrb[0].mxu0 %v2035
        %v2517 = vpop.f32.mrb[0].mxu0
        %v2518 = vadd.f32 %v2293, %v2517
        %v2519 = vpop.f32.mrb[0].mxu0
        %2520 = vmatprep.mubr.f32.mxu0 0.0
        %2521 = vmatmul.mubr.f32.gmra.mrb[0].mxu0 %v2038
        %v2522 = vpop.f32.mrb[0].mxu0
        %v2523 = vadd.f32 %v2298, %v2522
        %v2524 = vpop.f32.mrb[0].mxu0
        %2525 = vmatprep.mubr.f32.mxu0 0.0
        %2526 = vmatmul.mubr.f32.gmra.mrb[0].mxu0 %v2041
        %v2527 = vpop.f32.mrb[0].mxu0
        %v2528 = vadd.f32 %v2303, %v2527
        %v2529 = vpop.f32.mrb[0].mxu0
        %2530 = vmatprep.mubr.f32.mxu0 0.0
        %2531 = vmatmul.mubr.f32.gmra.mrb[0].mxu0 %v2044
        %v2532 = vpop.f32.mrb[0].mxu0
        %v2533 = vadd.f32 %v2308, %v2532
        %v2534 = vpop.f32.mrb[0].mxu0
        %2535 = vmatprep.mubr.f32.mxu0 0.0
        %2536 = vmatmul.mubr.f32.gmra.mrb[0].mxu0 %v2047
        %v2537 = vpop.f32.mrb[0].mxu0
        %v2538 = vadd.f32 %v2313, %v2537
        %v2539 = vpop.f32.mrb[0].mxu0
        %2540 = vmatprep.mubr.f32.mxu0 0.0
        %2541 = vmatmul.mubr.f32.gmra.mrb[0].mxu0 %v2050
        %v2542 = vpop.f32.mrb[0].mxu0
        %v2543 = vadd.f32 %v2318, %v2542
        %v2544 = vpop.f32.mrb[0].mxu0
        %2545 = vmatprep.mubr.f32.mxu0 0.0
        %2546 = vmatmul.mubr.f32.gmra.mrb[0].mxu0 %v2053
        %v2547 = vpop.f32.mrb[0].mxu0
        %v2548 = vadd.f32 %v2323, %v2547
        %v2549 = vpop.f32.mrb[0].mxu0
        %2550 = vmatprep.mubr.f32.mxu0 0.0
        %2551 = vmatmul.mubr.f32.gmra.mrb[0].mxu0 %v2056
        %v2552 = vpop.f32.mrb[0].mxu0
        %v2553 = vadd.f32 %v2328, %v2552
        %v2554 = vpop.f32.mrb[0].mxu0
        %2555 = vdwg.mxu0
        %v2556 = vadd.f32 %v1929, %v2398
        %v2557 = vadd.f32 %v1930, %v2403
        %v2558 = vadd.f32 %v1931, %v2408
        %v2559 = vadd.f32 %v1932, %v2413
        %v2560 = vadd.f32 %v1933, %v2418
        %v2561 = vadd.f32 %v1934, %v2423
        %v2562 = vadd.f32 %v1935, %v2428
        %v2563 = vadd.f32 %v1936, %v2433
        %v2564 = vadd.f32 %v1937, %v2438
        %v2565 = vadd.f32 %v1938, %v2443
        %v2566 = vadd.f32 %v1939, %v2448
        %v2567 = vadd.f32 %v1940, %v2453
        %v2568 = vadd.f32 %v1941, %v2458
        %v2569 = vadd.f32 %v1942, %v2463
        %v2570 = vadd.f32 %v1943, %v2468
        %v2571 = vadd.f32 %v1944, %v2473
        %v2572 = vadd.f32 %v1945, %v2478
        %v2573 = vadd.f32 %v1946, %v2483
        %v2574 = vadd.f32 %v1947, %v2488
        %v2575 = vadd.f32 %v1948, %v2493
        %v2576 = vadd.f32 %v1949, %v2498
        %v2577 = vadd.f32 %v1950, %v2503
        %v2578 = vadd.f32 %v1951, %v2508
        %v2579 = vadd.f32 %v1952, %v2513
        %v2580 = vadd.f32 %v1953, %v2518
        %v2581 = vadd.f32 %v1954, %v2523
        %v2582 = vadd.f32 %v1955, %v2528
        %v2583 = vadd.f32 %v1956, %v2533
        %v2584 = vadd.f32 %v1957, %v2538
        %v2585 = vadd.f32 %v1958, %v2543
        %v2586 = vadd.f32 %v1959, %v2548
        %v2587 = vadd.f32 %v1960, %v2553
        %2588 = vst [vmem:[#allocation3] sm:$0xff] %v2556
        %2589 = vst [vmem:[#allocation3 + $0x8] sm:$0xff] %v2557
        %2590 = vst [vmem:[#allocation3 + $0x10] sm:$0xff] %v2558
        %2591 = vst [vmem:[#allocation3 + $0x18] sm:$0xff] %v2559
        %2592 = vst [vmem:[#allocation3 + $0x20] sm:$0xff] %v2560
        %2593 = vst [vmem:[#allocation3 + $0x28] sm:$0xff] %v2561
        %2594 = vst [vmem:[#allocation3 + $0x30] sm:$0xff] %v2562
        %2595 = vst [vmem:[#allocation3 + $0x38] sm:$0xff] %v2563
        %2596 = vst [vmem:[#allocation3 + $0x40] sm:$0xff] %v2564
        %2597 = vst [vmem:[#allocation3 + $0x48] sm:$0xff] %v2565
        %2598 = vst [vmem:[#allocation3 + $0x50] sm:$0xff] %v2566
        %2599 = vst [vmem:[#allocation3 + $0x58] sm:$0xff] %v2567
        %2600 = vst [vmem:[#allocation3 + $0x60] sm:$0xff] %v2568
        %2601 = vst [vmem:[#allocation3 + $0x68] sm:$0xff] %v2569
        %2602 = vst [vmem:[#allocation3 + $0x70] sm:$0xff] %v2570
        %2603 = vst [vmem:[#allocation3 + $0x78] sm:$0xff] %v2571
        %2604 = vst [vmem:[#allocation3 + $0x80] sm:$0xff] %v2572
        %2605 = vst [vmem:[#allocation3 + $0x88] sm:$0xff] %v2573
        %2606 = vst [vmem:[#allocation3 + $0x90] sm:$0xff] %v2574
        %2607 = vst [vmem:[#allocation3 + $0x98] sm:$0xff] %v2575
        %2608 = vst [vmem:[#allocation3 + $0xa0] sm:$0xff] %v2576
        %2609 = vst [vmem:[#allocation3 + $0xa8] sm:$0xff] %v2577
        %2610 = vst [vmem:[#allocation3 + $0xb0] sm:$0xff] %v2578
        %2611 = vst [vmem:[#allocation3 + $0xb8] sm:$0xff] %v2579
        %2612 = vst [vmem:[#allocation3 + $0xc0] sm:$0xff] %v2580
        %2613 = vst [vmem:[#allocation3 + $0xc8] sm:$0xff] %v2581
        %2614 = vst [vmem:[#allocation3 + $0xd0] sm:$0xff] %v2582
        %2615 = vst [vmem:[#allocation3 + $0xd8] sm:$0xff] %v2583
        %2616 = vst [vmem:[#allocation3 + $0xe0] sm:$0xff] %v2584
        %2617 = vst [vmem:[#allocation3 + $0xe8] sm:$0xff] %v2585
        %2618 = vst [vmem:[#allocation3 + $0xf0] sm:$0xff] %v2586
        %2619 = vst [vmem:[#allocation3 + $0xf8] sm:$0xff] %v2587
        %v2620 = vld [vmem:[#allocation3] sm:$0xff]
        %v2621 = vld [vmem:[#allocation3 + $0x8] sm:$0xff]
        %v2622 = vld [vmem:[#allocation3 + $0x10] sm:$0xff]
        %v2623 = vld [vmem:[#allocation3 + $0x18] sm:$0xff]
        %v2624 = vld [vmem:[#allocation3 + $0x20] sm:$0xff]
        %v2625 = vld [vmem:[#allocation3 + $0x28] sm:$0xff]
        %v2626 = vld [vmem:[#allocation3 + $0x30] sm:$0xff]
        %v2627 = vld [vmem:[#allocation3 + $0x38] sm:$0xff]
        %v2628 = vld [vmem:[#allocation3 + $0x40] sm:$0xff]
        %v2629 = vld [vmem:[#allocation3 + $0x48] sm:$0xff]
        %v2630 = vld [vmem:[#allocation3 + $0x50] sm:$0xff]
        %v2631 = vld [vmem:[#allocation3 + $0x58] sm:$0xff]
        %v2632 = vld [vmem:[#allocation3 + $0x60] sm:$0xff]
        %v2633 = vld [vmem:[#allocation3 + $0x68] sm:$0xff]
        %v2634 = vld [vmem:[#allocation3 + $0x70] sm:$0xff]
        %v2635 = vld [vmem:[#allocation3 + $0x78] sm:$0xff]
        %v2636 = vld [vmem:[#allocation3 + $0x80] sm:$0xff]
        %v2637 = vld [vmem:[#allocation3 + $0x88] sm:$0xff]
        %v2638 = vld [vmem:[#allocation3 + $0x90] sm:$0xff]
        %v2639 = vld [vmem:[#allocation3 + $0x98] sm:$0xff]
        %v2640 = vld [vmem:[#allocation3 + $0xa0] sm:$0xff]
        %v2641 = vld [vmem:[#allocation3 + $0xa8] sm:$0xff]
        %v2642 = vld [vmem:[#allocation3 + $0xb0] sm:$0xff]
        %v2643 = vld [vmem:[#allocation3 + $0xb8] sm:$0xff]
        %v2644 = vld [vmem:[#allocation3 + $0xc0] sm:$0xff]
        %v2645 = vld [vmem:[#allocation3 + $0xc8] sm:$0xff]
        %v2646 = vld [vmem:[#allocation3 + $0xd0] sm:$0xff]
        %v2647 = vld [vmem:[#allocation3 + $0xd8] sm:$0xff]
        %v2648 = vld [vmem:[#allocation3 + $0xe0] sm:$0xff]
        %v2649 = vld [vmem:[#allocation3 + $0xe8] sm:$0xff]
        %v2650 = vld [vmem:[#allocation3 + $0xf0] sm:$0xff]
        %v2651 = vld [vmem:[#allocation3 + $0xf8] sm:$0xff]
        %s2652 = scalar_lea.vmem [#allocation2], 96
        %v2653 = vld [vmem:[%s2652] sm:$0xff]
        %v2654 = vld [vmem:[%s2652 + $0x8] sm:$0xff]
        %v2655 = vld [vmem:[%s2652 + $0x10] sm:$0xff]
        %v2656 = vld [vmem:[%s2652 + $0x18] sm:$0xff]
        %v2657 = vld [vmem:[%s2652 + $0x20] sm:$0xff]
        %v2658 = vld [vmem:[%s2652 + $0x28] sm:$0xff]
        %v2659 = vld [vmem:[%s2652 + $0x30] sm:$0xff]
        %v2660 = vld [vmem:[%s2652 + $0x38] sm:$0xff]
        %v2661 = vld [vmem:[%s2652 + $0x40] sm:$0xff]
        %v2662 = vld [vmem:[%s2652 + $0x48] sm:$0xff]
        %v2663 = vld [vmem:[%s2652 + $0x50] sm:$0xff]
        %v2664 = vld [vmem:[%s2652 + $0x58] sm:$0xff]
        %v2665 = vld [vmem:[%s2652 + $0x60] sm:$0xff]
        %v2666 = vld [vmem:[%s2652 + $0x68] sm:$0xff]
        %v2667 = vld [vmem:[%s2652 + $0x70] sm:$0xff]
        %v2668 = vld [vmem:[%s2652 + $0x78] sm:$0xff]
        %v2669 = vld [vmem:[%s2652 + $0x80] sm:$0xff]
        %v2670 = vld [vmem:[%s2652 + $0x88] sm:$0xff]
        %v2671 = vld [vmem:[%s2652 + $0x90] sm:$0xff]
        %v2672 = vld [vmem:[%s2652 + $0x98] sm:$0xff]
        %v2673 = vld [vmem:[%s2652 + $0xa0] sm:$0xff]
        %v2674 = vld [vmem:[%s2652 + $0xa8] sm:$0xff]
        %v2675 = vld [vmem:[%s2652 + $0xb0] sm:$0xff]
        %v2676 = vld [vmem:[%s2652 + $0xb8] sm:$0xff]
        %v2677 = vld [vmem:[%s2652 + $0xc0] sm:$0xff]
        %v2678 = vld [vmem:[%s2652 + $0xc8] sm:$0xff]
        %v2679 = vld [vmem:[%s2652 + $0xd0] sm:$0xff]
        %v2680 = vld [vmem:[%s2652 + $0xd8] sm:$0xff]
        %v2681 = vld [vmem:[%s2652 + $0xe0] sm:$0xff]
        %v2682 = vld [vmem:[%s2652 + $0xe8] sm:$0xff]
        %v2683 = vld [vmem:[%s2652 + $0xf0] sm:$0xff]
        %v2684 = vld [vmem:[%s2652 + $0xf8] sm:$0xff]
        %v2685 = vld [vmem:[%s2652 + $0x100] sm:$0xff]
        %v2686 = vld [vmem:[%s2652 + $0x108] sm:$0xff]
        %v2687 = vld [vmem:[%s2652 + $0x110] sm:$0xff]
        %v2688 = vld [vmem:[%s2652 + $0x118] sm:$0xff]
        %v2689 = vld [vmem:[%s2652 + $0x120] sm:$0xff]
        %v2690 = vld [vmem:[%s2652 + $0x128] sm:$0xff]
        %v2691 = vld [vmem:[%s2652 + $0x130] sm:$0xff]
        %v2692 = vld [vmem:[%s2652 + $0x138] sm:$0xff]
        %v2693 = vld [vmem:[%s2652 + $0x140] sm:$0xff]
        %v2694 = vld [vmem:[%s2652 + $0x148] sm:$0xff]
        %v2695 = vld [vmem:[%s2652 + $0x150] sm:$0xff]
        %v2696 = vld [vmem:[%s2652 + $0x158] sm:$0xff]
        %v2697 = vld [vmem:[%s2652 + $0x160] sm:$0xff]
        %v2698 = vld [vmem:[%s2652 + $0x168] sm:$0xff]
        %v2699 = vld [vmem:[%s2652 + $0x170] sm:$0xff]
        %v2700 = vld [vmem:[%s2652 + $0x178] sm:$0xff]
        %v2701 = vld [vmem:[%s2652 + $0x180] sm:$0xff]
        %v2702 = vld [vmem:[%s2652 + $0x188] sm:$0xff]
        %v2703 = vld [vmem:[%s2652 + $0x190] sm:$0xff]
        %v2704 = vld [vmem:[%s2652 + $0x198] sm:$0xff]
        %v2705 = vld [vmem:[%s2652 + $0x1a0] sm:$0xff]
        %v2706 = vld [vmem:[%s2652 + $0x1a8] sm:$0xff]
        %v2707 = vld [vmem:[%s2652 + $0x1b0] sm:$0xff]
        %v2708 = vld [vmem:[%s2652 + $0x1b8] sm:$0xff]
        %v2709 = vld [vmem:[%s2652 + $0x1c0] sm:$0xff]
        %v2710 = vld [vmem:[%s2652 + $0x1c8] sm:$0xff]
        %v2711 = vld [vmem:[%s2652 + $0x1d0] sm:$0xff]
        %v2712 = vld [vmem:[%s2652 + $0x1d8] sm:$0xff]
        %v2713 = vld [vmem:[%s2652 + $0x1e0] sm:$0xff]
        %v2714 = vld [vmem:[%s2652 + $0x1e8] sm:$0xff]
        %v2715 = vld [vmem:[%s2652 + $0x1f0] sm:$0xff]
        %v2716 = vld [vmem:[%s2652 + $0x1f8] sm:$0xff]
        %v2717 = vld [vmem:[%s2652 + $0x200] sm:$0xff]
        %v2718 = vld [vmem:[%s2652 + $0x208] sm:$0xff]
        %v2719 = vld [vmem:[%s2652 + $0x210] sm:$0xff]
        %v2720 = vld [vmem:[%s2652 + $0x218] sm:$0xff]
        %v2721 = vld [vmem:[%s2652 + $0x220] sm:$0xff]
        %v2722 = vld [vmem:[%s2652 + $0x228] sm:$0xff]
        %v2723 = vld [vmem:[%s2652 + $0x230] sm:$0xff]
        %v2724 = vld [vmem:[%s2652 + $0x238] sm:$0xff]
        %v2725 = vld [vmem:[%s2652 + $0x240] sm:$0xff]
        %v2726 = vld [vmem:[%s2652 + $0x248] sm:$0xff]
        %v2727 = vld [vmem:[%s2652 + $0x250] sm:$0xff]
        %v2728 = vld [vmem:[%s2652 + $0x258] sm:$0xff]
        %v2729 = vld [vmem:[%s2652 + $0x260] sm:$0xff]
        %v2730 = vld [vmem:[%s2652 + $0x268] sm:$0xff]
        %v2731 = vld [vmem:[%s2652 + $0x270] sm:$0xff]
        %v2732 = vld [vmem:[%s2652 + $0x278] sm:$0xff]
        %v2733 = vld [vmem:[%s2652 + $0x280] sm:$0xff]
        %v2734 = vld [vmem:[%s2652 + $0x288] sm:$0xff]
        %v2735 = vld [vmem:[%s2652 + $0x290] sm:$0xff]
        %v2736 = vld [vmem:[%s2652 + $0x298] sm:$0xff]
        %v2737 = vld [vmem:[%s2652 + $0x2a0] sm:$0xff]
        %v2738 = vld [vmem:[%s2652 + $0x2a8] sm:$0xff]
        %v2739 = vld [vmem:[%s2652 + $0x2b0] sm:$0xff]
        %v2740 = vld [vmem:[%s2652 + $0x2b8] sm:$0xff]
        %v2741 = vld [vmem:[%s2652 + $0x2c0] sm:$0xff]
        %v2742 = vld [vmem:[%s2652 + $0x2c8] sm:$0xff]
        %v2743 = vld [vmem:[%s2652 + $0x2d0] sm:$0xff]
        %v2744 = vld [vmem:[%s2652 + $0x2d8] sm:$0xff]
        %v2745 = vld [vmem:[%s2652 + $0x2e0] sm:$0xff]
        %v2746 = vld [vmem:[%s2652 + $0x2e8] sm:$0xff]
        %v2747 = vld [vmem:[%s2652 + $0x2f0] sm:$0xff]
        %v2748 = vld [vmem:[%s2652 + $0x2f8] sm:$0xff]
        %s2749 = scalar_lea.vmem [#allocation10], 768
        %v2750 = vld [vmem:[%s2749] sm:$0xff]
        %v2751 = vld [vmem:[%s2749 + $0x8] sm:$0xff]
        %v2752 = vld [vmem:[%s2749 + $0x10] sm:$0xff]
        %v2753 = vld [vmem:[%s2749 + $0x18] sm:$0xff]
        %v2754 = vld [vmem:[%s2749 + $0x20] sm:$0xff]
        %v2755 = vld [vmem:[%s2749 + $0x28] sm:$0xff]
        %v2756 = vld [vmem:[%s2749 + $0x30] sm:$0xff]
        %v2757 = vld [vmem:[%s2749 + $0x38] sm:$0xff]
        %v2758 = vld [vmem:[%s2749 + $0x40] sm:$0xff]
        %v2759 = vld [vmem:[%s2749 + $0x48] sm:$0xff]
        %v2760 = vld [vmem:[%s2749 + $0x50] sm:$0xff]
        %v2761 = vld [vmem:[%s2749 + $0x58] sm:$0xff]
        %v2762 = vld [vmem:[%s2749 + $0x60] sm:$0xff]
        %v2763 = vld [vmem:[%s2749 + $0x68] sm:$0xff]
        %v2764 = vld [vmem:[%s2749 + $0x70] sm:$0xff]
        %v2765 = vld [vmem:[%s2749 + $0x78] sm:$0xff]
        %v2766 = vld [vmem:[%s2749 + $0x80] sm:$0xff]
        %v2767 = vld [vmem:[%s2749 + $0x88] sm:$0xff]
        %v2768 = vld [vmem:[%s2749 + $0x90] sm:$0xff]
        %v2769 = vld [vmem:[%s2749 + $0x98] sm:$0xff]
        %v2770 = vld [vmem:[%s2749 + $0xa0] sm:$0xff]
        %v2771 = vld [vmem:[%s2749 + $0xa8] sm:$0xff]
        %v2772 = vld [vmem:[%s2749 + $0xb0] sm:$0xff]
        %v2773 = vld [vmem:[%s2749 + $0xb8] sm:$0xff]
        %v2774 = vld [vmem:[%s2749 + $0xc0] sm:$0xff]
        %v2775 = vld [vmem:[%s2749 + $0xc8] sm:$0xff]
        %v2776 = vld [vmem:[%s2749 + $0xd0] sm:$0xff]
        %v2777 = vld [vmem:[%s2749 + $0xd8] sm:$0xff]
        %v2778 = vld [vmem:[%s2749 + $0xe0] sm:$0xff]
        %v2779 = vld [vmem:[%s2749 + $0xe8] sm:$0xff]
        %v2780 = vld [vmem:[%s2749 + $0xf0] sm:$0xff]
        %v2781 = vld [vmem:[%s2749 + $0xf8] sm:$0xff]
        %v2782 = vld [vmem:[%s2749 + $0x100] sm:$0xff]
        %v2783 = vld [vmem:[%s2749 + $0x108] sm:$0xff]
        %v2784 = vld [vmem:[%s2749 + $0x110] sm:$0xff]
        %v2785 = vld [vmem:[%s2749 + $0x118] sm:$0xff]
        %v2786 = vld [vmem:[%s2749 + $0x120] sm:$0xff]
        %v2787 = vld [vmem:[%s2749 + $0x128] sm:$0xff]
        %v2788 = vld [vmem:[%s2749 + $0x130] sm:$0xff]
        %v2789 = vld [vmem:[%s2749 + $0x138] sm:$0xff]
        %v2790 = vld [vmem:[%s2749 + $0x140] sm:$0xff]
        %v2791 = vld [vmem:[%s2749 + $0x148] sm:$0xff]
        %v2792 = vld [vmem:[%s2749 + $0x150] sm:$0xff]
        %v2793 = vld [vmem:[%s2749 + $0x158] sm:$0xff]
        %v2794 = vld [vmem:[%s2749 + $0x160] sm:$0xff]
        %v2795 = vld [vmem:[%s2749 + $0x168] sm:$0xff]
        %v2796 = vld [vmem:[%s2749 + $0x170] sm:$0xff]
        %v2797 = vld [vmem:[%s2749 + $0x178] sm:$0xff]
        %2798 = vmatprep.subr.mxu0 0.0
        %2799 = vmatpush1.msra.mxu0 %v2750
        %2800 = vmatprep.subr.mxu0 0.0
        %2801 = vmatpush1.msra.mxu0 %v2751
        %2802 = vmatprep.subr.mxu0 0.0
        %2803 = vmatpush1.msra.mxu0 %v2752
        %2804 = vmatprep.subr.mxu0 0.0
        %2805 = vmatpush1.msra.mxu0 %v2753
        %2806 = vmatprep.subr.mxu0 0.0
        %2807 = vmatpush1.msra.mxu0 %v2754
        %2808 = vmatprep.subr.mxu0 0.0
        %2809 = vmatpush1.msra.mxu0 %v2755
        %2810 = vmatprep.subr.mxu0 0.0
        %2811 = vmatpush1.msra.mxu0 %v2756
        %2812 = vmatprep.subr.mxu0 0.0
        %2813 = vmatpush1.msra.mxu0 %v2757
        %2814 = vmatprep.subr.mxu0 0.0
        %2815 = vmatpush1.msra.mxu0 %v2758
        %2816 = vmatprep.subr.mxu0 0.0
        %2817 = vmatpush1.msra.mxu0 %v2759
        %2818 = vmatprep.subr.mxu0 0.0
        %2819 = vmatpush1.msra.mxu0 %v2760
        %2820 = vmatprep.subr.mxu0 0.0
        %2821 = vmatpush1.msra.mxu0 %v2761
        %2822 = vmatprep.subr.mxu0 0.0
        %2823 = vmatpush1.msra.mxu0 %v2762
        %2824 = vmatprep.subr.mxu0 0.0
        %2825 = vmatpush1.msra.mxu0 %v2763
        %2826 = vmatprep.subr.mxu0 0.0
        %2827 = vmatpush1.msra.mxu0 %v2764
        %2828 = vmatprep.subr.mxu0 0.0
        %2829 = vmatpush1.msra.mxu0 %v2765
        %2830 = vmatprep.subr.mxu0 0.0
        %2831 = vmatpush1.msra.mxu0 %v2766
        %2832 = vmatprep.subr.mxu0 0.0
        %2833 = vmatpush1.msra.mxu0 %v2767
        %2834 = vmatprep.subr.mxu0 0.0
        %2835 = vmatpush1.msra.mxu0 %v2768
        %2836 = vmatprep.subr.mxu0 0.0
        %2837 = vmatpush1.msra.mxu0 %v2769
        %2838 = vmatprep.subr.mxu0 0.0
        %2839 = vmatpush1.msra.mxu0 %v2770
        %2840 = vmatprep.subr.mxu0 0.0
        %2841 = vmatpush1.msra.mxu0 %v2771
        %2842 = vmatprep.subr.mxu0 0.0
        %2843 = vmatpush1.msra.mxu0 %v2772
        %2844 = vmatprep.subr.mxu0 0.0
        %2845 = vmatpush1.msra.mxu0 %v2773
        %2846 = vmatprep.subr.mxu0 0.0
        %2847 = vmatpush1.msra.mxu0 %v2774
        %2848 = vmatprep.subr.mxu0 0.0
        %2849 = vmatpush1.msra.mxu0 %v2775
        %2850 = vmatprep.subr.mxu0 0.0
        %2851 = vmatpush1.msra.mxu0 %v2776
        %2852 = vmatprep.subr.mxu0 0.0
        %2853 = vmatpush1.msra.mxu0 %v2777
        %2854 = vmatprep.subr.mxu0 0.0
        %2855 = vmatpush1.msra.mxu0 %v2778
        %2856 = vmatprep.subr.mxu0 0.0
        %2857 = vmatpush1.msra.mxu0 %v2779
        %2858 = vmatprep.subr.mxu0 0.0
        %2859 = vmatpush1.msra.mxu0 %v2780
        %2860 = vmatprep.subr.mxu0 0.0
        %2861 = vmatpush1.msra.mxu0 %v2781
        %2862 = vmatprep.mubr.f32.mxu0 %v2654
        %2863 = vmatmul.mubr.f32.gmra.mrb[0].mxu0 %v2653
        %v2864 = vpop.f32.mrb[0].mxu0
        %v2865 = vadd.f32 0.0, %v2864
        %v2866 = vpop.f32.mrb[0].mxu0
        %2867 = vmatprep.mubr.f32.mxu0 %v2657
        %2868 = vmatmul.mubr.f32.gmra.mrb[0].mxu0 %v2656
        %v2869 = vpop.f32.mrb[0].mxu0
        %v2870 = vadd.f32 0.0, %v2869
        %v2871 = vpop.f32.mrb[0].mxu0
        %2872 = vmatprep.mubr.f32.mxu0 %v2660
        %2873 = vmatmul.mubr.f32.gmra.mrb[0].mxu0 %v2659
        %v2874 = vpop.f32.mrb[0].mxu0
        %v2875 = vadd.f32 0.0, %v2874
        %v2876 = vpop.f32.mrb[0].mxu0
        %2877 = vmatprep.mubr.f32.mxu0 %v2663
        %2878 = vmatmul.mubr.f32.gmra.mrb[0].mxu0 %v2662
        %v2879 = vpop.f32.mrb[0].mxu0
        %v2880 = vadd.f32 0.0, %v2879
        %v2881 = vpop.f32.mrb[0].mxu0
        %2882 = vmatprep.mubr.f32.mxu0 %v2666
        %2883 = vmatmul.mubr.f32.gmra.mrb[0].mxu0 %v2665
        %v2884 = vpop.f32.mrb[0].mxu0
        %v2885 = vadd.f32 0.0, %v2884
        %v2886 = vpop.f32.mrb[0].mxu0
        %2887 = vmatprep.mubr.f32.mxu0 %v2669
        %2888 = vmatmul.mubr.f32.gmra.mrb[0].mxu0 %v2668
        %v2889 = vpop.f32.mrb[0].mxu0
        %v2890 = vadd.f32 0.0, %v2889
        %v2891 = vpop.f32.mrb[0].mxu0
        %2892 = vmatprep.mubr.f32.mxu0 %v2672
        %2893 = vmatmul.mubr.f32.gmra.mrb[0].mxu0 %v2671
        %v2894 = vpop.f32.mrb[0].mxu0
        %v2895 = vadd.f32 0.0, %v2894
        %v2896 = vpop.f32.mrb[0].mxu0
        %2897 = vmatprep.mubr.f32.mxu0 %v2675
        %2898 = vmatmul.mubr.f32.gmra.mrb[0].mxu0 %v2674
        %v2899 = vpop.f32.mrb[0].mxu0
        %v2900 = vadd.f32 0.0, %v2899
        %v2901 = vpop.f32.mrb[0].mxu0
        %2902 = vmatprep.mubr.f32.mxu0 %v2678
        %2903 = vmatmul.mubr.f32.gmra.mrb[0].mxu0 %v2677
        %v2904 = vpop.f32.mrb[0].mxu0
        %v2905 = vadd.f32 0.0, %v2904
        %v2906 = vpop.f32.mrb[0].mxu0
        %2907 = vmatprep.mubr.f32.mxu0 %v2681
        %2908 = vmatmul.mubr.f32.gmra.mrb[0].mxu0 %v2680
        %v2909 = vpop.f32.mrb[0].mxu0
        %v2910 = vadd.f32 0.0, %v2909
        %v2911 = vpop.f32.mrb[0].mxu0
        %2912 = vmatprep.mubr.f32.mxu0 %v2684
        %2913 = vmatmul.mubr.f32.gmra.mrb[0].mxu0 %v2683
        %v2914 = vpop.f32.mrb[0].mxu0
        %v2915 = vadd.f32 0.0, %v2914
        %v2916 = vpop.f32.mrb[0].mxu0
        %2917 = vmatprep.mubr.f32.mxu0 %v2687
        %2918 = vmatmul.mubr.f32.gmra.mrb[0].mxu0 %v2686
        %v2919 = vpop.f32.mrb[0].mxu0
        %v2920 = vadd.f32 0.0, %v2919
        %v2921 = vpop.f32.mrb[0].mxu0
        %2922 = vmatprep.mubr.f32.mxu0 %v2690
        %2923 = vmatmul.mubr.f32.gmra.mrb[0].mxu0 %v2689
        %v2924 = vpop.f32.mrb[0].mxu0
        %v2925 = vadd.f32 0.0, %v2924
        %v2926 = vpop.f32.mrb[0].mxu0
        %2927 = vmatprep.mubr.f32.mxu0 %v2693
        %2928 = vmatmul.mubr.f32.gmra.mrb[0].mxu0 %v2692
        %v2929 = vpop.f32.mrb[0].mxu0
        %v2930 = vadd.f32 0.0, %v2929
        %v2931 = vpop.f32.mrb[0].mxu0
        %2932 = vmatprep.mubr.f32.mxu0 %v2696
        %2933 = vmatmul.mubr.f32.gmra.mrb[0].mxu0 %v2695
        %v2934 = vpop.f32.mrb[0].mxu0
        %v2935 = vadd.f32 0.0, %v2934
        %v2936 = vpop.f32.mrb[0].mxu0
        %2937 = vmatprep.mubr.f32.mxu0 %v2699
        %2938 = vmatmul.mubr.f32.gmra.mrb[0].mxu0 %v2698
        %v2939 = vpop.f32.mrb[0].mxu0
        %v2940 = vadd.f32 0.0, %v2939
        %v2941 = vpop.f32.mrb[0].mxu0
        %2942 = vmatprep.mubr.f32.mxu0 %v2702
        %2943 = vmatmul.mubr.f32.gmra.mrb[0].mxu0 %v2701
        %v2944 = vpop.f32.mrb[0].mxu0
        %v2945 = vadd.f32 0.0, %v2944
        %v2946 = vpop.f32.mrb[0].mxu0
        %2947 = vmatprep.mubr.f32.mxu0 %v2705
        %2948 = vmatmul.mubr.f32.gmra.mrb[0].mxu0 %v2704
        %v2949 = vpop.f32.mrb[0].mxu0
        %v2950 = vadd.f32 0.0, %v2949
        %v2951 = vpop.f32.mrb[0].mxu0
        %2952 = vmatprep.mubr.f32.mxu0 %v2708
        %2953 = vmatmul.mubr.f32.gmra.mrb[0].mxu0 %v2707
        %v2954 = vpop.f32.mrb[0].mxu0
        %v2955 = vadd.f32 0.0, %v2954
        %v2956 = vpop.f32.mrb[0].mxu0
        %2957 = vmatprep.mubr.f32.mxu0 %v2711
        %2958 = vmatmul.mubr.f32.gmra.mrb[0].mxu0 %v2710
        %v2959 = vpop.f32.mrb[0].mxu0
        %v2960 = vadd.f32 0.0, %v2959
        %v2961 = vpop.f32.mrb[0].mxu0
        %2962 = vmatprep.mubr.f32.mxu0 %v2714
        %2963 = vmatmul.mubr.f32.gmra.mrb[0].mxu0 %v2713
        %v2964 = vpop.f32.mrb[0].mxu0
        %v2965 = vadd.f32 0.0, %v2964
        %v2966 = vpop.f32.mrb[0].mxu0
        %2967 = vmatprep.mubr.f32.mxu0 %v2717
        %2968 = vmatmul.mubr.f32.gmra.mrb[0].mxu0 %v2716
        %v2969 = vpop.f32.mrb[0].mxu0
        %v2970 = vadd.f32 0.0, %v2969
        %v2971 = vpop.f32.mrb[0].mxu0
        %2972 = vmatprep.mubr.f32.mxu0 %v2720
        %2973 = vmatmul.mubr.f32.gmra.mrb[0].mxu0 %v2719
        %v2974 = vpop.f32.mrb[0].mxu0
        %v2975 = vadd.f32 0.0, %v2974
        %v2976 = vpop.f32.mrb[0].mxu0
        %2977 = vmatprep.mubr.f32.mxu0 %v2723
        %2978 = vmatmul.mubr.f32.gmra.mrb[0].mxu0 %v2722
        %v2979 = vpop.f32.mrb[0].mxu0
        %v2980 = vadd.f32 0.0, %v2979
        %v2981 = vpop.f32.mrb[0].mxu0
        %2982 = vmatprep.mubr.f32.mxu0 %v2726
        %2983 = vmatmul.mubr.f32.gmra.mrb[0].mxu0 %v2725
        %v2984 = vpop.f32.mrb[0].mxu0
        %v2985 = vadd.f32 0.0, %v2984
        %v2986 = vpop.f32.mrb[0].mxu0
        %2987 = vmatprep.mubr.f32.mxu0 %v2729
        %2988 = vmatmul.mubr.f32.gmra.mrb[0].mxu0 %v2728
        %v2989 = vpop.f32.mrb[0].mxu0
        %v2990 = vadd.f32 0.0, %v2989
        %v2991 = vpop.f32.mrb[0].mxu0
        %2992 = vmatprep.mubr.f32.mxu0 %v2732
        %2993 = vmatmul.mubr.f32.gmra.mrb[0].mxu0 %v2731
        %v2994 = vpop.f32.mrb[0].mxu0
        %v2995 = vadd.f32 0.0, %v2994
        %v2996 = vpop.f32.mrb[0].mxu0
        %2997 = vmatprep.mubr.f32.mxu0 %v2735
        %2998 = vmatmul.mubr.f32.gmra.mrb[0].mxu0 %v2734
        %v2999 = vpop.f32.mrb[0].mxu0
        %v3000 = vadd.f32 0.0, %v2999
        %v3001 = vpop.f32.mrb[0].mxu0
        %3002 = vmatprep.mubr.f32.mxu0 %v2738
        %3003 = vmatmul.mubr.f32.gmra.mrb[0].mxu0 %v2737
        %v3004 = vpop.f32.mrb[0].mxu0
        %v3005 = vadd.f32 0.0, %v3004
        %v3006 = vpop.f32.mrb[0].mxu0
        %3007 = vmatprep.mubr.f32.mxu0 %v2741
        %3008 = vmatmul.mubr.f32.gmra.mrb[0].mxu0 %v2740
        %v3009 = vpop.f32.mrb[0].mxu0
        %v3010 = vadd.f32 0.0, %v3009
        %v3011 = vpop.f32.mrb[0].mxu0
        %3012 = vmatprep.mubr.f32.mxu0 %v2744
        %3013 = vmatmul.mubr.f32.gmra.mrb[0].mxu0 %v2743
        %v3014 = vpop.f32.mrb[0].mxu0
        %v3015 = vadd.f32 0.0, %v3014
        %v3016 = vpop.f32.mrb[0].mxu0
        %3017 = vmatprep.mubr.f32.mxu0 %v2747
        %3018 = vmatmul.mubr.f32.gmra.mrb[0].mxu0 %v2746
        %v3019 = vpop.f32.mrb[0].mxu0
        %v3020 = vadd.f32 0.0, %v3019
        %v3021 = vpop.f32.mrb[0].mxu0
        %3022 = vdwg.mxu0
        %3023 = vmatprep.subr.mxu0 0.0
        %3024 = vmatpush1.msra.mxu0 %v2782
        %3025 = vmatprep.subr.mxu0 0.0
        %3026 = vmatpush1.msra.mxu0 %v2783
        %3027 = vmatprep.subr.mxu0 0.0
        %3028 = vmatpush1.msra.mxu0 %v2784
        %3029 = vmatprep.subr.mxu0 0.0
        %3030 = vmatpush1.msra.mxu0 %v2785
        %3031 = vmatprep.subr.mxu0 0.0
        %3032 = vmatpush1.msra.mxu0 %v2786
        %3033 = vmatprep.subr.mxu0 0.0
        %3034 = vmatpush1.msra.mxu0 %v2787
        %3035 = vmatprep.subr.mxu0 0.0
        %3036 = vmatpush1.msra.mxu0 %v2788
        %3037 = vmatprep.subr.mxu0 0.0
        %3038 = vmatpush1.msra.mxu0 %v2789
        %3039 = vmatprep.subr.mxu0 0.0
        %3040 = vmatpush1.msra.mxu0 %v2790
        %3041 = vmatprep.subr.mxu0 0.0
        %3042 = vmatpush1.msra.mxu0 %v2791
        %3043 = vmatprep.subr.mxu0 0.0
        %3044 = vmatpush1.msra.mxu0 %v2792
        %3045 = vmatprep.subr.mxu0 0.0
        %3046 = vmatpush1.msra.mxu0 %v2793
        %3047 = vmatprep.subr.mxu0 0.0
        %3048 = vmatpush1.msra.mxu0 %v2794
        %3049 = vmatprep.subr.mxu0 0.0
        %3050 = vmatpush1.msra.mxu0 %v2795
        %3051 = vmatprep.subr.mxu0 0.0
        %3052 = vmatpush1.msra.mxu0 %v2796
        %3053 = vmatprep.subr.mxu0 0.0
        %3054 = vmatpush1.msra.mxu0 %v2797
        %3055 = vmatprep.subr.mxu0 0.0
        %3056 = vmatpush1.msra.mxu0 0.0
        %3057 = vmatprep.subr.mxu0 0.0
        %3058 = vmatpush1.msra.mxu0 0.0
        %3059 = vmatprep.subr.mxu0 0.0
        %3060 = vmatpush1.msra.mxu0 0.0
        %3061 = vmatprep.subr.mxu0 0.0
        %3062 = vmatpush1.msra.mxu0 0.0
        %3063 = vmatprep.subr.mxu0 0.0
        %3064 = vmatpush1.msra.mxu0 0.0
        %3065 = vmatprep.subr.mxu0 0.0
        %3066 = vmatpush1.msra.mxu0 0.0
        %3067 = vmatprep.subr.mxu0 0.0
        %3068 = vmatpush1.msra.mxu0 0.0
        %3069 = vmatprep.subr.mxu0 0.0
        %3070 = vmatpush1.msra.mxu0 0.0
        %3071 = vmatprep.subr.mxu0 0.0
        %3072 = vmatpush1.msra.mxu0 0.0
        %3073 = vmatprep.subr.mxu0 0.0
        %3074 = vmatpush1.msra.mxu0 0.0
        %3075 = vmatprep.subr.mxu0 0.0
        %3076 = vmatpush1.msra.mxu0 0.0
        %3077 = vmatprep.subr.mxu0 0.0
        %3078 = vmatpush1.msra.mxu0 0.0
        %3079 = vmatprep.subr.mxu0 0.0
        %3080 = vmatpush1.msra.mxu0 0.0
        %3081 = vmatprep.subr.mxu0 0.0
        %3082 = vmatpush1.msra.mxu0 0.0
        %3083 = vmatprep.subr.mxu0 0.0
        %3084 = vmatpush1.msra.mxu0 0.0
        %3085 = vmatprep.subr.mxu0 0.0
        %3086 = vmatpush1.msra.mxu0 0.0
        %3087 = vmatprep.mubr.f32.mxu0 0.0
        %3088 = vmatmul.mubr.f32.gmra.mrb[0].mxu0 %v2655
        %v3089 = vpop.f32.mrb[0].mxu0
        %v3090 = vadd.f32 %v2865, %v3089
        %v3091 = vpop.f32.mrb[0].mxu0
        %3092 = vmatprep.mubr.f32.mxu0 0.0
        %3093 = vmatmul.mubr.f32.gmra.mrb[0].mxu0 %v2658
        %v3094 = vpop.f32.mrb[0].mxu0
        %v3095 = vadd.f32 %v2870, %v3094
        %v3096 = vpop.f32.mrb[0].mxu0
        %3097 = vmatprep.mubr.f32.mxu0 0.0
        %3098 = vmatmul.mubr.f32.gmra.mrb[0].mxu0 %v2661
        %v3099 = vpop.f32.mrb[0].mxu0
        %v3100 = vadd.f32 %v2875, %v3099
        %v3101 = vpop.f32.mrb[0].mxu0
        %3102 = vmatprep.mubr.f32.mxu0 0.0
        %3103 = vmatmul.mubr.f32.gmra.mrb[0].mxu0 %v2664
        %v3104 = vpop.f32.mrb[0].mxu0
        %v3105 = vadd.f32 %v2880, %v3104
        %v3106 = vpop.f32.mrb[0].mxu0
        %3107 = vmatprep.mubr.f32.mxu0 0.0
        %3108 = vmatmul.mubr.f32.gmra.mrb[0].mxu0 %v2667
        %v3109 = vpop.f32.mrb[0].mxu0
        %v3110 = vadd.f32 %v2885, %v3109
        %v3111 = vpop.f32.mrb[0].mxu0
        %3112 = vmatprep.mubr.f32.mxu0 0.0
        %3113 = vmatmul.mubr.f32.gmra.mrb[0].mxu0 %v2670
        %v3114 = vpop.f32.mrb[0].mxu0
        %v3115 = vadd.f32 %v2890, %v3114
        %v3116 = vpop.f32.mrb[0].mxu0
        %3117 = vmatprep.mubr.f32.mxu0 0.0
        %3118 = vmatmul.mubr.f32.gmra.mrb[0].mxu0 %v2673
        %v3119 = vpop.f32.mrb[0].mxu0
        %v3120 = vadd.f32 %v2895, %v3119
        %v3121 = vpop.f32.mrb[0].mxu0
        %3122 = vmatprep.mubr.f32.mxu0 0.0
        %3123 = vmatmul.mubr.f32.gmra.mrb[0].mxu0 %v2676
        %v3124 = vpop.f32.mrb[0].mxu0
        %v3125 = vadd.f32 %v2900, %v3124
        %v3126 = vpop.f32.mrb[0].mxu0
        %3127 = vmatprep.mubr.f32.mxu0 0.0
        %3128 = vmatmul.mubr.f32.gmra.mrb[0].mxu0 %v2679
        %v3129 = vpop.f32.mrb[0].mxu0
        %v3130 = vadd.f32 %v2905, %v3129
        %v3131 = vpop.f32.mrb[0].mxu0
        %3132 = vmatprep.mubr.f32.mxu0 0.0
        %3133 = vmatmul.mubr.f32.gmra.mrb[0].mxu0 %v2682
        %v3134 = vpop.f32.mrb[0].mxu0
        %v3135 = vadd.f32 %v2910, %v3134
        %v3136 = vpop.f32.mrb[0].mxu0
        %3137 = vmatprep.mubr.f32.mxu0 0.0
        %3138 = vmatmul.mubr.f32.gmra.mrb[0].mxu0 %v2685
        %v3139 = vpop.f32.mrb[0].mxu0
        %v3140 = vadd.f32 %v2915, %v3139
        %v3141 = vpop.f32.mrb[0].mxu0
        %3142 = vmatprep.mubr.f32.mxu0 0.0
        %3143 = vmatmul.mubr.f32.gmra.mrb[0].mxu0 %v2688
        %v3144 = vpop.f32.mrb[0].mxu0
        %v3145 = vadd.f32 %v2920, %v3144
        %v3146 = vpop.f32.mrb[0].mxu0
        %3147 = vmatprep.mubr.f32.mxu0 0.0
        %3148 = vmatmul.mubr.f32.gmra.mrb[0].mxu0 %v2691
        %v3149 = vpop.f32.mrb[0].mxu0
        %v3150 = vadd.f32 %v2925, %v3149
        %v3151 = vpop.f32.mrb[0].mxu0
        %3152 = vmatprep.mubr.f32.mxu0 0.0
        %3153 = vmatmul.mubr.f32.gmra.mrb[0].mxu0 %v2694
        %v3154 = vpop.f32.mrb[0].mxu0
        %v3155 = vadd.f32 %v2930, %v3154
        %v3156 = vpop.f32.mrb[0].mxu0
        %3157 = vmatprep.mubr.f32.mxu0 0.0
        %3158 = vmatmul.mubr.f32.gmra.mrb[0].mxu0 %v2697
        %v3159 = vpop.f32.mrb[0].mxu0
        %v3160 = vadd.f32 %v2935, %v3159
        %v3161 = vpop.f32.mrb[0].mxu0
        %3162 = vmatprep.mubr.f32.mxu0 0.0
        %3163 = vmatmul.mubr.f32.gmra.mrb[0].mxu0 %v2700
        %v3164 = vpop.f32.mrb[0].mxu0
        %v3165 = vadd.f32 %v2940, %v3164
        %v3166 = vpop.f32.mrb[0].mxu0
        %3167 = vmatprep.mubr.f32.mxu0 0.0
        %3168 = vmatmul.mubr.f32.gmra.mrb[0].mxu0 %v2703
        %v3169 = vpop.f32.mrb[0].mxu0
        %v3170 = vadd.f32 %v2945, %v3169
        %v3171 = vpop.f32.mrb[0].mxu0
        %3172 = vmatprep.mubr.f32.mxu0 0.0
        %3173 = vmatmul.mubr.f32.gmra.mrb[0].mxu0 %v2706
        %v3174 = vpop.f32.mrb[0].mxu0
        %v3175 = vadd.f32 %v2950, %v3174
        %v3176 = vpop.f32.mrb[0].mxu0
        %3177 = vmatprep.mubr.f32.mxu0 0.0
        %3178 = vmatmul.mubr.f32.gmra.mrb[0].mxu0 %v2709
        %v3179 = vpop.f32.mrb[0].mxu0
        %v3180 = vadd.f32 %v2955, %v3179
        %v3181 = vpop.f32.mrb[0].mxu0
        %3182 = vmatprep.mubr.f32.mxu0 0.0
        %3183 = vmatmul.mubr.f32.gmra.mrb[0].mxu0 %v2712
        %v3184 = vpop.f32.mrb[0].mxu0
        %v3185 = vadd.f32 %v2960, %v3184
        %v3186 = vpop.f32.mrb[0].mxu0
        %3187 = vmatprep.mubr.f32.mxu0 0.0
        %3188 = vmatmul.mubr.f32.gmra.mrb[0].mxu0 %v2715
        %v3189 = vpop.f32.mrb[0].mxu0
        %v3190 = vadd.f32 %v2965, %v3189
        %v3191 = vpop.f32.mrb[0].mxu0
        %3192 = vmatprep.mubr.f32.mxu0 0.0
        %3193 = vmatmul.mubr.f32.gmra.mrb[0].mxu0 %v2718
        %v3194 = vpop.f32.mrb[0].mxu0
        %v3195 = vadd.f32 %v2970, %v3194
        %v3196 = vpop.f32.mrb[0].mxu0
        %3197 = vmatprep.mubr.f32.mxu0 0.0
        %3198 = vmatmul.mubr.f32.gmra.mrb[0].mxu0 %v2721
        %v3199 = vpop.f32.mrb[0].mxu0
        %v3200 = vadd.f32 %v2975, %v3199
        %v3201 = vpop.f32.mrb[0].mxu0
        %3202 = vmatprep.mubr.f32.mxu0 0.0
        %3203 = vmatmul.mubr.f32.gmra.mrb[0].mxu0 %v2724
        %v3204 = vpop.f32.mrb[0].mxu0
        %v3205 = vadd.f32 %v2980, %v3204
        %v3206 = vpop.f32.mrb[0].mxu0
        %3207 = vmatprep.mubr.f32.mxu0 0.0
        %3208 = vmatmul.mubr.f32.gmra.mrb[0].mxu0 %v2727
        %v3209 = vpop.f32.mrb[0].mxu0
        %v3210 = vadd.f32 %v2985, %v3209
        %v3211 = vpop.f32.mrb[0].mxu0
        %3212 = vmatprep.mubr.f32.mxu0 0.0
        %3213 = vmatmul.mubr.f32.gmra.mrb[0].mxu0 %v2730
        %v3214 = vpop.f32.mrb[0].mxu0
        %v3215 = vadd.f32 %v2990, %v3214
        %v3216 = vpop.f32.mrb[0].mxu0
        %3217 = vmatprep.mubr.f32.mxu0 0.0
        %3218 = vmatmul.mubr.f32.gmra.mrb[0].mxu0 %v2733
        %v3219 = vpop.f32.mrb[0].mxu0
        %v3220 = vadd.f32 %v2995, %v3219
        %v3221 = vpop.f32.mrb[0].mxu0
        %3222 = vmatprep.mubr.f32.mxu0 0.0
        %3223 = vmatmul.mubr.f32.gmra.mrb[0].mxu0 %v2736
        %v3224 = vpop.f32.mrb[0].mxu0
        %v3225 = vadd.f32 %v3000, %v3224
        %v3226 = vpop.f32.mrb[0].mxu0
        %3227 = vmatprep.mubr.f32.mxu0 0.0
        %3228 = vmatmul.mubr.f32.gmra.mrb[0].mxu0 %v2739
        %v3229 = vpop.f32.mrb[0].mxu0
        %v3230 = vadd.f32 %v3005, %v3229
        %v3231 = vpop.f32.mrb[0].mxu0
        %3232 = vmatprep.mubr.f32.mxu0 0.0
        %3233 = vmatmul.mubr.f32.gmra.mrb[0].mxu0 %v2742
        %v3234 = vpop.f32.mrb[0].mxu0
        %v3235 = vadd.f32 %v3010, %v3234
        %v3236 = vpop.f32.mrb[0].mxu0
        %3237 = vmatprep.mubr.f32.mxu0 0.0
        %3238 = vmatmul.mubr.f32.gmra.mrb[0].mxu0 %v2745
        %v3239 = vpop.f32.mrb[0].mxu0
        %v3240 = vadd.f32 %v3015, %v3239
        %v3241 = vpop.f32.mrb[0].mxu0
        %3242 = vmatprep.mubr.f32.mxu0 0.0
        %3243 = vmatmul.mubr.f32.gmra.mrb[0].mxu0 %v2748
        %v3244 = vpop.f32.mrb[0].mxu0
        %v3245 = vadd.f32 %v3020, %v3244
        %v3246 = vpop.f32.mrb[0].mxu0
        %3247 = vdwg.mxu0
        %v3248 = vadd.f32 %v2620, %v3090
        %v3249 = vadd.f32 %v2621, %v3095
        %v3250 = vadd.f32 %v2622, %v3100
        %v3251 = vadd.f32 %v2623, %v3105
        %v3252 = vadd.f32 %v2624, %v3110
        %v3253 = vadd.f32 %v2625, %v3115
        %v3254 = vadd.f32 %v2626, %v3120
        %v3255 = vadd.f32 %v2627, %v3125
        %v3256 = vadd.f32 %v2628, %v3130
        %v3257 = vadd.f32 %v2629, %v3135
        %v3258 = vadd.f32 %v2630, %v3140
        %v3259 = vadd.f32 %v2631, %v3145
        %v3260 = vadd.f32 %v2632, %v3150
        %v3261 = vadd.f32 %v2633, %v3155
        %v3262 = vadd.f32 %v2634, %v3160
        %v3263 = vadd.f32 %v2635, %v3165
        %v3264 = vadd.f32 %v2636, %v3170
        %v3265 = vadd.f32 %v2637, %v3175
        %v3266 = vadd.f32 %v2638, %v3180
        %v3267 = vadd.f32 %v2639, %v3185
        %v3268 = vadd.f32 %v2640, %v3190
        %v3269 = vadd.f32 %v2641, %v3195
        %v3270 = vadd.f32 %v2642, %v3200
        %v3271 = vadd.f32 %v2643, %v3205
        %v3272 = vadd.f32 %v2644, %v3210
        %v3273 = vadd.f32 %v2645, %v3215
        %v3274 = vadd.f32 %v2646, %v3220
        %v3275 = vadd.f32 %v2647, %v3225
        %v3276 = vadd.f32 %v2648, %v3230
        %v3277 = vadd.f32 %v2649, %v3235
        %v3278 = vadd.f32 %v2650, %v3240
        %v3279 = vadd.f32 %v2651, %v3245
        %3280 = vst [vmem:[#allocation3] sm:$0xff] %v3248
        %3281 = vst [vmem:[#allocation3 + $0x8] sm:$0xff] %v3249
        %3282 = vst [vmem:[#allocation3 + $0x10] sm:$0xff] %v3250
        %3283 = vst [vmem:[#allocation3 + $0x18] sm:$0xff] %v3251
        %3284 = vst [vmem:[#allocation3 + $0x20] sm:$0xff] %v3252
        %3285 = vst [vmem:[#allocation3 + $0x28] sm:$0xff] %v3253
        %3286 = vst [vmem:[#allocation3 + $0x30] sm:$0xff] %v3254
        %3287 = vst [vmem:[#allocation3 + $0x38] sm:$0xff] %v3255
        %3288 = vst [vmem:[#allocation3 + $0x40] sm:$0xff] %v3256
        %3289 = vst [vmem:[#allocation3 + $0x48] sm:$0xff] %v3257
        %3290 = vst [vmem:[#allocation3 + $0x50] sm:$0xff] %v3258
        %3291 = vst [vmem:[#allocation3 + $0x58] sm:$0xff] %v3259
        %3292 = vst [vmem:[#allocation3 + $0x60] sm:$0xff] %v3260
        %3293 = vst [vmem:[#allocation3 + $0x68] sm:$0xff] %v3261
        %3294 = vst [vmem:[#allocation3 + $0x70] sm:$0xff] %v3262
        %3295 = vst [vmem:[#allocation3 + $0x78] sm:$0xff] %v3263
        %3296 = vst [vmem:[#allocation3 + $0x80] sm:$0xff] %v3264
        %3297 = vst [vmem:[#allocation3 + $0x88] sm:$0xff] %v3265
        %3298 = vst [vmem:[#allocation3 + $0x90] sm:$0xff] %v3266
        %3299 = vst [vmem:[#allocation3 + $0x98] sm:$0xff] %v3267
        %3300 = vst [vmem:[#allocation3 + $0xa0] sm:$0xff] %v3268
        %3301 = vst [vmem:[#allocation3 + $0xa8] sm:$0xff] %v3269
        %3302 = vst [vmem:[#allocation3 + $0xb0] sm:$0xff] %v3270
        %3303 = vst [vmem:[#allocation3 + $0xb8] sm:$0xff] %v3271
        %3304 = vst [vmem:[#allocation3 + $0xc0] sm:$0xff] %v3272
        %3305 = vst [vmem:[#allocation3 + $0xc8] sm:$0xff] %v3273
        %3306 = vst [vmem:[#allocation3 + $0xd0] sm:$0xff] %v3274
        %3307 = vst [vmem:[#allocation3 + $0xd8] sm:$0xff] %v3275
        %3308 = vst [vmem:[#allocation3 + $0xe0] sm:$0xff] %v3276
        %3309 = vst [vmem:[#allocation3 + $0xe8] sm:$0xff] %v3277
        %3310 = vst [vmem:[#allocation3 + $0xf0] sm:$0xff] %v3278
        %3311 = vst [vmem:[#allocation3 + $0xf8] sm:$0xff] %v3279
        %v3312 = vld [vmem:[#allocation3] sm:$0xff]
        %v3313 = vld [vmem:[#allocation3 + $0x8] sm:$0xff]
        %v3314 = vld [vmem:[#allocation3 + $0x10] sm:$0xff]
        %v3315 = vld [vmem:[#allocation3 + $0x18] sm:$0xff]
        %v3316 = vld [vmem:[#allocation3 + $0x20] sm:$0xff]
        %v3317 = vld [vmem:[#allocation3 + $0x28] sm:$0xff]
        %v3318 = vld [vmem:[#allocation3 + $0x30] sm:$0xff]
        %v3319 = vld [vmem:[#allocation3 + $0x38] sm:$0xff]
        %v3320 = vld [vmem:[#allocation3 + $0x40] sm:$0xff]
        %v3321 = vld [vmem:[#allocation3 + $0x48] sm:$0xff]
        %v3322 = vld [vmem:[#allocation3 + $0x50] sm:$0xff]
        %v3323 = vld [vmem:[#allocation3 + $0x58] sm:$0xff]
        %v3324 = vld [vmem:[#allocation3 + $0x60] sm:$0xff]
        %v3325 = vld [vmem:[#allocation3 + $0x68] sm:$0xff]
        %v3326 = vld [vmem:[#allocation3 + $0x70] sm:$0xff]
        %v3327 = vld [vmem:[#allocation3 + $0x78] sm:$0xff]
        %v3328 = vld [vmem:[#allocation3 + $0x80] sm:$0xff]
        %v3329 = vld [vmem:[#allocation3 + $0x88] sm:$0xff]
        %v3330 = vld [vmem:[#allocation3 + $0x90] sm:$0xff]
        %v3331 = vld [vmem:[#allocation3 + $0x98] sm:$0xff]
        %v3332 = vld [vmem:[#allocation3 + $0xa0] sm:$0xff]
        %v3333 = vld [vmem:[#allocation3 + $0xa8] sm:$0xff]
        %v3334 = vld [vmem:[#allocation3 + $0xb0] sm:$0xff]
        %v3335 = vld [vmem:[#allocation3 + $0xb8] sm:$0xff]
        %v3336 = vld [vmem:[#allocation3 + $0xc0] sm:$0xff]
        %v3337 = vld [vmem:[#allocation3 + $0xc8] sm:$0xff]
        %v3338 = vld [vmem:[#allocation3 + $0xd0] sm:$0xff]
        %v3339 = vld [vmem:[#allocation3 + $0xd8] sm:$0xff]
        %v3340 = vld [vmem:[#allocation3 + $0xe0] sm:$0xff]
        %v3341 = vld [vmem:[#allocation3 + $0xe8] sm:$0xff]
        %v3342 = vld [vmem:[#allocation3 + $0xf0] sm:$0xff]
        %v3343 = vld [vmem:[#allocation3 + $0xf8] sm:$0xff]
        %v3344 = vld [vmem:[%s4] sm:$0x1]
        %v3346 = vlaneseq
        %v3347 = vshrl.u32 %v3346, 7
        %v3348 = vsub.s32 0, %v3347
        %v3349 = vrot.slane %v3344, %v3348
        %v3351 = vadd.f32 %v3312, %v3349
        %v3352 = vadd.f32 %v3313, %v3349
        %v3353 = vadd.f32 %v3314, %v3349
        %v3354 = vadd.f32 %v3315, %v3349
        %v3355 = vadd.f32 %v3316, %v3349
        %v3356 = vadd.f32 %v3317, %v3349
        %v3357 = vadd.f32 %v3318, %v3349
        %v3358 = vadd.f32 %v3319, %v3349
        %v3359 = vadd.f32 %v3320, %v3349
        %v3360 = vadd.f32 %v3321, %v3349
        %v3361 = vadd.f32 %v3322, %v3349
        %v3362 = vadd.f32 %v3323, %v3349
        %v3363 = vadd.f32 %v3324, %v3349
        %v3364 = vadd.f32 %v3325, %v3349
        %v3365 = vadd.f32 %v3326, %v3349
        %v3366 = vadd.f32 %v3327, %v3349
        %v3367 = vadd.f32 %v3328, %v3349
        %v3368 = vadd.f32 %v3329, %v3349
        %v3369 = vadd.f32 %v3330, %v3349
        %v3370 = vadd.f32 %v3331, %v3349
        %v3371 = vadd.f32 %v3332, %v3349
        %v3372 = vadd.f32 %v3333, %v3349
        %v3373 = vadd.f32 %v3334, %v3349
        %v3374 = vadd.f32 %v3335, %v3349
        %v3375 = vadd.f32 %v3336, %v3349
        %v3376 = vadd.f32 %v3337, %v3349
        %v3377 = vadd.f32 %v3338, %v3349
        %v3378 = vadd.f32 %v3339, %v3349
        %v3379 = vadd.f32 %v3340, %v3349
        %v3380 = vadd.f32 %v3341, %v3349
        %v3381 = vadd.f32 %v3342, %v3349
        %v3382 = vadd.f32 %v3343, %v3349
        %v3383 = vsub.f32 0.0, %v3351
        %v3384 = vsub.f32 0.0, %v3352
        %v3385 = vsub.f32 0.0, %v3353
        %v3386 = vsub.f32 0.0, %v3354
        %v3387 = vsub.f32 0.0, %v3355
        %v3388 = vsub.f32 0.0, %v3356
        %v3389 = vsub.f32 0.0, %v3357
        %v3390 = vsub.f32 0.0, %v3358
        %v3391 = vsub.f32 0.0, %v3359
        %v3392 = vsub.f32 0.0, %v3360
        %v3393 = vsub.f32 0.0, %v3361
        %v3394 = vsub.f32 0.0, %v3362
        %v3395 = vsub.f32 0.0, %v3363
        %v3396 = vsub.f32 0.0, %v3364
        %v3397 = vsub.f32 0.0, %v3365
        %v3398 = vsub.f32 0.0, %v3366
        %v3399 = vsub.f32 0.0, %v3367
        %v3400 = vsub.f32 0.0, %v3368
        %v3401 = vsub.f32 0.0, %v3369
        %v3402 = vsub.f32 0.0, %v3370
        %v3403 = vsub.f32 0.0, %v3371
        %v3404 = vsub.f32 0.0, %v3372
        %v3405 = vsub.f32 0.0, %v3373
        %v3406 = vsub.f32 0.0, %v3374
        %v3407 = vsub.f32 0.0, %v3375
        %v3408 = vsub.f32 0.0, %v3376
        %v3409 = vsub.f32 0.0, %v3377
        %v3410 = vsub.f32 0.0, %v3378
        %v3411 = vsub.f32 0.0, %v3379
        %v3412 = vsub.f32 0.0, %v3380
        %v3413 = vsub.f32 0.0, %v3381
        %v3414 = vsub.f32 0.0, %v3382
        %v3415 = vmul.f32 %v3383, 1.442695
        %v3416 = vpow.pop %v3415
        %v3417 = vmul.f32 %v3384, 1.442695
        %v3418 = vpow.pop %v3417
        %v3419 = vmul.f32 %v3385, 1.442695
        %v3420 = vpow.pop %v3419
        %v3421 = vmul.f32 %v3386, 1.442695
        %v3422 = vpow.pop %v3421
        %v3423 = vmul.f32 %v3387, 1.442695
        %v3424 = vpow.pop %v3423
        %v3425 = vmul.f32 %v3388, 1.442695
        %v3426 = vpow.pop %v3425
        %v3427 = vmul.f32 %v3389, 1.442695
        %v3428 = vpow.pop %v3427
        %v3429 = vmul.f32 %v3390, 1.442695
        %v3430 = vpow.pop %v3429
        %v3431 = vmul.f32 %v3391, 1.442695
        %v3432 = vpow.pop %v3431
        %v3433 = vmul.f32 %v3392, 1.442695
        %v3434 = vpow.pop %v3433
        %v3435 = vmul.f32 %v3393, 1.442695
        %v3436 = vpow.pop %v3435
        %v3437 = vmul.f32 %v3394, 1.442695
        %v3438 = vpow.pop %v3437
        %v3439 = vmul.f32 %v3395, 1.442695
        %v3440 = vpow.pop %v3439
        %v3441 = vmul.f32 %v3396, 1.442695
        %v3442 = vpow.pop %v3441
        %v3443 = vmul.f32 %v3397, 1.442695
        %v3444 = vpow.pop %v3443
        %v3445 = vmul.f32 %v3398, 1.442695
        %v3446 = vpow.pop %v3445
        %v3447 = vmul.f32 %v3399, 1.442695
        %v3448 = vpow.pop %v3447
        %v3449 = vmul.f32 %v3400, 1.442695
        %v3450 = vpow.pop %v3449
        %v3451 = vmul.f32 %v3401, 1.442695
        %v3452 = vpow.pop %v3451
        %v3453 = vmul.f32 %v3402, 1.442695
        %v3454 = vpow.pop %v3453
        %v3455 = vmul.f32 %v3403, 1.442695
        %v3456 = vpow.pop %v3455
        %v3457 = vmul.f32 %v3404, 1.442695
        %v3458 = vpow.pop %v3457
        %v3459 = vmul.f32 %v3405, 1.442695
        %v3460 = vpow.pop %v3459
        %v3461 = vmul.f32 %v3406, 1.442695
        %v3462 = vpow.pop %v3461
        %v3463 = vmul.f32 %v3407, 1.442695
        %v3464 = vpow.pop %v3463
        %v3465 = vmul.f32 %v3408, 1.442695
        %v3466 = vpow.pop %v3465
        %v3467 = vmul.f32 %v3409, 1.442695
        %v3468 = vpow.pop %v3467
        %v3469 = vmul.f32 %v3410, 1.442695
        %v3470 = vpow.pop %v3469
        %v3471 = vmul.f32 %v3411, 1.442695
        %v3472 = vpow.pop %v3471
        %v3473 = vmul.f32 %v3412, 1.442695
        %v3474 = vpow.pop %v3473
        %v3475 = vmul.f32 %v3413, 1.442695
        %v3476 = vpow.pop %v3475
        %v3477 = vmul.f32 %v3414, 1.442695
        %v3478 = vpow.pop %v3477
        %v3479 = vadd.f32 %v3416, 1.0
        %v3480 = vadd.f32 %v3418, 1.0
        %v3481 = vadd.f32 %v3420, 1.0
        %v3482 = vadd.f32 %v3422, 1.0
        %v3483 = vadd.f32 %v3424, 1.0
        %v3484 = vadd.f32 %v3426, 1.0
        %v3485 = vadd.f32 %v3428, 1.0
        %v3486 = vadd.f32 %v3430, 1.0
        %v3487 = vadd.f32 %v3432, 1.0
        %v3488 = vadd.f32 %v3434, 1.0
        %v3489 = vadd.f32 %v3436, 1.0
        %v3490 = vadd.f32 %v3438, 1.0
        %v3491 = vadd.f32 %v3440, 1.0
        %v3492 = vadd.f32 %v3442, 1.0
        %v3493 = vadd.f32 %v3444, 1.0
        %v3494 = vadd.f32 %v3446, 1.0
        %v3495 = vadd.f32 %v3448, 1.0
        %v3496 = vadd.f32 %v3450, 1.0
        %v3497 = vadd.f32 %v3452, 1.0
        %v3498 = vadd.f32 %v3454, 1.0
        %v3499 = vadd.f32 %v3456, 1.0
        %v3500 = vadd.f32 %v3458, 1.0
        %v3501 = vadd.f32 %v3460, 1.0
        %v3502 = vadd.f32 %v3462, 1.0
        %v3503 = vadd.f32 %v3464, 1.0
        %v3504 = vadd.f32 %v3466, 1.0
        %v3505 = vadd.f32 %v3468, 1.0
        %v3506 = vadd.f32 %v3470, 1.0
        %v3507 = vadd.f32 %v3472, 1.0
        %v3508 = vadd.f32 %v3474, 1.0
        %v3509 = vadd.f32 %v3476, 1.0
        %v3510 = vadd.f32 %v3478, 1.0
        %v3511 = vrcp.pop %v3479
        %v3512 = vmul.f32 1.0, %v3511
        %v3513 = vrcp.pop %v3480
        %v3514 = vmul.f32 1.0, %v3513
        %v3515 = vrcp.pop %v3481
        %v3516 = vmul.f32 1.0, %v3515
        %v3517 = vrcp.pop %v3482
        %v3518 = vmul.f32 1.0, %v3517
        %v3519 = vrcp.pop %v3483
        %v3520 = vmul.f32 1.0, %v3519
        %v3521 = vrcp.pop %v3484
        %v3522 = vmul.f32 1.0, %v3521
        %v3523 = vrcp.pop %v3485
        %v3524 = vmul.f32 1.0, %v3523
        %v3525 = vrcp.pop %v3486
        %v3526 = vmul.f32 1.0, %v3525
        %v3527 = vrcp.pop %v3487
        %v3528 = vmul.f32 1.0, %v3527
        %v3529 = vrcp.pop %v3488
        %v3530 = vmul.f32 1.0, %v3529
        %v3531 = vrcp.pop %v3489
        %v3532 = vmul.f32 1.0, %v3531
        %v3533 = vrcp.pop %v3490
        %v3534 = vmul.f32 1.0, %v3533
        %v3535 = vrcp.pop %v3491
        %v3536 = vmul.f32 1.0, %v3535
        %v3537 = vrcp.pop %v3492
        %v3538 = vmul.f32 1.0, %v3537
        %v3539 = vrcp.pop %v3493
        %v3540 = vmul.f32 1.0, %v3539
        %v3541 = vrcp.pop %v3494
        %v3542 = vmul.f32 1.0, %v3541
        %v3543 = vrcp.pop %v3495
        %v3544 = vmul.f32 1.0, %v3543
        %v3545 = vrcp.pop %v3496
        %v3546 = vmul.f32 1.0, %v3545
        %v3547 = vrcp.pop %v3497
        %v3548 = vmul.f32 1.0, %v3547
        %v3549 = vrcp.pop %v3498
        %v3550 = vmul.f32 1.0, %v3549
        %v3551 = vrcp.pop %v3499
        %v3552 = vmul.f32 1.0, %v3551
        %v3553 = vrcp.pop %v3500
        %v3554 = vmul.f32 1.0, %v3553
        %v3555 = vrcp.pop %v3501
        %v3556 = vmul.f32 1.0, %v3555
        %v3557 = vrcp.pop %v3502
        %v3558 = vmul.f32 1.0, %v3557
        %v3559 = vrcp.pop %v3503
        %v3560 = vmul.f32 1.0, %v3559
        %v3561 = vrcp.pop %v3504
        %v3562 = vmul.f32 1.0, %v3561
        %v3563 = vrcp.pop %v3505
        %v3564 = vmul.f32 1.0, %v3563
        %v3565 = vrcp.pop %v3506
        %v3566 = vmul.f32 1.0, %v3565
        %v3567 = vrcp.pop %v3507
        %v3568 = vmul.f32 1.0, %v3567
        %v3569 = vrcp.pop %v3508
        %v3570 = vmul.f32 1.0, %v3569
        %v3571 = vrcp.pop %v3509
        %v3572 = vmul.f32 1.0, %v3571
        %v3573 = vrcp.pop %v3510
        %v3574 = vmul.f32 1.0, %v3573
        %v3575 = vmul.f32 %v3351, %v3512
        %v3576 = vmul.f32 %v3352, %v3514
        %v3577 = vmul.f32 %v3353, %v3516
        %v3578 = vmul.f32 %v3354, %v3518
        %v3579 = vmul.f32 %v3355, %v3520
        %v3580 = vmul.f32 %v3356, %v3522
        %v3581 = vmul.f32 %v3357, %v3524
        %v3582 = vmul.f32 %v3358, %v3526
        %v3583 = vmul.f32 %v3359, %v3528
        %v3584 = vmul.f32 %v3360, %v3530
        %v3585 = vmul.f32 %v3361, %v3532
        %v3586 = vmul.f32 %v3362, %v3534
        %v3587 = vmul.f32 %v3363, %v3536
        %v3588 = vmul.f32 %v3364, %v3538
        %v3589 = vmul.f32 %v3365, %v3540
        %v3590 = vmul.f32 %v3366, %v3542
        %v3591 = vmul.f32 %v3367, %v3544
        %v3592 = vmul.f32 %v3368, %v3546
        %v3593 = vmul.f32 %v3369, %v3548
        %v3594 = vmul.f32 %v3370, %v3550
        %v3595 = vmul.f32 %v3371, %v3552
        %v3596 = vmul.f32 %v3372, %v3554
        %v3597 = vmul.f32 %v3373, %v3556
        %v3598 = vmul.f32 %v3374, %v3558
        %v3599 = vmul.f32 %v3375, %v3560
        %v3600 = vmul.f32 %v3376, %v3562
        %v3601 = vmul.f32 %v3377, %v3564
        %v3602 = vmul.f32 %v3378, %v3566
        %v3603 = vmul.f32 %v3379, %v3568
        %v3604 = vmul.f32 %v3380, %v3570
        %v3605 = vmul.f32 %v3381, %v3572
        %v3606 = vmul.f32 %v3382, %v3574
        %3607 = vst [vmem:[#allocation4] sm:$0xff] %v3575
        %3608 = vst [vmem:[#allocation4 + $0x8] sm:$0xff] %v3576
        %3609 = vst [vmem:[#allocation4 + $0x10] sm:$0xff] %v3577
        %3610 = vst [vmem:[#allocation4 + $0x18] sm:$0xff] %v3578
        %3611 = vst [vmem:[#allocation4 + $0x20] sm:$0xff] %v3579
        %3612 = vst [vmem:[#allocation4 + $0x28] sm:$0xff] %v3580
        %3613 = vst [vmem:[#allocation4 + $0x30] sm:$0xff] %v3581
        %3614 = vst [vmem:[#allocation4 + $0x38] sm:$0xff] %v3582
        %3615 = vst [vmem:[#allocation4 + $0x40] sm:$0xff] %v3583
        %3616 = vst [vmem:[#allocation4 + $0x48] sm:$0xff] %v3584
        %3617 = vst [vmem:[#allocation4 + $0x50] sm:$0xff] %v3585
        %3618 = vst [vmem:[#allocation4 + $0x58] sm:$0xff] %v3586
        %3619 = vst [vmem:[#allocation4 + $0x60] sm:$0xff] %v3587
        %3620 = vst [vmem:[#allocation4 + $0x68] sm:$0xff] %v3588
        %3621 = vst [vmem:[#allocation4 + $0x70] sm:$0xff] %v3589
        %3622 = vst [vmem:[#allocation4 + $0x78] sm:$0xff] %v3590
        %3623 = vst [vmem:[#allocation4 + $0x80] sm:$0xff] %v3591
        %3624 = vst [vmem:[#allocation4 + $0x88] sm:$0xff] %v3592
        %3625 = vst [vmem:[#allocation4 + $0x90] sm:$0xff] %v3593
        %3626 = vst [vmem:[#allocation4 + $0x98] sm:$0xff] %v3594
        %3627 = vst [vmem:[#allocation4 + $0xa0] sm:$0xff] %v3595
        %3628 = vst [vmem:[#allocation4 + $0xa8] sm:$0xff] %v3596
        %3629 = vst [vmem:[#allocation4 + $0xb0] sm:$0xff] %v3597
        %3630 = vst [vmem:[#allocation4 + $0xb8] sm:$0xff] %v3598
        %3631 = vst [vmem:[#allocation4 + $0xc0] sm:$0xff] %v3599
        %3632 = vst [vmem:[#allocation4 + $0xc8] sm:$0xff] %v3600
        %3633 = vst [vmem:[#allocation4 + $0xd0] sm:$0xff] %v3601
        %3634 = vst [vmem:[#allocation4 + $0xd8] sm:$0xff] %v3602
        %3635 = vst [vmem:[#allocation4 + $0xe0] sm:$0xff] %v3603
        %3636 = vst [vmem:[#allocation4 + $0xe8] sm:$0xff] %v3604
        %3637 = vst [vmem:[#allocation4 + $0xf0] sm:$0xff] %v3605
        %3638 = vst [vmem:[#allocation4 + $0xf8] sm:$0xff] %v3606
        %v3639 = vld [vmem:[#allocation4] sm:$0xff]
        %v3640 = vld [vmem:[#allocation4 + $0x8] sm:$0xff]
        %v3641 = vld [vmem:[#allocation4 + $0x10] sm:$0xff]
        %v3642 = vld [vmem:[#allocation4 + $0x18] sm:$0xff]
        %v3643 = vld [vmem:[#allocation4 + $0x20] sm:$0xff]
        %v3644 = vld [vmem:[#allocation4 + $0x28] sm:$0xff]
        %v3645 = vld [vmem:[#allocation4 + $0x30] sm:$0xff]
        %v3646 = vld [vmem:[#allocation4 + $0x38] sm:$0xff]
        %v3647 = vld [vmem:[#allocation4 + $0x40] sm:$0xff]
        %v3648 = vld [vmem:[#allocation4 + $0x48] sm:$0xff]
        %v3649 = vld [vmem:[#allocation4 + $0x50] sm:$0xff]
        %v3650 = vld [vmem:[#allocation4 + $0x58] sm:$0xff]
        %v3651 = vld [vmem:[#allocation4 + $0x60] sm:$0xff]
        %v3652 = vld [vmem:[#allocation4 + $0x68] sm:$0xff]
        %v3653 = vld [vmem:[#allocation4 + $0x70] sm:$0xff]
        %v3654 = vld [vmem:[#allocation4 + $0x78] sm:$0xff]
        %v3655 = vld [vmem:[#allocation4 + $0x80] sm:$0xff]
        %v3656 = vld [vmem:[#allocation4 + $0x88] sm:$0xff]
        %v3657 = vld [vmem:[#allocation4 + $0x90] sm:$0xff]
        %v3658 = vld [vmem:[#allocation4 + $0x98] sm:$0xff]
        %v3659 = vld [vmem:[#allocation4 + $0xa0] sm:$0xff]
        %v3660 = vld [vmem:[#allocation4 + $0xa8] sm:$0xff]
        %v3661 = vld [vmem:[#allocation4 + $0xb0] sm:$0xff]
        %v3662 = vld [vmem:[#allocation4 + $0xb8] sm:$0xff]
        %v3663 = vld [vmem:[#allocation4 + $0xc0] sm:$0xff]
        %v3664 = vld [vmem:[#allocation4 + $0xc8] sm:$0xff]
        %v3665 = vld [vmem:[#allocation4 + $0xd0] sm:$0xff]
        %v3666 = vld [vmem:[#allocation4 + $0xd8] sm:$0xff]
        %v3667 = vld [vmem:[#allocation4 + $0xe0] sm:$0xff]
        %v3668 = vld [vmem:[#allocation4 + $0xe8] sm:$0xff]
        %v3669 = vld [vmem:[#allocation4 + $0xf0] sm:$0xff]
        %v3670 = vld [vmem:[#allocation4 + $0xf8] sm:$0xff]
        %v3671 = vld [vmem:[#allocation8] sm:$0xff]
        %v3672 = vld [vmem:[#allocation8 + $0x8] sm:$0xff]
        %v3673 = vld [vmem:[#allocation8 + $0x10] sm:$0xff]
        %v3674 = vld [vmem:[#allocation8 + $0x18] sm:$0xff]
        %v3675 = vld [vmem:[#allocation8 + $0x20] sm:$0xff]
        %v3676 = vld [vmem:[#allocation8 + $0x28] sm:$0xff]
        %v3677 = vld [vmem:[#allocation8 + $0x30] sm:$0xff]
        %v3678 = vld [vmem:[#allocation8 + $0x38] sm:$0xff]
        %v3679 = vld [vmem:[#allocation8 + $0x40] sm:$0xff]
        %v3680 = vld [vmem:[#allocation8 + $0x48] sm:$0xff]
        %v3681 = vld [vmem:[#allocation8 + $0x50] sm:$0xff]
        %v3682 = vld [vmem:[#allocation8 + $0x58] sm:$0xff]
        %v3683 = vld [vmem:[#allocation8 + $0x60] sm:$0xff]
        %v3684 = vld [vmem:[#allocation8 + $0x68] sm:$0xff]
        %v3685 = vld [vmem:[#allocation8 + $0x70] sm:$0xff]
        %v3686 = vld [vmem:[#allocation8 + $0x78] sm:$0xff]
        %v3687 = vld [vmem:[%s2] sm:$0x1]
        %v3689 = vlaneseq
        %v3690 = vshrl.u32 %v3689, 7
        %v3691 = vsub.s32 0, %v3690
        %v3692 = vrot.slane %v3687, %v3691
        %3694 = vmatprep.subr.mxu0 0.0
        %3695 = vmatpush1.msra.mxu0 %v3671
        %3696 = vmatprep.subr.mxu0 0.0
        %3697 = vmatpush1.msra.mxu0 %v3672
        %3698 = vmatprep.subr.mxu0 0.0
        %3699 = vmatpush1.msra.mxu0 %v3673
        %3700 = vmatprep.subr.mxu0 0.0
        %3701 = vmatpush1.msra.mxu0 %v3674
        %3702 = vmatprep.subr.mxu0 0.0
        %3703 = vmatpush1.msra.mxu0 %v3675
        %3704 = vmatprep.subr.mxu0 0.0
        %3705 = vmatpush1.msra.mxu0 %v3676
        %3706 = vmatprep.subr.mxu0 0.0
        %3707 = vmatpush1.msra.mxu0 %v3677
        %3708 = vmatprep.subr.mxu0 0.0
        %3709 = vmatpush1.msra.mxu0 %v3678
        %3710 = vmatprep.subr.mxu0 0.0
        %3711 = vmatpush1.msra.mxu0 %v3679
        %3712 = vmatprep.subr.mxu0 0.0
        %3713 = vmatpush1.msra.mxu0 %v3680
        %3714 = vmatprep.subr.mxu0 0.0
        %3715 = vmatpush1.msra.mxu0 %v3681
        %3716 = vmatprep.subr.mxu0 0.0
        %3717 = vmatpush1.msra.mxu0 %v3682
        %3718 = vmatprep.subr.mxu0 0.0
        %3719 = vmatpush1.msra.mxu0 %v3683
        %3720 = vmatprep.subr.mxu0 0.0
        %3721 = vmatpush1.msra.mxu0 %v3684
        %3722 = vmatprep.subr.mxu0 0.0
        %3723 = vmatpush1.msra.mxu0 %v3685
        %3724 = vmatprep.subr.mxu0 0.0
        %3725 = vmatpush1.msra.mxu0 %v3686
        %3726 = vmatprep.subr.mxu0 0.0
        %3727 = vmatpush1.msra.mxu0 0.0
        %3728 = vmatprep.subr.mxu0 0.0
        %3729 = vmatpush1.msra.mxu0 0.0
        %3730 = vmatprep.subr.mxu0 0.0
        %3731 = vmatpush1.msra.mxu0 0.0
        %3732 = vmatprep.subr.mxu0 0.0
        %3733 = vmatpush1.msra.mxu0 0.0
        %3734 = vmatprep.subr.mxu0 0.0
        %3735 = vmatpush1.msra.mxu0 0.0
        %3736 = vmatprep.subr.mxu0 0.0
        %3737 = vmatpush1.msra.mxu0 0.0
        %3738 = vmatprep.subr.mxu0 0.0
        %3739 = vmatpush1.msra.mxu0 0.0
        %3740 = vmatprep.subr.mxu0 0.0
        %3741 = vmatpush1.msra.mxu0 0.0
        %3742 = vmatprep.subr.mxu0 0.0
        %3743 = vmatpush1.msra.mxu0 0.0
        %3744 = vmatprep.subr.mxu0 0.0
        %3745 = vmatpush1.msra.mxu0 0.0
        %3746 = vmatprep.subr.mxu0 0.0
        %3747 = vmatpush1.msra.mxu0 0.0
        %3748 = vmatprep.subr.mxu0 0.0
        %3749 = vmatpush1.msra.mxu0 0.0
        %3750 = vmatprep.subr.mxu0 0.0
        %3751 = vmatpush1.msra.mxu0 0.0
        %3752 = vmatprep.subr.mxu0 0.0
        %3753 = vmatpush1.msra.mxu0 0.0
        %3754 = vmatprep.subr.mxu0 0.0
        %3755 = vmatpush1.msra.mxu0 0.0
        %3756 = vmatprep.subr.mxu0 0.0
        %3757 = vmatpush1.msra.mxu0 0.0
        %3758 = vmatprep.mubr.f32.mxu0 0.0
        %3759 = vmatmul.mubr.f32.gmra.mrb[0].mxu0 %v3639
        %v3760 = vpop.f32.mrb[0].mxu0
        %v3761 = vadd.f32 %v3692, %v3760
        %v3762 = vpop.f32.mrb[0].mxu0
        %3763 = vmatprep.mubr.f32.mxu0 0.0
        %3764 = vmatmul.mubr.f32.gmra.mrb[0].mxu0 %v3640
        %v3765 = vpop.f32.mrb[0].mxu0
        %v3766 = vadd.f32 %v3692, %v3765
        %v3767 = vpop.f32.mrb[0].mxu0
        %3768 = vmatprep.mubr.f32.mxu0 0.0
        %3769 = vmatmul.mubr.f32.gmra.mrb[0].mxu0 %v3641
        %v3770 = vpop.f32.mrb[0].mxu0
        %v3771 = vadd.f32 %v3692, %v3770
        %v3772 = vpop.f32.mrb[0].mxu0
        %3773 = vmatprep.mubr.f32.mxu0 0.0
        %3774 = vmatmul.mubr.f32.gmra.mrb[0].mxu0 %v3642
        %v3775 = vpop.f32.mrb[0].mxu0
        %v3776 = vadd.f32 %v3692, %v3775
        %v3777 = vpop.f32.mrb[0].mxu0
        %3778 = vmatprep.mubr.f32.mxu0 0.0
        %3779 = vmatmul.mubr.f32.gmra.mrb[0].mxu0 %v3643
        %v3780 = vpop.f32.mrb[0].mxu0
        %v3781 = vadd.f32 %v3692, %v3780
        %v3782 = vpop.f32.mrb[0].mxu0
        %3783 = vmatprep.mubr.f32.mxu0 0.0
        %3784 = vmatmul.mubr.f32.gmra.mrb[0].mxu0 %v3644
        %v3785 = vpop.f32.mrb[0].mxu0
        %v3786 = vadd.f32 %v3692, %v3785
        %v3787 = vpop.f32.mrb[0].mxu0
        %3788 = vmatprep.mubr.f32.mxu0 0.0
        %3789 = vmatmul.mubr.f32.gmra.mrb[0].mxu0 %v3645
        %v3790 = vpop.f32.mrb[0].mxu0
        %v3791 = vadd.f32 %v3692, %v3790
        %v3792 = vpop.f32.mrb[0].mxu0
        %3793 = vmatprep.mubr.f32.mxu0 0.0
        %3794 = vmatmul.mubr.f32.gmra.mrb[0].mxu0 %v3646
        %v3795 = vpop.f32.mrb[0].mxu0
        %v3796 = vadd.f32 %v3692, %v3795
        %v3797 = vpop.f32.mrb[0].mxu0
        %3798 = vmatprep.mubr.f32.mxu0 0.0
        %3799 = vmatmul.mubr.f32.gmra.mrb[0].mxu0 %v3647
        %v3800 = vpop.f32.mrb[0].mxu0
        %v3801 = vadd.f32 %v3692, %v3800
        %v3802 = vpop.f32.mrb[0].mxu0
        %3803 = vmatprep.mubr.f32.mxu0 0.0
        %3804 = vmatmul.mubr.f32.gmra.mrb[0].mxu0 %v3648
        %v3805 = vpop.f32.mrb[0].mxu0
        %v3806 = vadd.f32 %v3692, %v3805
        %v3807 = vpop.f32.mrb[0].mxu0
        %3808 = vmatprep.mubr.f32.mxu0 0.0
        %3809 = vmatmul.mubr.f32.gmra.mrb[0].mxu0 %v3649
        %v3810 = vpop.f32.mrb[0].mxu0
        %v3811 = vadd.f32 %v3692, %v3810
        %v3812 = vpop.f32.mrb[0].mxu0
        %3813 = vmatprep.mubr.f32.mxu0 0.0
        %3814 = vmatmul.mubr.f32.gmra.mrb[0].mxu0 %v3650
        %v3815 = vpop.f32.mrb[0].mxu0
        %v3816 = vadd.f32 %v3692, %v3815
        %v3817 = vpop.f32.mrb[0].mxu0
        %3818 = vmatprep.mubr.f32.mxu0 0.0
        %3819 = vmatmul.mubr.f32.gmra.mrb[0].mxu0 %v3651
        %v3820 = vpop.f32.mrb[0].mxu0
        %v3821 = vadd.f32 %v3692, %v3820
        %v3822 = vpop.f32.mrb[0].mxu0
        %3823 = vmatprep.mubr.f32.mxu0 0.0
        %3824 = vmatmul.mubr.f32.gmra.mrb[0].mxu0 %v3652
        %v3825 = vpop.f32.mrb[0].mxu0
        %v3826 = vadd.f32 %v3692, %v3825
        %v3827 = vpop.f32.mrb[0].mxu0
        %3828 = vmatprep.mubr.f32.mxu0 0.0
        %3829 = vmatmul.mubr.f32.gmra.mrb[0].mxu0 %v3653
        %v3830 = vpop.f32.mrb[0].mxu0
        %v3831 = vadd.f32 %v3692, %v3830
        %v3832 = vpop.f32.mrb[0].mxu0
        %3833 = vmatprep.mubr.f32.mxu0 0.0
        %3834 = vmatmul.mubr.f32.gmra.mrb[0].mxu0 %v3654
        %v3835 = vpop.f32.mrb[0].mxu0
        %v3836 = vadd.f32 %v3692, %v3835
        %v3837 = vpop.f32.mrb[0].mxu0
        %3838 = vmatprep.mubr.f32.mxu0 0.0
        %3839 = vmatmul.mubr.f32.gmra.mrb[0].mxu0 %v3655
        %v3840 = vpop.f32.mrb[0].mxu0
        %v3841 = vadd.f32 %v3692, %v3840
        %v3842 = vpop.f32.mrb[0].mxu0
        %3843 = vmatprep.mubr.f32.mxu0 0.0
        %3844 = vmatmul.mubr.f32.gmra.mrb[0].mxu0 %v3656
        %v3845 = vpop.f32.mrb[0].mxu0
        %v3846 = vadd.f32 %v3692, %v3845
        %v3847 = vpop.f32.mrb[0].mxu0
        %3848 = vmatprep.mubr.f32.mxu0 0.0
        %3849 = vmatmul.mubr.f32.gmra.mrb[0].mxu0 %v3657
        %v3850 = vpop.f32.mrb[0].mxu0
        %v3851 = vadd.f32 %v3692, %v3850
        %v3852 = vpop.f32.mrb[0].mxu0
        %3853 = vmatprep.mubr.f32.mxu0 0.0
        %3854 = vmatmul.mubr.f32.gmra.mrb[0].mxu0 %v3658
        %v3855 = vpop.f32.mrb[0].mxu0
        %v3856 = vadd.f32 %v3692, %v3855
        %v3857 = vpop.f32.mrb[0].mxu0
        %3858 = vmatprep.mubr.f32.mxu0 0.0
        %3859 = vmatmul.mubr.f32.gmra.mrb[0].mxu0 %v3659
        %v3860 = vpop.f32.mrb[0].mxu0
        %v3861 = vadd.f32 %v3692, %v3860
        %v3862 = vpop.f32.mrb[0].mxu0
        %3863 = vmatprep.mubr.f32.mxu0 0.0
        %3864 = vmatmul.mubr.f32.gmra.mrb[0].mxu0 %v3660
        %v3865 = vpop.f32.mrb[0].mxu0
        %v3866 = vadd.f32 %v3692, %v3865
        %v3867 = vpop.f32.mrb[0].mxu0
        %3868 = vmatprep.mubr.f32.mxu0 0.0
        %3869 = vmatmul.mubr.f32.gmra.mrb[0].mxu0 %v3661
        %v3870 = vpop.f32.mrb[0].mxu0
        %v3871 = vadd.f32 %v3692, %v3870
        %v3872 = vpop.f32.mrb[0].mxu0
        %3873 = vmatprep.mubr.f32.mxu0 0.0
        %3874 = vmatmul.mubr.f32.gmra.mrb[0].mxu0 %v3662
        %v3875 = vpop.f32.mrb[0].mxu0
        %v3876 = vadd.f32 %v3692, %v3875
        %v3877 = vpop.f32.mrb[0].mxu0
        %3878 = vmatprep.mubr.f32.mxu0 0.0
        %3879 = vmatmul.mubr.f32.gmra.mrb[0].mxu0 %v3663
        %v3880 = vpop.f32.mrb[0].mxu0
        %v3881 = vadd.f32 %v3692, %v3880
        %v3882 = vpop.f32.mrb[0].mxu0
        %3883 = vmatprep.mubr.f32.mxu0 0.0
        %3884 = vmatmul.mubr.f32.gmra.mrb[0].mxu0 %v3664
        %v3885 = vpop.f32.mrb[0].mxu0
        %v3886 = vadd.f32 %v3692, %v3885
        %v3887 = vpop.f32.mrb[0].mxu0
        %3888 = vmatprep.mubr.f32.mxu0 0.0
        %3889 = vmatmul.mubr.f32.gmra.mrb[0].mxu0 %v3665
        %v3890 = vpop.f32.mrb[0].mxu0
        %v3891 = vadd.f32 %v3692, %v3890
        %v3892 = vpop.f32.mrb[0].mxu0
        %3893 = vmatprep.mubr.f32.mxu0 0.0
        %3894 = vmatmul.mubr.f32.gmra.mrb[0].mxu0 %v3666
        %v3895 = vpop.f32.mrb[0].mxu0
        %v3896 = vadd.f32 %v3692, %v3895
        %v3897 = vpop.f32.mrb[0].mxu0
        %3898 = vmatprep.mubr.f32.mxu0 0.0
        %3899 = vmatmul.mubr.f32.gmra.mrb[0].mxu0 %v3667
        %v3900 = vpop.f32.mrb[0].mxu0
        %v3901 = vadd.f32 %v3692, %v3900
        %v3902 = vpop.f32.mrb[0].mxu0
        %3903 = vmatprep.mubr.f32.mxu0 0.0
        %3904 = vmatmul.mubr.f32.gmra.mrb[0].mxu0 %v3668
        %v3905 = vpop.f32.mrb[0].mxu0
        %v3906 = vadd.f32 %v3692, %v3905
        %v3907 = vpop.f32.mrb[0].mxu0
        %3908 = vmatprep.mubr.f32.mxu0 0.0
        %3909 = vmatmul.mubr.f32.gmra.mrb[0].mxu0 %v3669
        %v3910 = vpop.f32.mrb[0].mxu0
        %v3911 = vadd.f32 %v3692, %v3910
        %v3912 = vpop.f32.mrb[0].mxu0
        %3913 = vmatprep.mubr.f32.mxu0 0.0
        %3914 = vmatmul.mubr.f32.gmra.mrb[0].mxu0 %v3670
        %v3915 = vpop.f32.mrb[0].mxu0
        %v3916 = vadd.f32 %v3692, %v3915
        %v3917 = vpop.f32.mrb[0].mxu0
        %3918 = vdwg.mxu0
        %v3919 = vsub.f32 0.0, %v3761
        %v3920 = vsub.f32 0.0, %v3766
        %v3921 = vsub.f32 0.0, %v3771
        %v3922 = vsub.f32 0.0, %v3776
        %v3923 = vsub.f32 0.0, %v3781
        %v3924 = vsub.f32 0.0, %v3786
        %v3925 = vsub.f32 0.0, %v3791
        %v3926 = vsub.f32 0.0, %v3796
        %v3927 = vsub.f32 0.0, %v3801
        %v3928 = vsub.f32 0.0, %v3806
        %v3929 = vsub.f32 0.0, %v3811
        %v3930 = vsub.f32 0.0, %v3816
        %v3931 = vsub.f32 0.0, %v3821
        %v3932 = vsub.f32 0.0, %v3826
        %v3933 = vsub.f32 0.0, %v3831
        %v3934 = vsub.f32 0.0, %v3836
        %v3935 = vsub.f32 0.0, %v3841
        %v3936 = vsub.f32 0.0, %v3846
        %v3937 = vsub.f32 0.0, %v3851
        %v3938 = vsub.f32 0.0, %v3856
        %v3939 = vsub.f32 0.0, %v3861
        %v3940 = vsub.f32 0.0, %v3866
        %v3941 = vsub.f32 0.0, %v3871
        %v3942 = vsub.f32 0.0, %v3876
        %v3943 = vsub.f32 0.0, %v3881
        %v3944 = vsub.f32 0.0, %v3886
        %v3945 = vsub.f32 0.0, %v3891
        %v3946 = vsub.f32 0.0, %v3896
        %v3947 = vsub.f32 0.0, %v3901
        %v3948 = vsub.f32 0.0, %v3906
        %v3949 = vsub.f32 0.0, %v3911
        %v3950 = vsub.f32 0.0, %v3916
        %v3951 = vmul.f32 %v3919, 1.442695
        %v3952 = vpow.pop %v3951
        %v3953 = vmul.f32 %v3920, 1.442695
        %v3954 = vpow.pop %v3953
        %v3955 = vmul.f32 %v3921, 1.442695
        %v3956 = vpow.pop %v3955
        %v3957 = vmul.f32 %v3922, 1.442695
        %v3958 = vpow.pop %v3957
        %v3959 = vmul.f32 %v3923, 1.442695
        %v3960 = vpow.pop %v3959
        %v3961 = vmul.f32 %v3924, 1.442695
        %v3962 = vpow.pop %v3961
        %v3963 = vmul.f32 %v3925, 1.442695
        %v3964 = vpow.pop %v3963
        %v3965 = vmul.f32 %v3926, 1.442695
        %v3966 = vpow.pop %v3965
        %v3967 = vmul.f32 %v3927, 1.442695
        %v3968 = vpow.pop %v3967
        %v3969 = vmul.f32 %v3928, 1.442695
        %v3970 = vpow.pop %v3969
        %v3971 = vmul.f32 %v3929, 1.442695
        %v3972 = vpow.pop %v3971
        %v3973 = vmul.f32 %v3930, 1.442695
        %v3974 = vpow.pop %v3973
        %v3975 = vmul.f32 %v3931, 1.442695
        %v3976 = vpow.pop %v3975
        %v3977 = vmul.f32 %v3932, 1.442695
        %v3978 = vpow.pop %v3977
        %v3979 = vmul.f32 %v3933, 1.442695
        %v3980 = vpow.pop %v3979
        %v3981 = vmul.f32 %v3934, 1.442695
        %v3982 = vpow.pop %v3981
        %v3983 = vmul.f32 %v3935, 1.442695
        %v3984 = vpow.pop %v3983
        %v3985 = vmul.f32 %v3936, 1.442695
        %v3986 = vpow.pop %v3985
        %v3987 = vmul.f32 %v3937, 1.442695
        %v3988 = vpow.pop %v3987
        %v3989 = vmul.f32 %v3938, 1.442695
        %v3990 = vpow.pop %v3989
        %v3991 = vmul.f32 %v3939, 1.442695
        %v3992 = vpow.pop %v3991
        %v3993 = vmul.f32 %v3940, 1.442695
        %v3994 = vpow.pop %v3993
        %v3995 = vmul.f32 %v3941, 1.442695
        %v3996 = vpow.pop %v3995
        %v3997 = vmul.f32 %v3942, 1.442695
        %v3998 = vpow.pop %v3997
        %v3999 = vmul.f32 %v3943, 1.442695
        %v4000 = vpow.pop %v3999
        %v4001 = vmul.f32 %v3944, 1.442695
        %v4002 = vpow.pop %v4001
        %v4003 = vmul.f32 %v3945, 1.442695
        %v4004 = vpow.pop %v4003
        %v4005 = vmul.f32 %v3946, 1.442695
        %v4006 = vpow.pop %v4005
        %v4007 = vmul.f32 %v3947, 1.442695
        %v4008 = vpow.pop %v4007
        %v4009 = vmul.f32 %v3948, 1.442695
        %v4010 = vpow.pop %v4009
        %v4011 = vmul.f32 %v3949, 1.442695
        %v4012 = vpow.pop %v4011
        %v4013 = vmul.f32 %v3950, 1.442695
        %v4014 = vpow.pop %v4013
        %v4015 = vadd.f32 %v3952, 1.0
        %v4016 = vadd.f32 %v3954, 1.0
        %v4017 = vadd.f32 %v3956, 1.0
        %v4018 = vadd.f32 %v3958, 1.0
        %v4019 = vadd.f32 %v3960, 1.0
        %v4020 = vadd.f32 %v3962, 1.0
        %v4021 = vadd.f32 %v3964, 1.0
        %v4022 = vadd.f32 %v3966, 1.0
        %v4023 = vadd.f32 %v3968, 1.0
        %v4024 = vadd.f32 %v3970, 1.0
        %v4025 = vadd.f32 %v3972, 1.0
        %v4026 = vadd.f32 %v3974, 1.0
        %v4027 = vadd.f32 %v3976, 1.0
        %v4028 = vadd.f32 %v3978, 1.0
        %v4029 = vadd.f32 %v3980, 1.0
        %v4030 = vadd.f32 %v3982, 1.0
        %v4031 = vadd.f32 %v3984, 1.0
        %v4032 = vadd.f32 %v3986, 1.0
        %v4033 = vadd.f32 %v3988, 1.0
        %v4034 = vadd.f32 %v3990, 1.0
        %v4035 = vadd.f32 %v3992, 1.0
        %v4036 = vadd.f32 %v3994, 1.0
        %v4037 = vadd.f32 %v3996, 1.0
        %v4038 = vadd.f32 %v3998, 1.0
        %v4039 = vadd.f32 %v4000, 1.0
        %v4040 = vadd.f32 %v4002, 1.0
        %v4041 = vadd.f32 %v4004, 1.0
        %v4042 = vadd.f32 %v4006, 1.0
        %v4043 = vadd.f32 %v4008, 1.0
        %v4044 = vadd.f32 %v4010, 1.0
        %v4045 = vadd.f32 %v4012, 1.0
        %v4046 = vadd.f32 %v4014, 1.0
        %v4047 = vrcp.pop %v4015
        %v4048 = vmul.f32 1.0, %v4047
        %v4049 = vrcp.pop %v4016
        %v4050 = vmul.f32 1.0, %v4049
        %v4051 = vrcp.pop %v4017
        %v4052 = vmul.f32 1.0, %v4051
        %v4053 = vrcp.pop %v4018
        %v4054 = vmul.f32 1.0, %v4053
        %v4055 = vrcp.pop %v4019
        %v4056 = vmul.f32 1.0, %v4055
        %v4057 = vrcp.pop %v4020
        %v4058 = vmul.f32 1.0, %v4057
        %v4059 = vrcp.pop %v4021
        %v4060 = vmul.f32 1.0, %v4059
        %v4061 = vrcp.pop %v4022
        %v4062 = vmul.f32 1.0, %v4061
        %v4063 = vrcp.pop %v4023
        %v4064 = vmul.f32 1.0, %v4063
        %v4065 = vrcp.pop %v4024
        %v4066 = vmul.f32 1.0, %v4065
        %v4067 = vrcp.pop %v4025
        %v4068 = vmul.f32 1.0, %v4067
        %v4069 = vrcp.pop %v4026
        %v4070 = vmul.f32 1.0, %v4069
        %v4071 = vrcp.pop %v4027
        %v4072 = vmul.f32 1.0, %v4071
        %v4073 = vrcp.pop %v4028
        %v4074 = vmul.f32 1.0, %v4073
        %v4075 = vrcp.pop %v4029
        %v4076 = vmul.f32 1.0, %v4075
        %v4077 = vrcp.pop %v4030
        %v4078 = vmul.f32 1.0, %v4077
        %v4079 = vrcp.pop %v4031
        %v4080 = vmul.f32 1.0, %v4079
        %v4081 = vrcp.pop %v4032
        %v4082 = vmul.f32 1.0, %v4081
        %v4083 = vrcp.pop %v4033
        %v4084 = vmul.f32 1.0, %v4083
        %v4085 = vrcp.pop %v4034
        %v4086 = vmul.f32 1.0, %v4085
        %v4087 = vrcp.pop %v4035
        %v4088 = vmul.f32 1.0, %v4087
        %v4089 = vrcp.pop %v4036
        %v4090 = vmul.f32 1.0, %v4089
        %v4091 = vrcp.pop %v4037
        %v4092 = vmul.f32 1.0, %v4091
        %v4093 = vrcp.pop %v4038
        %v4094 = vmul.f32 1.0, %v4093
        %v4095 = vrcp.pop %v4039
        %v4096 = vmul.f32 1.0, %v4095
        %v4097 = vrcp.pop %v4040
        %v4098 = vmul.f32 1.0, %v4097
        %v4099 = vrcp.pop %v4041
        %v4100 = vmul.f32 1.0, %v4099
        %v4101 = vrcp.pop %v4042
        %v4102 = vmul.f32 1.0, %v4101
        %v4103 = vrcp.pop %v4043
        %v4104 = vmul.f32 1.0, %v4103
        %v4105 = vrcp.pop %v4044
        %v4106 = vmul.f32 1.0, %v4105
        %v4107 = vrcp.pop %v4045
        %v4108 = vmul.f32 1.0, %v4107
        %v4109 = vrcp.pop %v4046
        %v4110 = vmul.f32 1.0, %v4109
        %v4111 = vmul.f32 %v3761, %v4048
        %v4112 = vmul.f32 %v3766, %v4050
        %v4113 = vmul.f32 %v3771, %v4052
        %v4114 = vmul.f32 %v3776, %v4054
        %v4115 = vmul.f32 %v3781, %v4056
        %v4116 = vmul.f32 %v3786, %v4058
        %v4117 = vmul.f32 %v3791, %v4060
        %v4118 = vmul.f32 %v3796, %v4062
        %v4119 = vmul.f32 %v3801, %v4064
        %v4120 = vmul.f32 %v3806, %v4066
        %v4121 = vmul.f32 %v3811, %v4068
        %v4122 = vmul.f32 %v3816, %v4070
        %v4123 = vmul.f32 %v3821, %v4072
        %v4124 = vmul.f32 %v3826, %v4074
        %v4125 = vmul.f32 %v3831, %v4076
        %v4126 = vmul.f32 %v3836, %v4078
        %v4127 = vmul.f32 %v3841, %v4080
        %v4128 = vmul.f32 %v3846, %v4082
        %v4129 = vmul.f32 %v3851, %v4084
        %v4130 = vmul.f32 %v3856, %v4086
        %v4131 = vmul.f32 %v3861, %v4088
        %v4132 = vmul.f32 %v3866, %v4090
        %v4133 = vmul.f32 %v3871, %v4092
        %v4134 = vmul.f32 %v3876, %v4094
        %v4135 = vmul.f32 %v3881, %v4096
        %v4136 = vmul.f32 %v3886, %v4098
        %v4137 = vmul.f32 %v3891, %v4100
        %v4138 = vmul.f32 %v3896, %v4102
        %v4139 = vmul.f32 %v3901, %v4104
        %v4140 = vmul.f32 %v3906, %v4106
        %v4141 = vmul.f32 %v3911, %v4108
        %v4142 = vmul.f32 %v3916, %v4110
        %v4175 = vrot.slane %v4111, 7
        %v4176 = vrot.slane %v4112, 7
        %v4177 = vsel %vm916, %v4175, %v4176
        %v4178 = vrot.slane %v4113, 7
        %v4179 = vrot.slane %v4114, 7
        %v4180 = vsel %vm916, %v4178, %v4179
        %v4181 = vrot.slane %v4115, 7
        %v4182 = vrot.slane %v4116, 7
        %v4183 = vsel %vm916, %v4181, %v4182
        %v4184 = vrot.slane %v4117, 7
        %v4185 = vrot.slane %v4118, 7
        %v4186 = vsel %vm916, %v4184, %v4185
        %v4187 = vrot.slane %v4119, 7
        %v4188 = vrot.slane %v4120, 7
        %v4189 = vsel %vm916, %v4187, %v4188
        %v4190 = vrot.slane %v4121, 7
        %v4191 = vrot.slane %v4122, 7
        %v4192 = vsel %vm916, %v4190, %v4191
        %v4193 = vrot.slane %v4123, 7
        %v4194 = vrot.slane %v4124, 7
        %v4195 = vsel %vm916, %v4193, %v4194
        %v4196 = vrot.slane %v4125, 7
        %v4197 = vrot.slane %v4126, 7
        %v4198 = vsel %vm916, %v4196, %v4197
        %v4199 = vrot.slane %v4127, 7
        %v4200 = vrot.slane %v4128, 7
        %v4201 = vsel %vm916, %v4199, %v4200
        %v4202 = vrot.slane %v4129, 7
        %v4203 = vrot.slane %v4130, 7
        %v4204 = vsel %vm916, %v4202, %v4203
        %v4205 = vrot.slane %v4131, 7
        %v4206 = vrot.slane %v4132, 7
        %v4207 = vsel %vm916, %v4205, %v4206
        %v4208 = vrot.slane %v4133, 7
        %v4209 = vrot.slane %v4134, 7
        %v4210 = vsel %vm916, %v4208, %v4209
        %v4211 = vrot.slane %v4135, 7
        %v4212 = vrot.slane %v4136, 7
        %v4213 = vsel %vm916, %v4211, %v4212
        %v4214 = vrot.slane %v4137, 7
        %v4215 = vrot.slane %v4138, 7
        %v4216 = vsel %vm916, %v4214, %v4215
        %v4217 = vrot.slane %v4139, 7
        %v4218 = vrot.slane %v4140, 7
        %v4219 = vsel %vm916, %v4217, %v4218
        %v4220 = vrot.slane %v4141, 7
        %v4221 = vrot.slane %v4142, 7
        %v4222 = vsel %vm916, %v4220, %v4221
        %v4255 = vsel %vm916, 0.0, %v4175
        %v4256 = vsel %vm916, 0.0, %v4178
        %v4257 = vsel %vm916, 0.0, %v4181
        %v4258 = vsel %vm916, 0.0, %v4184
        %v4259 = vsel %vm916, 0.0, %v4187
        %v4260 = vsel %vm916, 0.0, %v4190
        %v4261 = vsel %vm916, 0.0, %v4193
        %v4262 = vsel %vm916, 0.0, %v4196
        %v4263 = vsel %vm916, 0.0, %v4199
        %v4264 = vsel %vm916, 0.0, %v4202
        %v4265 = vsel %vm916, 0.0, %v4205
        %v4266 = vsel %vm916, 0.0, %v4208
        %v4267 = vsel %vm916, 0.0, %v4211
        %v4268 = vsel %vm916, 0.0, %v4214
        %v4269 = vsel %vm916, 0.0, %v4217
        %v4270 = vsel %vm916, 0.0, %v4220
        %v4271 = vrot.slane %v4111, 1
        %v4272 = vrot.slane %v4112, 1
        %v4273 = vsel %vm1013, %v4271, %v4272
        %v4274 = vrot.slane %v4113, 1
        %v4275 = vrot.slane %v4114, 1
        %v4276 = vsel %vm1013, %v4274, %v4275
        %v4277 = vrot.slane %v4115, 1
        %v4278 = vrot.slane %v4116, 1
        %v4279 = vsel %vm1013, %v4277, %v4278
        %v4280 = vrot.slane %v4117, 1
        %v4281 = vrot.slane %v4118, 1
        %v4282 = vsel %vm1013, %v4280, %v4281
        %v4283 = vrot.slane %v4119, 1
        %v4284 = vrot.slane %v4120, 1
        %v4285 = vsel %vm1013, %v4283, %v4284
        %v4286 = vrot.slane %v4121, 1
        %v4287 = vrot.slane %v4122, 1
        %v4288 = vsel %vm1013, %v4286, %v4287
        %v4289 = vrot.slane %v4123, 1
        %v4290 = vrot.slane %v4124, 1
        %v4291 = vsel %vm1013, %v4289, %v4290
        %v4292 = vrot.slane %v4125, 1
        %v4293 = vrot.slane %v4126, 1
        %v4294 = vsel %vm1013, %v4292, %v4293
        %v4295 = vrot.slane %v4127, 1
        %v4296 = vrot.slane %v4128, 1
        %v4297 = vsel %vm1013, %v4295, %v4296
        %v4298 = vrot.slane %v4129, 1
        %v4299 = vrot.slane %v4130, 1
        %v4300 = vsel %vm1013, %v4298, %v4299
        %v4301 = vrot.slane %v4131, 1
        %v4302 = vrot.slane %v4132, 1
        %v4303 = vsel %vm1013, %v4301, %v4302
        %v4304 = vrot.slane %v4133, 1
        %v4305 = vrot.slane %v4134, 1
        %v4306 = vsel %vm1013, %v4304, %v4305
        %v4307 = vrot.slane %v4135, 1
        %v4308 = vrot.slane %v4136, 1
        %v4309 = vsel %vm1013, %v4307, %v4308
        %v4310 = vrot.slane %v4137, 1
        %v4311 = vrot.slane %v4138, 1
        %v4312 = vsel %vm1013, %v4310, %v4311
        %v4313 = vrot.slane %v4139, 1
        %v4314 = vrot.slane %v4140, 1
        %v4315 = vsel %vm1013, %v4313, %v4314
        %v4316 = vrot.slane %v4141, 1
        %v4317 = vrot.slane %v4142, 1
        %v4318 = vsel %vm1013, %v4316, %v4317
        %v4351 = vsel %vm1013, %v4272, 0.0
        %v4352 = vsel %vm1013, %v4275, 0.0
        %v4353 = vsel %vm1013, %v4278, 0.0
        %v4354 = vsel %vm1013, %v4281, 0.0
        %v4355 = vsel %vm1013, %v4284, 0.0
        %v4356 = vsel %vm1013, %v4287, 0.0
        %v4357 = vsel %vm1013, %v4290, 0.0
        %v4358 = vsel %vm1013, %v4293, 0.0
        %v4359 = vsel %vm1013, %v4296, 0.0
        %v4360 = vsel %vm1013, %v4299, 0.0
        %v4361 = vsel %vm1013, %v4302, 0.0
        %v4362 = vsel %vm1013, %v4305, 0.0
        %v4363 = vsel %vm1013, %v4308, 0.0
        %v4364 = vsel %vm1013, %v4311, 0.0
        %v4365 = vsel %vm1013, %v4314, 0.0
        %v4366 = vsel %vm1013, %v4317, 0.0
        %4367 = vst [vmem:[%s1110] sm:$0xff] %v4255
        %4368 = vst [vmem:[%s1110 + $0x18] sm:$0xff] %v4177
        %4369 = vst [vmem:[%s1110 + $0x30] sm:$0xff] %v4256
        %4370 = vst [vmem:[%s1110 + $0x48] sm:$0xff] %v4180
        %4371 = vst [vmem:[%s1110 + $0x60] sm:$0xff] %v4257
        %4372 = vst [vmem:[%s1110 + $0x78] sm:$0xff] %v4183
        %4373 = vst [vmem:[%s1110 + $0x90] sm:$0xff] %v4258
        %4374 = vst [vmem:[%s1110 + $0xa8] sm:$0xff] %v4186
        %4375 = vst [vmem:[%s1110 + $0xc0] sm:$0xff] %v4259
        %4376 = vst [vmem:[%s1110 + $0xd8] sm:$0xff] %v4189
        %4377 = vst [vmem:[%s1110 + $0xf0] sm:$0xff] %v4260
        %4378 = vst [vmem:[%s1110 + $0x108] sm:$0xff] %v4192
        %4379 = vst [vmem:[%s1110 + $0x120] sm:$0xff] %v4261
        %4380 = vst [vmem:[%s1110 + $0x138] sm:$0xff] %v4195
        %4381 = vst [vmem:[%s1110 + $0x150] sm:$0xff] %v4262
        %4382 = vst [vmem:[%s1110 + $0x168] sm:$0xff] %v4198
        %4383 = vst [vmem:[%s1110 + $0x180] sm:$0xff] %v4263
        %4384 = vst [vmem:[%s1110 + $0x198] sm:$0xff] %v4201
        %4385 = vst [vmem:[%s1110 + $0x1b0] sm:$0xff] %v4264
        %4386 = vst [vmem:[%s1110 + $0x1c8] sm:$0xff] %v4204
        %4387 = vst [vmem:[%s1110 + $0x1e0] sm:$0xff] %v4265
        %4388 = vst [vmem:[%s1110 + $0x1f8] sm:$0xff] %v4207
        %4389 = vst [vmem:[%s1110 + $0x210] sm:$0xff] %v4266
        %4390 = vst [vmem:[%s1110 + $0x228] sm:$0xff] %v4210
        %4391 = vst [vmem:[%s1110 + $0x240] sm:$0xff] %v4267
        %4392 = vst [vmem:[%s1110 + $0x258] sm:$0xff] %v4213
        %4393 = vst [vmem:[%s1110 + $0x270] sm:$0xff] %v4268
        %4394 = vst [vmem:[%s1110 + $0x288] sm:$0xff] %v4216
        %4395 = vst [vmem:[%s1110 + $0x2a0] sm:$0xff] %v4269
        %4396 = vst [vmem:[%s1110 + $0x2b8] sm:$0xff] %v4219
        %4397 = vst [vmem:[%s1110 + $0x2d0] sm:$0xff] %v4270
        %4398 = vst [vmem:[%s1110 + $0x2e8] sm:$0xff] %v4222
        %4399 = vst [vmem:[%s1110 + $0x8] sm:$0xff] %v4111
        %4400 = vst [vmem:[%s1110 + $0x20] sm:$0xff] %v4112
        %4401 = vst [vmem:[%s1110 + $0x38] sm:$0xff] %v4113
        %4402 = vst [vmem:[%s1110 + $0x50] sm:$0xff] %v4114
        %4403 = vst [vmem:[%s1110 + $0x68] sm:$0xff] %v4115
        %4404 = vst [vmem:[%s1110 + $0x80] sm:$0xff] %v4116
        %4405 = vst [vmem:[%s1110 + $0x98] sm:$0xff] %v4117
        %4406 = vst [vmem:[%s1110 + $0xb0] sm:$0xff] %v4118
        %4407 = vst [vmem:[%s1110 + $0xc8] sm:$0xff] %v4119
        %4408 = vst [vmem:[%s1110 + $0xe0] sm:$0xff] %v4120
        %4409 = vst [vmem:[%s1110 + $0xf8] sm:$0xff] %v4121
        %4410 = vst [vmem:[%s1110 + $0x110] sm:$0xff] %v4122
        %4411 = vst [vmem:[%s1110 + $0x128] sm:$0xff] %v4123
        %4412 = vst [vmem:[%s1110 + $0x140] sm:$0xff] %v4124
        %4413 = vst [vmem:[%s1110 + $0x158] sm:$0xff] %v4125
        %4414 = vst [vmem:[%s1110 + $0x170] sm:$0xff] %v4126
        %4415 = vst [vmem:[%s1110 + $0x188] sm:$0xff] %v4127
        %4416 = vst [vmem:[%s1110 + $0x1a0] sm:$0xff] %v4128
        %4417 = vst [vmem:[%s1110 + $0x1b8] sm:$0xff] %v4129
        %4418 = vst [vmem:[%s1110 + $0x1d0] sm:$0xff] %v4130
        %4419 = vst [vmem:[%s1110 + $0x1e8] sm:$0xff] %v4131
        %4420 = vst [vmem:[%s1110 + $0x200] sm:$0xff] %v4132
        %4421 = vst [vmem:[%s1110 + $0x218] sm:$0xff] %v4133
        %4422 = vst [vmem:[%s1110 + $0x230] sm:$0xff] %v4134
        %4423 = vst [vmem:[%s1110 + $0x248] sm:$0xff] %v4135
        %4424 = vst [vmem:[%s1110 + $0x260] sm:$0xff] %v4136
        %4425 = vst [vmem:[%s1110 + $0x278] sm:$0xff] %v4137
        %4426 = vst [vmem:[%s1110 + $0x290] sm:$0xff] %v4138
        %4427 = vst [vmem:[%s1110 + $0x2a8] sm:$0xff] %v4139
        %4428 = vst [vmem:[%s1110 + $0x2c0] sm:$0xff] %v4140
        %4429 = vst [vmem:[%s1110 + $0x2d8] sm:$0xff] %v4141
        %4430 = vst [vmem:[%s1110 + $0x2f0] sm:$0xff] %v4142
        %4431 = vst [vmem:[%s1110 + $0x10] sm:$0xff] %v4273
        %4432 = vst [vmem:[%s1110 + $0x28] sm:$0xff] %v4351
        %4433 = vst [vmem:[%s1110 + $0x40] sm:$0xff] %v4276
        %4434 = vst [vmem:[%s1110 + $0x58] sm:$0xff] %v4352
        %4435 = vst [vmem:[%s1110 + $0x70] sm:$0xff] %v4279
        %4436 = vst [vmem:[%s1110 + $0x88] sm:$0xff] %v4353
        %4437 = vst [vmem:[%s1110 + $0xa0] sm:$0xff] %v4282
        %4438 = vst [vmem:[%s1110 + $0xb8] sm:$0xff] %v4354
        %4439 = vst [vmem:[%s1110 + $0xd0] sm:$0xff] %v4285
        %4440 = vst [vmem:[%s1110 + $0xe8] sm:$0xff] %v4355
        %4441 = vst [vmem:[%s1110 + $0x100] sm:$0xff] %v4288
        %4442 = vst [vmem:[%s1110 + $0x118] sm:$0xff] %v4356
        %4443 = vst [vmem:[%s1110 + $0x130] sm:$0xff] %v4291
        %4444 = vst [vmem:[%s1110 + $0x148] sm:$0xff] %v4357
        %4445 = vst [vmem:[%s1110 + $0x160] sm:$0xff] %v4294
        %4446 = vst [vmem:[%s1110 + $0x178] sm:$0xff] %v4358
        %4447 = vst [vmem:[%s1110 + $0x190] sm:$0xff] %v4297
        %4448 = vst [vmem:[%s1110 + $0x1a8] sm:$0xff] %v4359
        %4449 = vst [vmem:[%s1110 + $0x1c0] sm:$0xff] %v4300
        %4450 = vst [vmem:[%s1110 + $0x1d8] sm:$0xff] %v4360
        %4451 = vst [vmem:[%s1110 + $0x1f0] sm:$0xff] %v4303
        %4452 = vst [vmem:[%s1110 + $0x208] sm:$0xff] %v4361
        %4453 = vst [vmem:[%s1110 + $0x220] sm:$0xff] %v4306
        %4454 = vst [vmem:[%s1110 + $0x238] sm:$0xff] %v4362
        %4455 = vst [vmem:[%s1110 + $0x250] sm:$0xff] %v4309
        %4456 = vst [vmem:[%s1110 + $0x268] sm:$0xff] %v4363
        %4457 = vst [vmem:[%s1110 + $0x280] sm:$0xff] %v4312
        %4458 = vst [vmem:[%s1110 + $0x298] sm:$0xff] %v4364
        %4459 = vst [vmem:[%s1110 + $0x2b0] sm:$0xff] %v4315
        %4460 = vst [vmem:[%s1110 + $0x2c8] sm:$0xff] %v4365
        %4461 = vst [vmem:[%s1110 + $0x2e0] sm:$0xff] %v4318
        %4462 = vst [vmem:[%s1110 + $0x2f8] sm:$0xff] %v4366
        %4463 = vst [vmem:[#allocation3] sm:$0xff] 0.0
        %4464 = vst [vmem:[#allocation3 + $0x8] sm:$0xff] 0.0
        %4465 = vst [vmem:[#allocation3 + $0x10] sm:$0xff] 0.0
        %4466 = vst [vmem:[#allocation3 + $0x18] sm:$0xff] 0.0
        %4467 = vst [vmem:[#allocation3 + $0x20] sm:$0xff] 0.0
        %4468 = vst [vmem:[#allocation3 + $0x28] sm:$0xff] 0.0
        %4469 = vst [vmem:[#allocation3 + $0x30] sm:$0xff] 0.0
        %4470 = vst [vmem:[#allocation3 + $0x38] sm:$0xff] 0.0
        %4471 = vst [vmem:[#allocation3 + $0x40] sm:$0xff] 0.0
        %4472 = vst [vmem:[#allocation3 + $0x48] sm:$0xff] 0.0
        %4473 = vst [vmem:[#allocation3 + $0x50] sm:$0xff] 0.0
        %4474 = vst [vmem:[#allocation3 + $0x58] sm:$0xff] 0.0
        %4475 = vst [vmem:[#allocation3 + $0x60] sm:$0xff] 0.0
        %4476 = vst [vmem:[#allocation3 + $0x68] sm:$0xff] 0.0
        %4477 = vst [vmem:[#allocation3 + $0x70] sm:$0xff] 0.0
        %4478 = vst [vmem:[#allocation3 + $0x78] sm:$0xff] 0.0
        %4479 = vst [vmem:[#allocation3 + $0x80] sm:$0xff] 0.0
        %4480 = vst [vmem:[#allocation3 + $0x88] sm:$0xff] 0.0
        %4481 = vst [vmem:[#allocation3 + $0x90] sm:$0xff] 0.0
        %4482 = vst [vmem:[#allocation3 + $0x98] sm:$0xff] 0.0
        %4483 = vst [vmem:[#allocation3 + $0xa0] sm:$0xff] 0.0
        %4484 = vst [vmem:[#allocation3 + $0xa8] sm:$0xff] 0.0
        %4485 = vst [vmem:[#allocation3 + $0xb0] sm:$0xff] 0.0
        %4486 = vst [vmem:[#allocation3 + $0xb8] sm:$0xff] 0.0
        %4487 = vst [vmem:[#allocation3 + $0xc0] sm:$0xff] 0.0
        %4488 = vst [vmem:[#allocation3 + $0xc8] sm:$0xff] 0.0
        %4489 = vst [vmem:[#allocation3 + $0xd0] sm:$0xff] 0.0
        %4490 = vst [vmem:[#allocation3 + $0xd8] sm:$0xff] 0.0
        %4491 = vst [vmem:[#allocation3 + $0xe0] sm:$0xff] 0.0
        %4492 = vst [vmem:[#allocation3 + $0xe8] sm:$0xff] 0.0
        %4493 = vst [vmem:[#allocation3 + $0xf0] sm:$0xff] 0.0
        %4494 = vst [vmem:[#allocation3 + $0xf8] sm:$0xff] 0.0
        %v4495 = vld [vmem:[#allocation3] sm:$0xff]
        %v4496 = vld [vmem:[#allocation3 + $0x8] sm:$0xff]
        %v4497 = vld [vmem:[#allocation3 + $0x10] sm:$0xff]
        %v4498 = vld [vmem:[#allocation3 + $0x18] sm:$0xff]
        %v4499 = vld [vmem:[#allocation3 + $0x20] sm:$0xff]
        %v4500 = vld [vmem:[#allocation3 + $0x28] sm:$0xff]
        %v4501 = vld [vmem:[#allocation3 + $0x30] sm:$0xff]
        %v4502 = vld [vmem:[#allocation3 + $0x38] sm:$0xff]
        %v4503 = vld [vmem:[#allocation3 + $0x40] sm:$0xff]
        %v4504 = vld [vmem:[#allocation3 + $0x48] sm:$0xff]
        %v4505 = vld [vmem:[#allocation3 + $0x50] sm:$0xff]
        %v4506 = vld [vmem:[#allocation3 + $0x58] sm:$0xff]
        %v4507 = vld [vmem:[#allocation3 + $0x60] sm:$0xff]
        %v4508 = vld [vmem:[#allocation3 + $0x68] sm:$0xff]
        %v4509 = vld [vmem:[#allocation3 + $0x70] sm:$0xff]
        %v4510 = vld [vmem:[#allocation3 + $0x78] sm:$0xff]
        %v4511 = vld [vmem:[#allocation3 + $0x80] sm:$0xff]
        %v4512 = vld [vmem:[#allocation3 + $0x88] sm:$0xff]
        %v4513 = vld [vmem:[#allocation3 + $0x90] sm:$0xff]
        %v4514 = vld [vmem:[#allocation3 + $0x98] sm:$0xff]
        %v4515 = vld [vmem:[#allocation3 + $0xa0] sm:$0xff]
        %v4516 = vld [vmem:[#allocation3 + $0xa8] sm:$0xff]
        %v4517 = vld [vmem:[#allocation3 + $0xb0] sm:$0xff]
        %v4518 = vld [vmem:[#allocation3 + $0xb8] sm:$0xff]
        %v4519 = vld [vmem:[#allocation3 + $0xc0] sm:$0xff]
        %v4520 = vld [vmem:[#allocation3 + $0xc8] sm:$0xff]
        %v4521 = vld [vmem:[#allocation3 + $0xd0] sm:$0xff]
        %v4522 = vld [vmem:[#allocation3 + $0xd8] sm:$0xff]
        %v4523 = vld [vmem:[#allocation3 + $0xe0] sm:$0xff]
        %v4524 = vld [vmem:[#allocation3 + $0xe8] sm:$0xff]
        %v4525 = vld [vmem:[#allocation3 + $0xf0] sm:$0xff]
        %v4526 = vld [vmem:[#allocation3 + $0xf8] sm:$0xff]
        %v4527 = vld [vmem:[#allocation2] sm:$0xff]
        %v4528 = vld [vmem:[#allocation2 + $0x8] sm:$0xff]
        %v4529 = vld [vmem:[#allocation2 + $0x10] sm:$0xff]
        %v4530 = vld [vmem:[#allocation2 + $0x18] sm:$0xff]
        %v4531 = vld [vmem:[#allocation2 + $0x20] sm:$0xff]
        %v4532 = vld [vmem:[#allocation2 + $0x28] sm:$0xff]
        %v4533 = vld [vmem:[#allocation2 + $0x30] sm:$0xff]
        %v4534 = vld [vmem:[#allocation2 + $0x38] sm:$0xff]
        %v4535 = vld [vmem:[#allocation2 + $0x40] sm:$0xff]
        %v4536 = vld [vmem:[#allocation2 + $0x48] sm:$0xff]
        %v4537 = vld [vmem:[#allocation2 + $0x50] sm:$0xff]
        %v4538 = vld [vmem:[#allocation2 + $0x58] sm:$0xff]
        %v4539 = vld [vmem:[#allocation2 + $0x60] sm:$0xff]
        %v4540 = vld [vmem:[#allocation2 + $0x68] sm:$0xff]
        %v4541 = vld [vmem:[#allocation2 + $0x70] sm:$0xff]
        %v4542 = vld [vmem:[#allocation2 + $0x78] sm:$0xff]
        %v4543 = vld [vmem:[#allocation2 + $0x80] sm:$0xff]
        %v4544 = vld [vmem:[#allocation2 + $0x88] sm:$0xff]
        %v4545 = vld [vmem:[#allocation2 + $0x90] sm:$0xff]
        %v4546 = vld [vmem:[#allocation2 + $0x98] sm:$0xff]
        %v4547 = vld [vmem:[#allocation2 + $0xa0] sm:$0xff]
        %v4548 = vld [vmem:[#allocation2 + $0xa8] sm:$0xff]
        %v4549 = vld [vmem:[#allocation2 + $0xb0] sm:$0xff]
        %v4550 = vld [vmem:[#allocation2 + $0xb8] sm:$0xff]
        %v4551 = vld [vmem:[#allocation2 + $0xc0] sm:$0xff]
        %v4552 = vld [vmem:[#allocation2 + $0xc8] sm:$0xff]
        %v4553 = vld [vmem:[#allocation2 + $0xd0] sm:$0xff]
        %v4554 = vld [vmem:[#allocation2 + $0xd8] sm:$0xff]
        %v4555 = vld [vmem:[#allocation2 + $0xe0] sm:$0xff]
        %v4556 = vld [vmem:[#allocation2 + $0xe8] sm:$0xff]
        %v4557 = vld [vmem:[#allocation2 + $0xf0] sm:$0xff]
        %v4558 = vld [vmem:[#allocation2 + $0xf8] sm:$0xff]
        %v4559 = vld [vmem:[#allocation2 + $0x100] sm:$0xff]
        %v4560 = vld [vmem:[#allocation2 + $0x108] sm:$0xff]
        %v4561 = vld [vmem:[#allocation2 + $0x110] sm:$0xff]
        %v4562 = vld [vmem:[#allocation2 + $0x118] sm:$0xff]
        %v4563 = vld [vmem:[#allocation2 + $0x120] sm:$0xff]
        %v4564 = vld [vmem:[#allocation2 + $0x128] sm:$0xff]
        %v4565 = vld [vmem:[#allocation2 + $0x130] sm:$0xff]
        %v4566 = vld [vmem:[#allocation2 + $0x138] sm:$0xff]
        %v4567 = vld [vmem:[#allocation2 + $0x140] sm:$0xff]
        %v4568 = vld [vmem:[#allocation2 + $0x148] sm:$0xff]
        %v4569 = vld [vmem:[#allocation2 + $0x150] sm:$0xff]
        %v4570 = vld [vmem:[#allocation2 + $0x158] sm:$0xff]
        %v4571 = vld [vmem:[#allocation2 + $0x160] sm:$0xff]
        %v4572 = vld [vmem:[#allocation2 + $0x168] sm:$0xff]
        %v4573 = vld [vmem:[#allocation2 + $0x170] sm:$0xff]
        %v4574 = vld [vmem:[#allocation2 + $0x178] sm:$0xff]
        %v4575 = vld [vmem:[#allocation2 + $0x180] sm:$0xff]
        %v4576 = vld [vmem:[#allocation2 + $0x188] sm:$0xff]
        %v4577 = vld [vmem:[#allocation2 + $0x190] sm:$0xff]
        %v4578 = vld [vmem:[#allocation2 + $0x198] sm:$0xff]
        %v4579 = vld [vmem:[#allocation2 + $0x1a0] sm:$0xff]
        %v4580 = vld [vmem:[#allocation2 + $0x1a8] sm:$0xff]
        %v4581 = vld [vmem:[#allocation2 + $0x1b0] sm:$0xff]
        %v4582 = vld [vmem:[#allocation2 + $0x1b8] sm:$0xff]
        %v4583 = vld [vmem:[#allocation2 + $0x1c0] sm:$0xff]
        %v4584 = vld [vmem:[#allocation2 + $0x1c8] sm:$0xff]
        %v4585 = vld [vmem:[#allocation2 + $0x1d0] sm:$0xff]
        %v4586 = vld [vmem:[#allocation2 + $0x1d8] sm:$0xff]
        %v4587 = vld [vmem:[#allocation2 + $0x1e0] sm:$0xff]
        %v4588 = vld [vmem:[#allocation2 + $0x1e8] sm:$0xff]
        %v4589 = vld [vmem:[#allocation2 + $0x1f0] sm:$0xff]
        %v4590 = vld [vmem:[#allocation2 + $0x1f8] sm:$0xff]
        %v4591 = vld [vmem:[#allocation2 + $0x200] sm:$0xff]
        %v4592 = vld [vmem:[#allocation2 + $0x208] sm:$0xff]
        %v4593 = vld [vmem:[#allocation2 + $0x210] sm:$0xff]
        %v4594 = vld [vmem:[#allocation2 + $0x218] sm:$0xff]
        %v4595 = vld [vmem:[#allocation2 + $0x220] sm:$0xff]
        %v4596 = vld [vmem:[#allocation2 + $0x228] sm:$0xff]
        %v4597 = vld [vmem:[#allocation2 + $0x230] sm:$0xff]
        %v4598 = vld [vmem:[#allocation2 + $0x238] sm:$0xff]
        %v4599 = vld [vmem:[#allocation2 + $0x240] sm:$0xff]
        %v4600 = vld [vmem:[#allocation2 + $0x248] sm:$0xff]
        %v4601 = vld [vmem:[#allocation2 + $0x250] sm:$0xff]
        %v4602 = vld [vmem:[#allocation2 + $0x258] sm:$0xff]
        %v4603 = vld [vmem:[#allocation2 + $0x260] sm:$0xff]
        %v4604 = vld [vmem:[#allocation2 + $0x268] sm:$0xff]
        %v4605 = vld [vmem:[#allocation2 + $0x270] sm:$0xff]
        %v4606 = vld [vmem:[#allocation2 + $0x278] sm:$0xff]
        %v4607 = vld [vmem:[#allocation2 + $0x280] sm:$0xff]
        %v4608 = vld [vmem:[#allocation2 + $0x288] sm:$0xff]
        %v4609 = vld [vmem:[#allocation2 + $0x290] sm:$0xff]
        %v4610 = vld [vmem:[#allocation2 + $0x298] sm:$0xff]
        %v4611 = vld [vmem:[#allocation2 + $0x2a0] sm:$0xff]
        %v4612 = vld [vmem:[#allocation2 + $0x2a8] sm:$0xff]
        %v4613 = vld [vmem:[#allocation2 + $0x2b0] sm:$0xff]
        %v4614 = vld [vmem:[#allocation2 + $0x2b8] sm:$0xff]
        %v4615 = vld [vmem:[#allocation2 + $0x2c0] sm:$0xff]
        %v4616 = vld [vmem:[#allocation2 + $0x2c8] sm:$0xff]
        %v4617 = vld [vmem:[#allocation2 + $0x2d0] sm:$0xff]
        %v4618 = vld [vmem:[#allocation2 + $0x2d8] sm:$0xff]
        %v4619 = vld [vmem:[#allocation2 + $0x2e0] sm:$0xff]
        %v4620 = vld [vmem:[#allocation2 + $0x2e8] sm:$0xff]
        %v4621 = vld [vmem:[#allocation2 + $0x2f0] sm:$0xff]
        %v4622 = vld [vmem:[#allocation2 + $0x2f8] sm:$0xff]
        %v4623 = vld [vmem:[#allocation10] sm:$0xff]
        %v4624 = vld [vmem:[#allocation10 + $0x8] sm:$0xff]
        %v4625 = vld [vmem:[#allocation10 + $0x10] sm:$0xff]
        %v4626 = vld [vmem:[#allocation10 + $0x18] sm:$0xff]
        %v4627 = vld [vmem:[#allocation10 + $0x20] sm:$0xff]
        %v4628 = vld [vmem:[#allocation10 + $0x28] sm:$0xff]
        %v4629 = vld [vmem:[#allocation10 + $0x30] sm:$0xff]
        %v4630 = vld [vmem:[#allocation10 + $0x38] sm:$0xff]
        %v4631 = vld [vmem:[#allocation10 + $0x40] sm:$0xff]
        %v4632 = vld [vmem:[#allocation10 + $0x48] sm:$0xff]
        %v4633 = vld [vmem:[#allocation10 + $0x50] sm:$0xff]
        %v4634 = vld [vmem:[#allocation10 + $0x58] sm:$0xff]
        %v4635 = vld [vmem:[#allocation10 + $0x60] sm:$0xff]
        %v4636 = vld [vmem:[#allocation10 + $0x68] sm:$0xff]
        %v4637 = vld [vmem:[#allocation10 + $0x70] sm:$0xff]
        %v4638 = vld [vmem:[#allocation10 + $0x78] sm:$0xff]
        %v4639 = vld [vmem:[#allocation10 + $0x80] sm:$0xff]
        %v4640 = vld [vmem:[#allocation10 + $0x88] sm:$0xff]
        %v4641 = vld [vmem:[#allocation10 + $0x90] sm:$0xff]
        %v4642 = vld [vmem:[#allocation10 + $0x98] sm:$0xff]
        %v4643 = vld [vmem:[#allocation10 + $0xa0] sm:$0xff]
        %v4644 = vld [vmem:[#allocation10 + $0xa8] sm:$0xff]
        %v4645 = vld [vmem:[#allocation10 + $0xb0] sm:$0xff]
        %v4646 = vld [vmem:[#allocation10 + $0xb8] sm:$0xff]
        %v4647 = vld [vmem:[#allocation10 + $0xc0] sm:$0xff]
        %v4648 = vld [vmem:[#allocation10 + $0xc8] sm:$0xff]
        %v4649 = vld [vmem:[#allocation10 + $0xd0] sm:$0xff]
        %v4650 = vld [vmem:[#allocation10 + $0xd8] sm:$0xff]
        %v4651 = vld [vmem:[#allocation10 + $0xe0] sm:$0xff]
        %v4652 = vld [vmem:[#allocation10 + $0xe8] sm:$0xff]
        %v4653 = vld [vmem:[#allocation10 + $0xf0] sm:$0xff]
        %v4654 = vld [vmem:[#allocation10 + $0xf8] sm:$0xff]
        %v4655 = vld [vmem:[#allocation10 + $0x100] sm:$0xff]
        %v4656 = vld [vmem:[#allocation10 + $0x108] sm:$0xff]
        %v4657 = vld [vmem:[#allocation10 + $0x110] sm:$0xff]
        %v4658 = vld [vmem:[#allocation10 + $0x118] sm:$0xff]
        %v4659 = vld [vmem:[#allocation10 + $0x120] sm:$0xff]
        %v4660 = vld [vmem:[#allocation10 + $0x128] sm:$0xff]
        %v4661 = vld [vmem:[#allocation10 + $0x130] sm:$0xff]
        %v4662 = vld [vmem:[#allocation10 + $0x138] sm:$0xff]
        %v4663 = vld [vmem:[#allocation10 + $0x140] sm:$0xff]
        %v4664 = vld [vmem:[#allocation10 + $0x148] sm:$0xff]
        %v4665 = vld [vmem:[#allocation10 + $0x150] sm:$0xff]
        %v4666 = vld [vmem:[#allocation10 + $0x158] sm:$0xff]
        %v4667 = vld [vmem:[#allocation10 + $0x160] sm:$0xff]
        %v4668 = vld [vmem:[#allocation10 + $0x168] sm:$0xff]
        %v4669 = vld [vmem:[#allocation10 + $0x170] sm:$0xff]
        %v4670 = vld [vmem:[#allocation10 + $0x178] sm:$0xff]
        %4671 = vmatprep.subr.mxu0 0.0
        %4672 = vmatpush1.msra.mxu0 %v4623
        %4673 = vmatprep.subr.mxu0 0.0
        %4674 = vmatpush1.msra.mxu0 %v4624
        %4675 = vmatprep.subr.mxu0 0.0
        %4676 = vmatpush1.msra.mxu0 %v4625
        %4677 = vmatprep.subr.mxu0 0.0
        %4678 = vmatpush1.msra.mxu0 %v4626
        %4679 = vmatprep.subr.mxu0 0.0
        %4680 = vmatpush1.msra.mxu0 %v4627
        %4681 = vmatprep.subr.mxu0 0.0
        %4682 = vmatpush1.msra.mxu0 %v4628
        %4683 = vmatprep.subr.mxu0 0.0
        %4684 = vmatpush1.msra.mxu0 %v4629
        %4685 = vmatprep.subr.mxu0 0.0
        %4686 = vmatpush1.msra.mxu0 %v4630
        %4687 = vmatprep.subr.mxu0 0.0
        %4688 = vmatpush1.msra.mxu0 %v4631
        %4689 = vmatprep.subr.mxu0 0.0
        %4690 = vmatpush1.msra.mxu0 %v4632
        %4691 = vmatprep.subr.mxu0 0.0
        %4692 = vmatpush1.msra.mxu0 %v4633
        %4693 = vmatprep.subr.mxu0 0.0
        %4694 = vmatpush1.msra.mxu0 %v4634
        %4695 = vmatprep.subr.mxu0 0.0
        %4696 = vmatpush1.msra.mxu0 %v4635
        %4697 = vmatprep.subr.mxu0 0.0
        %4698 = vmatpush1.msra.mxu0 %v4636
        %4699 = vmatprep.subr.mxu0 0.0
        %4700 = vmatpush1.msra.mxu0 %v4637
        %4701 = vmatprep.subr.mxu0 0.0
        %4702 = vmatpush1.msra.mxu0 %v4638
        %4703 = vmatprep.subr.mxu0 0.0
        %4704 = vmatpush1.msra.mxu0 %v4639
        %4705 = vmatprep.subr.mxu0 0.0
        %4706 = vmatpush1.msra.mxu0 %v4640
        %4707 = vmatprep.subr.mxu0 0.0
        %4708 = vmatpush1.msra.mxu0 %v4641
        %4709 = vmatprep.subr.mxu0 0.0
        %4710 = vmatpush1.msra.mxu0 %v4642
        %4711 = vmatprep.subr.mxu0 0.0
        %4712 = vmatpush1.msra.mxu0 %v4643
        %4713 = vmatprep.subr.mxu0 0.0
        %4714 = vmatpush1.msra.mxu0 %v4644
        %4715 = vmatprep.subr.mxu0 0.0
        %4716 = vmatpush1.msra.mxu0 %v4645
        %4717 = vmatprep.subr.mxu0 0.0
        %4718 = vmatpush1.msra.mxu0 %v4646
        %4719 = vmatprep.subr.mxu0 0.0
        %4720 = vmatpush1.msra.mxu0 %v4647
        %4721 = vmatprep.subr.mxu0 0.0
        %4722 = vmatpush1.msra.mxu0 %v4648
        %4723 = vmatprep.subr.mxu0 0.0
        %4724 = vmatpush1.msra.mxu0 %v4649
        %4725 = vmatprep.subr.mxu0 0.0
        %4726 = vmatpush1.msra.mxu0 %v4650
        %4727 = vmatprep.subr.mxu0 0.0
        %4728 = vmatpush1.msra.mxu0 %v4651
        %4729 = vmatprep.subr.mxu0 0.0
        %4730 = vmatpush1.msra.mxu0 %v4652
        %4731 = vmatprep.subr.mxu0 0.0
        %4732 = vmatpush1.msra.mxu0 %v4653
        %4733 = vmatprep.subr.mxu0 0.0
        %4734 = vmatpush1.msra.mxu0 %v4654
        %4735 = vmatprep.mubr.f32.mxu0 %v4528
        %4736 = vmatmul.mubr.f32.gmra.mrb[0].mxu0 %v4527
        %v4737 = vpop.f32.mrb[0].mxu0
        %v4738 = vadd.f32 0.0, %v4737
        %v4739 = vpop.f32.mrb[0].mxu0
        %4740 = vmatprep.mubr.f32.mxu0 %v4531
        %4741 = vmatmul.mubr.f32.gmra.mrb[0].mxu0 %v4530
        %v4742 = vpop.f32.mrb[0].mxu0
        %v4743 = vadd.f32 0.0, %v4742
        %v4744 = vpop.f32.mrb[0].mxu0
        %4745 = vmatprep.mubr.f32.mxu0 %v4534
        %4746 = vmatmul.mubr.f32.gmra.mrb[0].mxu0 %v4533
        %v4747 = vpop.f32.mrb[0].mxu0
        %v4748 = vadd.f32 0.0, %v4747
        %v4749 = vpop.f32.mrb[0].mxu0
        %4750 = vmatprep.mubr.f32.mxu0 %v4537
        %4751 = vmatmul.mubr.f32.gmra.mrb[0].mxu0 %v4536
        %v4752 = vpop.f32.mrb[0].mxu0
        %v4753 = vadd.f32 0.0, %v4752
        %v4754 = vpop.f32.mrb[0].mxu0
        %4755 = vmatprep.mubr.f32.mxu0 %v4540
        %4756 = vmatmul.mubr.f32.gmra.mrb[0].mxu0 %v4539
        %v4757 = vpop.f32.mrb[0].mxu0
        %v4758 = vadd.f32 0.0, %v4757
        %v4759 = vpop.f32.mrb[0].mxu0
        %4760 = vmatprep.mubr.f32.mxu0 %v4543
        %4761 = vmatmul.mubr.f32.gmra.mrb[0].mxu0 %v4542
        %v4762 = vpop.f32.mrb[0].mxu0
        %v4763 = vadd.f32 0.0, %v4762
        %v4764 = vpop.f32.mrb[0].mxu0
        %4765 = vmatprep.mubr.f32.mxu0 %v4546
        %4766 = vmatmul.mubr.f32.gmra.mrb[0].mxu0 %v4545
        %v4767 = vpop.f32.mrb[0].mxu0
        %v4768 = vadd.f32 0.0, %v4767
        %v4769 = vpop.f32.mrb[0].mxu0
        %4770 = vmatprep.mubr.f32.mxu0 %v4549
        %4771 = vmatmul.mubr.f32.gmra.mrb[0].mxu0 %v4548
        %v4772 = vpop.f32.mrb[0].mxu0
        %v4773 = vadd.f32 0.0, %v4772
        %v4774 = vpop.f32.mrb[0].mxu0
        %4775 = vmatprep.mubr.f32.mxu0 %v4552
        %4776 = vmatmul.mubr.f32.gmra.mrb[0].mxu0 %v4551
        %v4777 = vpop.f32.mrb[0].mxu0
        %v4778 = vadd.f32 0.0, %v4777
        %v4779 = vpop.f32.mrb[0].mxu0
        %4780 = vmatprep.mubr.f32.mxu0 %v4555
        %4781 = vmatmul.mubr.f32.gmra.mrb[0].mxu0 %v4554
        %v4782 = vpop.f32.mrb[0].mxu0
        %v4783 = vadd.f32 0.0, %v4782
        %v4784 = vpop.f32.mrb[0].mxu0
        %4785 = vmatprep.mubr.f32.mxu0 %v4558
        %4786 = vmatmul.mubr.f32.gmra.mrb[0].mxu0 %v4557
        %v4787 = vpop.f32.mrb[0].mxu0
        %v4788 = vadd.f32 0.0, %v4787
        %v4789 = vpop.f32.mrb[0].mxu0
        %4790 = vmatprep.mubr.f32.mxu0 %v4561
        %4791 = vmatmul.mubr.f32.gmra.mrb[0].mxu0 %v4560
        %v4792 = vpop.f32.mrb[0].mxu0
        %v4793 = vadd.f32 0.0, %v4792
        %v4794 = vpop.f32.mrb[0].mxu0
        %4795 = vmatprep.mubr.f32.mxu0 %v4564
        %4796 = vmatmul.mubr.f32.gmra.mrb[0].mxu0 %v4563
        %v4797 = vpop.f32.mrb[0].mxu0
        %v4798 = vadd.f32 0.0, %v4797
        %v4799 = vpop.f32.mrb[0].mxu0
        %4800 = vmatprep.mubr.f32.mxu0 %v4567
        %4801 = vmatmul.mubr.f32.gmra.mrb[0].mxu0 %v4566
        %v4802 = vpop.f32.mrb[0].mxu0
        %v4803 = vadd.f32 0.0, %v4802
        %v4804 = vpop.f32.mrb[0].mxu0
        %4805 = vmatprep.mubr.f32.mxu0 %v4570
        %4806 = vmatmul.mubr.f32.gmra.mrb[0].mxu0 %v4569
        %v4807 = vpop.f32.mrb[0].mxu0
        %v4808 = vadd.f32 0.0, %v4807
        %v4809 = vpop.f32.mrb[0].mxu0
        %4810 = vmatprep.mubr.f32.mxu0 %v4573
        %4811 = vmatmul.mubr.f32.gmra.mrb[0].mxu0 %v4572
        %v4812 = vpop.f32.mrb[0].mxu0
        %v4813 = vadd.f32 0.0, %v4812
        %v4814 = vpop.f32.mrb[0].mxu0
        %4815 = vmatprep.mubr.f32.mxu0 %v4576
        %4816 = vmatmul.mubr.f32.gmra.mrb[0].mxu0 %v4575
        %v4817 = vpop.f32.mrb[0].mxu0
        %v4818 = vadd.f32 0.0, %v4817
        %v4819 = vpop.f32.mrb[0].mxu0
        %4820 = vmatprep.mubr.f32.mxu0 %v4579
        %4821 = vmatmul.mubr.f32.gmra.mrb[0].mxu0 %v4578
        %v4822 = vpop.f32.mrb[0].mxu0
        %v4823 = vadd.f32 0.0, %v4822
        %v4824 = vpop.f32.mrb[0].mxu0
        %4825 = vmatprep.mubr.f32.mxu0 %v4582
        %4826 = vmatmul.mubr.f32.gmra.mrb[0].mxu0 %v4581
        %v4827 = vpop.f32.mrb[0].mxu0
        %v4828 = vadd.f32 0.0, %v4827
        %v4829 = vpop.f32.mrb[0].mxu0
        %4830 = vmatprep.mubr.f32.mxu0 %v4585
        %4831 = vmatmul.mubr.f32.gmra.mrb[0].mxu0 %v4584
        %v4832 = vpop.f32.mrb[0].mxu0
        %v4833 = vadd.f32 0.0, %v4832
        %v4834 = vpop.f32.mrb[0].mxu0
        %4835 = vmatprep.mubr.f32.mxu0 %v4588
        %4836 = vmatmul.mubr.f32.gmra.mrb[0].mxu0 %v4587
        %v4837 = vpop.f32.mrb[0].mxu0
        %v4838 = vadd.f32 0.0, %v4837
        %v4839 = vpop.f32.mrb[0].mxu0
        %4840 = vmatprep.mubr.f32.mxu0 %v4591
        %4841 = vmatmul.mubr.f32.gmra.mrb[0].mxu0 %v4590
        %v4842 = vpop.f32.mrb[0].mxu0
        %v4843 = vadd.f32 0.0, %v4842
        %v4844 = vpop.f32.mrb[0].mxu0
        %4845 = vmatprep.mubr.f32.mxu0 %v4594
        %4846 = vmatmul.mubr.f32.gmra.mrb[0].mxu0 %v4593
        %v4847 = vpop.f32.mrb[0].mxu0
        %v4848 = vadd.f32 0.0, %v4847
        %v4849 = vpop.f32.mrb[0].mxu0
        %4850 = vmatprep.mubr.f32.mxu0 %v4597
        %4851 = vmatmul.mubr.f32.gmra.mrb[0].mxu0 %v4596
        %v4852 = vpop.f32.mrb[0].mxu0
        %v4853 = vadd.f32 0.0, %v4852
        %v4854 = vpop.f32.mrb[0].mxu0
        %4855 = vmatprep.mubr.f32.mxu0 %v4600
        %4856 = vmatmul.mubr.f32.gmra.mrb[0].mxu0 %v4599
        %v4857 = vpop.f32.mrb[0].mxu0
        %v4858 = vadd.f32 0.0, %v4857
        %v4859 = vpop.f32.mrb[0].mxu0
        %4860 = vmatprep.mubr.f32.mxu0 %v4603
        %4861 = vmatmul.mubr.f32.gmra.mrb[0].mxu0 %v4602
        %v4862 = vpop.f32.mrb[0].mxu0
        %v4863 = vadd.f32 0.0, %v4862
        %v4864 = vpop.f32.mrb[0].mxu0
        %4865 = vmatprep.mubr.f32.mxu0 %v4606
        %4866 = vmatmul.mubr.f32.gmra.mrb[0].mxu0 %v4605
        %v4867 = vpop.f32.mrb[0].mxu0
        %v4868 = vadd.f32 0.0, %v4867
        %v4869 = vpop.f32.mrb[0].mxu0
        %4870 = vmatprep.mubr.f32.mxu0 %v4609
        %4871 = vmatmul.mubr.f32.gmra.mrb[0].mxu0 %v4608
        %v4872 = vpop.f32.mrb[0].mxu0
        %v4873 = vadd.f32 0.0, %v4872
        %v4874 = vpop.f32.mrb[0].mxu0
        %4875 = vmatprep.mubr.f32.mxu0 %v4612
        %4876 = vmatmul.mubr.f32.gmra.mrb[0].mxu0 %v4611
        %v4877 = vpop.f32.mrb[0].mxu0
        %v4878 = vadd.f32 0.0, %v4877
        %v4879 = vpop.f32.mrb[0].mxu0
        %4880 = vmatprep.mubr.f32.mxu0 %v4615
        %4881 = vmatmul.mubr.f32.gmra.mrb[0].mxu0 %v4614
        %v4882 = vpop.f32.mrb[0].mxu0
        %v4883 = vadd.f32 0.0, %v4882
        %v4884 = vpop.f32.mrb[0].mxu0
        %4885 = vmatprep.mubr.f32.mxu0 %v4618
        %4886 = vmatmul.mubr.f32.gmra.mrb[0].mxu0 %v4617
        %v4887 = vpop.f32.mrb[0].mxu0
        %v4888 = vadd.f32 0.0, %v4887
        %v4889 = vpop.f32.mrb[0].mxu0
        %4890 = vmatprep.mubr.f32.mxu0 %v4621
        %4891 = vmatmul.mubr.f32.gmra.mrb[0].mxu0 %v4620
        %v4892 = vpop.f32.mrb[0].mxu0
        %v4893 = vadd.f32 0.0, %v4892
        %v4894 = vpop.f32.mrb[0].mxu0
        %4895 = vdwg.mxu0
        %4896 = vmatprep.subr.mxu0 0.0
        %4897 = vmatpush1.msra.mxu0 %v4655
        %4898 = vmatprep.subr.mxu0 0.0
        %4899 = vmatpush1.msra.mxu0 %v4656
        %4900 = vmatprep.subr.mxu0 0.0
        %4901 = vmatpush1.msra.mxu0 %v4657
        %4902 = vmatprep.subr.mxu0 0.0
        %4903 = vmatpush1.msra.mxu0 %v4658
        %4904 = vmatprep.subr.mxu0 0.0
        %4905 = vmatpush1.msra.mxu0 %v4659
        %4906 = vmatprep.subr.mxu0 0.0
        %4907 = vmatpush1.msra.mxu0 %v4660
        %4908 = vmatprep.subr.mxu0 0.0
        %4909 = vmatpush1.msra.mxu0 %v4661
        %4910 = vmatprep.subr.mxu0 0.0
        %4911 = vmatpush1.msra.mxu0 %v4662
        %4912 = vmatprep.subr.mxu0 0.0
        %4913 = vmatpush1.msra.mxu0 %v4663
        %4914 = vmatprep.subr.mxu0 0.0
        %4915 = vmatpush1.msra.mxu0 %v4664
        %4916 = vmatprep.subr.mxu0 0.0
        %4917 = vmatpush1.msra.mxu0 %v4665
        %4918 = vmatprep.subr.mxu0 0.0
        %4919 = vmatpush1.msra.mxu0 %v4666
        %4920 = vmatprep.subr.mxu0 0.0
        %4921 = vmatpush1.msra.mxu0 %v4667
        %4922 = vmatprep.subr.mxu0 0.0
        %4923 = vmatpush1.msra.mxu0 %v4668
        %4924 = vmatprep.subr.mxu0 0.0
        %4925 = vmatpush1.msra.mxu0 %v4669
        %4926 = vmatprep.subr.mxu0 0.0
        %4927 = vmatpush1.msra.mxu0 %v4670
        %4928 = vmatprep.subr.mxu0 0.0
        %4929 = vmatpush1.msra.mxu0 0.0
        %4930 = vmatprep.subr.mxu0 0.0
        %4931 = vmatpush1.msra.mxu0 0.0
        %4932 = vmatprep.subr.mxu0 0.0
        %4933 = vmatpush1.msra.mxu0 0.0
        %4934 = vmatprep.subr.mxu0 0.0
        %4935 = vmatpush1.msra.mxu0 0.0
        %4936 = vmatprep.subr.mxu0 0.0
        %4937 = vmatpush1.msra.mxu0 0.0
        %4938 = vmatprep.subr.mxu0 0.0
        %4939 = vmatpush1.msra.mxu0 0.0
        %4940 = vmatprep.subr.mxu0 0.0
        %4941 = vmatpush1.msra.mxu0 0.0
        %4942 = vmatprep.subr.mxu0 0.0
        %4943 = vmatpush1.msra.mxu0 0.0
        %4944 = vmatprep.subr.mxu0 0.0
        %4945 = vmatpush1.msra.mxu0 0.0
        %4946 = vmatprep.subr.mxu0 0.0
        %4947 = vmatpush1.msra.mxu0 0.0
        %4948 = vmatprep.subr.mxu0 0.0
        %4949 = vmatpush1.msra.mxu0 0.0
        %4950 = vmatprep.subr.mxu0 0.0
        %4951 = vmatpush1.msra.mxu0 0.0
        %4952 = vmatprep.subr.mxu0 0.0
        %4953 = vmatpush1.msra.mxu0 0.0
        %4954 = vmatprep.subr.mxu0 0.0
        %4955 = vmatpush1.msra.mxu0 0.0
        %4956 = vmatprep.subr.mxu0 0.0
        %4957 = vmatpush1.msra.mxu0 0.0
        %4958 = vmatprep.subr.mxu0 0.0
        %4959 = vmatpush1.msra.mxu0 0.0
        %4960 = vmatprep.mubr.f32.mxu0 0.0
        %4961 = vmatmul.mubr.f32.gmra.mrb[0].mxu0 %v4529
        %v4962 = vpop.f32.mrb[0].mxu0
        %v4963 = vadd.f32 %v4738, %v4962
        %v4964 = vpop.f32.mrb[0].mxu0
        %4965 = vmatprep.mubr.f32.mxu0 0.0
        %4966 = vmatmul.mubr.f32.gmra.mrb[0].mxu0 %v4532
        %v4967 = vpop.f32.mrb[0].mxu0
        %v4968 = vadd.f32 %v4743, %v4967
        %v4969 = vpop.f32.mrb[0].mxu0
        %4970 = vmatprep.mubr.f32.mxu0 0.0
        %4971 = vmatmul.mubr.f32.gmra.mrb[0].mxu0 %v4535
        %v4972 = vpop.f32.mrb[0].mxu0
        %v4973 = vadd.f32 %v4748, %v4972
        %v4974 = vpop.f32.mrb[0].mxu0
        %4975 = vmatprep.mubr.f32.mxu0 0.0
        %4976 = vmatmul.mubr.f32.gmra.mrb[0].mxu0 %v4538
        %v4977 = vpop.f32.mrb[0].mxu0
        %v4978 = vadd.f32 %v4753, %v4977
        %v4979 = vpop.f32.mrb[0].mxu0
        %4980 = vmatprep.mubr.f32.mxu0 0.0
        %4981 = vmatmul.mubr.f32.gmra.mrb[0].mxu0 %v4541
        %v4982 = vpop.f32.mrb[0].mxu0
        %v4983 = vadd.f32 %v4758, %v4982
        %v4984 = vpop.f32.mrb[0].mxu0
        %4985 = vmatprep.mubr.f32.mxu0 0.0
        %4986 = vmatmul.mubr.f32.gmra.mrb[0].mxu0 %v4544
        %v4987 = vpop.f32.mrb[0].mxu0
        %v4988 = vadd.f32 %v4763, %v4987
        %v4989 = vpop.f32.mrb[0].mxu0
        %4990 = vmatprep.mubr.f32.mxu0 0.0
        %4991 = vmatmul.mubr.f32.gmra.mrb[0].mxu0 %v4547
        %v4992 = vpop.f32.mrb[0].mxu0
        %v4993 = vadd.f32 %v4768, %v4992
        %v4994 = vpop.f32.mrb[0].mxu0
        %4995 = vmatprep.mubr.f32.mxu0 0.0
        %4996 = vmatmul.mubr.f32.gmra.mrb[0].mxu0 %v4550
        %v4997 = vpop.f32.mrb[0].mxu0
        %v4998 = vadd.f32 %v4773, %v4997
        %v4999 = vpop.f32.mrb[0].mxu0
        %5000 = vmatprep.mubr.f32.mxu0 0.0
        %5001 = vmatmul.mubr.f32.gmra.mrb[0].mxu0 %v4553
        %v5002 = vpop.f32.mrb[0].mxu0
        %v5003 = vadd.f32 %v4778, %v5002
        %v5004 = vpop.f32.mrb[0].mxu0
        %5005 = vmatprep.mubr.f32.mxu0 0.0
        %5006 = vmatmul.mubr.f32.gmra.mrb[0].mxu0 %v4556
        %v5007 = vpop.f32.mrb[0].mxu0
        %v5008 = vadd.f32 %v4783, %v5007
        %v5009 = vpop.f32.mrb[0].mxu0
        %5010 = vmatprep.mubr.f32.mxu0 0.0
        %5011 = vmatmul.mubr.f32.gmra.mrb[0].mxu0 %v4559
        %v5012 = vpop.f32.mrb[0].mxu0
        %v5013 = vadd.f32 %v4788, %v5012
        %v5014 = vpop.f32.mrb[0].mxu0
        %5015 = vmatprep.mubr.f32.mxu0 0.0
        %5016 = vmatmul.mubr.f32.gmra.mrb[0].mxu0 %v4562
        %v5017 = vpop.f32.mrb[0].mxu0
        %v5018 = vadd.f32 %v4793, %v5017
        %v5019 = vpop.f32.mrb[0].mxu0
        %5020 = vmatprep.mubr.f32.mxu0 0.0
        %5021 = vmatmul.mubr.f32.gmra.mrb[0].mxu0 %v4565
        %v5022 = vpop.f32.mrb[0].mxu0
        %v5023 = vadd.f32 %v4798, %v5022
        %v5024 = vpop.f32.mrb[0].mxu0
        %5025 = vmatprep.mubr.f32.mxu0 0.0
        %5026 = vmatmul.mubr.f32.gmra.mrb[0].mxu0 %v4568
        %v5027 = vpop.f32.mrb[0].mxu0
        %v5028 = vadd.f32 %v4803, %v5027
        %v5029 = vpop.f32.mrb[0].mxu0
        %5030 = vmatprep.mubr.f32.mxu0 0.0
        %5031 = vmatmul.mubr.f32.gmra.mrb[0].mxu0 %v4571
        %v5032 = vpop.f32.mrb[0].mxu0
        %v5033 = vadd.f32 %v4808, %v5032
        %v5034 = vpop.f32.mrb[0].mxu0
        %5035 = vmatprep.mubr.f32.mxu0 0.0
        %5036 = vmatmul.mubr.f32.gmra.mrb[0].mxu0 %v4574
        %v5037 = vpop.f32.mrb[0].mxu0
        %v5038 = vadd.f32 %v4813, %v5037
        %v5039 = vpop.f32.mrb[0].mxu0
        %5040 = vmatprep.mubr.f32.mxu0 0.0
        %5041 = vmatmul.mubr.f32.gmra.mrb[0].mxu0 %v4577
        %v5042 = vpop.f32.mrb[0].mxu0
        %v5043 = vadd.f32 %v4818, %v5042
        %v5044 = vpop.f32.mrb[0].mxu0
        %5045 = vmatprep.mubr.f32.mxu0 0.0
        %5046 = vmatmul.mubr.f32.gmra.mrb[0].mxu0 %v4580
        %v5047 = vpop.f32.mrb[0].mxu0
        %v5048 = vadd.f32 %v4823, %v5047
        %v5049 = vpop.f32.mrb[0].mxu0
        %5050 = vmatprep.mubr.f32.mxu0 0.0
        %5051 = vmatmul.mubr.f32.gmra.mrb[0].mxu0 %v4583
        %v5052 = vpop.f32.mrb[0].mxu0
        %v5053 = vadd.f32 %v4828, %v5052
        %v5054 = vpop.f32.mrb[0].mxu0
        %5055 = vmatprep.mubr.f32.mxu0 0.0
        %5056 = vmatmul.mubr.f32.gmra.mrb[0].mxu0 %v4586
        %v5057 = vpop.f32.mrb[0].mxu0
        %v5058 = vadd.f32 %v4833, %v5057
        %v5059 = vpop.f32.mrb[0].mxu0
        %5060 = vmatprep.mubr.f32.mxu0 0.0
        %5061 = vmatmul.mubr.f32.gmra.mrb[0].mxu0 %v4589
        %v5062 = vpop.f32.mrb[0].mxu0
        %v5063 = vadd.f32 %v4838, %v5062
        %v5064 = vpop.f32.mrb[0].mxu0
        %5065 = vmatprep.mubr.f32.mxu0 0.0
        %5066 = vmatmul.mubr.f32.gmra.mrb[0].mxu0 %v4592
        %v5067 = vpop.f32.mrb[0].mxu0
        %v5068 = vadd.f32 %v4843, %v5067
        %v5069 = vpop.f32.mrb[0].mxu0
        %5070 = vmatprep.mubr.f32.mxu0 0.0
        %5071 = vmatmul.mubr.f32.gmra.mrb[0].mxu0 %v4595
        %v5072 = vpop.f32.mrb[0].mxu0
        %v5073 = vadd.f32 %v4848, %v5072
        %v5074 = vpop.f32.mrb[0].mxu0
        %5075 = vmatprep.mubr.f32.mxu0 0.0
        %5076 = vmatmul.mubr.f32.gmra.mrb[0].mxu0 %v4598
        %v5077 = vpop.f32.mrb[0].mxu0
        %v5078 = vadd.f32 %v4853, %v5077
        %v5079 = vpop.f32.mrb[0].mxu0
        %5080 = vmatprep.mubr.f32.mxu0 0.0
        %5081 = vmatmul.mubr.f32.gmra.mrb[0].mxu0 %v4601
        %v5082 = vpop.f32.mrb[0].mxu0
        %v5083 = vadd.f32 %v4858, %v5082
        %v5084 = vpop.f32.mrb[0].mxu0
        %5085 = vmatprep.mubr.f32.mxu0 0.0
        %5086 = vmatmul.mubr.f32.gmra.mrb[0].mxu0 %v4604
        %v5087 = vpop.f32.mrb[0].mxu0
        %v5088 = vadd.f32 %v4863, %v5087
        %v5089 = vpop.f32.mrb[0].mxu0
        %5090 = vmatprep.mubr.f32.mxu0 0.0
        %5091 = vmatmul.mubr.f32.gmra.mrb[0].mxu0 %v4607
        %v5092 = vpop.f32.mrb[0].mxu0
        %v5093 = vadd.f32 %v4868, %v5092
        %v5094 = vpop.f32.mrb[0].mxu0
        %5095 = vmatprep.mubr.f32.mxu0 0.0
        %5096 = vmatmul.mubr.f32.gmra.mrb[0].mxu0 %v4610
        %v5097 = vpop.f32.mrb[0].mxu0
        %v5098 = vadd.f32 %v4873, %v5097
        %v5099 = vpop.f32.mrb[0].mxu0
        %5100 = vmatprep.mubr.f32.mxu0 0.0
        %5101 = vmatmul.mubr.f32.gmra.mrb[0].mxu0 %v4613
        %v5102 = vpop.f32.mrb[0].mxu0
        %v5103 = vadd.f32 %v4878, %v5102
        %v5104 = vpop.f32.mrb[0].mxu0
        %5105 = vmatprep.mubr.f32.mxu0 0.0
        %5106 = vmatmul.mubr.f32.gmra.mrb[0].mxu0 %v4616
        %v5107 = vpop.f32.mrb[0].mxu0
        %v5108 = vadd.f32 %v4883, %v5107
        %v5109 = vpop.f32.mrb[0].mxu0
        %5110 = vmatprep.mubr.f32.mxu0 0.0
        %5111 = vmatmul.mubr.f32.gmra.mrb[0].mxu0 %v4619
        %v5112 = vpop.f32.mrb[0].mxu0
        %v5113 = vadd.f32 %v4888, %v5112
        %v5114 = vpop.f32.mrb[0].mxu0
        %5115 = vmatprep.mubr.f32.mxu0 0.0
        %5116 = vmatmul.mubr.f32.gmra.mrb[0].mxu0 %v4622
        %v5117 = vpop.f32.mrb[0].mxu0
        %v5118 = vadd.f32 %v4893, %v5117
        %v5119 = vpop.f32.mrb[0].mxu0
        %5120 = vdwg.mxu0
        %v5121 = vadd.f32 %v4495, %v4963
        %v5122 = vadd.f32 %v4496, %v4968
        %v5123 = vadd.f32 %v4497, %v4973
        %v5124 = vadd.f32 %v4498, %v4978
        %v5125 = vadd.f32 %v4499, %v4983
        %v5126 = vadd.f32 %v4500, %v4988
        %v5127 = vadd.f32 %v4501, %v4993
        %v5128 = vadd.f32 %v4502, %v4998
        %v5129 = vadd.f32 %v4503, %v5003
        %v5130 = vadd.f32 %v4504, %v5008
        %v5131 = vadd.f32 %v4505, %v5013
        %v5132 = vadd.f32 %v4506, %v5018
        %v5133 = vadd.f32 %v4507, %v5023
        %v5134 = vadd.f32 %v4508, %v5028
        %v5135 = vadd.f32 %v4509, %v5033
        %v5136 = vadd.f32 %v4510, %v5038
        %v5137 = vadd.f32 %v4511, %v5043
        %v5138 = vadd.f32 %v4512, %v5048
        %v5139 = vadd.f32 %v4513, %v5053
        %v5140 = vadd.f32 %v4514, %v5058
        %v5141 = vadd.f32 %v4515, %v5063
        %v5142 = vadd.f32 %v4516, %v5068
        %v5143 = vadd.f32 %v4517, %v5073
        %v5144 = vadd.f32 %v4518, %v5078
        %v5145 = vadd.f32 %v4519, %v5083
        %v5146 = vadd.f32 %v4520, %v5088
        %v5147 = vadd.f32 %v4521, %v5093
        %v5148 = vadd.f32 %v4522, %v5098
        %v5149 = vadd.f32 %v4523, %v5103
        %v5150 = vadd.f32 %v4524, %v5108
        %v5151 = vadd.f32 %v4525, %v5113
        %v5152 = vadd.f32 %v4526, %v5118
        %5153 = vst [vmem:[#allocation3] sm:$0xff] %v5121
        %5154 = vst [vmem:[#allocation3 + $0x8] sm:$0xff] %v5122
        %5155 = vst [vmem:[#allocation3 + $0x10] sm:$0xff] %v5123
        %5156 = vst [vmem:[#allocation3 + $0x18] sm:$0xff] %v5124
        %5157 = vst [vmem:[#allocation3 + $0x20] sm:$0xff] %v5125
        %5158 = vst [vmem:[#allocation3 + $0x28] sm:$0xff] %v5126
        %5159 = vst [vmem:[#allocation3 + $0x30] sm:$0xff] %v5127
        %5160 = vst [vmem:[#allocation3 + $0x38] sm:$0xff] %v5128
        %5161 = vst [vmem:[#allocation3 + $0x40] sm:$0xff] %v5129
        %5162 = vst [vmem:[#allocation3 + $0x48] sm:$0xff] %v5130
        %5163 = vst [vmem:[#allocation3 + $0x50] sm:$0xff] %v5131
        %5164 = vst [vmem:[#allocation3 + $0x58] sm:$0xff] %v5132
        %5165 = vst [vmem:[#allocation3 + $0x60] sm:$0xff] %v5133
        %5166 = vst [vmem:[#allocation3 + $0x68] sm:$0xff] %v5134
        %5167 = vst [vmem:[#allocation3 + $0x70] sm:$0xff] %v5135
        %5168 = vst [vmem:[#allocation3 + $0x78] sm:$0xff] %v5136
        %5169 = vst [vmem:[#allocation3 + $0x80] sm:$0xff] %v5137
        %5170 = vst [vmem:[#allocation3 + $0x88] sm:$0xff] %v5138
        %5171 = vst [vmem:[#allocation3 + $0x90] sm:$0xff] %v5139
        %5172 = vst [vmem:[#allocation3 + $0x98] sm:$0xff] %v5140
        %5173 = vst [vmem:[#allocation3 + $0xa0] sm:$0xff] %v5141
        %5174 = vst [vmem:[#allocation3 + $0xa8] sm:$0xff] %v5142
        %5175 = vst [vmem:[#allocation3 + $0xb0] sm:$0xff] %v5143
        %5176 = vst [vmem:[#allocation3 + $0xb8] sm:$0xff] %v5144
        %5177 = vst [vmem:[#allocation3 + $0xc0] sm:$0xff] %v5145
        %5178 = vst [vmem:[#allocation3 + $0xc8] sm:$0xff] %v5146
        %5179 = vst [vmem:[#allocation3 + $0xd0] sm:$0xff] %v5147
        %5180 = vst [vmem:[#allocation3 + $0xd8] sm:$0xff] %v5148
        %5181 = vst [vmem:[#allocation3 + $0xe0] sm:$0xff] %v5149
        %5182 = vst [vmem:[#allocation3 + $0xe8] sm:$0xff] %v5150
        %5183 = vst [vmem:[#allocation3 + $0xf0] sm:$0xff] %v5151
        %5184 = vst [vmem:[#allocation3 + $0xf8] sm:$0xff] %v5152
        %v5185 = vld [vmem:[#allocation3] sm:$0xff]
        %v5186 = vld [vmem:[#allocation3 + $0x8] sm:$0xff]
        %v5187 = vld [vmem:[#allocation3 + $0x10] sm:$0xff]
        %v5188 = vld [vmem:[#allocation3 + $0x18] sm:$0xff]
        %v5189 = vld [vmem:[#allocation3 + $0x20] sm:$0xff]
        %v5190 = vld [vmem:[#allocation3 + $0x28] sm:$0xff]
        %v5191 = vld [vmem:[#allocation3 + $0x30] sm:$0xff]
        %v5192 = vld [vmem:[#allocation3 + $0x38] sm:$0xff]
        %v5193 = vld [vmem:[#allocation3 + $0x40] sm:$0xff]
        %v5194 = vld [vmem:[#allocation3 + $0x48] sm:$0xff]
        %v5195 = vld [vmem:[#allocation3 + $0x50] sm:$0xff]
        %v5196 = vld [vmem:[#allocation3 + $0x58] sm:$0xff]
        %v5197 = vld [vmem:[#allocation3 + $0x60] sm:$0xff]
        %v5198 = vld [vmem:[#allocation3 + $0x68] sm:$0xff]
        %v5199 = vld [vmem:[#allocation3 + $0x70] sm:$0xff]
        %v5200 = vld [vmem:[#allocation3 + $0x78] sm:$0xff]
        %v5201 = vld [vmem:[#allocation3 + $0x80] sm:$0xff]
        %v5202 = vld [vmem:[#allocation3 + $0x88] sm:$0xff]
        %v5203 = vld [vmem:[#allocation3 + $0x90] sm:$0xff]
        %v5204 = vld [vmem:[#allocation3 + $0x98] sm:$0xff]
        %v5205 = vld [vmem:[#allocation3 + $0xa0] sm:$0xff]
        %v5206 = vld [vmem:[#allocation3 + $0xa8] sm:$0xff]
        %v5207 = vld [vmem:[#allocation3 + $0xb0] sm:$0xff]
        %v5208 = vld [vmem:[#allocation3 + $0xb8] sm:$0xff]
        %v5209 = vld [vmem:[#allocation3 + $0xc0] sm:$0xff]
        %v5210 = vld [vmem:[#allocation3 + $0xc8] sm:$0xff]
        %v5211 = vld [vmem:[#allocation3 + $0xd0] sm:$0xff]
        %v5212 = vld [vmem:[#allocation3 + $0xd8] sm:$0xff]
        %v5213 = vld [vmem:[#allocation3 + $0xe0] sm:$0xff]
        %v5214 = vld [vmem:[#allocation3 + $0xe8] sm:$0xff]
        %v5215 = vld [vmem:[#allocation3 + $0xf0] sm:$0xff]
        %v5216 = vld [vmem:[#allocation3 + $0xf8] sm:$0xff]
        %v5217 = vld [vmem:[%s1110] sm:$0xff]
        %v5218 = vld [vmem:[%s1110 + $0x8] sm:$0xff]
        %v5219 = vld [vmem:[%s1110 + $0x10] sm:$0xff]
        %v5220 = vld [vmem:[%s1110 + $0x18] sm:$0xff]
        %v5221 = vld [vmem:[%s1110 + $0x20] sm:$0xff]
        %v5222 = vld [vmem:[%s1110 + $0x28] sm:$0xff]
        %v5223 = vld [vmem:[%s1110 + $0x30] sm:$0xff]
        %v5224 = vld [vmem:[%s1110 + $0x38] sm:$0xff]
        %v5225 = vld [vmem:[%s1110 + $0x40] sm:$0xff]
        %v5226 = vld [vmem:[%s1110 + $0x48] sm:$0xff]
        %v5227 = vld [vmem:[%s1110 + $0x50] sm:$0xff]
        %v5228 = vld [vmem:[%s1110 + $0x58] sm:$0xff]
        %v5229 = vld [vmem:[%s1110 + $0x60] sm:$0xff]
        %v5230 = vld [vmem:[%s1110 + $0x68] sm:$0xff]
        %v5231 = vld [vmem:[%s1110 + $0x70] sm:$0xff]
        %v5232 = vld [vmem:[%s1110 + $0x78] sm:$0xff]
        %v5233 = vld [vmem:[%s1110 + $0x80] sm:$0xff]
        %v5234 = vld [vmem:[%s1110 + $0x88] sm:$0xff]
        %v5235 = vld [vmem:[%s1110 + $0x90] sm:$0xff]
        %v5236 = vld [vmem:[%s1110 + $0x98] sm:$0xff]
        %v5237 = vld [vmem:[%s1110 + $0xa0] sm:$0xff]
        %v5238 = vld [vmem:[%s1110 + $0xa8] sm:$0xff]
        %v5239 = vld [vmem:[%s1110 + $0xb0] sm:$0xff]
        %v5240 = vld [vmem:[%s1110 + $0xb8] sm:$0xff]
        %v5241 = vld [vmem:[%s1110 + $0xc0] sm:$0xff]
        %v5242 = vld [vmem:[%s1110 + $0xc8] sm:$0xff]
        %v5243 = vld [vmem:[%s1110 + $0xd0] sm:$0xff]
        %v5244 = vld [vmem:[%s1110 + $0xd8] sm:$0xff]
        %v5245 = vld [vmem:[%s1110 + $0xe0] sm:$0xff]
        %v5246 = vld [vmem:[%s1110 + $0xe8] sm:$0xff]
        %v5247 = vld [vmem:[%s1110 + $0xf0] sm:$0xff]
        %v5248 = vld [vmem:[%s1110 + $0xf8] sm:$0xff]
        %v5249 = vld [vmem:[%s1110 + $0x100] sm:$0xff]
        %v5250 = vld [vmem:[%s1110 + $0x108] sm:$0xff]
        %v5251 = vld [vmem:[%s1110 + $0x110] sm:$0xff]
        %v5252 = vld [vmem:[%s1110 + $0x118] sm:$0xff]
        %v5253 = vld [vmem:[%s1110 + $0x120] sm:$0xff]
        %v5254 = vld [vmem:[%s1110 + $0x128] sm:$0xff]
        %v5255 = vld [vmem:[%s1110 + $0x130] sm:$0xff]
        %v5256 = vld [vmem:[%s1110 + $0x138] sm:$0xff]
        %v5257 = vld [vmem:[%s1110 + $0x140] sm:$0xff]
        %v5258 = vld [vmem:[%s1110 + $0x148] sm:$0xff]
        %v5259 = vld [vmem:[%s1110 + $0x150] sm:$0xff]
        %v5260 = vld [vmem:[%s1110 + $0x158] sm:$0xff]
        %v5261 = vld [vmem:[%s1110 + $0x160] sm:$0xff]
        %v5262 = vld [vmem:[%s1110 + $0x168] sm:$0xff]
        %v5263 = vld [vmem:[%s1110 + $0x170] sm:$0xff]
        %v5264 = vld [vmem:[%s1110 + $0x178] sm:$0xff]
        %v5265 = vld [vmem:[%s1110 + $0x180] sm:$0xff]
        %v5266 = vld [vmem:[%s1110 + $0x188] sm:$0xff]
        %v5267 = vld [vmem:[%s1110 + $0x190] sm:$0xff]
        %v5268 = vld [vmem:[%s1110 + $0x198] sm:$0xff]
        %v5269 = vld [vmem:[%s1110 + $0x1a0] sm:$0xff]
        %v5270 = vld [vmem:[%s1110 + $0x1a8] sm:$0xff]
        %v5271 = vld [vmem:[%s1110 + $0x1b0] sm:$0xff]
        %v5272 = vld [vmem:[%s1110 + $0x1b8] sm:$0xff]
        %v5273 = vld [vmem:[%s1110 + $0x1c0] sm:$0xff]
        %v5274 = vld [vmem:[%s1110 + $0x1c8] sm:$0xff]
        %v5275 = vld [vmem:[%s1110 + $0x1d0] sm:$0xff]
        %v5276 = vld [vmem:[%s1110 + $0x1d8] sm:$0xff]
        %v5277 = vld [vmem:[%s1110 + $0x1e0] sm:$0xff]
        %v5278 = vld [vmem:[%s1110 + $0x1e8] sm:$0xff]
        %v5279 = vld [vmem:[%s1110 + $0x1f0] sm:$0xff]
        %v5280 = vld [vmem:[%s1110 + $0x1f8] sm:$0xff]
        %v5281 = vld [vmem:[%s1110 + $0x200] sm:$0xff]
        %v5282 = vld [vmem:[%s1110 + $0x208] sm:$0xff]
        %v5283 = vld [vmem:[%s1110 + $0x210] sm:$0xff]
        %v5284 = vld [vmem:[%s1110 + $0x218] sm:$0xff]
        %v5285 = vld [vmem:[%s1110 + $0x220] sm:$0xff]
        %v5286 = vld [vmem:[%s1110 + $0x228] sm:$0xff]
        %v5287 = vld [vmem:[%s1110 + $0x230] sm:$0xff]
        %v5288 = vld [vmem:[%s1110 + $0x238] sm:$0xff]
        %v5289 = vld [vmem:[%s1110 + $0x240] sm:$0xff]
        %v5290 = vld [vmem:[%s1110 + $0x248] sm:$0xff]
        %v5291 = vld [vmem:[%s1110 + $0x250] sm:$0xff]
        %v5292 = vld [vmem:[%s1110 + $0x258] sm:$0xff]
        %v5293 = vld [vmem:[%s1110 + $0x260] sm:$0xff]
        %v5294 = vld [vmem:[%s1110 + $0x268] sm:$0xff]
        %v5295 = vld [vmem:[%s1110 + $0x270] sm:$0xff]
        %v5296 = vld [vmem:[%s1110 + $0x278] sm:$0xff]
        %v5297 = vld [vmem:[%s1110 + $0x280] sm:$0xff]
        %v5298 = vld [vmem:[%s1110 + $0x288] sm:$0xff]
        %v5299 = vld [vmem:[%s1110 + $0x290] sm:$0xff]
        %v5300 = vld [vmem:[%s1110 + $0x298] sm:$0xff]
        %v5301 = vld [vmem:[%s1110 + $0x2a0] sm:$0xff]
        %v5302 = vld [vmem:[%s1110 + $0x2a8] sm:$0xff]
        %v5303 = vld [vmem:[%s1110 + $0x2b0] sm:$0xff]
        %v5304 = vld [vmem:[%s1110 + $0x2b8] sm:$0xff]
        %v5305 = vld [vmem:[%s1110 + $0x2c0] sm:$0xff]
        %v5306 = vld [vmem:[%s1110 + $0x2c8] sm:$0xff]
        %v5307 = vld [vmem:[%s1110 + $0x2d0] sm:$0xff]
        %v5308 = vld [vmem:[%s1110 + $0x2d8] sm:$0xff]
        %v5309 = vld [vmem:[%s1110 + $0x2e0] sm:$0xff]
        %v5310 = vld [vmem:[%s1110 + $0x2e8] sm:$0xff]
        %v5311 = vld [vmem:[%s1110 + $0x2f0] sm:$0xff]
        %v5312 = vld [vmem:[%s1110 + $0x2f8] sm:$0xff]
        %v5313 = vld [vmem:[%s2057] sm:$0xff]
        %v5314 = vld [vmem:[%s2057 + $0x8] sm:$0xff]
        %v5315 = vld [vmem:[%s2057 + $0x10] sm:$0xff]
        %v5316 = vld [vmem:[%s2057 + $0x18] sm:$0xff]
        %v5317 = vld [vmem:[%s2057 + $0x20] sm:$0xff]
        %v5318 = vld [vmem:[%s2057 + $0x28] sm:$0xff]
        %v5319 = vld [vmem:[%s2057 + $0x30] sm:$0xff]
        %v5320 = vld [vmem:[%s2057 + $0x38] sm:$0xff]
        %v5321 = vld [vmem:[%s2057 + $0x40] sm:$0xff]
        %v5322 = vld [vmem:[%s2057 + $0x48] sm:$0xff]
        %v5323 = vld [vmem:[%s2057 + $0x50] sm:$0xff]
        %v5324 = vld [vmem:[%s2057 + $0x58] sm:$0xff]
        %v5325 = vld [vmem:[%s2057 + $0x60] sm:$0xff]
        %v5326 = vld [vmem:[%s2057 + $0x68] sm:$0xff]
        %v5327 = vld [vmem:[%s2057 + $0x70] sm:$0xff]
        %v5328 = vld [vmem:[%s2057 + $0x78] sm:$0xff]
        %v5329 = vld [vmem:[%s2057 + $0x80] sm:$0xff]
        %v5330 = vld [vmem:[%s2057 + $0x88] sm:$0xff]
        %v5331 = vld [vmem:[%s2057 + $0x90] sm:$0xff]
        %v5332 = vld [vmem:[%s2057 + $0x98] sm:$0xff]
        %v5333 = vld [vmem:[%s2057 + $0xa0] sm:$0xff]
        %v5334 = vld [vmem:[%s2057 + $0xa8] sm:$0xff]
        %v5335 = vld [vmem:[%s2057 + $0xb0] sm:$0xff]
        %v5336 = vld [vmem:[%s2057 + $0xb8] sm:$0xff]
        %v5337 = vld [vmem:[%s2057 + $0xc0] sm:$0xff]
        %v5338 = vld [vmem:[%s2057 + $0xc8] sm:$0xff]
        %v5339 = vld [vmem:[%s2057 + $0xd0] sm:$0xff]
        %v5340 = vld [vmem:[%s2057 + $0xd8] sm:$0xff]
        %v5341 = vld [vmem:[%s2057 + $0xe0] sm:$0xff]
        %v5342 = vld [vmem:[%s2057 + $0xe8] sm:$0xff]
        %v5343 = vld [vmem:[%s2057 + $0xf0] sm:$0xff]
        %v5344 = vld [vmem:[%s2057 + $0xf8] sm:$0xff]
        %v5345 = vld [vmem:[%s2057 + $0x100] sm:$0xff]
        %v5346 = vld [vmem:[%s2057 + $0x108] sm:$0xff]
        %v5347 = vld [vmem:[%s2057 + $0x110] sm:$0xff]
        %v5348 = vld [vmem:[%s2057 + $0x118] sm:$0xff]
        %v5349 = vld [vmem:[%s2057 + $0x120] sm:$0xff]
        %v5350 = vld [vmem:[%s2057 + $0x128] sm:$0xff]
        %v5351 = vld [vmem:[%s2057 + $0x130] sm:$0xff]
        %v5352 = vld [vmem:[%s2057 + $0x138] sm:$0xff]
        %v5353 = vld [vmem:[%s2057 + $0x140] sm:$0xff]
        %v5354 = vld [vmem:[%s2057 + $0x148] sm:$0xff]
        %v5355 = vld [vmem:[%s2057 + $0x150] sm:$0xff]
        %v5356 = vld [vmem:[%s2057 + $0x158] sm:$0xff]
        %v5357 = vld [vmem:[%s2057 + $0x160] sm:$0xff]
        %v5358 = vld [vmem:[%s2057 + $0x168] sm:$0xff]
        %v5359 = vld [vmem:[%s2057 + $0x170] sm:$0xff]
        %v5360 = vld [vmem:[%s2057 + $0x178] sm:$0xff]
        %5361 = vmatprep.subr.mxu0 0.0
        %5362 = vmatpush1.msra.mxu0 %v5313
        %5363 = vmatprep.subr.mxu0 0.0
        %5364 = vmatpush1.msra.mxu0 %v5314
        %5365 = vmatprep.subr.mxu0 0.0
        %5366 = vmatpush1.msra.mxu0 %v5315
        %5367 = vmatprep.subr.mxu0 0.0
        %5368 = vmatpush1.msra.mxu0 %v5316
        %5369 = vmatprep.subr.mxu0 0.0
        %5370 = vmatpush1.msra.mxu0 %v5317
        %5371 = vmatprep.subr.mxu0 0.0
        %5372 = vmatpush1.msra.mxu0 %v5318
        %5373 = vmatprep.subr.mxu0 0.0
        %5374 = vmatpush1.msra.mxu0 %v5319
        %5375 = vmatprep.subr.mxu0 0.0
        %5376 = vmatpush1.msra.mxu0 %v5320
        %5377 = vmatprep.subr.mxu0 0.0
        %5378 = vmatpush1.msra.mxu0 %v5321
        %5379 = vmatprep.subr.mxu0 0.0
        %5380 = vmatpush1.msra.mxu0 %v5322
        %5381 = vmatprep.subr.mxu0 0.0
        %5382 = vmatpush1.msra.mxu0 %v5323
        %5383 = vmatprep.subr.mxu0 0.0
        %5384 = vmatpush1.msra.mxu0 %v5324
        %5385 = vmatprep.subr.mxu0 0.0
        %5386 = vmatpush1.msra.mxu0 %v5325
        %5387 = vmatprep.subr.mxu0 0.0
        %5388 = vmatpush1.msra.mxu0 %v5326
        %5389 = vmatprep.subr.mxu0 0.0
        %5390 = vmatpush1.msra.mxu0 %v5327
        %5391 = vmatprep.subr.mxu0 0.0
        %5392 = vmatpush1.msra.mxu0 %v5328
        %5393 = vmatprep.subr.mxu0 0.0
        %5394 = vmatpush1.msra.mxu0 %v5329
        %5395 = vmatprep.subr.mxu0 0.0
        %5396 = vmatpush1.msra.mxu0 %v5330
        %5397 = vmatprep.subr.mxu0 0.0
        %5398 = vmatpush1.msra.mxu0 %v5331
        %5399 = vmatprep.subr.mxu0 0.0
        %5400 = vmatpush1.msra.mxu0 %v5332
        %5401 = vmatprep.subr.mxu0 0.0
        %5402 = vmatpush1.msra.mxu0 %v5333
        %5403 = vmatprep.subr.mxu0 0.0
        %5404 = vmatpush1.msra.mxu0 %v5334
        %5405 = vmatprep.subr.mxu0 0.0
        %5406 = vmatpush1.msra.mxu0 %v5335
        %5407 = vmatprep.subr.mxu0 0.0
        %5408 = vmatpush1.msra.mxu0 %v5336
        %5409 = vmatprep.subr.mxu0 0.0
        %5410 = vmatpush1.msra.mxu0 %v5337
        %5411 = vmatprep.subr.mxu0 0.0
        %5412 = vmatpush1.msra.mxu0 %v5338
        %5413 = vmatprep.subr.mxu0 0.0
        %5414 = vmatpush1.msra.mxu0 %v5339
        %5415 = vmatprep.subr.mxu0 0.0
        %5416 = vmatpush1.msra.mxu0 %v5340
        %5417 = vmatprep.subr.mxu0 0.0
        %5418 = vmatpush1.msra.mxu0 %v5341
        %5419 = vmatprep.subr.mxu0 0.0
        %5420 = vmatpush1.msra.mxu0 %v5342
        %5421 = vmatprep.subr.mxu0 0.0
        %5422 = vmatpush1.msra.mxu0 %v5343
        %5423 = vmatprep.subr.mxu0 0.0
        %5424 = vmatpush1.msra.mxu0 %v5344
        %5425 = vmatprep.mubr.f32.mxu0 %v5218
        %5426 = vmatmul.mubr.f32.gmra.mrb[0].mxu0 %v5217
        %v5427 = vpop.f32.mrb[0].mxu0
        %v5428 = vadd.f32 0.0, %v5427
        %v5429 = vpop.f32.mrb[0].mxu0
        %5430 = vmatprep.mubr.f32.mxu0 %v5221
        %5431 = vmatmul.mubr.f32.gmra.mrb[0].mxu0 %v5220
        %v5432 = vpop.f32.mrb[0].mxu0
        %v5433 = vadd.f32 0.0, %v5432
        %v5434 = vpop.f32.mrb[0].mxu0
        %5435 = vmatprep.mubr.f32.mxu0 %v5224
        %5436 = vmatmul.mubr.f32.gmra.mrb[0].mxu0 %v5223
        %v5437 = vpop.f32.mrb[0].mxu0
        %v5438 = vadd.f32 0.0, %v5437
        %v5439 = vpop.f32.mrb[0].mxu0
        %5440 = vmatprep.mubr.f32.mxu0 %v5227
        %5441 = vmatmul.mubr.f32.gmra.mrb[0].mxu0 %v5226
        %v5442 = vpop.f32.mrb[0].mxu0
        %v5443 = vadd.f32 0.0, %v5442
        %v5444 = vpop.f32.mrb[0].mxu0
        %5445 = vmatprep.mubr.f32.mxu0 %v5230
        %5446 = vmatmul.mubr.f32.gmra.mrb[0].mxu0 %v5229
        %v5447 = vpop.f32.mrb[0].mxu0
        %v5448 = vadd.f32 0.0, %v5447
        %v5449 = vpop.f32.mrb[0].mxu0
        %5450 = vmatprep.mubr.f32.mxu0 %v5233
        %5451 = vmatmul.mubr.f32.gmra.mrb[0].mxu0 %v5232
        %v5452 = vpop.f32.mrb[0].mxu0
        %v5453 = vadd.f32 0.0, %v5452
        %v5454 = vpop.f32.mrb[0].mxu0
        %5455 = vmatprep.mubr.f32.mxu0 %v5236
        %5456 = vmatmul.mubr.f32.gmra.mrb[0].mxu0 %v5235
        %v5457 = vpop.f32.mrb[0].mxu0
        %v5458 = vadd.f32 0.0, %v5457
        %v5459 = vpop.f32.mrb[0].mxu0
        %5460 = vmatprep.mubr.f32.mxu0 %v5239
        %5461 = vmatmul.mubr.f32.gmra.mrb[0].mxu0 %v5238
        %v5462 = vpop.f32.mrb[0].mxu0
        %v5463 = vadd.f32 0.0, %v5462
        %v5464 = vpop.f32.mrb[0].mxu0
        %5465 = vmatprep.mubr.f32.mxu0 %v5242
        %5466 = vmatmul.mubr.f32.gmra.mrb[0].mxu0 %v5241
        %v5467 = vpop.f32.mrb[0].mxu0
        %v5468 = vadd.f32 0.0, %v5467
        %v5469 = vpop.f32.mrb[0].mxu0
        %5470 = vmatprep.mubr.f32.mxu0 %v5245
        %5471 = vmatmul.mubr.f32.gmra.mrb[0].mxu0 %v5244
        %v5472 = vpop.f32.mrb[0].mxu0
        %v5473 = vadd.f32 0.0, %v5472
        %v5474 = vpop.f32.mrb[0].mxu0
        %5475 = vmatprep.mubr.f32.mxu0 %v5248
        %5476 = vmatmul.mubr.f32.gmra.mrb[0].mxu0 %v5247
        %v5477 = vpop.f32.mrb[0].mxu0
        %v5478 = vadd.f32 0.0, %v5477
        %v5479 = vpop.f32.mrb[0].mxu0
        %5480 = vmatprep.mubr.f32.mxu0 %v5251
        %5481 = vmatmul.mubr.f32.gmra.mrb[0].mxu0 %v5250
        %v5482 = vpop.f32.mrb[0].mxu0
        %v5483 = vadd.f32 0.0, %v5482
        %v5484 = vpop.f32.mrb[0].mxu0
        %5485 = vmatprep.mubr.f32.mxu0 %v5254
        %5486 = vmatmul.mubr.f32.gmra.mrb[0].mxu0 %v5253
        %v5487 = vpop.f32.mrb[0].mxu0
        %v5488 = vadd.f32 0.0, %v5487
        %v5489 = vpop.f32.mrb[0].mxu0
        %5490 = vmatprep.mubr.f32.mxu0 %v5257
        %5491 = vmatmul.mubr.f32.gmra.mrb[0].mxu0 %v5256
        %v5492 = vpop.f32.mrb[0].mxu0
        %v5493 = vadd.f32 0.0, %v5492
        %v5494 = vpop.f32.mrb[0].mxu0
        %5495 = vmatprep.mubr.f32.mxu0 %v5260
        %5496 = vmatmul.mubr.f32.gmra.mrb[0].mxu0 %v5259
        %v5497 = vpop.f32.mrb[0].mxu0
        %v5498 = vadd.f32 0.0, %v5497
        %v5499 = vpop.f32.mrb[0].mxu0
        %5500 = vmatprep.mubr.f32.mxu0 %v5263
        %5501 = vmatmul.mubr.f32.gmra.mrb[0].mxu0 %v5262
        %v5502 = vpop.f32.mrb[0].mxu0
        %v5503 = vadd.f32 0.0, %v5502
        %v5504 = vpop.f32.mrb[0].mxu0
        %5505 = vmatprep.mubr.f32.mxu0 %v5266
        %5506 = vmatmul.mubr.f32.gmra.mrb[0].mxu0 %v5265
        %v5507 = vpop.f32.mrb[0].mxu0
        %v5508 = vadd.f32 0.0, %v5507
        %v5509 = vpop.f32.mrb[0].mxu0
        %5510 = vmatprep.mubr.f32.mxu0 %v5269
        %5511 = vmatmul.mubr.f32.gmra.mrb[0].mxu0 %v5268
        %v5512 = vpop.f32.mrb[0].mxu0
        %v5513 = vadd.f32 0.0, %v5512
        %v5514 = vpop.f32.mrb[0].mxu0
        %5515 = vmatprep.mubr.f32.mxu0 %v5272
        %5516 = vmatmul.mubr.f32.gmra.mrb[0].mxu0 %v5271
        %v5517 = vpop.f32.mrb[0].mxu0
        %v5518 = vadd.f32 0.0, %v5517
        %v5519 = vpop.f32.mrb[0].mxu0
        %5520 = vmatprep.mubr.f32.mxu0 %v5275
        %5521 = vmatmul.mubr.f32.gmra.mrb[0].mxu0 %v5274
        %v5522 = vpop.f32.mrb[0].mxu0
        %v5523 = vadd.f32 0.0, %v5522
        %v5524 = vpop.f32.mrb[0].mxu0
        %5525 = vmatprep.mubr.f32.mxu0 %v5278
        %5526 = vmatmul.mubr.f32.gmra.mrb[0].mxu0 %v5277
        %v5527 = vpop.f32.mrb[0].mxu0
        %v5528 = vadd.f32 0.0, %v5527
        %v5529 = vpop.f32.mrb[0].mxu0
        %5530 = vmatprep.mubr.f32.mxu0 %v5281
        %5531 = vmatmul.mubr.f32.gmra.mrb[0].mxu0 %v5280
        %v5532 = vpop.f32.mrb[0].mxu0
        %v5533 = vadd.f32 0.0, %v5532
        %v5534 = vpop.f32.mrb[0].mxu0
        %5535 = vmatprep.mubr.f32.mxu0 %v5284
        %5536 = vmatmul.mubr.f32.gmra.mrb[0].mxu0 %v5283
        %v5537 = vpop.f32.mrb[0].mxu0
        %v5538 = vadd.f32 0.0, %v5537
        %v5539 = vpop.f32.mrb[0].mxu0
        %5540 = vmatprep.mubr.f32.mxu0 %v5287
        %5541 = vmatmul.mubr.f32.gmra.mrb[0].mxu0 %v5286
        %v5542 = vpop.f32.mrb[0].mxu0
        %v5543 = vadd.f32 0.0, %v5542
        %v5544 = vpop.f32.mrb[0].mxu0
        %5545 = vmatprep.mubr.f32.mxu0 %v5290
        %5546 = vmatmul.mubr.f32.gmra.mrb[0].mxu0 %v5289
        %v5547 = vpop.f32.mrb[0].mxu0
        %v5548 = vadd.f32 0.0, %v5547
        %v5549 = vpop.f32.mrb[0].mxu0
        %5550 = vmatprep.mubr.f32.mxu0 %v5293
        %5551 = vmatmul.mubr.f32.gmra.mrb[0].mxu0 %v5292
        %v5552 = vpop.f32.mrb[0].mxu0
        %v5553 = vadd.f32 0.0, %v5552
        %v5554 = vpop.f32.mrb[0].mxu0
        %5555 = vmatprep.mubr.f32.mxu0 %v5296
        %5556 = vmatmul.mubr.f32.gmra.mrb[0].mxu0 %v5295
        %v5557 = vpop.f32.mrb[0].mxu0
        %v5558 = vadd.f32 0.0, %v5557
        %v5559 = vpop.f32.mrb[0].mxu0
        %5560 = vmatprep.mubr.f32.mxu0 %v5299
        %5561 = vmatmul.mubr.f32.gmra.mrb[0].mxu0 %v5298
        %v5562 = vpop.f32.mrb[0].mxu0
        %v5563 = vadd.f32 0.0, %v5562
        %v5564 = vpop.f32.mrb[0].mxu0
        %5565 = vmatprep.mubr.f32.mxu0 %v5302
        %5566 = vmatmul.mubr.f32.gmra.mrb[0].mxu0 %v5301
        %v5567 = vpop.f32.mrb[0].mxu0
        %v5568 = vadd.f32 0.0, %v5567
        %v5569 = vpop.f32.mrb[0].mxu0
        %5570 = vmatprep.mubr.f32.mxu0 %v5305
        %5571 = vmatmul.mubr.f32.gmra.mrb[0].mxu0 %v5304
        %v5572 = vpop.f32.mrb[0].mxu0
        %v5573 = vadd.f32 0.0, %v5572
        %v5574 = vpop.f32.mrb[0].mxu0
        %5575 = vmatprep.mubr.f32.mxu0 %v5308
        %5576 = vmatmul.mubr.f32.gmra.mrb[0].mxu0 %v5307
        %v5577 = vpop.f32.mrb[0].mxu0
        %v5578 = vadd.f32 0.0, %v5577
        %v5579 = vpop.f32.mrb[0].mxu0
        %5580 = vmatprep.mubr.f32.mxu0 %v5311
        %5581 = vmatmul.mubr.f32.gmra.mrb[0].mxu0 %v5310
        %v5582 = vpop.f32.mrb[0].mxu0
        %v5583 = vadd.f32 0.0, %v5582
        %v5584 = vpop.f32.mrb[0].mxu0
        %5585 = vdwg.mxu0
        %5586 = vmatprep.subr.mxu0 0.0
        %5587 = vmatpush1.msra.mxu0 %v5345
        %5588 = vmatprep.subr.mxu0 0.0
        %5589 = vmatpush1.msra.mxu0 %v5346
        %5590 = vmatprep.subr.mxu0 0.0
        %5591 = vmatpush1.msra.mxu0 %v5347
        %5592 = vmatprep.subr.mxu0 0.0
        %5593 = vmatpush1.msra.mxu0 %v5348
        %5594 = vmatprep.subr.mxu0 0.0
        %5595 = vmatpush1.msra.mxu0 %v5349
        %5596 = vmatprep.subr.mxu0 0.0
        %5597 = vmatpush1.msra.mxu0 %v5350
        %5598 = vmatprep.subr.mxu0 0.0
        %5599 = vmatpush1.msra.mxu0 %v5351
        %5600 = vmatprep.subr.mxu0 0.0
        %5601 = vmatpush1.msra.mxu0 %v5352
        %5602 = vmatprep.subr.mxu0 0.0
        %5603 = vmatpush1.msra.mxu0 %v5353
        %5604 = vmatprep.subr.mxu0 0.0
        %5605 = vmatpush1.msra.mxu0 %v5354
        %5606 = vmatprep.subr.mxu0 0.0
        %5607 = vmatpush1.msra.mxu0 %v5355
        %5608 = vmatprep.subr.mxu0 0.0
        %5609 = vmatpush1.msra.mxu0 %v5356
        %5610 = vmatprep.subr.mxu0 0.0
        %5611 = vmatpush1.msra.mxu0 %v5357
        %5612 = vmatprep.subr.mxu0 0.0
        %5613 = vmatpush1.msra.mxu0 %v5358
        %5614 = vmatprep.subr.mxu0 0.0
        %5615 = vmatpush1.msra.mxu0 %v5359
        %5616 = vmatprep.subr.mxu0 0.0
        %5617 = vmatpush1.msra.mxu0 %v5360
        %5618 = vmatprep.subr.mxu0 0.0
        %5619 = vmatpush1.msra.mxu0 0.0
        %5620 = vmatprep.subr.mxu0 0.0
        %5621 = vmatpush1.msra.mxu0 0.0
        %5622 = vmatprep.subr.mxu0 0.0
        %5623 = vmatpush1.msra.mxu0 0.0
        %5624 = vmatprep.subr.mxu0 0.0
        %5625 = vmatpush1.msra.mxu0 0.0
        %5626 = vmatprep.subr.mxu0 0.0
        %5627 = vmatpush1.msra.mxu0 0.0
        %5628 = vmatprep.subr.mxu0 0.0
        %5629 = vmatpush1.msra.mxu0 0.0
        %5630 = vmatprep.subr.mxu0 0.0
        %5631 = vmatpush1.msra.mxu0 0.0
        %5632 = vmatprep.subr.mxu0 0.0
        %5633 = vmatpush1.msra.mxu0 0.0
        %5634 = vmatprep.subr.mxu0 0.0
        %5635 = vmatpush1.msra.mxu0 0.0
        %5636 = vmatprep.subr.mxu0 0.0
        %5637 = vmatpush1.msra.mxu0 0.0
        %5638 = vmatprep.subr.mxu0 0.0
        %5639 = vmatpush1.msra.mxu0 0.0
        %5640 = vmatprep.subr.mxu0 0.0
        %5641 = vmatpush1.msra.mxu0 0.0
        %5642 = vmatprep.subr.mxu0 0.0
        %5643 = vmatpush1.msra.mxu0 0.0
        %5644 = vmatprep.subr.mxu0 0.0
        %5645 = vmatpush1.msra.mxu0 0.0
        %5646 = vmatprep.subr.mxu0 0.0
        %5647 = vmatpush1.msra.mxu0 0.0
        %5648 = vmatprep.subr.mxu0 0.0
        %5649 = vmatpush1.msra.mxu0 0.0
        %5650 = vmatprep.mubr.f32.mxu0 0.0
        %5651 = vmatmul.mubr.f32.gmra.mrb[0].mxu0 %v5219
        %v5652 = vpop.f32.mrb[0].mxu0
        %v5653 = vadd.f32 %v5428, %v5652
        %v5654 = vpop.f32.mrb[0].mxu0
        %5655 = vmatprep.mubr.f32.mxu0 0.0
        %5656 = vmatmul.mubr.f32.gmra.mrb[0].mxu0 %v5222
        %v5657 = vpop.f32.mrb[0].mxu0
        %v5658 = vadd.f32 %v5433, %v5657
        %v5659 = vpop.f32.mrb[0].mxu0
        %5660 = vmatprep.mubr.f32.mxu0 0.0
        %5661 = vmatmul.mubr.f32.gmra.mrb[0].mxu0 %v5225
        %v5662 = vpop.f32.mrb[0].mxu0
        %v5663 = vadd.f32 %v5438, %v5662
        %v5664 = vpop.f32.mrb[0].mxu0
        %5665 = vmatprep.mubr.f32.mxu0 0.0
        %5666 = vmatmul.mubr.f32.gmra.mrb[0].mxu0 %v5228
        %v5667 = vpop.f32.mrb[0].mxu0
        %v5668 = vadd.f32 %v5443, %v5667
        %v5669 = vpop.f32.mrb[0].mxu0
        %5670 = vmatprep.mubr.f32.mxu0 0.0
        %5671 = vmatmul.mubr.f32.gmra.mrb[0].mxu0 %v5231
        %v5672 = vpop.f32.mrb[0].mxu0
        %v5673 = vadd.f32 %v5448, %v5672
        %v5674 = vpop.f32.mrb[0].mxu0
        %5675 = vmatprep.mubr.f32.mxu0 0.0
        %5676 = vmatmul.mubr.f32.gmra.mrb[0].mxu0 %v5234
        %v5677 = vpop.f32.mrb[0].mxu0
        %v5678 = vadd.f32 %v5453, %v5677
        %v5679 = vpop.f32.mrb[0].mxu0
        %5680 = vmatprep.mubr.f32.mxu0 0.0
        %5681 = vmatmul.mubr.f32.gmra.mrb[0].mxu0 %v5237
        %v5682 = vpop.f32.mrb[0].mxu0
        %v5683 = vadd.f32 %v5458, %v5682
        %v5684 = vpop.f32.mrb[0].mxu0
        %5685 = vmatprep.mubr.f32.mxu0 0.0
        %5686 = vmatmul.mubr.f32.gmra.mrb[0].mxu0 %v5240
        %v5687 = vpop.f32.mrb[0].mxu0
        %v5688 = vadd.f32 %v5463, %v5687
        %v5689 = vpop.f32.mrb[0].mxu0
        %5690 = vmatprep.mubr.f32.mxu0 0.0
        %5691 = vmatmul.mubr.f32.gmra.mrb[0].mxu0 %v5243
        %v5692 = vpop.f32.mrb[0].mxu0
        %v5693 = vadd.f32 %v5468, %v5692
        %v5694 = vpop.f32.mrb[0].mxu0
        %5695 = vmatprep.mubr.f32.mxu0 0.0
        %5696 = vmatmul.mubr.f32.gmra.mrb[0].mxu0 %v5246
        %v5697 = vpop.f32.mrb[0].mxu0
        %v5698 = vadd.f32 %v5473, %v5697
        %v5699 = vpop.f32.mrb[0].mxu0
        %5700 = vmatprep.mubr.f32.mxu0 0.0
        %5701 = vmatmul.mubr.f32.gmra.mrb[0].mxu0 %v5249
        %v5702 = vpop.f32.mrb[0].mxu0
        %v5703 = vadd.f32 %v5478, %v5702
        %v5704 = vpop.f32.mrb[0].mxu0
        %5705 = vmatprep.mubr.f32.mxu0 0.0
        %5706 = vmatmul.mubr.f32.gmra.mrb[0].mxu0 %v5252
        %v5707 = vpop.f32.mrb[0].mxu0
        %v5708 = vadd.f32 %v5483, %v5707
        %v5709 = vpop.f32.mrb[0].mxu0
        %5710 = vmatprep.mubr.f32.mxu0 0.0
        %5711 = vmatmul.mubr.f32.gmra.mrb[0].mxu0 %v5255
        %v5712 = vpop.f32.mrb[0].mxu0
        %v5713 = vadd.f32 %v5488, %v5712
        %v5714 = vpop.f32.mrb[0].mxu0
        %5715 = vmatprep.mubr.f32.mxu0 0.0
        %5716 = vmatmul.mubr.f32.gmra.mrb[0].mxu0 %v5258
        %v5717 = vpop.f32.mrb[0].mxu0
        %v5718 = vadd.f32 %v5493, %v5717
        %v5719 = vpop.f32.mrb[0].mxu0
        %5720 = vmatprep.mubr.f32.mxu0 0.0
        %5721 = vmatmul.mubr.f32.gmra.mrb[0].mxu0 %v5261
        %v5722 = vpop.f32.mrb[0].mxu0
        %v5723 = vadd.f32 %v5498, %v5722
        %v5724 = vpop.f32.mrb[0].mxu0
        %5725 = vmatprep.mubr.f32.mxu0 0.0
        %5726 = vmatmul.mubr.f32.gmra.mrb[0].mxu0 %v5264
        %v5727 = vpop.f32.mrb[0].mxu0
        %v5728 = vadd.f32 %v5503, %v5727
        %v5729 = vpop.f32.mrb[0].mxu0
        %5730 = vmatprep.mubr.f32.mxu0 0.0
        %5731 = vmatmul.mubr.f32.gmra.mrb[0].mxu0 %v5267
        %v5732 = vpop.f32.mrb[0].mxu0
        %v5733 = vadd.f32 %v5508, %v5732
        %v5734 = vpop.f32.mrb[0].mxu0
        %5735 = vmatprep.mubr.f32.mxu0 0.0
        %5736 = vmatmul.mubr.f32.gmra.mrb[0].mxu0 %v5270
        %v5737 = vpop.f32.mrb[0].mxu0
        %v5738 = vadd.f32 %v5513, %v5737
        %v5739 = vpop.f32.mrb[0].mxu0
        %5740 = vmatprep.mubr.f32.mxu0 0.0
        %5741 = vmatmul.mubr.f32.gmra.mrb[0].mxu0 %v5273
        %v5742 = vpop.f32.mrb[0].mxu0
        %v5743 = vadd.f32 %v5518, %v5742
        %v5744 = vpop.f32.mrb[0].mxu0
        %5745 = vmatprep.mubr.f32.mxu0 0.0
        %5746 = vmatmul.mubr.f32.gmra.mrb[0].mxu0 %v5276
        %v5747 = vpop.f32.mrb[0].mxu0
        %v5748 = vadd.f32 %v5523, %v5747
        %v5749 = vpop.f32.mrb[0].mxu0
        %5750 = vmatprep.mubr.f32.mxu0 0.0
        %5751 = vmatmul.mubr.f32.gmra.mrb[0].mxu0 %v5279
        %v5752 = vpop.f32.mrb[0].mxu0
        %v5753 = vadd.f32 %v5528, %v5752
        %v5754 = vpop.f32.mrb[0].mxu0
        %5755 = vmatprep.mubr.f32.mxu0 0.0
        %5756 = vmatmul.mubr.f32.gmra.mrb[0].mxu0 %v5282
        %v5757 = vpop.f32.mrb[0].mxu0
        %v5758 = vadd.f32 %v5533, %v5757
        %v5759 = vpop.f32.mrb[0].mxu0
        %5760 = vmatprep.mubr.f32.mxu0 0.0
        %5761 = vmatmul.mubr.f32.gmra.mrb[0].mxu0 %v5285
        %v5762 = vpop.f32.mrb[0].mxu0
        %v5763 = vadd.f32 %v5538, %v5762
        %v5764 = vpop.f32.mrb[0].mxu0
        %5765 = vmatprep.mubr.f32.mxu0 0.0
        %5766 = vmatmul.mubr.f32.gmra.mrb[0].mxu0 %v5288
        %v5767 = vpop.f32.mrb[0].mxu0
        %v5768 = vadd.f32 %v5543, %v5767
        %v5769 = vpop.f32.mrb[0].mxu0
        %5770 = vmatprep.mubr.f32.mxu0 0.0
        %5771 = vmatmul.mubr.f32.gmra.mrb[0].mxu0 %v5291
        %v5772 = vpop.f32.mrb[0].mxu0
        %v5773 = vadd.f32 %v5548, %v5772
        %v5774 = vpop.f32.mrb[0].mxu0
        %5775 = vmatprep.mubr.f32.mxu0 0.0
        %5776 = vmatmul.mubr.f32.gmra.mrb[0].mxu0 %v5294
        %v5777 = vpop.f32.mrb[0].mxu0
        %v5778 = vadd.f32 %v5553, %v5777
        %v5779 = vpop.f32.mrb[0].mxu0
        %5780 = vmatprep.mubr.f32.mxu0 0.0
        %5781 = vmatmul.mubr.f32.gmra.mrb[0].mxu0 %v5297
        %v5782 = vpop.f32.mrb[0].mxu0
        %v5783 = vadd.f32 %v5558, %v5782
        %v5784 = vpop.f32.mrb[0].mxu0
        %5785 = vmatprep.mubr.f32.mxu0 0.0
        %5786 = vmatmul.mubr.f32.gmra.mrb[0].mxu0 %v5300
        %v5787 = vpop.f32.mrb[0].mxu0
        %v5788 = vadd.f32 %v5563, %v5787
        %v5789 = vpop.f32.mrb[0].mxu0
        %5790 = vmatprep.mubr.f32.mxu0 0.0
        %5791 = vmatmul.mubr.f32.gmra.mrb[0].mxu0 %v5303
        %v5792 = vpop.f32.mrb[0].mxu0
        %v5793 = vadd.f32 %v5568, %v5792
        %v5794 = vpop.f32.mrb[0].mxu0
        %5795 = vmatprep.mubr.f32.mxu0 0.0
        %5796 = vmatmul.mubr.f32.gmra.mrb[0].mxu0 %v5306
        %v5797 = vpop.f32.mrb[0].mxu0
        %v5798 = vadd.f32 %v5573, %v5797
        %v5799 = vpop.f32.mrb[0].mxu0
        %5800 = vmatprep.mubr.f32.mxu0 0.0
        %5801 = vmatmul.mubr.f32.gmra.mrb[0].mxu0 %v5309
        %v5802 = vpop.f32.mrb[0].mxu0
        %v5803 = vadd.f32 %v5578, %v5802
        %v5804 = vpop.f32.mrb[0].mxu0
        %5805 = vmatprep.mubr.f32.mxu0 0.0
        %5806 = vmatmul.mubr.f32.gmra.mrb[0].mxu0 %v5312
        %v5807 = vpop.f32.mrb[0].mxu0
        %v5808 = vadd.f32 %v5583, %v5807
        %v5809 = vpop.f32.mrb[0].mxu0
        %5810 = vdwg.mxu0
        %v5811 = vadd.f32 %v5185, %v5653
        %v5812 = vadd.f32 %v5186, %v5658
        %v5813 = vadd.f32 %v5187, %v5663
        %v5814 = vadd.f32 %v5188, %v5668
        %v5815 = vadd.f32 %v5189, %v5673
        %v5816 = vadd.f32 %v5190, %v5678
        %v5817 = vadd.f32 %v5191, %v5683
        %v5818 = vadd.f32 %v5192, %v5688
        %v5819 = vadd.f32 %v5193, %v5693
        %v5820 = vadd.f32 %v5194, %v5698
        %v5821 = vadd.f32 %v5195, %v5703
        %v5822 = vadd.f32 %v5196, %v5708
        %v5823 = vadd.f32 %v5197, %v5713
        %v5824 = vadd.f32 %v5198, %v5718
        %v5825 = vadd.f32 %v5199, %v5723
        %v5826 = vadd.f32 %v5200, %v5728
        %v5827 = vadd.f32 %v5201, %v5733
        %v5828 = vadd.f32 %v5202, %v5738
        %v5829 = vadd.f32 %v5203, %v5743
        %v5830 = vadd.f32 %v5204, %v5748
        %v5831 = vadd.f32 %v5205, %v5753
        %v5832 = vadd.f32 %v5206, %v5758
        %v5833 = vadd.f32 %v5207, %v5763
        %v5834 = vadd.f32 %v5208, %v5768
        %v5835 = vadd.f32 %v5209, %v5773
        %v5836 = vadd.f32 %v5210, %v5778
        %v5837 = vadd.f32 %v5211, %v5783
        %v5838 = vadd.f32 %v5212, %v5788
        %v5839 = vadd.f32 %v5213, %v5793
        %v5840 = vadd.f32 %v5214, %v5798
        %v5841 = vadd.f32 %v5215, %v5803
        %v5842 = vadd.f32 %v5216, %v5808
        %5843 = vst [vmem:[#allocation3] sm:$0xff] %v5811
        %5844 = vst [vmem:[#allocation3 + $0x8] sm:$0xff] %v5812
        %5845 = vst [vmem:[#allocation3 + $0x10] sm:$0xff] %v5813
        %5846 = vst [vmem:[#allocation3 + $0x18] sm:$0xff] %v5814
        %5847 = vst [vmem:[#allocation3 + $0x20] sm:$0xff] %v5815
        %5848 = vst [vmem:[#allocation3 + $0x28] sm:$0xff] %v5816
        %5849 = vst [vmem:[#allocation3 + $0x30] sm:$0xff] %v5817
        %5850 = vst [vmem:[#allocation3 + $0x38] sm:$0xff] %v5818
        %5851 = vst [vmem:[#allocation3 + $0x40] sm:$0xff] %v5819
        %5852 = vst [vmem:[#allocation3 + $0x48] sm:$0xff] %v5820
        %5853 = vst [vmem:[#allocation3 + $0x50] sm:$0xff] %v5821
        %5854 = vst [vmem:[#allocation3 + $0x58] sm:$0xff] %v5822
        %5855 = vst [vmem:[#allocation3 + $0x60] sm:$0xff] %v5823
        %5856 = vst [vmem:[#allocation3 + $0x68] sm:$0xff] %v5824
        %5857 = vst [vmem:[#allocation3 + $0x70] sm:$0xff] %v5825
        %5858 = vst [vmem:[#allocation3 + $0x78] sm:$0xff] %v5826
        %5859 = vst [vmem:[#allocation3 + $0x80] sm:$0xff] %v5827
        %5860 = vst [vmem:[#allocation3 + $0x88] sm:$0xff] %v5828
        %5861 = vst [vmem:[#allocation3 + $0x90] sm:$0xff] %v5829
        %5862 = vst [vmem:[#allocation3 + $0x98] sm:$0xff] %v5830
        %5863 = vst [vmem:[#allocation3 + $0xa0] sm:$0xff] %v5831
        %5864 = vst [vmem:[#allocation3 + $0xa8] sm:$0xff] %v5832
        %5865 = vst [vmem:[#allocation3 + $0xb0] sm:$0xff] %v5833
        %5866 = vst [vmem:[#allocation3 + $0xb8] sm:$0xff] %v5834
        %5867 = vst [vmem:[#allocation3 + $0xc0] sm:$0xff] %v5835
        %5868 = vst [vmem:[#allocation3 + $0xc8] sm:$0xff] %v5836
        %5869 = vst [vmem:[#allocation3 + $0xd0] sm:$0xff] %v5837
        %5870 = vst [vmem:[#allocation3 + $0xd8] sm:$0xff] %v5838
        %5871 = vst [vmem:[#allocation3 + $0xe0] sm:$0xff] %v5839
        %5872 = vst [vmem:[#allocation3 + $0xe8] sm:$0xff] %v5840
        %5873 = vst [vmem:[#allocation3 + $0xf0] sm:$0xff] %v5841
        %5874 = vst [vmem:[#allocation3 + $0xf8] sm:$0xff] %v5842
        %v5875 = vld [vmem:[#allocation3] sm:$0xff]
        %v5876 = vld [vmem:[#allocation3 + $0x8] sm:$0xff]
        %v5877 = vld [vmem:[#allocation3 + $0x10] sm:$0xff]
        %v5878 = vld [vmem:[#allocation3 + $0x18] sm:$0xff]
        %v5879 = vld [vmem:[#allocation3 + $0x20] sm:$0xff]
        %v5880 = vld [vmem:[#allocation3 + $0x28] sm:$0xff]
        %v5881 = vld [vmem:[#allocation3 + $0x30] sm:$0xff]
        %v5882 = vld [vmem:[#allocation3 + $0x38] sm:$0xff]
        %v5883 = vld [vmem:[#allocation3 + $0x40] sm:$0xff]
        %v5884 = vld [vmem:[#allocation3 + $0x48] sm:$0xff]
        %v5885 = vld [vmem:[#allocation3 + $0x50] sm:$0xff]
        %v5886 = vld [vmem:[#allocation3 + $0x58] sm:$0xff]
        %v5887 = vld [vmem:[#allocation3 + $0x60] sm:$0xff]
        %v5888 = vld [vmem:[#allocation3 + $0x68] sm:$0xff]
        %v5889 = vld [vmem:[#allocation3 + $0x70] sm:$0xff]
        %v5890 = vld [vmem:[#allocation3 + $0x78] sm:$0xff]
        %v5891 = vld [vmem:[#allocation3 + $0x80] sm:$0xff]
        %v5892 = vld [vmem:[#allocation3 + $0x88] sm:$0xff]
        %v5893 = vld [vmem:[#allocation3 + $0x90] sm:$0xff]
        %v5894 = vld [vmem:[#allocation3 + $0x98] sm:$0xff]
        %v5895 = vld [vmem:[#allocation3 + $0xa0] sm:$0xff]
        %v5896 = vld [vmem:[#allocation3 + $0xa8] sm:$0xff]
        %v5897 = vld [vmem:[#allocation3 + $0xb0] sm:$0xff]
        %v5898 = vld [vmem:[#allocation3 + $0xb8] sm:$0xff]
        %v5899 = vld [vmem:[#allocation3 + $0xc0] sm:$0xff]
        %v5900 = vld [vmem:[#allocation3 + $0xc8] sm:$0xff]
        %v5901 = vld [vmem:[#allocation3 + $0xd0] sm:$0xff]
        %v5902 = vld [vmem:[#allocation3 + $0xd8] sm:$0xff]
        %v5903 = vld [vmem:[#allocation3 + $0xe0] sm:$0xff]
        %v5904 = vld [vmem:[#allocation3 + $0xe8] sm:$0xff]
        %v5905 = vld [vmem:[#allocation3 + $0xf0] sm:$0xff]
        %v5906 = vld [vmem:[#allocation3 + $0xf8] sm:$0xff]
        %v5907 = vld [vmem:[%s2652] sm:$0xff]
        %v5908 = vld [vmem:[%s2652 + $0x8] sm:$0xff]
        %v5909 = vld [vmem:[%s2652 + $0x10] sm:$0xff]
        %v5910 = vld [vmem:[%s2652 + $0x18] sm:$0xff]
        %v5911 = vld [vmem:[%s2652 + $0x20] sm:$0xff]
        %v5912 = vld [vmem:[%s2652 + $0x28] sm:$0xff]
        %v5913 = vld [vmem:[%s2652 + $0x30] sm:$0xff]
        %v5914 = vld [vmem:[%s2652 + $0x38] sm:$0xff]
        %v5915 = vld [vmem:[%s2652 + $0x40] sm:$0xff]
        %v5916 = vld [vmem:[%s2652 + $0x48] sm:$0xff]
        %v5917 = vld [vmem:[%s2652 + $0x50] sm:$0xff]
        %v5918 = vld [vmem:[%s2652 + $0x58] sm:$0xff]
        %v5919 = vld [vmem:[%s2652 + $0x60] sm:$0xff]
        %v5920 = vld [vmem:[%s2652 + $0x68] sm:$0xff]
        %v5921 = vld [vmem:[%s2652 + $0x70] sm:$0xff]
        %v5922 = vld [vmem:[%s2652 + $0x78] sm:$0xff]
        %v5923 = vld [vmem:[%s2652 + $0x80] sm:$0xff]
        %v5924 = vld [vmem:[%s2652 + $0x88] sm:$0xff]
        %v5925 = vld [vmem:[%s2652 + $0x90] sm:$0xff]
        %v5926 = vld [vmem:[%s2652 + $0x98] sm:$0xff]
        %v5927 = vld [vmem:[%s2652 + $0xa0] sm:$0xff]
        %v5928 = vld [vmem:[%s2652 + $0xa8] sm:$0xff]
        %v5929 = vld [vmem:[%s2652 + $0xb0] sm:$0xff]
        %v5930 = vld [vmem:[%s2652 + $0xb8] sm:$0xff]
        %v5931 = vld [vmem:[%s2652 + $0xc0] sm:$0xff]
        %v5932 = vld [vmem:[%s2652 + $0xc8] sm:$0xff]
        %v5933 = vld [vmem:[%s2652 + $0xd0] sm:$0xff]
        %v5934 = vld [vmem:[%s2652 + $0xd8] sm:$0xff]
        %v5935 = vld [vmem:[%s2652 + $0xe0] sm:$0xff]
        %v5936 = vld [vmem:[%s2652 + $0xe8] sm:$0xff]
        %v5937 = vld [vmem:[%s2652 + $0xf0] sm:$0xff]
        %v5938 = vld [vmem:[%s2652 + $0xf8] sm:$0xff]
        %v5939 = vld [vmem:[%s2652 + $0x100] sm:$0xff]
        %v5940 = vld [vmem:[%s2652 + $0x108] sm:$0xff]
        %v5941 = vld [vmem:[%s2652 + $0x110] sm:$0xff]
        %v5942 = vld [vmem:[%s2652 + $0x118] sm:$0xff]
        %v5943 = vld [vmem:[%s2652 + $0x120] sm:$0xff]
        %v5944 = vld [vmem:[%s2652 + $0x128] sm:$0xff]
        %v5945 = vld [vmem:[%s2652 + $0x130] sm:$0xff]
        %v5946 = vld [vmem:[%s2652 + $0x138] sm:$0xff]
        %v5947 = vld [vmem:[%s2652 + $0x140] sm:$0xff]
        %v5948 = vld [vmem:[%s2652 + $0x148] sm:$0xff]
        %v5949 = vld [vmem:[%s2652 + $0x150] sm:$0xff]
        %v5950 = vld [vmem:[%s2652 + $0x158] sm:$0xff]
        %v5951 = vld [vmem:[%s2652 + $0x160] sm:$0xff]
        %v5952 = vld [vmem:[%s2652 + $0x168] sm:$0xff]
        %v5953 = vld [vmem:[%s2652 + $0x170] sm:$0xff]
        %v5954 = vld [vmem:[%s2652 + $0x178] sm:$0xff]
        %v5955 = vld [vmem:[%s2652 + $0x180] sm:$0xff]
        %v5956 = vld [vmem:[%s2652 + $0x188] sm:$0xff]
        %v5957 = vld [vmem:[%s2652 + $0x190] sm:$0xff]
        %v5958 = vld [vmem:[%s2652 + $0x198] sm:$0xff]
        %v5959 = vld [vmem:[%s2652 + $0x1a0] sm:$0xff]
        %v5960 = vld [vmem:[%s2652 + $0x1a8] sm:$0xff]
        %v5961 = vld [vmem:[%s2652 + $0x1b0] sm:$0xff]
        %v5962 = vld [vmem:[%s2652 + $0x1b8] sm:$0xff]
        %v5963 = vld [vmem:[%s2652 + $0x1c0] sm:$0xff]
        %v5964 = vld [vmem:[%s2652 + $0x1c8] sm:$0xff]
        %v5965 = vld [vmem:[%s2652 + $0x1d0] sm:$0xff]
        %v5966 = vld [vmem:[%s2652 + $0x1d8] sm:$0xff]
        %v5967 = vld [vmem:[%s2652 + $0x1e0] sm:$0xff]
        %v5968 = vld [vmem:[%s2652 + $0x1e8] sm:$0xff]
        %v5969 = vld [vmem:[%s2652 + $0x1f0] sm:$0xff]
        %v5970 = vld [vmem:[%s2652 + $0x1f8] sm:$0xff]
        %v5971 = vld [vmem:[%s2652 + $0x200] sm:$0xff]
        %v5972 = vld [vmem:[%s2652 + $0x208] sm:$0xff]
        %v5973 = vld [vmem:[%s2652 + $0x210] sm:$0xff]
        %v5974 = vld [vmem:[%s2652 + $0x218] sm:$0xff]
        %v5975 = vld [vmem:[%s2652 + $0x220] sm:$0xff]
        %v5976 = vld [vmem:[%s2652 + $0x228] sm:$0xff]
        %v5977 = vld [vmem:[%s2652 + $0x230] sm:$0xff]
        %v5978 = vld [vmem:[%s2652 + $0x238] sm:$0xff]
        %v5979 = vld [vmem:[%s2652 + $0x240] sm:$0xff]
        %v5980 = vld [vmem:[%s2652 + $0x248] sm:$0xff]
        %v5981 = vld [vmem:[%s2652 + $0x250] sm:$0xff]
        %v5982 = vld [vmem:[%s2652 + $0x258] sm:$0xff]
        %v5983 = vld [vmem:[%s2652 + $0x260] sm:$0xff]
        %v5984 = vld [vmem:[%s2652 + $0x268] sm:$0xff]
        %v5985 = vld [vmem:[%s2652 + $0x270] sm:$0xff]
        %v5986 = vld [vmem:[%s2652 + $0x278] sm:$0xff]
        %v5987 = vld [vmem:[%s2652 + $0x280] sm:$0xff]
        %v5988 = vld [vmem:[%s2652 + $0x288] sm:$0xff]
        %v5989 = vld [vmem:[%s2652 + $0x290] sm:$0xff]
        %v5990 = vld [vmem:[%s2652 + $0x298] sm:$0xff]
        %v5991 = vld [vmem:[%s2652 + $0x2a0] sm:$0xff]
        %v5992 = vld [vmem:[%s2652 + $0x2a8] sm:$0xff]
        %v5993 = vld [vmem:[%s2652 + $0x2b0] sm:$0xff]
        %v5994 = vld [vmem:[%s2652 + $0x2b8] sm:$0xff]
        %v5995 = vld [vmem:[%s2652 + $0x2c0] sm:$0xff]
        %v5996 = vld [vmem:[%s2652 + $0x2c8] sm:$0xff]
        %v5997 = vld [vmem:[%s2652 + $0x2d0] sm:$0xff]
        %v5998 = vld [vmem:[%s2652 + $0x2d8] sm:$0xff]
        %v5999 = vld [vmem:[%s2652 + $0x2e0] sm:$0xff]
        %v6000 = vld [vmem:[%s2652 + $0x2e8] sm:$0xff]
        %v6001 = vld [vmem:[%s2652 + $0x2f0] sm:$0xff]
        %v6002 = vld [vmem:[%s2652 + $0x2f8] sm:$0xff]
        %v6003 = vld [vmem:[%s2749] sm:$0xff]
        %v6004 = vld [vmem:[%s2749 + $0x8] sm:$0xff]
        %v6005 = vld [vmem:[%s2749 + $0x10] sm:$0xff]
        %v6006 = vld [vmem:[%s2749 + $0x18] sm:$0xff]
        %v6007 = vld [vmem:[%s2749 + $0x20] sm:$0xff]
        %v6008 = vld [vmem:[%s2749 + $0x28] sm:$0xff]
        %v6009 = vld [vmem:[%s2749 + $0x30] sm:$0xff]
        %v6010 = vld [vmem:[%s2749 + $0x38] sm:$0xff]
        %v6011 = vld [vmem:[%s2749 + $0x40] sm:$0xff]
        %v6012 = vld [vmem:[%s2749 + $0x48] sm:$0xff]
        %v6013 = vld [vmem:[%s2749 + $0x50] sm:$0xff]
        %v6014 = vld [vmem:[%s2749 + $0x58] sm:$0xff]
        %v6015 = vld [vmem:[%s2749 + $0x60] sm:$0xff]
        %v6016 = vld [vmem:[%s2749 + $0x68] sm:$0xff]
        %v6017 = vld [vmem:[%s2749 + $0x70] sm:$0xff]
        %v6018 = vld [vmem:[%s2749 + $0x78] sm:$0xff]
        %v6019 = vld [vmem:[%s2749 + $0x80] sm:$0xff]
        %v6020 = vld [vmem:[%s2749 + $0x88] sm:$0xff]
        %v6021 = vld [vmem:[%s2749 + $0x90] sm:$0xff]
        %v6022 = vld [vmem:[%s2749 + $0x98] sm:$0xff]
        %v6023 = vld [vmem:[%s2749 + $0xa0] sm:$0xff]
        %v6024 = vld [vmem:[%s2749 + $0xa8] sm:$0xff]
        %v6025 = vld [vmem:[%s2749 + $0xb0] sm:$0xff]
        %v6026 = vld [vmem:[%s2749 + $0xb8] sm:$0xff]
        %v6027 = vld [vmem:[%s2749 + $0xc0] sm:$0xff]
        %v6028 = vld [vmem:[%s2749 + $0xc8] sm:$0xff]
        %v6029 = vld [vmem:[%s2749 + $0xd0] sm:$0xff]
        %v6030 = vld [vmem:[%s2749 + $0xd8] sm:$0xff]
        %v6031 = vld [vmem:[%s2749 + $0xe0] sm:$0xff]
        %v6032 = vld [vmem:[%s2749 + $0xe8] sm:$0xff]
        %v6033 = vld [vmem:[%s2749 + $0xf0] sm:$0xff]
        %v6034 = vld [vmem:[%s2749 + $0xf8] sm:$0xff]
        %v6035 = vld [vmem:[%s2749 + $0x100] sm:$0xff]
        %v6036 = vld [vmem:[%s2749 + $0x108] sm:$0xff]
        %v6037 = vld [vmem:[%s2749 + $0x110] sm:$0xff]
        %v6038 = vld [vmem:[%s2749 + $0x118] sm:$0xff]
        %v6039 = vld [vmem:[%s2749 + $0x120] sm:$0xff]
        %v6040 = vld [vmem:[%s2749 + $0x128] sm:$0xff]
        %v6041 = vld [vmem:[%s2749 + $0x130] sm:$0xff]
        %v6042 = vld [vmem:[%s2749 + $0x138] sm:$0xff]
        %v6043 = vld [vmem:[%s2749 + $0x140] sm:$0xff]
        %v6044 = vld [vmem:[%s2749 + $0x148] sm:$0xff]
        %v6045 = vld [vmem:[%s2749 + $0x150] sm:$0xff]
        %v6046 = vld [vmem:[%s2749 + $0x158] sm:$0xff]
        %v6047 = vld [vmem:[%s2749 + $0x160] sm:$0xff]
        %v6048 = vld [vmem:[%s2749 + $0x168] sm:$0xff]
        %v6049 = vld [vmem:[%s2749 + $0x170] sm:$0xff]
        %v6050 = vld [vmem:[%s2749 + $0x178] sm:$0xff]
        %6051 = vmatprep.subr.mxu0 0.0
        %6052 = vmatpush1.msra.mxu0 %v6003
        %6053 = vmatprep.subr.mxu0 0.0
        %6054 = vmatpush1.msra.mxu0 %v6004
        %6055 = vmatprep.subr.mxu0 0.0
        %6056 = vmatpush1.msra.mxu0 %v6005
        %6057 = vmatprep.subr.mxu0 0.0
        %6058 = vmatpush1.msra.mxu0 %v6006
        %6059 = vmatprep.subr.mxu0 0.0
        %6060 = vmatpush1.msra.mxu0 %v6007
        %6061 = vmatprep.subr.mxu0 0.0
        %6062 = vmatpush1.msra.mxu0 %v6008
        %6063 = vmatprep.subr.mxu0 0.0
        %6064 = vmatpush1.msra.mxu0 %v6009
        %6065 = vmatprep.subr.mxu0 0.0
        %6066 = vmatpush1.msra.mxu0 %v6010
        %6067 = vmatprep.subr.mxu0 0.0
        %6068 = vmatpush1.msra.mxu0 %v6011
        %6069 = vmatprep.subr.mxu0 0.0
        %6070 = vmatpush1.msra.mxu0 %v6012
        %6071 = vmatprep.subr.mxu0 0.0
        %6072 = vmatpush1.msra.mxu0 %v6013
        %6073 = vmatprep.subr.mxu0 0.0
        %6074 = vmatpush1.msra.mxu0 %v6014
        %6075 = vmatprep.subr.mxu0 0.0
        %6076 = vmatpush1.msra.mxu0 %v6015
        %6077 = vmatprep.subr.mxu0 0.0
        %6078 = vmatpush1.msra.mxu0 %v6016
        %6079 = vmatprep.subr.mxu0 0.0
        %6080 = vmatpush1.msra.mxu0 %v6017
        %6081 = vmatprep.subr.mxu0 0.0
        %6082 = vmatpush1.msra.mxu0 %v6018
        %6083 = vmatprep.subr.mxu0 0.0
        %6084 = vmatpush1.msra.mxu0 %v6019
        %6085 = vmatprep.subr.mxu0 0.0
        %6086 = vmatpush1.msra.mxu0 %v6020
        %6087 = vmatprep.subr.mxu0 0.0
        %6088 = vmatpush1.msra.mxu0 %v6021
        %6089 = vmatprep.subr.mxu0 0.0
        %6090 = vmatpush1.msra.mxu0 %v6022
        %6091 = vmatprep.subr.mxu0 0.0
        %6092 = vmatpush1.msra.mxu0 %v6023
        %6093 = vmatprep.subr.mxu0 0.0
        %6094 = vmatpush1.msra.mxu0 %v6024
        %6095 = vmatprep.subr.mxu0 0.0
        %6096 = vmatpush1.msra.mxu0 %v6025
        %6097 = vmatprep.subr.mxu0 0.0
        %6098 = vmatpush1.msra.mxu0 %v6026
        %6099 = vmatprep.subr.mxu0 0.0
        %6100 = vmatpush1.msra.mxu0 %v6027
        %6101 = vmatprep.subr.mxu0 0.0
        %6102 = vmatpush1.msra.mxu0 %v6028
        %6103 = vmatprep.subr.mxu0 0.0
        %6104 = vmatpush1.msra.mxu0 %v6029
        %6105 = vmatprep.subr.mxu0 0.0
        %6106 = vmatpush1.msra.mxu0 %v6030
        %6107 = vmatprep.subr.mxu0 0.0
        %6108 = vmatpush1.msra.mxu0 %v6031
        %6109 = vmatprep.subr.mxu0 0.0
        %6110 = vmatpush1.msra.mxu0 %v6032
        %6111 = vmatprep.subr.mxu0 0.0
        %6112 = vmatpush1.msra.mxu0 %v6033
        %6113 = vmatprep.subr.mxu0 0.0
        %6114 = vmatpush1.msra.mxu0 %v6034
        %6115 = vmatprep.mubr.f32.mxu0 %v5908
        %6116 = vmatmul.mubr.f32.gmra.mrb[0].mxu0 %v5907
        %v6117 = vpop.f32.mrb[0].mxu0
        %v6118 = vadd.f32 0.0, %v6117
        %v6119 = vpop.f32.mrb[0].mxu0
        %6120 = vmatprep.mubr.f32.mxu0 %v5911
        %6121 = vmatmul.mubr.f32.gmra.mrb[0].mxu0 %v5910
        %v6122 = vpop.f32.mrb[0].mxu0
        %v6123 = vadd.f32 0.0, %v6122
        %v6124 = vpop.f32.mrb[0].mxu0
        %6125 = vmatprep.mubr.f32.mxu0 %v5914
        %6126 = vmatmul.mubr.f32.gmra.mrb[0].mxu0 %v5913
        %v6127 = vpop.f32.mrb[0].mxu0
        %v6128 = vadd.f32 0.0, %v6127
        %v6129 = vpop.f32.mrb[0].mxu0
        %6130 = vmatprep.mubr.f32.mxu0 %v5917
        %6131 = vmatmul.mubr.f32.gmra.mrb[0].mxu0 %v5916
        %v6132 = vpop.f32.mrb[0].mxu0
        %v6133 = vadd.f32 0.0, %v6132
        %v6134 = vpop.f32.mrb[0].mxu0
        %6135 = vmatprep.mubr.f32.mxu0 %v5920
        %6136 = vmatmul.mubr.f32.gmra.mrb[0].mxu0 %v5919
        %v6137 = vpop.f32.mrb[0].mxu0
        %v6138 = vadd.f32 0.0, %v6137
        %v6139 = vpop.f32.mrb[0].mxu0
        %6140 = vmatprep.mubr.f32.mxu0 %v5923
        %6141 = vmatmul.mubr.f32.gmra.mrb[0].mxu0 %v5922
        %v6142 = vpop.f32.mrb[0].mxu0
        %v6143 = vadd.f32 0.0, %v6142
        %v6144 = vpop.f32.mrb[0].mxu0
        %6145 = vmatprep.mubr.f32.mxu0 %v5926
        %6146 = vmatmul.mubr.f32.gmra.mrb[0].mxu0 %v5925
        %v6147 = vpop.f32.mrb[0].mxu0
        %v6148 = vadd.f32 0.0, %v6147
        %v6149 = vpop.f32.mrb[0].mxu0
        %6150 = vmatprep.mubr.f32.mxu0 %v5929
        %6151 = vmatmul.mubr.f32.gmra.mrb[0].mxu0 %v5928
        %v6152 = vpop.f32.mrb[0].mxu0
        %v6153 = vadd.f32 0.0, %v6152
        %v6154 = vpop.f32.mrb[0].mxu0
        %6155 = vmatprep.mubr.f32.mxu0 %v5932
        %6156 = vmatmul.mubr.f32.gmra.mrb[0].mxu0 %v5931
        %v6157 = vpop.f32.mrb[0].mxu0
        %v6158 = vadd.f32 0.0, %v6157
        %v6159 = vpop.f32.mrb[0].mxu0
        %6160 = vmatprep.mubr.f32.mxu0 %v5935
        %6161 = vmatmul.mubr.f32.gmra.mrb[0].mxu0 %v5934
        %v6162 = vpop.f32.mrb[0].mxu0
        %v6163 = vadd.f32 0.0, %v6162
        %v6164 = vpop.f32.mrb[0].mxu0
        %6165 = vmatprep.mubr.f32.mxu0 %v5938
        %6166 = vmatmul.mubr.f32.gmra.mrb[0].mxu0 %v5937
        %v6167 = vpop.f32.mrb[0].mxu0
        %v6168 = vadd.f32 0.0, %v6167
        %v6169 = vpop.f32.mrb[0].mxu0
        %6170 = vmatprep.mubr.f32.mxu0 %v5941
        %6171 = vmatmul.mubr.f32.gmra.mrb[0].mxu0 %v5940
        %v6172 = vpop.f32.mrb[0].mxu0
        %v6173 = vadd.f32 0.0, %v6172
        %v6174 = vpop.f32.mrb[0].mxu0
        %6175 = vmatprep.mubr.f32.mxu0 %v5944
        %6176 = vmatmul.mubr.f32.gmra.mrb[0].mxu0 %v5943
        %v6177 = vpop.f32.mrb[0].mxu0
        %v6178 = vadd.f32 0.0, %v6177
        %v6179 = vpop.f32.mrb[0].mxu0
        %6180 = vmatprep.mubr.f32.mxu0 %v5947
        %6181 = vmatmul.mubr.f32.gmra.mrb[0].mxu0 %v5946
        %v6182 = vpop.f32.mrb[0].mxu0
        %v6183 = vadd.f32 0.0, %v6182
        %v6184 = vpop.f32.mrb[0].mxu0
        %6185 = vmatprep.mubr.f32.mxu0 %v5950
        %6186 = vmatmul.mubr.f32.gmra.mrb[0].mxu0 %v5949
        %v6187 = vpop.f32.mrb[0].mxu0
        %v6188 = vadd.f32 0.0, %v6187
        %v6189 = vpop.f32.mrb[0].mxu0
        %6190 = vmatprep.mubr.f32.mxu0 %v5953
        %6191 = vmatmul.mubr.f32.gmra.mrb[0].mxu0 %v5952
        %v6192 = vpop.f32.mrb[0].mxu0
        %v6193 = vadd.f32 0.0, %v6192
        %v6194 = vpop.f32.mrb[0].mxu0
        %6195 = vmatprep.mubr.f32.mxu0 %v5956
        %6196 = vmatmul.mubr.f32.gmra.mrb[0].mxu0 %v5955
        %v6197 = vpop.f32.mrb[0].mxu0
        %v6198 = vadd.f32 0.0, %v6197
        %v6199 = vpop.f32.mrb[0].mxu0
        %6200 = vmatprep.mubr.f32.mxu0 %v5959
        %6201 = vmatmul.mubr.f32.gmra.mrb[0].mxu0 %v5958
        %v6202 = vpop.f32.mrb[0].mxu0
        %v6203 = vadd.f32 0.0, %v6202
        %v6204 = vpop.f32.mrb[0].mxu0
        %6205 = vmatprep.mubr.f32.mxu0 %v5962
        %6206 = vmatmul.mubr.f32.gmra.mrb[0].mxu0 %v5961
        %v6207 = vpop.f32.mrb[0].mxu0
        %v6208 = vadd.f32 0.0, %v6207
        %v6209 = vpop.f32.mrb[0].mxu0
        %6210 = vmatprep.mubr.f32.mxu0 %v5965
        %6211 = vmatmul.mubr.f32.gmra.mrb[0].mxu0 %v5964
        %v6212 = vpop.f32.mrb[0].mxu0
        %v6213 = vadd.f32 0.0, %v6212
        %v6214 = vpop.f32.mrb[0].mxu0
        %6215 = vmatprep.mubr.f32.mxu0 %v5968
        %6216 = vmatmul.mubr.f32.gmra.mrb[0].mxu0 %v5967
        %v6217 = vpop.f32.mrb[0].mxu0
        %v6218 = vadd.f32 0.0, %v6217
        %v6219 = vpop.f32.mrb[0].mxu0
        %6220 = vmatprep.mubr.f32.mxu0 %v5971
        %6221 = vmatmul.mubr.f32.gmra.mrb[0].mxu0 %v5970
        %v6222 = vpop.f32.mrb[0].mxu0
        %v6223 = vadd.f32 0.0, %v6222
        %v6224 = vpop.f32.mrb[0].mxu0
        %6225 = vmatprep.mubr.f32.mxu0 %v5974
        %6226 = vmatmul.mubr.f32.gmra.mrb[0].mxu0 %v5973
        %v6227 = vpop.f32.mrb[0].mxu0
        %v6228 = vadd.f32 0.0, %v6227
        %v6229 = vpop.f32.mrb[0].mxu0
        %6230 = vmatprep.mubr.f32.mxu0 %v5977
        %6231 = vmatmul.mubr.f32.gmra.mrb[0].mxu0 %v5976
        %v6232 = vpop.f32.mrb[0].mxu0
        %v6233 = vadd.f32 0.0, %v6232
        %v6234 = vpop.f32.mrb[0].mxu0
        %6235 = vmatprep.mubr.f32.mxu0 %v5980
        %6236 = vmatmul.mubr.f32.gmra.mrb[0].mxu0 %v5979
        %v6237 = vpop.f32.mrb[0].mxu0
        %v6238 = vadd.f32 0.0, %v6237
        %v6239 = vpop.f32.mrb[0].mxu0
        %6240 = vmatprep.mubr.f32.mxu0 %v5983
        %6241 = vmatmul.mubr.f32.gmra.mrb[0].mxu0 %v5982
        %v6242 = vpop.f32.mrb[0].mxu0
        %v6243 = vadd.f32 0.0, %v6242
        %v6244 = vpop.f32.mrb[0].mxu0
        %6245 = vmatprep.mubr.f32.mxu0 %v5986
        %6246 = vmatmul.mubr.f32.gmra.mrb[0].mxu0 %v5985
        %v6247 = vpop.f32.mrb[0].mxu0
        %v6248 = vadd.f32 0.0, %v6247
        %v6249 = vpop.f32.mrb[0].mxu0
        %6250 = vmatprep.mubr.f32.mxu0 %v5989
        %6251 = vmatmul.mubr.f32.gmra.mrb[0].mxu0 %v5988
        %v6252 = vpop.f32.mrb[0].mxu0
        %v6253 = vadd.f32 0.0, %v6252
        %v6254 = vpop.f32.mrb[0].mxu0
        %6255 = vmatprep.mubr.f32.mxu0 %v5992
        %6256 = vmatmul.mubr.f32.gmra.mrb[0].mxu0 %v5991
        %v6257 = vpop.f32.mrb[0].mxu0
        %v6258 = vadd.f32 0.0, %v6257
        %v6259 = vpop.f32.mrb[0].mxu0
        %6260 = vmatprep.mubr.f32.mxu0 %v5995
        %6261 = vmatmul.mubr.f32.gmra.mrb[0].mxu0 %v5994
        %v6262 = vpop.f32.mrb[0].mxu0
        %v6263 = vadd.f32 0.0, %v6262
        %v6264 = vpop.f32.mrb[0].mxu0
        %6265 = vmatprep.mubr.f32.mxu0 %v5998
        %6266 = vmatmul.mubr.f32.gmra.mrb[0].mxu0 %v5997
        %v6267 = vpop.f32.mrb[0].mxu0
        %v6268 = vadd.f32 0.0, %v6267
        %v6269 = vpop.f32.mrb[0].mxu0
        %6270 = vmatprep.mubr.f32.mxu0 %v6001
        %6271 = vmatmul.mubr.f32.gmra.mrb[0].mxu0 %v6000
        %v6272 = vpop.f32.mrb[0].mxu0
        %v6273 = vadd.f32 0.0, %v6272
        %v6274 = vpop.f32.mrb[0].mxu0
        %6275 = vdwg.mxu0
        %6276 = vmatprep.subr.mxu0 0.0
        %6277 = vmatpush1.msra.mxu0 %v6035
        %6278 = vmatprep.subr.mxu0 0.0
        %6279 = vmatpush1.msra.mxu0 %v6036
        %6280 = vmatprep.subr.mxu0 0.0
        %6281 = vmatpush1.msra.mxu0 %v6037
        %6282 = vmatprep.subr.mxu0 0.0
        %6283 = vmatpush1.msra.mxu0 %v6038
        %6284 = vmatprep.subr.mxu0 0.0
        %6285 = vmatpush1.msra.mxu0 %v6039
        %6286 = vmatprep.subr.mxu0 0.0
        %6287 = vmatpush1.msra.mxu0 %v6040
        %6288 = vmatprep.subr.mxu0 0.0
        %6289 = vmatpush1.msra.mxu0 %v6041
        %6290 = vmatprep.subr.mxu0 0.0
        %6291 = vmatpush1.msra.mxu0 %v6042
        %6292 = vmatprep.subr.mxu0 0.0
        %6293 = vmatpush1.msra.mxu0 %v6043
        %6294 = vmatprep.subr.mxu0 0.0
        %6295 = vmatpush1.msra.mxu0 %v6044
        %6296 = vmatprep.subr.mxu0 0.0
        %6297 = vmatpush1.msra.mxu0 %v6045
        %6298 = vmatprep.subr.mxu0 0.0
        %6299 = vmatpush1.msra.mxu0 %v6046
        %6300 = vmatprep.subr.mxu0 0.0
        %6301 = vmatpush1.msra.mxu0 %v6047
        %6302 = vmatprep.subr.mxu0 0.0
        %6303 = vmatpush1.msra.mxu0 %v6048
        %6304 = vmatprep.subr.mxu0 0.0
        %6305 = vmatpush1.msra.mxu0 %v6049
        %6306 = vmatprep.subr.mxu0 0.0
        %6307 = vmatpush1.msra.mxu0 %v6050
        %6308 = vmatprep.subr.mxu0 0.0
        %6309 = vmatpush1.msra.mxu0 0.0
        %6310 = vmatprep.subr.mxu0 0.0
        %6311 = vmatpush1.msra.mxu0 0.0
        %6312 = vmatprep.subr.mxu0 0.0
        %6313 = vmatpush1.msra.mxu0 0.0
        %6314 = vmatprep.subr.mxu0 0.0
        %6315 = vmatpush1.msra.mxu0 0.0
        %6316 = vmatprep.subr.mxu0 0.0
        %6317 = vmatpush1.msra.mxu0 0.0
        %6318 = vmatprep.subr.mxu0 0.0
        %6319 = vmatpush1.msra.mxu0 0.0
        %6320 = vmatprep.subr.mxu0 0.0
        %6321 = vmatpush1.msra.mxu0 0.0
        %6322 = vmatprep.subr.mxu0 0.0
        %6323 = vmatpush1.msra.mxu0 0.0
        %6324 = vmatprep.subr.mxu0 0.0
        %6325 = vmatpush1.msra.mxu0 0.0
        %6326 = vmatprep.subr.mxu0 0.0
        %6327 = vmatpush1.msra.mxu0 0.0
        %6328 = vmatprep.subr.mxu0 0.0
        %6329 = vmatpush1.msra.mxu0 0.0
        %6330 = vmatprep.subr.mxu0 0.0
        %6331 = vmatpush1.msra.mxu0 0.0
        %6332 = vmatprep.subr.mxu0 0.0
        %6333 = vmatpush1.msra.mxu0 0.0
        %6334 = vmatprep.subr.mxu0 0.0
        %6335 = vmatpush1.msra.mxu0 0.0
        %6336 = vmatprep.subr.mxu0 0.0
        %6337 = vmatpush1.msra.mxu0 0.0
        %6338 = vmatprep.subr.mxu0 0.0
        %6339 = vmatpush1.msra.mxu0 0.0
        %6340 = vmatprep.mubr.f32.mxu0 0.0
        %6341 = vmatmul.mubr.f32.gmra.mrb[0].mxu0 %v5909
        %v6342 = vpop.f32.mrb[0].mxu0
        %v6343 = vadd.f32 %v6118, %v6342
        %v6344 = vpop.f32.mrb[0].mxu0
        %6345 = vmatprep.mubr.f32.mxu0 0.0
        %6346 = vmatmul.mubr.f32.gmra.mrb[0].mxu0 %v5912
        %v6347 = vpop.f32.mrb[0].mxu0
        %v6348 = vadd.f32 %v6123, %v6347
        %v6349 = vpop.f32.mrb[0].mxu0
        %6350 = vmatprep.mubr.f32.mxu0 0.0
        %6351 = vmatmul.mubr.f32.gmra.mrb[0].mxu0 %v5915
        %v6352 = vpop.f32.mrb[0].mxu0
        %v6353 = vadd.f32 %v6128, %v6352
        %v6354 = vpop.f32.mrb[0].mxu0
        %6355 = vmatprep.mubr.f32.mxu0 0.0
        %6356 = vmatmul.mubr.f32.gmra.mrb[0].mxu0 %v5918
        %v6357 = vpop.f32.mrb[0].mxu0
        %v6358 = vadd.f32 %v6133, %v6357
        %v6359 = vpop.f32.mrb[0].mxu0
        %6360 = vmatprep.mubr.f32.mxu0 0.0
        %6361 = vmatmul.mubr.f32.gmra.mrb[0].mxu0 %v5921
        %v6362 = vpop.f32.mrb[0].mxu0
        %v6363 = vadd.f32 %v6138, %v6362
        %v6364 = vpop.f32.mrb[0].mxu0
        %6365 = vmatprep.mubr.f32.mxu0 0.0
        %6366 = vmatmul.mubr.f32.gmra.mrb[0].mxu0 %v5924
        %v6367 = vpop.f32.mrb[0].mxu0
        %v6368 = vadd.f32 %v6143, %v6367
        %v6369 = vpop.f32.mrb[0].mxu0
        %6370 = vmatprep.mubr.f32.mxu0 0.0
        %6371 = vmatmul.mubr.f32.gmra.mrb[0].mxu0 %v5927
        %v6372 = vpop.f32.mrb[0].mxu0
        %v6373 = vadd.f32 %v6148, %v6372
        %v6374 = vpop.f32.mrb[0].mxu0
        %6375 = vmatprep.mubr.f32.mxu0 0.0
        %6376 = vmatmul.mubr.f32.gmra.mrb[0].mxu0 %v5930
        %v6377 = vpop.f32.mrb[0].mxu0
        %v6378 = vadd.f32 %v6153, %v6377
        %v6379 = vpop.f32.mrb[0].mxu0
        %6380 = vmatprep.mubr.f32.mxu0 0.0
        %6381 = vmatmul.mubr.f32.gmra.mrb[0].mxu0 %v5933
        %v6382 = vpop.f32.mrb[0].mxu0
        %v6383 = vadd.f32 %v6158, %v6382
        %v6384 = vpop.f32.mrb[0].mxu0
        %6385 = vmatprep.mubr.f32.mxu0 0.0
        %6386 = vmatmul.mubr.f32.gmra.mrb[0].mxu0 %v5936
        %v6387 = vpop.f32.mrb[0].mxu0
        %v6388 = vadd.f32 %v6163, %v6387
        %v6389 = vpop.f32.mrb[0].mxu0
        %6390 = vmatprep.mubr.f32.mxu0 0.0
        %6391 = vmatmul.mubr.f32.gmra.mrb[0].mxu0 %v5939
        %v6392 = vpop.f32.mrb[0].mxu0
        %v6393 = vadd.f32 %v6168, %v6392
        %v6394 = vpop.f32.mrb[0].mxu0
        %6395 = vmatprep.mubr.f32.mxu0 0.0
        %6396 = vmatmul.mubr.f32.gmra.mrb[0].mxu0 %v5942
        %v6397 = vpop.f32.mrb[0].mxu0
        %v6398 = vadd.f32 %v6173, %v6397
        %v6399 = vpop.f32.mrb[0].mxu0
        %6400 = vmatprep.mubr.f32.mxu0 0.0
        %6401 = vmatmul.mubr.f32.gmra.mrb[0].mxu0 %v5945
        %v6402 = vpop.f32.mrb[0].mxu0
        %v6403 = vadd.f32 %v6178, %v6402
        %v6404 = vpop.f32.mrb[0].mxu0
        %6405 = vmatprep.mubr.f32.mxu0 0.0
        %6406 = vmatmul.mubr.f32.gmra.mrb[0].mxu0 %v5948
        %v6407 = vpop.f32.mrb[0].mxu0
        %v6408 = vadd.f32 %v6183, %v6407
        %v6409 = vpop.f32.mrb[0].mxu0
        %6410 = vmatprep.mubr.f32.mxu0 0.0
        %6411 = vmatmul.mubr.f32.gmra.mrb[0].mxu0 %v5951
        %v6412 = vpop.f32.mrb[0].mxu0
        %v6413 = vadd.f32 %v6188, %v6412
        %v6414 = vpop.f32.mrb[0].mxu0
        %6415 = vmatprep.mubr.f32.mxu0 0.0
        %6416 = vmatmul.mubr.f32.gmra.mrb[0].mxu0 %v5954
        %v6417 = vpop.f32.mrb[0].mxu0
        %v6418 = vadd.f32 %v6193, %v6417
        %v6419 = vpop.f32.mrb[0].mxu0
        %6420 = vmatprep.mubr.f32.mxu0 0.0
        %6421 = vmatmul.mubr.f32.gmra.mrb[0].mxu0 %v5957
        %v6422 = vpop.f32.mrb[0].mxu0
        %v6423 = vadd.f32 %v6198, %v6422
        %v6424 = vpop.f32.mrb[0].mxu0
        %6425 = vmatprep.mubr.f32.mxu0 0.0
        %6426 = vmatmul.mubr.f32.gmra.mrb[0].mxu0 %v5960
        %v6427 = vpop.f32.mrb[0].mxu0
        %v6428 = vadd.f32 %v6203, %v6427
        %v6429 = vpop.f32.mrb[0].mxu0
        %6430 = vmatprep.mubr.f32.mxu0 0.0
        %6431 = vmatmul.mubr.f32.gmra.mrb[0].mxu0 %v5963
        %v6432 = vpop.f32.mrb[0].mxu0
        %v6433 = vadd.f32 %v6208, %v6432
        %v6434 = vpop.f32.mrb[0].mxu0
        %6435 = vmatprep.mubr.f32.mxu0 0.0
        %6436 = vmatmul.mubr.f32.gmra.mrb[0].mxu0 %v5966
        %v6437 = vpop.f32.mrb[0].mxu0
        %v6438 = vadd.f32 %v6213, %v6437
        %v6439 = vpop.f32.mrb[0].mxu0
        %6440 = vmatprep.mubr.f32.mxu0 0.0
        %6441 = vmatmul.mubr.f32.gmra.mrb[0].mxu0 %v5969
        %v6442 = vpop.f32.mrb[0].mxu0
        %v6443 = vadd.f32 %v6218, %v6442
        %v6444 = vpop.f32.mrb[0].mxu0
        %6445 = vmatprep.mubr.f32.mxu0 0.0
        %6446 = vmatmul.mubr.f32.gmra.mrb[0].mxu0 %v5972
        %v6447 = vpop.f32.mrb[0].mxu0
        %v6448 = vadd.f32 %v6223, %v6447
        %v6449 = vpop.f32.mrb[0].mxu0
        %6450 = vmatprep.mubr.f32.mxu0 0.0
        %6451 = vmatmul.mubr.f32.gmra.mrb[0].mxu0 %v5975
        %v6452 = vpop.f32.mrb[0].mxu0
        %v6453 = vadd.f32 %v6228, %v6452
        %v6454 = vpop.f32.mrb[0].mxu0
        %6455 = vmatprep.mubr.f32.mxu0 0.0
        %6456 = vmatmul.mubr.f32.gmra.mrb[0].mxu0 %v5978
        %v6457 = vpop.f32.mrb[0].mxu0
        %v6458 = vadd.f32 %v6233, %v6457
        %v6459 = vpop.f32.mrb[0].mxu0
        %6460 = vmatprep.mubr.f32.mxu0 0.0
        %6461 = vmatmul.mubr.f32.gmra.mrb[0].mxu0 %v5981
        %v6462 = vpop.f32.mrb[0].mxu0
        %v6463 = vadd.f32 %v6238, %v6462
        %v6464 = vpop.f32.mrb[0].mxu0
        %6465 = vmatprep.mubr.f32.mxu0 0.0
        %6466 = vmatmul.mubr.f32.gmra.mrb[0].mxu0 %v5984
        %v6467 = vpop.f32.mrb[0].mxu0
        %v6468 = vadd.f32 %v6243, %v6467
        %v6469 = vpop.f32.mrb[0].mxu0
        %6470 = vmatprep.mubr.f32.mxu0 0.0
        %6471 = vmatmul.mubr.f32.gmra.mrb[0].mxu0 %v5987
        %v6472 = vpop.f32.mrb[0].mxu0
        %v6473 = vadd.f32 %v6248, %v6472
        %v6474 = vpop.f32.mrb[0].mxu0
        %6475 = vmatprep.mubr.f32.mxu0 0.0
        %6476 = vmatmul.mubr.f32.gmra.mrb[0].mxu0 %v5990
        %v6477 = vpop.f32.mrb[0].mxu0
        %v6478 = vadd.f32 %v6253, %v6477
        %v6479 = vpop.f32.mrb[0].mxu0
        %6480 = vmatprep.mubr.f32.mxu0 0.0
        %6481 = vmatmul.mubr.f32.gmra.mrb[0].mxu0 %v5993
        %v6482 = vpop.f32.mrb[0].mxu0
        %v6483 = vadd.f32 %v6258, %v6482
        %v6484 = vpop.f32.mrb[0].mxu0
        %6485 = vmatprep.mubr.f32.mxu0 0.0
        %6486 = vmatmul.mubr.f32.gmra.mrb[0].mxu0 %v5996
        %v6487 = vpop.f32.mrb[0].mxu0
        %v6488 = vadd.f32 %v6263, %v6487
        %v6489 = vpop.f32.mrb[0].mxu0
        %6490 = vmatprep.mubr.f32.mxu0 0.0
        %6491 = vmatmul.mubr.f32.gmra.mrb[0].mxu0 %v5999
        %v6492 = vpop.f32.mrb[0].mxu0
        %v6493 = vadd.f32 %v6268, %v6492
        %v6494 = vpop.f32.mrb[0].mxu0
        %6495 = vmatprep.mubr.f32.mxu0 0.0
        %6496 = vmatmul.mubr.f32.gmra.mrb[0].mxu0 %v6002
        %v6497 = vpop.f32.mrb[0].mxu0
        %v6498 = vadd.f32 %v6273, %v6497
        %v6499 = vpop.f32.mrb[0].mxu0
        %6500 = vdwg.mxu0
        %v6501 = vadd.f32 %v5875, %v6343
        %v6502 = vadd.f32 %v5876, %v6348
        %v6503 = vadd.f32 %v5877, %v6353
        %v6504 = vadd.f32 %v5878, %v6358
        %v6505 = vadd.f32 %v5879, %v6363
        %v6506 = vadd.f32 %v5880, %v6368
        %v6507 = vadd.f32 %v5881, %v6373
        %v6508 = vadd.f32 %v5882, %v6378
        %v6509 = vadd.f32 %v5883, %v6383
        %v6510 = vadd.f32 %v5884, %v6388
        %v6511 = vadd.f32 %v5885, %v6393
        %v6512 = vadd.f32 %v5886, %v6398
        %v6513 = vadd.f32 %v5887, %v6403
        %v6514 = vadd.f32 %v5888, %v6408
        %v6515 = vadd.f32 %v5889, %v6413
        %v6516 = vadd.f32 %v5890, %v6418
        %v6517 = vadd.f32 %v5891, %v6423
        %v6518 = vadd.f32 %v5892, %v6428
        %v6519 = vadd.f32 %v5893, %v6433
        %v6520 = vadd.f32 %v5894, %v6438
        %v6521 = vadd.f32 %v5895, %v6443
        %v6522 = vadd.f32 %v5896, %v6448
        %v6523 = vadd.f32 %v5897, %v6453
        %v6524 = vadd.f32 %v5898, %v6458
        %v6525 = vadd.f32 %v5899, %v6463
        %v6526 = vadd.f32 %v5900, %v6468
        %v6527 = vadd.f32 %v5901, %v6473
        %v6528 = vadd.f32 %v5902, %v6478
        %v6529 = vadd.f32 %v5903, %v6483
        %v6530 = vadd.f32 %v5904, %v6488
        %v6531 = vadd.f32 %v5905, %v6493
        %v6532 = vadd.f32 %v5906, %v6498
        %6533 = vst [vmem:[#allocation3] sm:$0xff] %v6501
        %6534 = vst [vmem:[#allocation3 + $0x8] sm:$0xff] %v6502
        %6535 = vst [vmem:[#allocation3 + $0x10] sm:$0xff] %v6503
        %6536 = vst [vmem:[#allocation3 + $0x18] sm:$0xff] %v6504
        %6537 = vst [vmem:[#allocation3 + $0x20] sm:$0xff] %v6505
        %6538 = vst [vmem:[#allocation3 + $0x28] sm:$0xff] %v6506
        %6539 = vst [vmem:[#allocation3 + $0x30] sm:$0xff] %v6507
        %6540 = vst [vmem:[#allocation3 + $0x38] sm:$0xff] %v6508
        %6541 = vst [vmem:[#allocation3 + $0x40] sm:$0xff] %v6509
        %6542 = vst [vmem:[#allocation3 + $0x48] sm:$0xff] %v6510
        %6543 = vst [vmem:[#allocation3 + $0x50] sm:$0xff] %v6511
        %6544 = vst [vmem:[#allocation3 + $0x58] sm:$0xff] %v6512
        %6545 = vst [vmem:[#allocation3 + $0x60] sm:$0xff] %v6513
        %6546 = vst [vmem:[#allocation3 + $0x68] sm:$0xff] %v6514
        %6547 = vst [vmem:[#allocation3 + $0x70] sm:$0xff] %v6515
        %6548 = vst [vmem:[#allocation3 + $0x78] sm:$0xff] %v6516
        %6549 = vst [vmem:[#allocation3 + $0x80] sm:$0xff] %v6517
        %6550 = vst [vmem:[#allocation3 + $0x88] sm:$0xff] %v6518
        %6551 = vst [vmem:[#allocation3 + $0x90] sm:$0xff] %v6519
        %6552 = vst [vmem:[#allocation3 + $0x98] sm:$0xff] %v6520
        %6553 = vst [vmem:[#allocation3 + $0xa0] sm:$0xff] %v6521
        %6554 = vst [vmem:[#allocation3 + $0xa8] sm:$0xff] %v6522
        %6555 = vst [vmem:[#allocation3 + $0xb0] sm:$0xff] %v6523
        %6556 = vst [vmem:[#allocation3 + $0xb8] sm:$0xff] %v6524
        %6557 = vst [vmem:[#allocation3 + $0xc0] sm:$0xff] %v6525
        %6558 = vst [vmem:[#allocation3 + $0xc8] sm:$0xff] %v6526
        %6559 = vst [vmem:[#allocation3 + $0xd0] sm:$0xff] %v6527
        %6560 = vst [vmem:[#allocation3 + $0xd8] sm:$0xff] %v6528
        %6561 = vst [vmem:[#allocation3 + $0xe0] sm:$0xff] %v6529
        %6562 = vst [vmem:[#allocation3 + $0xe8] sm:$0xff] %v6530
        %6563 = vst [vmem:[#allocation3 + $0xf0] sm:$0xff] %v6531
        %6564 = vst [vmem:[#allocation3 + $0xf8] sm:$0xff] %v6532
        %v6565 = vld [vmem:[#allocation3] sm:$0xff]
        %v6566 = vld [vmem:[#allocation3 + $0x8] sm:$0xff]
        %v6567 = vld [vmem:[#allocation3 + $0x10] sm:$0xff]
        %v6568 = vld [vmem:[#allocation3 + $0x18] sm:$0xff]
        %v6569 = vld [vmem:[#allocation3 + $0x20] sm:$0xff]
        %v6570 = vld [vmem:[#allocation3 + $0x28] sm:$0xff]
        %v6571 = vld [vmem:[#allocation3 + $0x30] sm:$0xff]
        %v6572 = vld [vmem:[#allocation3 + $0x38] sm:$0xff]
        %v6573 = vld [vmem:[#allocation3 + $0x40] sm:$0xff]
        %v6574 = vld [vmem:[#allocation3 + $0x48] sm:$0xff]
        %v6575 = vld [vmem:[#allocation3 + $0x50] sm:$0xff]
        %v6576 = vld [vmem:[#allocation3 + $0x58] sm:$0xff]
        %v6577 = vld [vmem:[#allocation3 + $0x60] sm:$0xff]
        %v6578 = vld [vmem:[#allocation3 + $0x68] sm:$0xff]
        %v6579 = vld [vmem:[#allocation3 + $0x70] sm:$0xff]
        %v6580 = vld [vmem:[#allocation3 + $0x78] sm:$0xff]
        %v6581 = vld [vmem:[#allocation3 + $0x80] sm:$0xff]
        %v6582 = vld [vmem:[#allocation3 + $0x88] sm:$0xff]
        %v6583 = vld [vmem:[#allocation3 + $0x90] sm:$0xff]
        %v6584 = vld [vmem:[#allocation3 + $0x98] sm:$0xff]
        %v6585 = vld [vmem:[#allocation3 + $0xa0] sm:$0xff]
        %v6586 = vld [vmem:[#allocation3 + $0xa8] sm:$0xff]
        %v6587 = vld [vmem:[#allocation3 + $0xb0] sm:$0xff]
        %v6588 = vld [vmem:[#allocation3 + $0xb8] sm:$0xff]
        %v6589 = vld [vmem:[#allocation3 + $0xc0] sm:$0xff]
        %v6590 = vld [vmem:[#allocation3 + $0xc8] sm:$0xff]
        %v6591 = vld [vmem:[#allocation3 + $0xd0] sm:$0xff]
        %v6592 = vld [vmem:[#allocation3 + $0xd8] sm:$0xff]
        %v6593 = vld [vmem:[#allocation3 + $0xe0] sm:$0xff]
        %v6594 = vld [vmem:[#allocation3 + $0xe8] sm:$0xff]
        %v6595 = vld [vmem:[#allocation3 + $0xf0] sm:$0xff]
        %v6596 = vld [vmem:[#allocation3 + $0xf8] sm:$0xff]
        %v6597 = vld [vmem:[%s4] sm:$0x1]
        %v6599 = vlaneseq
        %v6600 = vshrl.u32 %v6599, 7
        %v6601 = vsub.s32 0, %v6600
        %v6602 = vrot.slane %v6597, %v6601
        %v6604 = vadd.f32 %v6565, %v6602
        %v6605 = vadd.f32 %v6566, %v6602
        %v6606 = vadd.f32 %v6567, %v6602
        %v6607 = vadd.f32 %v6568, %v6602
        %v6608 = vadd.f32 %v6569, %v6602
        %v6609 = vadd.f32 %v6570, %v6602
        %v6610 = vadd.f32 %v6571, %v6602
        %v6611 = vadd.f32 %v6572, %v6602
        %v6612 = vadd.f32 %v6573, %v6602
        %v6613 = vadd.f32 %v6574, %v6602
        %v6614 = vadd.f32 %v6575, %v6602
        %v6615 = vadd.f32 %v6576, %v6602
        %v6616 = vadd.f32 %v6577, %v6602
        %v6617 = vadd.f32 %v6578, %v6602
        %v6618 = vadd.f32 %v6579, %v6602
        %v6619 = vadd.f32 %v6580, %v6602
        %v6620 = vadd.f32 %v6581, %v6602
        %v6621 = vadd.f32 %v6582, %v6602
        %v6622 = vadd.f32 %v6583, %v6602
        %v6623 = vadd.f32 %v6584, %v6602
        %v6624 = vadd.f32 %v6585, %v6602
        %v6625 = vadd.f32 %v6586, %v6602
        %v6626 = vadd.f32 %v6587, %v6602
        %v6627 = vadd.f32 %v6588, %v6602
        %v6628 = vadd.f32 %v6589, %v6602
        %v6629 = vadd.f32 %v6590, %v6602
        %v6630 = vadd.f32 %v6591, %v6602
        %v6631 = vadd.f32 %v6592, %v6602
        %v6632 = vadd.f32 %v6593, %v6602
        %v6633 = vadd.f32 %v6594, %v6602
        %v6634 = vadd.f32 %v6595, %v6602
        %v6635 = vadd.f32 %v6596, %v6602
        %v6636 = vsub.f32 0.0, %v6604
        %v6637 = vsub.f32 0.0, %v6605
        %v6638 = vsub.f32 0.0, %v6606
        %v6639 = vsub.f32 0.0, %v6607
        %v6640 = vsub.f32 0.0, %v6608
        %v6641 = vsub.f32 0.0, %v6609
        %v6642 = vsub.f32 0.0, %v6610
        %v6643 = vsub.f32 0.0, %v6611
        %v6644 = vsub.f32 0.0, %v6612
        %v6645 = vsub.f32 0.0, %v6613
        %v6646 = vsub.f32 0.0, %v6614
        %v6647 = vsub.f32 0.0, %v6615
        %v6648 = vsub.f32 0.0, %v6616
        %v6649 = vsub.f32 0.0, %v6617
        %v6650 = vsub.f32 0.0, %v6618
        %v6651 = vsub.f32 0.0, %v6619
        %v6652 = vsub.f32 0.0, %v6620
        %v6653 = vsub.f32 0.0, %v6621
        %v6654 = vsub.f32 0.0, %v6622
        %v6655 = vsub.f32 0.0, %v6623
        %v6656 = vsub.f32 0.0, %v6624
        %v6657 = vsub.f32 0.0, %v6625
        %v6658 = vsub.f32 0.0, %v6626
        %v6659 = vsub.f32 0.0, %v6627
        %v6660 = vsub.f32 0.0, %v6628
        %v6661 = vsub.f32 0.0, %v6629
        %v6662 = vsub.f32 0.0, %v6630
        %v6663 = vsub.f32 0.0, %v6631
        %v6664 = vsub.f32 0.0, %v6632
        %v6665 = vsub.f32 0.0, %v6633
        %v6666 = vsub.f32 0.0, %v6634
        %v6667 = vsub.f32 0.0, %v6635
        %v6668 = vmul.f32 %v6636, 1.442695
        %v6669 = vpow.pop %v6668
        %v6670 = vmul.f32 %v6637, 1.442695
        %v6671 = vpow.pop %v6670
        %v6672 = vmul.f32 %v6638, 1.442695
        %v6673 = vpow.pop %v6672
        %v6674 = vmul.f32 %v6639, 1.442695
        %v6675 = vpow.pop %v6674
        %v6676 = vmul.f32 %v6640, 1.442695
        %v6677 = vpow.pop %v6676
        %v6678 = vmul.f32 %v6641, 1.442695
        %v6679 = vpow.pop %v6678
        %v6680 = vmul.f32 %v6642, 1.442695
        %v6681 = vpow.pop %v6680
        %v6682 = vmul.f32 %v6643, 1.442695
        %v6683 = vpow.pop %v6682
        %v6684 = vmul.f32 %v6644, 1.442695
        %v6685 = vpow.pop %v6684
        %v6686 = vmul.f32 %v6645, 1.442695
        %v6687 = vpow.pop %v6686
        %v6688 = vmul.f32 %v6646, 1.442695
        %v6689 = vpow.pop %v6688
        %v6690 = vmul.f32 %v6647, 1.442695
        %v6691 = vpow.pop %v6690
        %v6692 = vmul.f32 %v6648, 1.442695
        %v6693 = vpow.pop %v6692
        %v6694 = vmul.f32 %v6649, 1.442695
        %v6695 = vpow.pop %v6694
        %v6696 = vmul.f32 %v6650, 1.442695
        %v6697 = vpow.pop %v6696
        %v6698 = vmul.f32 %v6651, 1.442695
        %v6699 = vpow.pop %v6698
        %v6700 = vmul.f32 %v6652, 1.442695
        %v6701 = vpow.pop %v6700
        %v6702 = vmul.f32 %v6653, 1.442695
        %v6703 = vpow.pop %v6702
        %v6704 = vmul.f32 %v6654, 1.442695
        %v6705 = vpow.pop %v6704
        %v6706 = vmul.f32 %v6655, 1.442695
        %v6707 = vpow.pop %v6706
        %v6708 = vmul.f32 %v6656, 1.442695
        %v6709 = vpow.pop %v6708
        %v6710 = vmul.f32 %v6657, 1.442695
        %v6711 = vpow.pop %v6710
        %v6712 = vmul.f32 %v6658, 1.442695
        %v6713 = vpow.pop %v6712
        %v6714 = vmul.f32 %v6659, 1.442695
        %v6715 = vpow.pop %v6714
        %v6716 = vmul.f32 %v6660, 1.442695
        %v6717 = vpow.pop %v6716
        %v6718 = vmul.f32 %v6661, 1.442695
        %v6719 = vpow.pop %v6718
        %v6720 = vmul.f32 %v6662, 1.442695
        %v6721 = vpow.pop %v6720
        %v6722 = vmul.f32 %v6663, 1.442695
        %v6723 = vpow.pop %v6722
        %v6724 = vmul.f32 %v6664, 1.442695
        %v6725 = vpow.pop %v6724
        %v6726 = vmul.f32 %v6665, 1.442695
        %v6727 = vpow.pop %v6726
        %v6728 = vmul.f32 %v6666, 1.442695
        %v6729 = vpow.pop %v6728
        %v6730 = vmul.f32 %v6667, 1.442695
        %v6731 = vpow.pop %v6730
        %v6732 = vadd.f32 %v6669, 1.0
        %v6733 = vadd.f32 %v6671, 1.0
        %v6734 = vadd.f32 %v6673, 1.0
        %v6735 = vadd.f32 %v6675, 1.0
        %v6736 = vadd.f32 %v6677, 1.0
        %v6737 = vadd.f32 %v6679, 1.0
        %v6738 = vadd.f32 %v6681, 1.0
        %v6739 = vadd.f32 %v6683, 1.0
        %v6740 = vadd.f32 %v6685, 1.0
        %v6741 = vadd.f32 %v6687, 1.0
        %v6742 = vadd.f32 %v6689, 1.0
        %v6743 = vadd.f32 %v6691, 1.0
        %v6744 = vadd.f32 %v6693, 1.0
        %v6745 = vadd.f32 %v6695, 1.0
        %v6746 = vadd.f32 %v6697, 1.0
        %v6747 = vadd.f32 %v6699, 1.0
        %v6748 = vadd.f32 %v6701, 1.0
        %v6749 = vadd.f32 %v6703, 1.0
        %v6750 = vadd.f32 %v6705, 1.0
        %v6751 = vadd.f32 %v6707, 1.0
        %v6752 = vadd.f32 %v6709, 1.0
        %v6753 = vadd.f32 %v6711, 1.0
        %v6754 = vadd.f32 %v6713, 1.0
        %v6755 = vadd.f32 %v6715, 1.0
        %v6756 = vadd.f32 %v6717, 1.0
        %v6757 = vadd.f32 %v6719, 1.0
        %v6758 = vadd.f32 %v6721, 1.0
        %v6759 = vadd.f32 %v6723, 1.0
        %v6760 = vadd.f32 %v6725, 1.0
        %v6761 = vadd.f32 %v6727, 1.0
        %v6762 = vadd.f32 %v6729, 1.0
        %v6763 = vadd.f32 %v6731, 1.0
        %v6764 = vrcp.pop %v6732
        %v6765 = vmul.f32 1.0, %v6764
        %v6766 = vrcp.pop %v6733
        %v6767 = vmul.f32 1.0, %v6766
        %v6768 = vrcp.pop %v6734
        %v6769 = vmul.f32 1.0, %v6768
        %v6770 = vrcp.pop %v6735
        %v6771 = vmul.f32 1.0, %v6770
        %v6772 = vrcp.pop %v6736
        %v6773 = vmul.f32 1.0, %v6772
        %v6774 = vrcp.pop %v6737
        %v6775 = vmul.f32 1.0, %v6774
        %v6776 = vrcp.pop %v6738
        %v6777 = vmul.f32 1.0, %v6776
        %v6778 = vrcp.pop %v6739
        %v6779 = vmul.f32 1.0, %v6778
        %v6780 = vrcp.pop %v6740
        %v6781 = vmul.f32 1.0, %v6780
        %v6782 = vrcp.pop %v6741
        %v6783 = vmul.f32 1.0, %v6782
        %v6784 = vrcp.pop %v6742
        %v6785 = vmul.f32 1.0, %v6784
        %v6786 = vrcp.pop %v6743
        %v6787 = vmul.f32 1.0, %v6786
        %v6788 = vrcp.pop %v6744
        %v6789 = vmul.f32 1.0, %v6788
        %v6790 = vrcp.pop %v6745
        %v6791 = vmul.f32 1.0, %v6790
        %v6792 = vrcp.pop %v6746
        %v6793 = vmul.f32 1.0, %v6792
        %v6794 = vrcp.pop %v6747
        %v6795 = vmul.f32 1.0, %v6794
        %v6796 = vrcp.pop %v6748
        %v6797 = vmul.f32 1.0, %v6796
        %v6798 = vrcp.pop %v6749
        %v6799 = vmul.f32 1.0, %v6798
        %v6800 = vrcp.pop %v6750
        %v6801 = vmul.f32 1.0, %v6800
        %v6802 = vrcp.pop %v6751
        %v6803 = vmul.f32 1.0, %v6802
        %v6804 = vrcp.pop %v6752
        %v6805 = vmul.f32 1.0, %v6804
        %v6806 = vrcp.pop %v6753
        %v6807 = vmul.f32 1.0, %v6806
        %v6808 = vrcp.pop %v6754
        %v6809 = vmul.f32 1.0, %v6808
        %v6810 = vrcp.pop %v6755
        %v6811 = vmul.f32 1.0, %v6810
        %v6812 = vrcp.pop %v6756
        %v6813 = vmul.f32 1.0, %v6812
        %v6814 = vrcp.pop %v6757
        %v6815 = vmul.f32 1.0, %v6814
        %v6816 = vrcp.pop %v6758
        %v6817 = vmul.f32 1.0, %v6816
        %v6818 = vrcp.pop %v6759
        %v6819 = vmul.f32 1.0, %v6818
        %v6820 = vrcp.pop %v6760
        %v6821 = vmul.f32 1.0, %v6820
        %v6822 = vrcp.pop %v6761
        %v6823 = vmul.f32 1.0, %v6822
        %v6824 = vrcp.pop %v6762
        %v6825 = vmul.f32 1.0, %v6824
        %v6826 = vrcp.pop %v6763
        %v6827 = vmul.f32 1.0, %v6826
        %v6828 = vmul.f32 %v6604, %v6765
        %v6829 = vmul.f32 %v6605, %v6767
        %v6830 = vmul.f32 %v6606, %v6769
        %v6831 = vmul.f32 %v6607, %v6771
        %v6832 = vmul.f32 %v6608, %v6773
        %v6833 = vmul.f32 %v6609, %v6775
        %v6834 = vmul.f32 %v6610, %v6777
        %v6835 = vmul.f32 %v6611, %v6779
        %v6836 = vmul.f32 %v6612, %v6781
        %v6837 = vmul.f32 %v6613, %v6783
        %v6838 = vmul.f32 %v6614, %v6785
        %v6839 = vmul.f32 %v6615, %v6787
        %v6840 = vmul.f32 %v6616, %v6789
        %v6841 = vmul.f32 %v6617, %v6791
        %v6842 = vmul.f32 %v6618, %v6793
        %v6843 = vmul.f32 %v6619, %v6795
        %v6844 = vmul.f32 %v6620, %v6797
        %v6845 = vmul.f32 %v6621, %v6799
        %v6846 = vmul.f32 %v6622, %v6801
        %v6847 = vmul.f32 %v6623, %v6803
        %v6848 = vmul.f32 %v6624, %v6805
        %v6849 = vmul.f32 %v6625, %v6807
        %v6850 = vmul.f32 %v6626, %v6809
        %v6851 = vmul.f32 %v6627, %v6811
        %v6852 = vmul.f32 %v6628, %v6813
        %v6853 = vmul.f32 %v6629, %v6815
        %v6854 = vmul.f32 %v6630, %v6817
        %v6855 = vmul.f32 %v6631, %v6819
        %v6856 = vmul.f32 %v6632, %v6821
        %v6857 = vmul.f32 %v6633, %v6823
        %v6858 = vmul.f32 %v6634, %v6825
        %v6859 = vmul.f32 %v6635, %v6827
        %v6860 = vld [vmem:[%s237] sm:$0xff]
        %v6861 = vld [vmem:[%s237 + $0x8] sm:$0xff]
        %v6862 = vld [vmem:[%s237 + $0x10] sm:$0xff]
        %v6863 = vld [vmem:[%s237 + $0x18] sm:$0xff]
        %v6864 = vld [vmem:[%s237 + $0x20] sm:$0xff]
        %v6865 = vld [vmem:[%s237 + $0x28] sm:$0xff]
        %v6866 = vld [vmem:[%s237 + $0x30] sm:$0xff]
        %v6867 = vld [vmem:[%s237 + $0x38] sm:$0xff]
        %v6868 = vld [vmem:[%s237 + $0x40] sm:$0xff]
        %v6869 = vld [vmem:[%s237 + $0x48] sm:$0xff]
        %v6870 = vld [vmem:[%s237 + $0x50] sm:$0xff]
        %v6871 = vld [vmem:[%s237 + $0x58] sm:$0xff]
        %v6872 = vld [vmem:[%s237 + $0x60] sm:$0xff]
        %v6873 = vld [vmem:[%s237 + $0x68] sm:$0xff]
        %v6874 = vld [vmem:[%s237 + $0x70] sm:$0xff]
        %v6875 = vld [vmem:[%s237 + $0x78] sm:$0xff]
        %v6876 = vld [vmem:[%s237 + $0x80] sm:$0xff]
        %v6877 = vld [vmem:[%s237 + $0x88] sm:$0xff]
        %v6878 = vld [vmem:[%s237 + $0x90] sm:$0xff]
        %v6879 = vld [vmem:[%s237 + $0x98] sm:$0xff]
        %v6880 = vld [vmem:[%s237 + $0xa0] sm:$0xff]
        %v6881 = vld [vmem:[%s237 + $0xa8] sm:$0xff]
        %v6882 = vld [vmem:[%s237 + $0xb0] sm:$0xff]
        %v6883 = vld [vmem:[%s237 + $0xb8] sm:$0xff]
        %v6884 = vld [vmem:[%s237 + $0xc0] sm:$0xff]
        %v6885 = vld [vmem:[%s237 + $0xc8] sm:$0xff]
        %v6886 = vld [vmem:[%s237 + $0xd0] sm:$0xff]
        %v6887 = vld [vmem:[%s237 + $0xd8] sm:$0xff]
        %v6888 = vld [vmem:[%s237 + $0xe0] sm:$0xff]
        %v6889 = vld [vmem:[%s237 + $0xe8] sm:$0xff]
        %v6890 = vld [vmem:[%s237 + $0xf0] sm:$0xff]
        %v6891 = vld [vmem:[%s237 + $0xf8] sm:$0xff]
        %v6892 = vadd.f32 %v6828, %v6860
        %v6893 = vadd.f32 %v6829, %v6861
        %v6894 = vadd.f32 %v6830, %v6862
        %v6895 = vadd.f32 %v6831, %v6863
        %v6896 = vadd.f32 %v6832, %v6864
        %v6897 = vadd.f32 %v6833, %v6865
        %v6898 = vadd.f32 %v6834, %v6866
        %v6899 = vadd.f32 %v6835, %v6867
        %v6900 = vadd.f32 %v6836, %v6868
        %v6901 = vadd.f32 %v6837, %v6869
        %v6902 = vadd.f32 %v6838, %v6870
        %v6903 = vadd.f32 %v6839, %v6871
        %v6904 = vadd.f32 %v6840, %v6872
        %v6905 = vadd.f32 %v6841, %v6873
        %v6906 = vadd.f32 %v6842, %v6874
        %v6907 = vadd.f32 %v6843, %v6875
        %v6908 = vadd.f32 %v6844, %v6876
        %v6909 = vadd.f32 %v6845, %v6877
        %v6910 = vadd.f32 %v6846, %v6878
        %v6911 = vadd.f32 %v6847, %v6879
        %v6912 = vadd.f32 %v6848, %v6880
        %v6913 = vadd.f32 %v6849, %v6881
        %v6914 = vadd.f32 %v6850, %v6882
        %v6915 = vadd.f32 %v6851, %v6883
        %v6916 = vadd.f32 %v6852, %v6884
        %v6917 = vadd.f32 %v6853, %v6885
        %v6918 = vadd.f32 %v6854, %v6886
        %v6919 = vadd.f32 %v6855, %v6887
        %v6920 = vadd.f32 %v6856, %v6888
        %v6921 = vadd.f32 %v6857, %v6889
        %v6922 = vadd.f32 %v6858, %v6890
        %v6923 = vadd.f32 %v6859, %v6891
        %6924 = vst [vmem:[%s271] sm:$0xff] %v6892
        %6925 = vst [vmem:[%s271 + $0x8] sm:$0xff] %v6893
        %6926 = vst [vmem:[%s271 + $0x10] sm:$0xff] %v6894
        %6927 = vst [vmem:[%s271 + $0x18] sm:$0xff] %v6895
        %6928 = vst [vmem:[%s271 + $0x20] sm:$0xff] %v6896
        %6929 = vst [vmem:[%s271 + $0x28] sm:$0xff] %v6897
        %6930 = vst [vmem:[%s271 + $0x30] sm:$0xff] %v6898
        %6931 = vst [vmem:[%s271 + $0x38] sm:$0xff] %v6899
        %6932 = vst [vmem:[%s271 + $0x40] sm:$0xff] %v6900
        %6933 = vst [vmem:[%s271 + $0x48] sm:$0xff] %v6901
        %6934 = vst [vmem:[%s271 + $0x50] sm:$0xff] %v6902
        %6935 = vst [vmem:[%s271 + $0x58] sm:$0xff] %v6903
        %6936 = vst [vmem:[%s271 + $0x60] sm:$0xff] %v6904
        %6937 = vst [vmem:[%s271 + $0x68] sm:$0xff] %v6905
        %6938 = vst [vmem:[%s271 + $0x70] sm:$0xff] %v6906
        %6939 = vst [vmem:[%s271 + $0x78] sm:$0xff] %v6907
        %6940 = vst [vmem:[%s271 + $0x80] sm:$0xff] %v6908
        %6941 = vst [vmem:[%s271 + $0x88] sm:$0xff] %v6909
        %6942 = vst [vmem:[%s271 + $0x90] sm:$0xff] %v6910
        %6943 = vst [vmem:[%s271 + $0x98] sm:$0xff] %v6911
        %6944 = vst [vmem:[%s271 + $0xa0] sm:$0xff] %v6912
        %6945 = vst [vmem:[%s271 + $0xa8] sm:$0xff] %v6913
        %6946 = vst [vmem:[%s271 + $0xb0] sm:$0xff] %v6914
        %6947 = vst [vmem:[%s271 + $0xb8] sm:$0xff] %v6915
        %6948 = vst [vmem:[%s271 + $0xc0] sm:$0xff] %v6916
        %6949 = vst [vmem:[%s271 + $0xc8] sm:$0xff] %v6917
        %6950 = vst [vmem:[%s271 + $0xd0] sm:$0xff] %v6918
        %6951 = vst [vmem:[%s271 + $0xd8] sm:$0xff] %v6919
        %6952 = vst [vmem:[%s271 + $0xe0] sm:$0xff] %v6920
        %6953 = vst [vmem:[%s271 + $0xe8] sm:$0xff] %v6921
        %6954 = vst [vmem:[%s271 + $0xf0] sm:$0xff] %v6922
        %6955 = vst [vmem:[%s271 + $0xf8] sm:$0xff] %v6923
        %s6956 = sand.u32 %s141, 1
        %s6957 = scalar_lea.sflag [#allocation7], %s6956
        %s6958 = sand.u32 %s141, 1
        %s6959 = smul.addr %s6958, 256
        %s6960 = scalar_lea.vmem [#allocation11], %s6959
        // Predicated region
        $region53: #{tpu_custom_call.1} parent=39 // pred_check
          %p6961 = pneg %p151
        $region54: #{tpu_custom_call.1} parent=39 // pred_check_branch
          %6963 = sbr.rel (%p6961) target = $region56
        $region55: #{tpu_custom_call.1} parent=39 // pred_region
          %s6965 = ssub.s32 4096, 4096
          %6966 = vsyncadd %s6957, %s6965
          %s6967 = smul.addr %s23, 32
          %s6968 = smul.addr %s6967, 128
          %s6969 = scalar_lea.hbm %s5, %s6968
          %s6970 = sshll.u32 %s6960, 4
          %s6971 = int_to_ptr.vmem [resolvable:$true] %s6970
          %6976 = dma.vmem_to_hbm [thread:$0]  %s6971, 4096, %s6969, %s6957, 128, 128, 8
        $region56: #{tpu_custom_call.1} parent=39 // pred_fallthru
          _
      $region40: #{tpu_custom_call.1} parent=5 // pred_fallthru
        _
      %p6977 = scmp.le.s32.totalorder 2, %s18
      // Predicated region
      $region57: #{tpu_custom_call.1} parent=5 // pred_check
        %p6978 = pneg %p6977
      $region58: #{tpu_custom_call.1} parent=5 // pred_check_branch
        %6980 = sbr.rel (%p6978) target = $region60
      $region59: #{tpu_custom_call.1} parent=5 // pred_region
        %s6981 = ssub.s32 %s18, 2
        // Predicated region
        $region61: #{tpu_custom_call.1} parent=59 // pred_check
          %p6982 = pneg %p157
        $region62: #{tpu_custom_call.1} parent=59 // pred_check_branch
          %6984 = sbr.rel (%p6982) target = $region64
        $region63: #{tpu_custom_call.1} parent=59 // pred_region
          %s6985 = sand.u32 %s142, 1
          %s6986 = scalar_lea.sflag [#allocation7], %s6985
          %s6987 = sand.u32 %s142, 1
          %s6988 = smul.addr %s6987, 256
          %s6989 = scalar_lea.vmem [#allocation11], %s6988
          %6990 = dma.done %s6986, 4096
        $region64: #{tpu_custom_call.1} parent=59 // pred_fallthru
          _
      $region60: #{tpu_custom_call.1} parent=5 // pred_fallthru
        _
    $region6: #{tpu_custom_call.1} parent=1 // loop_footer
      %s22 = sadd.s32 1, %s18
    $region7: #{tpu_custom_call.1} parent=1 // loop_footer_branch
      %17 = sbr.rel target = $region3
    $region8: #{tpu_custom_call.1} parent=1 // loop_exit
      _
    %6991 = vsyncpa [#allocation6], 1
    %s6992 = scalar_lea.sflag [#allocation6], 1
    %6993 = vsyncpa %s6992, 1
    %6994 = vsyncpa [#allocation9], 1
    %6995 = vsyncpa [#allocation7], 1
    %s6996 = scalar_lea.sflag [#allocation7], 1
    %6997 = vsyncpa %s6996, 1

</llo_original>
